<compile_context>
chip_gen: v7x
topology: tpu7x:2x2x1
jax: 0.10.0
libtpu: 0.0.40
codegen_flags: <defaults>
</compile_context>

<pallas_src>
import math
import functools

import jax
import jax.numpy as jnp
from jax.experimental import pallas as pl
from jax.experimental.pallas import tpu as pltpu


_LAYER_PARAM_ORDER = ("wqkv", "bqkv", "wo", "bo", "w1", "b1", "w2", "b2",
                      "g1", "be1", "g2", "be2")
_LN_EPS = 1e-5


# ---------------------------------------------------------------------------
# Fused kernel: PE + num_layers x TransformerEncoderLayer + mean-pool
# ---------------------------------------------------------------------------
def _fused_encoder_kernel(*refs, num_heads, num_layers, embed_scale):
    emb_ref, pe_ref = refs[0], refs[1]
    out_ref = refs[-1]
    layer_refs = refs[2:-1]                       # 12 refs per layer

    N, S, E = emb_ref.shape
    H = num_heads
    D = E // H
    R = N * S                                     # both towers flattened into rows
    att_scale = 1.0 / math.sqrt(D)

    # Prologue: embedding scale + positional encoding (dropout = eval identity).
    x = emb_ref[...] * embed_scale + pe_ref[...][None, :, :]         # (N, S, E)
    x = x.reshape(R, E)                                              # layout-free

    for l in range(num_layers):                   # static unroll (num_layers small)
        (wqkv_ref, bqkv_ref, wo_ref, bo_ref, w1_ref, b1_ref, w2_ref, b2_ref,
         g1_ref, be1_ref, g2_ref, be2_ref) = layer_refs[12 * l:12 * (l + 1)]

        wqkv = wqkv_ref[...]                      # (E, 3E) bf16
        wo = wo_ref[...]                          # (E, E)  bf16
        w1 = w1_ref[...]                          # (E, F)  bf16
        w2 = w2_ref[...]                          # (F, E)  bf16

        # ---- fused QKV projection: ONE bf16 MXU matmul, f32 accumulation ----
        qkv = jnp.dot(x.astype(wqkv.dtype), wqkv,
                      preferred_element_type=jnp.float32) + bqkv_ref[...]  # (R, 3E)
        qkv3 = qkv.reshape(N, S, 3 * E)

        # ---- multi-head self attention; heads merged by ONE W_o matmul ----
        head_outs = []
        for h in range(H):                        # static unroll over heads
            lo = h * D
            qh = qkv3[:, :, lo:lo + D].astype(jnp.bfloat16)            # (N, S, D)
            kh = qkv3[:, :, E + lo:E + lo + D].astype(jnp.bfloat16)
            vh = qkv3[:, :, 2 * E + lo:2 * E + lo + D].astype(jnp.bfloat16)
            s = jnp.einsum('bqd,bkd->bqk', qh, kh,
                           preferred_element_type=jnp.float32) * att_scale
            s = s - jnp.max(s, axis=-1, keepdims=True)
            p = jnp.exp(s)
            p = p * pl.reciprocal(jnp.sum(p, axis=-1, keepdims=True), approx=True)
            head_outs.append(
                jnp.einsum('bqk,bkd->bqd', p.astype(jnp.bfloat16), vh,
                           preferred_element_type=jnp.float32))        # (N, S, D)

        ctx = jnp.concatenate(head_outs, axis=-1).reshape(R, E)        # (R, E)
        attn = jnp.dot(ctx.astype(wo.dtype), wo,
                       preferred_element_type=jnp.float32) + bo_ref[...]

        # ---- residual + LayerNorm 1 (post-norm) ----
        y = x + attn
        mu = jnp.mean(y, axis=-1, keepdims=True)
        var = jnp.mean((y - mu) ** 2, axis=-1, keepdims=True)
        y = (y - mu) * jax.lax.rsqrt(var + _LN_EPS) * g1_ref[...] + be1_ref[...]

        # ---- feed-forward (ReLU); bf16 weights & operands, f32 accumulation ----
        h1 = jnp.dot(y.astype(w1.dtype), w1,
                     preferred_element_type=jnp.float32) + b1_ref[...]
        h1 = jnp.maximum(h1, 0.0)
        ff = jnp.dot(h1.astype(w2.dtype), w2,
                     preferred_element_type=jnp.float32) + b2_ref[...]

        # ---- residual + LayerNorm 2 ----
        z = y + ff
        mu2 = jnp.mean(z, axis=-1, keepdims=True)
        var2 = jnp.mean((z - mu2) ** 2, axis=-1, keepdims=True)
        x = (z - mu2) * jax.lax.rsqrt(var2 + _LN_EPS) * g2_ref[...] + be2_ref[...]

    # Epilogue: mean over the sequence axis (== PyTorch's .mean(dim=0)).
    out_ref[...] = jnp.mean(x.reshape(N, S, E), axis=1)                # (N, E)


# ---------------------------------------------------------------------------
# Wrappers
# ---------------------------------------------------------------------------
def _full_spec(shape):
    nd = len(shape)
    return pl.BlockSpec(shape, lambda i, _nd=nd: (0,) * _nd)


def fused_tower_encode(emb, pe, layers, *, num_heads):
    """emb: (N, S, E) gathered (unscaled) embeddings. Returns (N, E) pooled."""
    N, S, E = emb.shape
    assert E % num_heads == 0, "embed_dim must be divisible by num_heads"
    num_layers = len(layers)

    weight_args = []
    for lyr in layers:
        weight_args.extend(lyr[name] for name in _LAYER_PARAM_ORDER)

    operands = (emb, pe, *weight_args)
    in_specs = [_full_spec(a.shape) for a in operands]

    # grid=(1,): everything (activations + ~1 MiB of weights) is resident in
    # VMEM for the whole call; no pipeline steps, weights DMA'd exactly once.
    pooled = pl.pallas_call(
        functools.partial(_fused_encoder_kernel, num_heads=num_heads,
                          num_layers=num_layers, embed_scale=math.sqrt(E)),
        out_shape=jax.ShapeDtypeStruct((N, E), jnp.float32),
        grid=(1,),
        in_specs=in_specs,
        out_specs=pl.BlockSpec((N, E), lambda i: (0, 0)),
        compiler_params=pltpu.CompilerParams(
            dimension_semantics=("arbitrary",),
            vmem_limit_bytes=32 * 1024 * 1024),   # safe on v5e/v6e/v7x alike
    )(*operands)
    return pooled


def sinusoidal_pe(seq_len, d_model):
    pos = jnp.arange(seq_len, dtype=jnp.float32)[:, None]
    div = jnp.exp(jnp.arange(0, d_model, 2, dtype=jnp.float32)
                  * (-math.log(10000.0) / d_model))
    pe = jnp.zeros((seq_len, d_model), jnp.float32)
    pe = pe.at[:, 0::2].set(jnp.sin(pos * div))
    pe = pe.at[:, 1::2].set(jnp.cos(pos * div))
    return pe


def transformer_recommender(user_sequence, article_sequence, params, *, num_heads):
    E = params["cat_emb"].shape[1]
    assert E % 2 == 0 and E % num_heads == 0

    # Embedding gathers stay in XLA (two tiny gathers); scale + PE + all
    # encoder layers + pooling are fused into the single Pallas kernel.
    ue = jnp.take(params["cat_emb"], user_sequence, axis=0)      # (B, Su, E)
    ae = jnp.take(params["tag_emb"], article_sequence, axis=0)   # (B, Sa, E)
    B, Su = ue.shape[:2]
    Sa = ae.shape[1]
    layers = params["layers"]

    if Su == Sa:
        # Both towers + all layers in ONE pallas_call (both towers start from
        # the same deepcopied encoder_layer weights, as in the PyTorch module).
        emb = jnp.concatenate([ue, ae], axis=0)                  # (2B, S, E)
        pooled = fused_tower_encode(emb, sinusoidal_pe(Su, E), layers,
                                    num_heads=num_heads)
        um, am = pooled[:B], pooled[B:]
    else:
        um = fused_tower_encode(ue, sinusoidal_pe(Su, E), layers,
                                num_heads=num_heads)
        am = fused_tower_encode(ae, sinusoidal_pe(Sa, E), layers,
                                num_heads=num_heads)

    # fc(concat([u, a])) + sigmoid (~1 KFLOP): cheaper in plain XLA than a
    # dedicated kernel; fc weight pre-split so the concat never materializes.
    logits = um @ params["fc_wu"] + am @ params["fc_wa"] + params["fc_b"]
    return jax.nn.sigmoid(logits)


# ---------------------------------------------------------------------------
# Deterministic synthetic parameter init (bf16 casts / QKV fusion done ONCE)
# ---------------------------------------------------------------------------
def init_params(key, num_categories, num_article_tags, embed_dim, dim_ff, num_layers):
    E, F = embed_dim, dim_ff
    ks = jax.random.split(key, 10)
    std = 0.05

    wq = std * jax.random.normal(ks[0], (E, E), jnp.float32)
    wk = std * jax.random.normal(ks[1], (E, E), jnp.float32)
    wv = std * jax.random.normal(ks[2], (E, E), jnp.float32)
    wo = std * jax.random.normal(ks[3], (E, E), jnp.float32)
    w1 = std * jax.random.normal(ks[4], (E, F), jnp.float32)
    w2 = std * jax.random.normal(ks[5], (F, E), jnp.float32)

    layer = {
        # QKV fused into one (E, 3E) weight; all MXU weights pre-cast to bf16
        # here (one-time), never on the forward path.
        "wqkv": jnp.concatenate([wq, wk, wv], axis=1).astype(jnp.bfloat16),
        "bqkv": jnp.zeros((1, 3 * E), jnp.float32),
        "wo": wo.astype(jnp.bfloat16),
        "bo": jnp.zeros((1, E), jnp.float32),
        "w1": w1.astype(jnp.bfloat16),
        "b1": jnp.zeros((1, F), jnp.float32),
        "w2": w2.astype(jnp.bfloat16),
        "b2": jnp.zeros((1, E), jnp.float32),
        "g1": jnp.ones((1, E), jnp.float32),
        "be1": jnp.zeros((1, E), jnp.float32),
        "g2": jnp.ones((1, E), jnp.float32),
        "be2": jnp.zeros((1, E), jnp.float32),
    }

    params = {
        "cat_emb": jax.random.normal(ks[6], (num_categories, E), jnp.float32),
        "tag_emb": jax.random.normal(ks[7], (num_article_tags, E), jnp.float32),
        # fc: Linear(2E -> 1); weight split so concat([u, a]) @ W.T == u@wu + a@wa
        "fc_wu": 0.1 * jax.random.normal(ks[8], (E, 1), jnp.float32),
        "fc_wa": 0.1 * jax.random.normal(ks[9], (E, 1), jnp.float32),
        "fc_b": jnp.zeros((1, 1), jnp.float32),
        # Every layer starts with identical weights (PyTorch deepcopy-at-init),
        # but the kernel consumes a weight set per layer, so diverged / trained
        # per-layer checkpoints would also be handled correctly.
        "layers": [dict(layer) for _ in range(num_layers)],
    }
    return params


# ---------------------------------------------------------------------------
if __name__ == "__main__":
    NUM_CATEGORIES = 50
    NUM_ARTICLE_TAGS = 40
    EMBED_DIM = 32
    NUM_HEADS = 4
    NUM_LAYERS = 2
    DIM_FF = 2048          # nn.TransformerEncoderLayer default dim_feedforward
    B, S_USER, S_ARTICLE = 2, 8, 8

    root = jax.random.PRNGKey(0)
    k_params, k_u, k_a = jax.random.split(root, 3)

    params = init_params(k_params, NUM_CATEGORIES, NUM_ARTICLE_TAGS,
                         EMBED_DIM, DIM_FF, NUM_LAYERS)

    user_sequence = jax.random.randint(k_u, (B, S_USER), 0, NUM_CATEGORIES, jnp.int32)
    article_sequence = jax.random.randint(k_a, (B, S_ARTICLE), 0, NUM_ARTICLE_TAGS, jnp.int32)

    fwd = jax.jit(functools.partial(transformer_recommender, num_heads=NUM_HEADS))
    score = fwd(user_sequence, article_sequence, params)
    score = jax.block_until_ready(score)

    assert score.shape == (B, 1)
    assert bool(jnp.all(jnp.isfinite(score)))
    assert bool(jnp.all((score >= 0.0) & (score <= 1.0)))
    print("KERNEL_OK")
</pallas_src>

<mosaic_0001>
module attributes {stable_mosaic.version = 11 : i64} {
  func.func @_fused_encoder_kernel(%arg0: i32, %arg1: memref<4x8x32xf32, #tpu.memory_space<vmem>>, %arg2: memref<8x32xf32, #tpu.memory_space<vmem>>, %arg3: memref<32x96xbf16, #tpu.memory_space<vmem>>, %arg4: memref<1x96xf32, #tpu.memory_space<vmem>>, %arg5: memref<32x32xbf16, #tpu.memory_space<vmem>>, %arg6: memref<1x32xf32, #tpu.memory_space<vmem>>, %arg7: memref<32x2048xbf16, #tpu.memory_space<vmem>>, %arg8: memref<1x2048xf32, #tpu.memory_space<vmem>>, %arg9: memref<2048x32xbf16, #tpu.memory_space<vmem>>, %arg10: memref<1x32xf32, #tpu.memory_space<vmem>>, %arg11: memref<1x32xf32, #tpu.memory_space<vmem>>, %arg12: memref<1x32xf32, #tpu.memory_space<vmem>>, %arg13: memref<1x32xf32, #tpu.memory_space<vmem>>, %arg14: memref<1x32xf32, #tpu.memory_space<vmem>>, %arg15: memref<32x96xbf16, #tpu.memory_space<vmem>>, %arg16: memref<1x96xf32, #tpu.memory_space<vmem>>, %arg17: memref<32x32xbf16, #tpu.memory_space<vmem>>, %arg18: memref<1x32xf32, #tpu.memory_space<vmem>>, %arg19: memref<32x2048xbf16, #tpu.memory_space<vmem>>, %arg20: memref<1x2048xf32, #tpu.memory_space<vmem>>, %arg21: memref<2048x32xbf16, #tpu.memory_space<vmem>>, %arg22: memref<1x32xf32, #tpu.memory_space<vmem>>, %arg23: memref<1x32xf32, #tpu.memory_space<vmem>>, %arg24: memref<1x32xf32, #tpu.memory_space<vmem>>, %arg25: memref<1x32xf32, #tpu.memory_space<vmem>>, %arg26: memref<1x32xf32, #tpu.memory_space<vmem>>, %arg27: memref<4x32xf32, #tpu.memory_space<vmem>>) attributes {dimension_semantics = [#tpu.dimension_semantics<arbitrary>], iteration_bounds = array<i64: 1>, scalar_prefetch = 0 : i64, scratch_operands = 0 : i64, tpu.core_type = #tpu.core_type<tc>, window_params = [{pipeline_mode = #tpu.pipeline_mode<synchronous>, transform_indices = @transform_0, window_bounds = array<i64: 4, 8, 32>}, {pipeline_mode = #tpu.pipeline_mode<synchronous>, transform_indices = @transform_1, window_bounds = array<i64: 8, 32>}, {pipeline_mode = #tpu.pipeline_mode<synchronous>, transform_indices = @transform_2, window_bounds = array<i64: 32, 96>}, {pipeline_mode = #tpu.pipeline_mode<synchronous>, transform_indices = @transform_3, window_bounds = array<i64: 1, 96>}, {pipeline_mode = #tpu.pipeline_mode<synchronous>, transform_indices = @transform_4, window_bounds = array<i64: 32, 32>}, {pipeline_mode = #tpu.pipeline_mode<synchronous>, transform_indices = @transform_5, window_bounds = array<i64: 1, 32>}, {pipeline_mode = #tpu.pipeline_mode<synchronous>, transform_indices = @transform_6, window_bounds = array<i64: 32, 2048>}, {pipeline_mode = #tpu.pipeline_mode<synchronous>, transform_indices = @transform_7, window_bounds = array<i64: 1, 2048>}, {pipeline_mode = #tpu.pipeline_mode<synchronous>, transform_indices = @transform_8, window_bounds = array<i64: 2048, 32>}, {pipeline_mode = #tpu.pipeline_mode<synchronous>, transform_indices = @transform_9, window_bounds = array<i64: 1, 32>}, {pipeline_mode = #tpu.pipeline_mode<synchronous>, transform_indices = @transform_10, window_bounds = array<i64: 1, 32>}, {pipeline_mode = #tpu.pipeline_mode<synchronous>, transform_indices = @transform_11, window_bounds = array<i64: 1, 32>}, {pipeline_mode = #tpu.pipeline_mode<synchronous>, transform_indices = @transform_12, window_bounds = array<i64: 1, 32>}, {pipeline_mode = #tpu.pipeline_mode<synchronous>, transform_indices = @transform_13, window_bounds = array<i64: 1, 32>}, {pipeline_mode = #tpu.pipeline_mode<synchronous>, transform_indices = @transform_14, window_bounds = array<i64: 32, 96>}, {pipeline_mode = #tpu.pipeline_mode<synchronous>, transform_indices = @transform_15, window_bounds = array<i64: 1, 96>}, {pipeline_mode = #tpu.pipeline_mode<synchronous>, transform_indices = @transform_16, window_bounds = array<i64: 32, 32>}, {pipeline_mode = #tpu.pipeline_mode<synchronous>, transform_indices = @transform_17, window_bounds = array<i64: 1, 32>}, {pipeline_mode = #tpu.pipeline_mode<synchronous>, transform_indices = @transform_18, window_bounds = array<i64: 32, 2048>}, {pipeline_mode = #tpu.pipeline_mode<synchronous>, transform_indices = @transform_19, window_bounds = array<i64: 1, 2048>}, {pipeline_mode = #tpu.pipeline_mode<synchronous>, transform_indices = @transform_20, window_bounds = array<i64: 2048, 32>}, {pipeline_mode = #tpu.pipeline_mode<synchronous>, transform_indices = @transform_21, window_bounds = array<i64: 1, 32>}, {pipeline_mode = #tpu.pipeline_mode<synchronous>, transform_indices = @transform_22, window_bounds = array<i64: 1, 32>}, {pipeline_mode = #tpu.pipeline_mode<synchronous>, transform_indices = @transform_23, window_bounds = array<i64: 1, 32>}, {pipeline_mode = #tpu.pipeline_mode<synchronous>, transform_indices = @transform_24, window_bounds = array<i64: 1, 32>}, {pipeline_mode = #tpu.pipeline_mode<synchronous>, transform_indices = @transform_25, window_bounds = array<i64: 1, 32>}, {pipeline_mode = #tpu.pipeline_mode<synchronous>, transform_indices = @transform_26, window_bounds = array<i64: 4, 32>}]} {
    %c0 = arith.constant 0 : index
    %c0_0 = arith.constant 0 : index
    %c0_1 = arith.constant 0 : index
    %0 = vector.load %arg1[%c0, %c0_0, %c0_1] : memref<4x8x32xf32, #tpu.memory_space<vmem>>, vector<4x8x32xf32>
    %cst = arith.constant 5.65685415 : f32
    %1 = vector.broadcast %cst : f32 to vector<4x8x32xf32>
    %2 = arith.mulf %0, %1 : vector<4x8x32xf32>
    %c0_2 = arith.constant 0 : index
    %c0_3 = arith.constant 0 : index
    %3 = vector.load %arg2[%c0_2, %c0_3] : memref<8x32xf32, #tpu.memory_space<vmem>>, vector<8x32xf32>
    %4 = vector.shape_cast %3 : vector<8x32xf32> to vector<1x8x32xf32>
    %5 = vector.broadcast %4 : vector<1x8x32xf32> to vector<4x8x32xf32>
    %6 = arith.addf %2, %5 : vector<4x8x32xf32>
    %7 = vector.shape_cast %6 : vector<4x8x32xf32> to vector<32x32xf32>
    %c0_4 = arith.constant 0 : index
    %c0_5 = arith.constant 0 : index
    %8 = vector.load %arg3[%c0_4, %c0_5] : memref<32x96xbf16, #tpu.memory_space<vmem>>, vector<32x96xbf16>
    %c0_6 = arith.constant 0 : index
    %c0_7 = arith.constant 0 : index
    %9 = vector.load %arg5[%c0_6, %c0_7] : memref<32x32xbf16, #tpu.memory_space<vmem>>, vector<32x32xbf16>
    %c0_8 = arith.constant 0 : index
    %c0_9 = arith.constant 0 : index
    %10 = vector.load %arg7[%c0_8, %c0_9] : memref<32x2048xbf16, #tpu.memory_space<vmem>>, vector<32x2048xbf16>
    %c0_10 = arith.constant 0 : index
    %c0_11 = arith.constant 0 : index
    %11 = vector.load %arg9[%c0_10, %c0_11] : memref<2048x32xbf16, #tpu.memory_space<vmem>>, vector<2048x32xbf16>
    %12 = arith.truncf %7 : vector<32x32xf32> to vector<32x32xbf16>
    %cst_12 = arith.constant dense<0.000000e+00> : vector<32x96xf32>
    %13 = tpu.matmul %12, %8, %cst_12 {dimension_numbers = #tpu.dot_dimension_numbers<[1], [0], [0], [1], [0, 0, 1, 1], [], []>} : vector<32x32xbf16>, vector<32x96xbf16>, vector<32x96xf32> -> vector<32x96xf32>
    %c0_13 = arith.constant 0 : index
    %c0_14 = arith.constant 0 : index
    %14 = vector.load %arg4[%c0_13, %c0_14] : memref<1x96xf32, #tpu.memory_space<vmem>>, vector<1x96xf32>
    %15 = vector.broadcast %14 : vector<1x96xf32> to vector<32x96xf32>
    %16 = arith.addf %13, %15 : vector<32x96xf32>
    %17 = vector.shape_cast %16 : vector<32x96xf32> to vector<4x8x96xf32>
    %18 = vector.extract_strided_slice %17 {offsets = [0, 0, 0], sizes = [4, 8, 8], strides = [1, 1, 1]} : vector<4x8x96xf32> to vector<4x8x8xf32>
    %19 = arith.truncf %18 : vector<4x8x8xf32> to vector<4x8x8xbf16>
    %20 = vector.extract_strided_slice %17 {offsets = [0, 0, 32], sizes = [4, 8, 8], strides = [1, 1, 1]} : vector<4x8x96xf32> to vector<4x8x8xf32>
    %21 = arith.truncf %20 : vector<4x8x8xf32> to vector<4x8x8xbf16>
    %22 = vector.extract_strided_slice %17 {offsets = [0, 0, 64], sizes = [4, 8, 8], strides = [1, 1, 1]} : vector<4x8x96xf32> to vector<4x8x8xf32>
    %23 = arith.truncf %22 : vector<4x8x8xf32> to vector<4x8x8xbf16>
    "tpu.trace_start"() <{level = 10 : i32, message = "bqd,bkd->bqk"}> : () -> ()
    %cst_15 = arith.constant dense<0.000000e+00> : vector<4x8x8xf32>
    %24 = tpu.matmul %19, %21, %cst_15 {dimension_numbers = #tpu.dot_dimension_numbers<[2], [2], [1], [1], [0, 0, 0, 1, 1, 1], [0], [0]>} : vector<4x8x8xbf16>, vector<4x8x8xbf16>, vector<4x8x8xf32> -> vector<4x8x8xf32>
    "tpu.trace_stop"() : () -> ()
    %cst_16 = arith.constant 0.353553385 : f32
    %25 = vector.broadcast %cst_16 : f32 to vector<4x8x8xf32>
    %26 = arith.mulf %24, %25 : vector<4x8x8xf32>
    %cst_17 = arith.constant dense<0xFF800000> : vector<4x8xf32>
    %27 = vector.multi_reduction <maximumf>, %26, %cst_17 [2] : vector<4x8x8xf32> to vector<4x8xf32>
    %28 = vector.shape_cast %27 : vector<4x8xf32> to vector<4x8x1xf32>
    %29 = vector.broadcast %28 : vector<4x8x1xf32> to vector<4x8x8xf32>
    %30 = arith.subf %26, %29 : vector<4x8x8xf32>
    %31 = math.exp %30 : vector<4x8x8xf32>
    %cst_18 = arith.constant dense<0.000000e+00> : vector<4x8xf32>
    %32 = vector.multi_reduction <add>, %31, %cst_18 [2] : vector<4x8x8xf32> to vector<4x8xf32>
    %33 = vector.shape_cast %32 : vector<4x8xf32> to vector<4x8x1xf32>
    %34 = tpu.reciprocal %33 {approx = true} : vector<4x8x1xf32> -> vector<4x8x1xf32>
    %35 = vector.broadcast %34 : vector<4x8x1xf32> to vector<4x8x8xf32>
    %36 = arith.mulf %31, %35 : vector<4x8x8xf32>
    %37 = arith.truncf %36 : vector<4x8x8xf32> to vector<4x8x8xbf16>
    "tpu.trace_start"() <{level = 10 : i32, message = "bqk,bkd->bqd"}> : () -> ()
    %cst_19 = arith.constant dense<0.000000e+00> : vector<4x8x8xf32>
    %38 = tpu.matmul %37, %23, %cst_19 {dimension_numbers = #tpu.dot_dimension_numbers<[2], [1], [1], [2], [0, 0, 0, 1, 1, 2], [0], [0]>} : vector<4x8x8xbf16>, vector<4x8x8xbf16>, vector<4x8x8xf32> -> vector<4x8x8xf32>
    "tpu.trace_stop"() : () -> ()
    %39 = vector.extract_strided_slice %17 {offsets = [0, 0, 8], sizes = [4, 8, 8], strides = [1, 1, 1]} : vector<4x8x96xf32> to vector<4x8x8xf32>
    %40 = arith.truncf %39 : vector<4x8x8xf32> to vector<4x8x8xbf16>
    %41 = vector.extract_strided_slice %17 {offsets = [0, 0, 40], sizes = [4, 8, 8], strides = [1, 1, 1]} : vector<4x8x96xf32> to vector<4x8x8xf32>
    %42 = arith.truncf %41 : vector<4x8x8xf32> to vector<4x8x8xbf16>
    %43 = vector.extract_strided_slice %17 {offsets = [0, 0, 72], sizes = [4, 8, 8], strides = [1, 1, 1]} : vector<4x8x96xf32> to vector<4x8x8xf32>
    %44 = arith.truncf %43 : vector<4x8x8xf32> to vector<4x8x8xbf16>
    "tpu.trace_start"() <{level = 10 : i32, message = "bqd,bkd->bqk"}> : () -> ()
    %cst_20 = arith.constant dense<0.000000e+00> : vector<4x8x8xf32>
    %45 = tpu.matmul %40, %42, %cst_20 {dimension_numbers = #tpu.dot_dimension_numbers<[2], [2], [1], [1], [0, 0, 0, 1, 1, 1], [0], [0]>} : vector<4x8x8xbf16>, vector<4x8x8xbf16>, vector<4x8x8xf32> -> vector<4x8x8xf32>
    "tpu.trace_stop"() : () -> ()
    %cst_21 = arith.constant 0.353553385 : f32
    %46 = vector.broadcast %cst_21 : f32 to vector<4x8x8xf32>
    %47 = arith.mulf %45, %46 : vector<4x8x8xf32>
    %cst_22 = arith.constant dense<0xFF800000> : vector<4x8xf32>
    %48 = vector.multi_reduction <maximumf>, %47, %cst_22 [2] : vector<4x8x8xf32> to vector<4x8xf32>
    %49 = vector.shape_cast %48 : vector<4x8xf32> to vector<4x8x1xf32>
    %50 = vector.broadcast %49 : vector<4x8x1xf32> to vector<4x8x8xf32>
    %51 = arith.subf %47, %50 : vector<4x8x8xf32>
    %52 = math.exp %51 : vector<4x8x8xf32>
    %cst_23 = arith.constant dense<0.000000e+00> : vector<4x8xf32>
    %53 = vector.multi_reduction <add>, %52, %cst_23 [2] : vector<4x8x8xf32> to vector<4x8xf32>
    %54 = vector.shape_cast %53 : vector<4x8xf32> to vector<4x8x1xf32>
    %55 = tpu.reciprocal %54 {approx = true} : vector<4x8x1xf32> -> vector<4x8x1xf32>
    %56 = vector.broadcast %55 : vector<4x8x1xf32> to vector<4x8x8xf32>
    %57 = arith.mulf %52, %56 : vector<4x8x8xf32>
    %58 = arith.truncf %57 : vector<4x8x8xf32> to vector<4x8x8xbf16>
    "tpu.trace_start"() <{level = 10 : i32, message = "bqk,bkd->bqd"}> : () -> ()
    %cst_24 = arith.constant dense<0.000000e+00> : vector<4x8x8xf32>
    %59 = tpu.matmul %58, %44, %cst_24 {dimension_numbers = #tpu.dot_dimension_numbers<[2], [1], [1], [2], [0, 0, 0, 1, 1, 2], [0], [0]>} : vector<4x8x8xbf16>, vector<4x8x8xbf16>, vector<4x8x8xf32> -> vector<4x8x8xf32>
    "tpu.trace_stop"() : () -> ()
    %60 = vector.extract_strided_slice %17 {offsets = [0, 0, 16], sizes = [4, 8, 8], strides = [1, 1, 1]} : vector<4x8x96xf32> to vector<4x8x8xf32>
    %61 = arith.truncf %60 : vector<4x8x8xf32> to vector<4x8x8xbf16>
    %62 = vector.extract_strided_slice %17 {offsets = [0, 0, 48], sizes = [4, 8, 8], strides = [1, 1, 1]} : vector<4x8x96xf32> to vector<4x8x8xf32>
    %63 = arith.truncf %62 : vector<4x8x8xf32> to vector<4x8x8xbf16>
    %64 = vector.extract_strided_slice %17 {offsets = [0, 0, 80], sizes = [4, 8, 8], strides = [1, 1, 1]} : vector<4x8x96xf32> to vector<4x8x8xf32>
    %65 = arith.truncf %64 : vector<4x8x8xf32> to vector<4x8x8xbf16>
    "tpu.trace_start"() <{level = 10 : i32, message = "bqd,bkd->bqk"}> : () -> ()
    %cst_25 = arith.constant dense<0.000000e+00> : vector<4x8x8xf32>
    %66 = tpu.matmul %61, %63, %cst_25 {dimension_numbers = #tpu.dot_dimension_numbers<[2], [2], [1], [1], [0, 0, 0, 1, 1, 1], [0], [0]>} : vector<4x8x8xbf16>, vector<4x8x8xbf16>, vector<4x8x8xf32> -> vector<4x8x8xf32>
    "tpu.trace_stop"() : () -> ()
    %cst_26 = arith.constant 0.353553385 : f32
    %67 = vector.broadcast %cst_26 : f32 to vector<4x8x8xf32>
    %68 = arith.mulf %66, %67 : vector<4x8x8xf32>
    %cst_27 = arith.constant dense<0xFF800000> : vector<4x8xf32>
    %69 = vector.multi_reduction <maximumf>, %68, %cst_27 [2] : vector<4x8x8xf32> to vector<4x8xf32>
    %70 = vector.shape_cast %69 : vector<4x8xf32> to vector<4x8x1xf32>
    %71 = vector.broadcast %70 : vector<4x8x1xf32> to vector<4x8x8xf32>
    %72 = arith.subf %68, %71 : vector<4x8x8xf32>
    %73 = math.exp %72 : vector<4x8x8xf32>
    %cst_28 = arith.constant dense<0.000000e+00> : vector<4x8xf32>
    %74 = vector.multi_reduction <add>, %73, %cst_28 [2] : vector<4x8x8xf32> to vector<4x8xf32>
    %75 = vector.shape_cast %74 : vector<4x8xf32> to vector<4x8x1xf32>
    %76 = tpu.reciprocal %75 {approx = true} : vector<4x8x1xf32> -> vector<4x8x1xf32>
    %77 = vector.broadcast %76 : vector<4x8x1xf32> to vector<4x8x8xf32>
    %78 = arith.mulf %73, %77 : vector<4x8x8xf32>
    %79 = arith.truncf %78 : vector<4x8x8xf32> to vector<4x8x8xbf16>
    "tpu.trace_start"() <{level = 10 : i32, message = "bqk,bkd->bqd"}> : () -> ()
    %cst_29 = arith.constant dense<0.000000e+00> : vector<4x8x8xf32>
    %80 = tpu.matmul %79, %65, %cst_29 {dimension_numbers = #tpu.dot_dimension_numbers<[2], [1], [1], [2], [0, 0, 0, 1, 1, 2], [0], [0]>} : vector<4x8x8xbf16>, vector<4x8x8xbf16>, vector<4x8x8xf32> -> vector<4x8x8xf32>
    "tpu.trace_stop"() : () -> ()
    %81 = vector.extract_strided_slice %17 {offsets = [0, 0, 24], sizes = [4, 8, 8], strides = [1, 1, 1]} : vector<4x8x96xf32> to vector<4x8x8xf32>
    %82 = arith.truncf %81 : vector<4x8x8xf32> to vector<4x8x8xbf16>
    %83 = vector.extract_strided_slice %17 {offsets = [0, 0, 56], sizes = [4, 8, 8], strides = [1, 1, 1]} : vector<4x8x96xf32> to vector<4x8x8xf32>
    %84 = arith.truncf %83 : vector<4x8x8xf32> to vector<4x8x8xbf16>
    %85 = vector.extract_strided_slice %17 {offsets = [0, 0, 88], sizes = [4, 8, 8], strides = [1, 1, 1]} : vector<4x8x96xf32> to vector<4x8x8xf32>
    %86 = arith.truncf %85 : vector<4x8x8xf32> to vector<4x8x8xbf16>
    "tpu.trace_start"() <{level = 10 : i32, message = "bqd,bkd->bqk"}> : () -> ()
    %cst_30 = arith.constant dense<0.000000e+00> : vector<4x8x8xf32>
    %87 = tpu.matmul %82, %84, %cst_30 {dimension_numbers = #tpu.dot_dimension_numbers<[2], [2], [1], [1], [0, 0, 0, 1, 1, 1], [0], [0]>} : vector<4x8x8xbf16>, vector<4x8x8xbf16>, vector<4x8x8xf32> -> vector<4x8x8xf32>
    "tpu.trace_stop"() : () -> ()
    %cst_31 = arith.constant 0.353553385 : f32
    %88 = vector.broadcast %cst_31 : f32 to vector<4x8x8xf32>
    %89 = arith.mulf %87, %88 : vector<4x8x8xf32>
    %cst_32 = arith.constant dense<0xFF800000> : vector<4x8xf32>
    %90 = vector.multi_reduction <maximumf>, %89, %cst_32 [2] : vector<4x8x8xf32> to vector<4x8xf32>
    %91 = vector.shape_cast %90 : vector<4x8xf32> to vector<4x8x1xf32>
    %92 = vector.broadcast %91 : vector<4x8x1xf32> to vector<4x8x8xf32>
    %93 = arith.subf %89, %92 : vector<4x8x8xf32>
    %94 = math.exp %93 : vector<4x8x8xf32>
    %cst_33 = arith.constant dense<0.000000e+00> : vector<4x8xf32>
    %95 = vector.multi_reduction <add>, %94, %cst_33 [2] : vector<4x8x8xf32> to vector<4x8xf32>
    %96 = vector.shape_cast %95 : vector<4x8xf32> to vector<4x8x1xf32>
    %97 = tpu.reciprocal %96 {approx = true} : vector<4x8x1xf32> -> vector<4x8x1xf32>
    %98 = vector.broadcast %97 : vector<4x8x1xf32> to vector<4x8x8xf32>
    %99 = arith.mulf %94, %98 : vector<4x8x8xf32>
    %100 = arith.truncf %99 : vector<4x8x8xf32> to vector<4x8x8xbf16>
    "tpu.trace_start"() <{level = 10 : i32, message = "bqk,bkd->bqd"}> : () -> ()
    %cst_34 = arith.constant dense<0.000000e+00> : vector<4x8x8xf32>
    %101 = tpu.matmul %100, %86, %cst_34 {dimension_numbers = #tpu.dot_dimension_numbers<[2], [1], [1], [2], [0, 0, 0, 1, 1, 2], [0], [0]>} : vector<4x8x8xbf16>, vector<4x8x8xbf16>, vector<4x8x8xf32> -> vector<4x8x8xf32>
    "tpu.trace_stop"() : () -> ()
    %102 = tpu.concatenate %38, %59, %80, %101 in 2 : vector<4x8x8xf32>, vector<4x8x8xf32>, vector<4x8x8xf32>, vector<4x8x8xf32> -> vector<4x8x32xf32>
    %103 = vector.shape_cast %102 : vector<4x8x32xf32> to vector<32x32xf32>
    %104 = arith.truncf %103 : vector<32x32xf32> to vector<32x32xbf16>
    %cst_35 = arith.constant dense<0.000000e+00> : vector<32x32xf32>
    %105 = tpu.matmul %104, %9, %cst_35 {dimension_numbers = #tpu.dot_dimension_numbers<[1], [0], [0], [1], [0, 0, 1, 1], [], []>} : vector<32x32xbf16>, vector<32x32xbf16>, vector<32x32xf32> -> vector<32x32xf32>
    %c0_36 = arith.constant 0 : index
    %c0_37 = arith.constant 0 : index
    %106 = vector.load %arg6[%c0_36, %c0_37] : memref<1x32xf32, #tpu.memory_space<vmem>>, vector<1x32xf32>
    %107 = vector.broadcast %106 : vector<1x32xf32> to vector<32x32xf32>
    %108 = arith.addf %105, %107 : vector<32x32xf32>
    %109 = arith.addf %7, %108 : vector<32x32xf32>
    %cst_38 = arith.constant dense<0.000000e+00> : vector<32xf32>
    %110 = vector.multi_reduction <add>, %109, %cst_38 [1] : vector<32x32xf32> to vector<32xf32>
    %111 = vector.shape_cast %110 : vector<32xf32> to vector<32x1xf32>
    %cst_39 = arith.constant 3.200000e+01 : f32
    %112 = vector.broadcast %cst_39 : f32 to vector<32x1xf32>
    %113 = arith.divf %111, %112 : vector<32x1xf32>
    %114 = vector.broadcast %113 : vector<32x1xf32> to vector<32x32xf32>
    %115 = arith.subf %109, %114 : vector<32x32xf32>
    %116 = arith.mulf %115, %115 : vector<32x32xf32>
    %cst_40 = arith.constant dense<0.000000e+00> : vector<32xf32>
    %117 = vector.multi_reduction <add>, %116, %cst_40 [1] : vector<32x32xf32> to vector<32xf32>
    %118 = vector.shape_cast %117 : vector<32xf32> to vector<32x1xf32>
    %cst_41 = arith.constant 3.200000e+01 : f32
    %119 = vector.broadcast %cst_41 : f32 to vector<32x1xf32>
    %120 = arith.divf %118, %119 : vector<32x1xf32>
    %121 = vector.broadcast %113 : vector<32x1xf32> to vector<32x32xf32>
    %122 = arith.subf %109, %121 : vector<32x32xf32>
    %cst_42 = arith.constant 9.99999974E-6 : f32
    %123 = vector.broadcast %cst_42 : f32 to vector<32x1xf32>
    %124 = arith.addf %120, %123 : vector<32x1xf32>
    %125 = math.rsqrt %124 : vector<32x1xf32>
    %126 = vector.broadcast %125 : vector<32x1xf32> to vector<32x32xf32>
    %127 = arith.mulf %122, %126 : vector<32x32xf32>
    %c0_43 = arith.constant 0 : index
    %c0_44 = arith.constant 0 : index
    %128 = vector.load %arg11[%c0_43, %c0_44] : memref<1x32xf32, #tpu.memory_space<vmem>>, vector<1x32xf32>
    %129 = vector.broadcast %128 : vector<1x32xf32> to vector<32x32xf32>
    %130 = arith.mulf %127, %129 : vector<32x32xf32>
    %c0_45 = arith.constant 0 : index
    %c0_46 = arith.constant 0 : index
    %131 = vector.load %arg12[%c0_45, %c0_46] : memref<1x32xf32, #tpu.memory_space<vmem>>, vector<1x32xf32>
    %132 = vector.broadcast %131 : vector<1x32xf32> to vector<32x32xf32>
    %133 = arith.addf %130, %132 : vector<32x32xf32>
    %134 = arith.truncf %133 : vector<32x32xf32> to vector<32x32xbf16>
    %cst_47 = arith.constant dense<0.000000e+00> : vector<32x2048xf32>
    %135 = tpu.matmul %134, %10, %cst_47 {dimension_numbers = #tpu.dot_dimension_numbers<[1], [0], [0], [1], [0, 0, 1, 1], [], []>} : vector<32x32xbf16>, vector<32x2048xbf16>, vector<32x2048xf32> -> vector<32x2048xf32>
    %c0_48 = arith.constant 0 : index
    %c0_49 = arith.constant 0 : index
    %136 = vector.load %arg8[%c0_48, %c0_49] : memref<1x2048xf32, #tpu.memory_space<vmem>>, vector<1x2048xf32>
    %137 = vector.broadcast %136 : vector<1x2048xf32> to vector<32x2048xf32>
    %138 = arith.addf %135, %137 : vector<32x2048xf32>
    %cst_50 = arith.constant 0.000000e+00 : f32
    %139 = vector.broadcast %cst_50 : f32 to vector<32x2048xf32>
    %140 = arith.maximumf %138, %139 : vector<32x2048xf32>
    %141 = arith.truncf %140 : vector<32x2048xf32> to vector<32x2048xbf16>
    %cst_51 = arith.constant dense<0.000000e+00> : vector<32x32xf32>
    %142 = tpu.matmul %141, %11, %cst_51 {dimension_numbers = #tpu.dot_dimension_numbers<[1], [0], [0], [1], [0, 0, 1, 1], [], []>} : vector<32x2048xbf16>, vector<2048x32xbf16>, vector<32x32xf32> -> vector<32x32xf32>
    %c0_52 = arith.constant 0 : index
    %c0_53 = arith.constant 0 : index
    %143 = vector.load %arg10[%c0_52, %c0_53] : memref<1x32xf32, #tpu.memory_space<vmem>>, vector<1x32xf32>
    %144 = vector.broadcast %143 : vector<1x32xf32> to vector<32x32xf32>
    %145 = arith.addf %142, %144 : vector<32x32xf32>
    %146 = arith.addf %133, %145 : vector<32x32xf32>
    %cst_54 = arith.constant dense<0.000000e+00> : vector<32xf32>
    %147 = vector.multi_reduction <add>, %146, %cst_54 [1] : vector<32x32xf32> to vector<32xf32>
    %148 = vector.shape_cast %147 : vector<32xf32> to vector<32x1xf32>
    %cst_55 = arith.constant 3.200000e+01 : f32
    %149 = vector.broadcast %cst_55 : f32 to vector<32x1xf32>
    %150 = arith.divf %148, %149 : vector<32x1xf32>
    %151 = vector.broadcast %150 : vector<32x1xf32> to vector<32x32xf32>
    %152 = arith.subf %146, %151 : vector<32x32xf32>
    %153 = arith.mulf %152, %152 : vector<32x32xf32>
    %cst_56 = arith.constant dense<0.000000e+00> : vector<32xf32>
    %154 = vector.multi_reduction <add>, %153, %cst_56 [1] : vector<32x32xf32> to vector<32xf32>
    %155 = vector.shape_cast %154 : vector<32xf32> to vector<32x1xf32>
    %cst_57 = arith.constant 3.200000e+01 : f32
    %156 = vector.broadcast %cst_57 : f32 to vector<32x1xf32>
    %157 = arith.divf %155, %156 : vector<32x1xf32>
    %158 = vector.broadcast %150 : vector<32x1xf32> to vector<32x32xf32>
    %159 = arith.subf %146, %158 : vector<32x32xf32>
    %cst_58 = arith.constant 9.99999974E-6 : f32
    %160 = vector.broadcast %cst_58 : f32 to vector<32x1xf32>
    %161 = arith.addf %157, %160 : vector<32x1xf32>
    %162 = math.rsqrt %161 : vector<32x1xf32>
    %163 = vector.broadcast %162 : vector<32x1xf32> to vector<32x32xf32>
    %164 = arith.mulf %159, %163 : vector<32x32xf32>
    %c0_59 = arith.constant 0 : index
    %c0_60 = arith.constant 0 : index
    %165 = vector.load %arg13[%c0_59, %c0_60] : memref<1x32xf32, #tpu.memory_space<vmem>>, vector<1x32xf32>
    %166 = vector.broadcast %165 : vector<1x32xf32> to vector<32x32xf32>
    %167 = arith.mulf %164, %166 : vector<32x32xf32>
    %c0_61 = arith.constant 0 : index
    %c0_62 = arith.constant 0 : index
    %168 = vector.load %arg14[%c0_61, %c0_62] : memref<1x32xf32, #tpu.memory_space<vmem>>, vector<1x32xf32>
    %169 = vector.broadcast %168 : vector<1x32xf32> to vector<32x32xf32>
    %170 = arith.addf %167, %169 : vector<32x32xf32>
    %c0_63 = arith.constant 0 : index
    %c0_64 = arith.constant 0 : index
    %171 = vector.load %arg15[%c0_63, %c0_64] : memref<32x96xbf16, #tpu.memory_space<vmem>>, vector<32x96xbf16>
    %c0_65 = arith.constant 0 : index
    %c0_66 = arith.constant 0 : index
    %172 = vector.load %arg17[%c0_65, %c0_66] : memref<32x32xbf16, #tpu.memory_space<vmem>>, vector<32x32xbf16>
    %c0_67 = arith.constant 0 : index
    %c0_68 = arith.constant 0 : index
    %173 = vector.load %arg19[%c0_67, %c0_68] : memref<32x2048xbf16, #tpu.memory_space<vmem>>, vector<32x2048xbf16>
    %c0_69 = arith.constant 0 : index
    %c0_70 = arith.constant 0 : index
    %174 = vector.load %arg21[%c0_69, %c0_70] : memref<2048x32xbf16, #tpu.memory_space<vmem>>, vector<2048x32xbf16>
    %175 = arith.truncf %170 : vector<32x32xf32> to vector<32x32xbf16>
    %cst_71 = arith.constant dense<0.000000e+00> : vector<32x96xf32>
    %176 = tpu.matmul %175, %171, %cst_71 {dimension_numbers = #tpu.dot_dimension_numbers<[1], [0], [0], [1], [0, 0, 1, 1], [], []>} : vector<32x32xbf16>, vector<32x96xbf16>, vector<32x96xf32> -> vector<32x96xf32>
    %c0_72 = arith.constant 0 : index
    %c0_73 = arith.constant 0 : index
    %177 = vector.load %arg16[%c0_72, %c0_73] : memref<1x96xf32, #tpu.memory_space<vmem>>, vector<1x96xf32>
    %178 = vector.broadcast %177 : vector<1x96xf32> to vector<32x96xf32>
    %179 = arith.addf %176, %178 : vector<32x96xf32>
    %180 = vector.shape_cast %179 : vector<32x96xf32> to vector<4x8x96xf32>
    %181 = vector.extract_strided_slice %180 {offsets = [0, 0, 0], sizes = [4, 8, 8], strides = [1, 1, 1]} : vector<4x8x96xf32> to vector<4x8x8xf32>
    %182 = arith.truncf %181 : vector<4x8x8xf32> to vector<4x8x8xbf16>
    %183 = vector.extract_strided_slice %180 {offsets = [0, 0, 32], sizes = [4, 8, 8], strides = [1, 1, 1]} : vector<4x8x96xf32> to vector<4x8x8xf32>
    %184 = arith.truncf %183 : vector<4x8x8xf32> to vector<4x8x8xbf16>
    %185 = vector.extract_strided_slice %180 {offsets = [0, 0, 64], sizes = [4, 8, 8], strides = [1, 1, 1]} : vector<4x8x96xf32> to vector<4x8x8xf32>
    %186 = arith.truncf %185 : vector<4x8x8xf32> to vector<4x8x8xbf16>
    "tpu.trace_start"() <{level = 10 : i32, message = "bqd,bkd->bqk"}> : () -> ()
    %cst_74 = arith.constant dense<0.000000e+00> : vector<4x8x8xf32>
    %187 = tpu.matmul %182, %184, %cst_74 {dimension_numbers = #tpu.dot_dimension_numbers<[2], [2], [1], [1], [0, 0, 0, 1, 1, 1], [0], [0]>} : vector<4x8x8xbf16>, vector<4x8x8xbf16>, vector<4x8x8xf32> -> vector<4x8x8xf32>
    "tpu.trace_stop"() : () -> ()
    %cst_75 = arith.constant 0.353553385 : f32
    %188 = vector.broadcast %cst_75 : f32 to vector<4x8x8xf32>
    %189 = arith.mulf %187, %188 : vector<4x8x8xf32>
    %cst_76 = arith.constant dense<0xFF800000> : vector<4x8xf32>
    %190 = vector.multi_reduction <maximumf>, %189, %cst_76 [2] : vector<4x8x8xf32> to vector<4x8xf32>
    %191 = vector.shape_cast %190 : vector<4x8xf32> to vector<4x8x1xf32>
    %192 = vector.broadcast %191 : vector<4x8x1xf32> to vector<4x8x8xf32>
    %193 = arith.subf %189, %192 : vector<4x8x8xf32>
    %194 = math.exp %193 : vector<4x8x8xf32>
    %cst_77 = arith.constant dense<0.000000e+00> : vector<4x8xf32>
    %195 = vector.multi_reduction <add>, %194, %cst_77 [2] : vector<4x8x8xf32> to vector<4x8xf32>
    %196 = vector.shape_cast %195 : vector<4x8xf32> to vector<4x8x1xf32>
    %197 = tpu.reciprocal %196 {approx = true} : vector<4x8x1xf32> -> vector<4x8x1xf32>
    %198 = vector.broadcast %197 : vector<4x8x1xf32> to vector<4x8x8xf32>
    %199 = arith.mulf %194, %198 : vector<4x8x8xf32>
    %200 = arith.truncf %199 : vector<4x8x8xf32> to vector<4x8x8xbf16>
    "tpu.trace_start"() <{level = 10 : i32, message = "bqk,bkd->bqd"}> : () -> ()
    %cst_78 = arith.constant dense<0.000000e+00> : vector<4x8x8xf32>
    %201 = tpu.matmul %200, %186, %cst_78 {dimension_numbers = #tpu.dot_dimension_numbers<[2], [1], [1], [2], [0, 0, 0, 1, 1, 2], [0], [0]>} : vector<4x8x8xbf16>, vector<4x8x8xbf16>, vector<4x8x8xf32> -> vector<4x8x8xf32>
    "tpu.trace_stop"() : () -> ()
    %202 = vector.extract_strided_slice %180 {offsets = [0, 0, 8], sizes = [4, 8, 8], strides = [1, 1, 1]} : vector<4x8x96xf32> to vector<4x8x8xf32>
    %203 = arith.truncf %202 : vector<4x8x8xf32> to vector<4x8x8xbf16>
    %204 = vector.extract_strided_slice %180 {offsets = [0, 0, 40], sizes = [4, 8, 8], strides = [1, 1, 1]} : vector<4x8x96xf32> to vector<4x8x8xf32>
    %205 = arith.truncf %204 : vector<4x8x8xf32> to vector<4x8x8xbf16>
    %206 = vector.extract_strided_slice %180 {offsets = [0, 0, 72], sizes = [4, 8, 8], strides = [1, 1, 1]} : vector<4x8x96xf32> to vector<4x8x8xf32>
    %207 = arith.truncf %206 : vector<4x8x8xf32> to vector<4x8x8xbf16>
    "tpu.trace_start"() <{level = 10 : i32, message = "bqd,bkd->bqk"}> : () -> ()
    %cst_79 = arith.constant dense<0.000000e+00> : vector<4x8x8xf32>
    %208 = tpu.matmul %203, %205, %cst_79 {dimension_numbers = #tpu.dot_dimension_numbers<[2], [2], [1], [1], [0, 0, 0, 1, 1, 1], [0], [0]>} : vector<4x8x8xbf16>, vector<4x8x8xbf16>, vector<4x8x8xf32> -> vector<4x8x8xf32>
    "tpu.trace_stop"() : () -> ()
    %cst_80 = arith.constant 0.353553385 : f32
    %209 = vector.broadcast %cst_80 : f32 to vector<4x8x8xf32>
    %210 = arith.mulf %208, %209 : vector<4x8x8xf32>
    %cst_81 = arith.constant dense<0xFF800000> : vector<4x8xf32>
    %211 = vector.multi_reduction <maximumf>, %210, %cst_81 [2] : vector<4x8x8xf32> to vector<4x8xf32>
    %212 = vector.shape_cast %211 : vector<4x8xf32> to vector<4x8x1xf32>
    %213 = vector.broadcast %212 : vector<4x8x1xf32> to vector<4x8x8xf32>
    %214 = arith.subf %210, %213 : vector<4x8x8xf32>
    %215 = math.exp %214 : vector<4x8x8xf32>
    %cst_82 = arith.constant dense<0.000000e+00> : vector<4x8xf32>
    %216 = vector.multi_reduction <add>, %215, %cst_82 [2] : vector<4x8x8xf32> to vector<4x8xf32>
    %217 = vector.shape_cast %216 : vector<4x8xf32> to vector<4x8x1xf32>
    %218 = tpu.reciprocal %217 {approx = true} : vector<4x8x1xf32> -> vector<4x8x1xf32>
    %219 = vector.broadcast %218 : vector<4x8x1xf32> to vector<4x8x8xf32>
    %220 = arith.mulf %215, %219 : vector<4x8x8xf32>
    %221 = arith.truncf %220 : vector<4x8x8xf32> to vector<4x8x8xbf16>
    "tpu.trace_start"() <{level = 10 : i32, message = "bqk,bkd->bqd"}> : () -> ()
    %cst_83 = arith.constant dense<0.000000e+00> : vector<4x8x8xf32>
    %222 = tpu.matmul %221, %207, %cst_83 {dimension_numbers = #tpu.dot_dimension_numbers<[2], [1], [1], [2], [0, 0, 0, 1, 1, 2], [0], [0]>} : vector<4x8x8xbf16>, vector<4x8x8xbf16>, vector<4x8x8xf32> -> vector<4x8x8xf32>
    "tpu.trace_stop"() : () -> ()
    %223 = vector.extract_strided_slice %180 {offsets = [0, 0, 16], sizes = [4, 8, 8], strides = [1, 1, 1]} : vector<4x8x96xf32> to vector<4x8x8xf32>
    %224 = arith.truncf %223 : vector<4x8x8xf32> to vector<4x8x8xbf16>
    %225 = vector.extract_strided_slice %180 {offsets = [0, 0, 48], sizes = [4, 8, 8], strides = [1, 1, 1]} : vector<4x8x96xf32> to vector<4x8x8xf32>
    %226 = arith.truncf %225 : vector<4x8x8xf32> to vector<4x8x8xbf16>
    %227 = vector.extract_strided_slice %180 {offsets = [0, 0, 80], sizes = [4, 8, 8], strides = [1, 1, 1]} : vector<4x8x96xf32> to vector<4x8x8xf32>
    %228 = arith.truncf %227 : vector<4x8x8xf32> to vector<4x8x8xbf16>
    "tpu.trace_start"() <{level = 10 : i32, message = "bqd,bkd->bqk"}> : () -> ()
    %cst_84 = arith.constant dense<0.000000e+00> : vector<4x8x8xf32>
    %229 = tpu.matmul %224, %226, %cst_84 {dimension_numbers = #tpu.dot_dimension_numbers<[2], [2], [1], [1], [0, 0, 0, 1, 1, 1], [0], [0]>} : vector<4x8x8xbf16>, vector<4x8x8xbf16>, vector<4x8x8xf32> -> vector<4x8x8xf32>
    "tpu.trace_stop"() : () -> ()
    %cst_85 = arith.constant 0.353553385 : f32
    %230 = vector.broadcast %cst_85 : f32 to vector<4x8x8xf32>
    %231 = arith.mulf %229, %230 : vector<4x8x8xf32>
    %cst_86 = arith.constant dense<0xFF800000> : vector<4x8xf32>
    %232 = vector.multi_reduction <maximumf>, %231, %cst_86 [2] : vector<4x8x8xf32> to vector<4x8xf32>
    %233 = vector.shape_cast %232 : vector<4x8xf32> to vector<4x8x1xf32>
    %234 = vector.broadcast %233 : vector<4x8x1xf32> to vector<4x8x8xf32>
    %235 = arith.subf %231, %234 : vector<4x8x8xf32>
    %236 = math.exp %235 : vector<4x8x8xf32>
    %cst_87 = arith.constant dense<0.000000e+00> : vector<4x8xf32>
    %237 = vector.multi_reduction <add>, %236, %cst_87 [2] : vector<4x8x8xf32> to vector<4x8xf32>
    %238 = vector.shape_cast %237 : vector<4x8xf32> to vector<4x8x1xf32>
    %239 = tpu.reciprocal %238 {approx = true} : vector<4x8x1xf32> -> vector<4x8x1xf32>
    %240 = vector.broadcast %239 : vector<4x8x1xf32> to vector<4x8x8xf32>
    %241 = arith.mulf %236, %240 : vector<4x8x8xf32>
    %242 = arith.truncf %241 : vector<4x8x8xf32> to vector<4x8x8xbf16>
    "tpu.trace_start"() <{level = 10 : i32, message = "bqk,bkd->bqd"}> : () -> ()
    %cst_88 = arith.constant dense<0.000000e+00> : vector<4x8x8xf32>
    %243 = tpu.matmul %242, %228, %cst_88 {dimension_numbers = #tpu.dot_dimension_numbers<[2], [1], [1], [2], [0, 0, 0, 1, 1, 2], [0], [0]>} : vector<4x8x8xbf16>, vector<4x8x8xbf16>, vector<4x8x8xf32> -> vector<4x8x8xf32>
    "tpu.trace_stop"() : () -> ()
    %244 = vector.extract_strided_slice %180 {offsets = [0, 0, 24], sizes = [4, 8, 8], strides = [1, 1, 1]} : vector<4x8x96xf32> to vector<4x8x8xf32>
    %245 = arith.truncf %244 : vector<4x8x8xf32> to vector<4x8x8xbf16>
    %246 = vector.extract_strided_slice %180 {offsets = [0, 0, 56], sizes = [4, 8, 8], strides = [1, 1, 1]} : vector<4x8x96xf32> to vector<4x8x8xf32>
    %247 = arith.truncf %246 : vector<4x8x8xf32> to vector<4x8x8xbf16>
    %248 = vector.extract_strided_slice %180 {offsets = [0, 0, 88], sizes = [4, 8, 8], strides = [1, 1, 1]} : vector<4x8x96xf32> to vector<4x8x8xf32>
    %249 = arith.truncf %248 : vector<4x8x8xf32> to vector<4x8x8xbf16>
    "tpu.trace_start"() <{level = 10 : i32, message = "bqd,bkd->bqk"}> : () -> ()
    %cst_89 = arith.constant dense<0.000000e+00> : vector<4x8x8xf32>
    %250 = tpu.matmul %245, %247, %cst_89 {dimension_numbers = #tpu.dot_dimension_numbers<[2], [2], [1], [1], [0, 0, 0, 1, 1, 1], [0], [0]>} : vector<4x8x8xbf16>, vector<4x8x8xbf16>, vector<4x8x8xf32> -> vector<4x8x8xf32>
    "tpu.trace_stop"() : () -> ()
    %cst_90 = arith.constant 0.353553385 : f32
    %251 = vector.broadcast %cst_90 : f32 to vector<4x8x8xf32>
    %252 = arith.mulf %250, %251 : vector<4x8x8xf32>
    %cst_91 = arith.constant dense<0xFF800000> : vector<4x8xf32>
    %253 = vector.multi_reduction <maximumf>, %252, %cst_91 [2] : vector<4x8x8xf32> to vector<4x8xf32>
    %254 = vector.shape_cast %253 : vector<4x8xf32> to vector<4x8x1xf32>
    %255 = vector.broadcast %254 : vector<4x8x1xf32> to vector<4x8x8xf32>
    %256 = arith.subf %252, %255 : vector<4x8x8xf32>
    %257 = math.exp %256 : vector<4x8x8xf32>
    %cst_92 = arith.constant dense<0.000000e+00> : vector<4x8xf32>
    %258 = vector.multi_reduction <add>, %257, %cst_92 [2] : vector<4x8x8xf32> to vector<4x8xf32>
    %259 = vector.shape_cast %258 : vector<4x8xf32> to vector<4x8x1xf32>
    %260 = tpu.reciprocal %259 {approx = true} : vector<4x8x1xf32> -> vector<4x8x1xf32>
    %261 = vector.broadcast %260 : vector<4x8x1xf32> to vector<4x8x8xf32>
    %262 = arith.mulf %257, %261 : vector<4x8x8xf32>
    %263 = arith.truncf %262 : vector<4x8x8xf32> to vector<4x8x8xbf16>
    "tpu.trace_start"() <{level = 10 : i32, message = "bqk,bkd->bqd"}> : () -> ()
    %cst_93 = arith.constant dense<0.000000e+00> : vector<4x8x8xf32>
    %264 = tpu.matmul %263, %249, %cst_93 {dimension_numbers = #tpu.dot_dimension_numbers<[2], [1], [1], [2], [0, 0, 0, 1, 1, 2], [0], [0]>} : vector<4x8x8xbf16>, vector<4x8x8xbf16>, vector<4x8x8xf32> -> vector<4x8x8xf32>
    "tpu.trace_stop"() : () -> ()
    %265 = tpu.concatenate %201, %222, %243, %264 in 2 : vector<4x8x8xf32>, vector<4x8x8xf32>, vector<4x8x8xf32>, vector<4x8x8xf32> -> vector<4x8x32xf32>
    %266 = vector.shape_cast %265 : vector<4x8x32xf32> to vector<32x32xf32>
    %267 = arith.truncf %266 : vector<32x32xf32> to vector<32x32xbf16>
    %cst_94 = arith.constant dense<0.000000e+00> : vector<32x32xf32>
    %268 = tpu.matmul %267, %172, %cst_94 {dimension_numbers = #tpu.dot_dimension_numbers<[1], [0], [0], [1], [0, 0, 1, 1], [], []>} : vector<32x32xbf16>, vector<32x32xbf16>, vector<32x32xf32> -> vector<32x32xf32>
    %c0_95 = arith.constant 0 : index
    %c0_96 = arith.constant 0 : index
    %269 = vector.load %arg18[%c0_95, %c0_96] : memref<1x32xf32, #tpu.memory_space<vmem>>, vector<1x32xf32>
    %270 = vector.broadcast %269 : vector<1x32xf32> to vector<32x32xf32>
    %271 = arith.addf %268, %270 : vector<32x32xf32>
    %272 = arith.addf %170, %271 : vector<32x32xf32>
    %cst_97 = arith.constant dense<0.000000e+00> : vector<32xf32>
    %273 = vector.multi_reduction <add>, %272, %cst_97 [1] : vector<32x32xf32> to vector<32xf32>
    %274 = vector.shape_cast %273 : vector<32xf32> to vector<32x1xf32>
    %cst_98 = arith.constant 3.200000e+01 : f32
    %275 = vector.broadcast %cst_98 : f32 to vector<32x1xf32>
    %276 = arith.divf %274, %275 : vector<32x1xf32>
    %277 = vector.broadcast %276 : vector<32x1xf32> to vector<32x32xf32>
    %278 = arith.subf %272, %277 : vector<32x32xf32>
    %279 = arith.mulf %278, %278 : vector<32x32xf32>
    %cst_99 = arith.constant dense<0.000000e+00> : vector<32xf32>
    %280 = vector.multi_reduction <add>, %279, %cst_99 [1] : vector<32x32xf32> to vector<32xf32>
    %281 = vector.shape_cast %280 : vector<32xf32> to vector<32x1xf32>
    %cst_100 = arith.constant 3.200000e+01 : f32
    %282 = vector.broadcast %cst_100 : f32 to vector<32x1xf32>
    %283 = arith.divf %281, %282 : vector<32x1xf32>
    %284 = vector.broadcast %276 : vector<32x1xf32> to vector<32x32xf32>
    %285 = arith.subf %272, %284 : vector<32x32xf32>
    %cst_101 = arith.constant 9.99999974E-6 : f32
    %286 = vector.broadcast %cst_101 : f32 to vector<32x1xf32>
    %287 = arith.addf %283, %286 : vector<32x1xf32>
    %288 = math.rsqrt %287 : vector<32x1xf32>
    %289 = vector.broadcast %288 : vector<32x1xf32> to vector<32x32xf32>
    %290 = arith.mulf %285, %289 : vector<32x32xf32>
    %c0_102 = arith.constant 0 : index
    %c0_103 = arith.constant 0 : index
    %291 = vector.load %arg23[%c0_102, %c0_103] : memref<1x32xf32, #tpu.memory_space<vmem>>, vector<1x32xf32>
    %292 = vector.broadcast %291 : vector<1x32xf32> to vector<32x32xf32>
    %293 = arith.mulf %290, %292 : vector<32x32xf32>
    %c0_104 = arith.constant 0 : index
    %c0_105 = arith.constant 0 : index
    %294 = vector.load %arg24[%c0_104, %c0_105] : memref<1x32xf32, #tpu.memory_space<vmem>>, vector<1x32xf32>
    %295 = vector.broadcast %294 : vector<1x32xf32> to vector<32x32xf32>
    %296 = arith.addf %293, %295 : vector<32x32xf32>
    %297 = arith.truncf %296 : vector<32x32xf32> to vector<32x32xbf16>
    %cst_106 = arith.constant dense<0.000000e+00> : vector<32x2048xf32>
    %298 = tpu.matmul %297, %173, %cst_106 {dimension_numbers = #tpu.dot_dimension_numbers<[1], [0], [0], [1], [0, 0, 1, 1], [], []>} : vector<32x32xbf16>, vector<32x2048xbf16>, vector<32x2048xf32> -> vector<32x2048xf32>
    %c0_107 = arith.constant 0 : index
    %c0_108 = arith.constant 0 : index
    %299 = vector.load %arg20[%c0_107, %c0_108] : memref<1x2048xf32, #tpu.memory_space<vmem>>, vector<1x2048xf32>
    %300 = vector.broadcast %299 : vector<1x2048xf32> to vector<32x2048xf32>
    %301 = arith.addf %298, %300 : vector<32x2048xf32>
    %cst_109 = arith.constant 0.000000e+00 : f32
    %302 = vector.broadcast %cst_109 : f32 to vector<32x2048xf32>
    %303 = arith.maximumf %301, %302 : vector<32x2048xf32>
    %304 = arith.truncf %303 : vector<32x2048xf32> to vector<32x2048xbf16>
    %cst_110 = arith.constant dense<0.000000e+00> : vector<32x32xf32>
    %305 = tpu.matmul %304, %174, %cst_110 {dimension_numbers = #tpu.dot_dimension_numbers<[1], [0], [0], [1], [0, 0, 1, 1], [], []>} : vector<32x2048xbf16>, vector<2048x32xbf16>, vector<32x32xf32> -> vector<32x32xf32>
    %c0_111 = arith.constant 0 : index
    %c0_112 = arith.constant 0 : index
    %306 = vector.load %arg22[%c0_111, %c0_112] : memref<1x32xf32, #tpu.memory_space<vmem>>, vector<1x32xf32>
    %307 = vector.broadcast %306 : vector<1x32xf32> to vector<32x32xf32>
    %308 = arith.addf %305, %307 : vector<32x32xf32>
    %309 = arith.addf %296, %308 : vector<32x32xf32>
    %cst_113 = arith.constant dense<0.000000e+00> : vector<32xf32>
    %310 = vector.multi_reduction <add>, %309, %cst_113 [1] : vector<32x32xf32> to vector<32xf32>
    %311 = vector.shape_cast %310 : vector<32xf32> to vector<32x1xf32>
    %cst_114 = arith.constant 3.200000e+01 : f32
    %312 = vector.broadcast %cst_114 : f32 to vector<32x1xf32>
    %313 = arith.divf %311, %312 : vector<32x1xf32>
    %314 = vector.broadcast %313 : vector<32x1xf32> to vector<32x32xf32>
    %315 = arith.subf %309, %314 : vector<32x32xf32>
    %316 = arith.mulf %315, %315 : vector<32x32xf32>
    %cst_115 = arith.constant dense<0.000000e+00> : vector<32xf32>
    %317 = vector.multi_reduction <add>, %316, %cst_115 [1] : vector<32x32xf32> to vector<32xf32>
    %318 = vector.shape_cast %317 : vector<32xf32> to vector<32x1xf32>
    %cst_116 = arith.constant 3.200000e+01 : f32
    %319 = vector.broadcast %cst_116 : f32 to vector<32x1xf32>
    %320 = arith.divf %318, %319 : vector<32x1xf32>
    %321 = vector.broadcast %313 : vector<32x1xf32> to vector<32x32xf32>
    %322 = arith.subf %309, %321 : vector<32x32xf32>
    %cst_117 = arith.constant 9.99999974E-6 : f32
    %323 = vector.broadcast %cst_117 : f32 to vector<32x1xf32>
    %324 = arith.addf %320, %323 : vector<32x1xf32>
    %325 = math.rsqrt %324 : vector<32x1xf32>
    %326 = vector.broadcast %325 : vector<32x1xf32> to vector<32x32xf32>
    %327 = arith.mulf %322, %326 : vector<32x32xf32>
    %c0_118 = arith.constant 0 : index
    %c0_119 = arith.constant 0 : index
    %328 = vector.load %arg25[%c0_118, %c0_119] : memref<1x32xf32, #tpu.memory_space<vmem>>, vector<1x32xf32>
    %329 = vector.broadcast %328 : vector<1x32xf32> to vector<32x32xf32>
    %330 = arith.mulf %327, %329 : vector<32x32xf32>
    %c0_120 = arith.constant 0 : index
    %c0_121 = arith.constant 0 : index
    %331 = vector.load %arg26[%c0_120, %c0_121] : memref<1x32xf32, #tpu.memory_space<vmem>>, vector<1x32xf32>
    %332 = vector.broadcast %331 : vector<1x32xf32> to vector<32x32xf32>
    %333 = arith.addf %330, %332 : vector<32x32xf32>
    %334 = vector.shape_cast %333 : vector<32x32xf32> to vector<4x8x32xf32>
    %cst_122 = arith.constant dense<0.000000e+00> : vector<4x32xf32>
    %335 = vector.multi_reduction <add>, %334, %cst_122 [1] : vector<4x8x32xf32> to vector<4x32xf32>
    %cst_123 = arith.constant 8.000000e+00 : f32
    %336 = vector.broadcast %cst_123 : f32 to vector<4x32xf32>
    %337 = arith.divf %335, %336 : vector<4x32xf32>
    %c0_124 = arith.constant 0 : index
    %c0_125 = arith.constant 0 : index
    %338 = vector.load %arg27[%c0_124, %c0_125] : memref<4x32xf32, #tpu.memory_space<vmem>>, vector<4x32xf32>
    tpu.vector_store %arg27[%c0_124, %c0_125], %337 {strides = array<i32>} : memref<4x32xf32, #tpu.memory_space<vmem>>, vector<4x32xf32>,
    return
  }
  func.func @transform_0(%arg0: i32) -> (i32, i32, i32) {
    %c0_i32 = arith.constant 0 : i32
    %c0_i32_0 = arith.constant 0 : i32
    %c0_i32_1 = arith.constant 0 : i32
    %c0_i32_2 = arith.constant 0 : i32
    return %c0_i32, %c0_i32_0, %c0_i32_1 : i32, i32, i32
  }
  func.func @transform_1(%arg0: i32) -> (i32, i32) {
    %c0_i32 = arith.constant 0 : i32
    %c0_i32_0 = arith.constant 0 : i32
    %c0_i32_1 = arith.constant 0 : i32
    return %c0_i32, %c0_i32_0 : i32, i32
  }
  func.func @transform_2(%arg0: i32) -> (i32, i32) {
    %c0_i32 = arith.constant 0 : i32
    %c0_i32_0 = arith.constant 0 : i32
    %c0_i32_1 = arith.constant 0 : i32
    return %c0_i32, %c0_i32_0 : i32, i32
  }
  func.func @transform_3(%arg0: i32) -> (i32, i32) {
    %c0_i32 = arith.constant 0 : i32
    %c0_i32_0 = arith.constant 0 : i32
    %c0_i32_1 = arith.constant 0 : i32
    return %c0_i32, %c0_i32_0 : i32, i32
  }
  func.func @transform_4(%arg0: i32) -> (i32, i32) {
    %c0_i32 = arith.constant 0 : i32
    %c0_i32_0 = arith.constant 0 : i32
    %c0_i32_1 = arith.constant 0 : i32
    return %c0_i32, %c0_i32_0 : i32, i32
  }
  func.func @transform_5(%arg0: i32) -> (i32, i32) {
    %c0_i32 = arith.constant 0 : i32
    %c0_i32_0 = arith.constant 0 : i32
    %c0_i32_1 = arith.constant 0 : i32
    return %c0_i32, %c0_i32_0 : i32, i32
  }
  func.func @transform_6(%arg0: i32) -> (i32, i32) {
    %c0_i32 = arith.constant 0 : i32
    %c0_i32_0 = arith.constant 0 : i32
    %c0_i32_1 = arith.constant 0 : i32
    return %c0_i32, %c0_i32_0 : i32, i32
  }
  func.func @transform_7(%arg0: i32) -> (i32, i32) {
    %c0_i32 = arith.constant 0 : i32
    %c0_i32_0 = arith.constant 0 : i32
    %c0_i32_1 = arith.constant 0 : i32
    return %c0_i32, %c0_i32_0 : i32, i32
  }
  func.func @transform_8(%arg0: i32) -> (i32, i32) {
    %c0_i32 = arith.constant 0 : i32
    %c0_i32_0 = arith.constant 0 : i32
    %c0_i32_1 = arith.constant 0 : i32
    return %c0_i32, %c0_i32_0 : i32, i32
  }
  func.func @transform_9(%arg0: i32) -> (i32, i32) {
    %c0_i32 = arith.constant 0 : i32
    %c0_i32_0 = arith.constant 0 : i32
    %c0_i32_1 = arith.constant 0 : i32
    return %c0_i32, %c0_i32_0 : i32, i32
  }
  func.func @transform_10(%arg0: i32) -> (i32, i32) {
    %c0_i32 = arith.constant 0 : i32
    %c0_i32_0 = arith.constant 0 : i32
    %c0_i32_1 = arith.constant 0 : i32
    return %c0_i32, %c0_i32_0 : i32, i32
  }
  func.func @transform_11(%arg0: i32) -> (i32, i32) {
    %c0_i32 = arith.constant 0 : i32
    %c0_i32_0 = arith.constant 0 : i32
    %c0_i32_1 = arith.constant 0 : i32
    return %c0_i32, %c0_i32_0 : i32, i32
  }
  func.func @transform_12(%arg0: i32) -> (i32, i32) {
    %c0_i32 = arith.constant 0 : i32
    %c0_i32_0 = arith.constant 0 : i32
    %c0_i32_1 = arith.constant 0 : i32
    return %c0_i32, %c0_i32_0 : i32, i32
  }
  func.func @transform_13(%arg0: i32) -> (i32, i32) {
    %c0_i32 = arith.constant 0 : i32
    %c0_i32_0 = arith.constant 0 : i32
    %c0_i32_1 = arith.constant 0 : i32
    return %c0_i32, %c0_i32_0 : i32, i32
  }
  func.func @transform_14(%arg0: i32) -> (i32, i32) {
    %c0_i32 = arith.constant 0 : i32
    %c0_i32_0 = arith.constant 0 : i32
    %c0_i32_1 = arith.constant 0 : i32
    return %c0_i32, %c0_i32_0 : i32, i32
  }
  func.func @transform_15(%arg0: i32) -> (i32, i32) {
    %c0_i32 = arith.constant 0 : i32
    %c0_i32_0 = arith.constant 0 : i32
    %c0_i32_1 = arith.constant 0 : i32
    return %c0_i32, %c0_i32_0 : i32, i32
  }
  func.func @transform_16(%arg0: i32) -> (i32, i32) {
    %c0_i32 = arith.constant 0 : i32
    %c0_i32_0 = arith.constant 0 : i32
    %c0_i32_1 = arith.constant 0 : i32
    return %c0_i32, %c0_i32_0 : i32, i32
  }
  func.func @transform_17(%arg0: i32) -> (i32, i32) {
    %c0_i32 = arith.constant 0 : i32
    %c0_i32_0 = arith.constant 0 : i32
    %c0_i32_1 = arith.constant 0 : i32
    return %c0_i32, %c0_i32_0 : i32, i32
  }
  func.func @transform_18(%arg0: i32) -> (i32, i32) {
    %c0_i32 = arith.constant 0 : i32
    %c0_i32_0 = arith.constant 0 : i32
    %c0_i32_1 = arith.constant 0 : i32
    return %c0_i32, %c0_i32_0 : i32, i32
  }
  func.func @transform_19(%arg0: i32) -> (i32, i32) {
    %c0_i32 = arith.constant 0 : i32
    %c0_i32_0 = arith.constant 0 : i32
    %c0_i32_1 = arith.constant 0 : i32
    return %c0_i32, %c0_i32_0 : i32, i32
  }
  func.func @transform_20(%arg0: i32) -> (i32, i32) {
    %c0_i32 = arith.constant 0 : i32
    %c0_i32_0 = arith.constant 0 : i32
    %c0_i32_1 = arith.constant 0 : i32
    return %c0_i32, %c0_i32_0 : i32, i32
  }
  func.func @transform_21(%arg0: i32) -> (i32, i32) {
    %c0_i32 = arith.constant 0 : i32
    %c0_i32_0 = arith.constant 0 : i32
    %c0_i32_1 = arith.constant 0 : i32
    return %c0_i32, %c0_i32_0 : i32, i32
  }
  func.func @transform_22(%arg0: i32) -> (i32, i32) {
    %c0_i32 = arith.constant 0 : i32
    %c0_i32_0 = arith.constant 0 : i32
    %c0_i32_1 = arith.constant 0 : i32
    return %c0_i32, %c0_i32_0 : i32, i32
  }
  func.func @transform_23(%arg0: i32) -> (i32, i32) {
    %c0_i32 = arith.constant 0 : i32
    %c0_i32_0 = arith.constant 0 : i32
    %c0_i32_1 = arith.constant 0 : i32
    return %c0_i32, %c0_i32_0 : i32, i32
  }
  func.func @transform_24(%arg0: i32) -> (i32, i32) {
    %c0_i32 = arith.constant 0 : i32
    %c0_i32_0 = arith.constant 0 : i32
    %c0_i32_1 = arith.constant 0 : i32
    return %c0_i32, %c0_i32_0 : i32, i32
  }
  func.func @transform_25(%arg0: i32) -> (i32, i32) {
    %c0_i32 = arith.constant 0 : i32
    %c0_i32_0 = arith.constant 0 : i32
    %c0_i32_1 = arith.constant 0 : i32
    return %c0_i32, %c0_i32_0 : i32, i32
  }
  func.func @transform_26(%arg0: i32) -> (i32, i32) {
    %c0_i32 = arith.constant 0 : i32
    %c0_i32_0 = arith.constant 0 : i32
    %c0_i32_1 = arith.constant 0 : i32
    return %c0_i32, %c0_i32_0 : i32, i32
  }
}

</mosaic_0001>

<llo_original>
// kernel: transformer_recommender.1
$region0: #{transformer_recommender.1}
  #allocation0 [shape = 'u32[]', space=smem, size = 0x4, offset = 0x4, fixed_abs, tag = 'smem constant byte address 0x4 - core index']
  #allocation1 [shape = 'u32[144,128]{1,0:T(1,128)}', space=vmem, size = 0x12000, scoped, tag = 'internal scratch']
  %s0 = inlined_call_operand.vmem [shape: f32[4,8,32], index: 0, kind: input, shape index: {}]
  %s1 = inlined_call_operand.vmem [shape: f32[8,32], index: 1, kind: input, shape index: {}]
  %s2 = inlined_call_operand.vmem [shape: bf16[32,96], index: 2, kind: input, shape index: {}]
  %s3 = inlined_call_operand.vmem [shape: f32[1,96], index: 3, kind: input, shape index: {}]
  %s4 = inlined_call_operand.vmem [shape: bf16[32,32], index: 4, kind: input, shape index: {}]
  %s5 = inlined_call_operand.vmem [shape: f32[1,32], index: 5, kind: input, shape index: {}]
  %s6 = inlined_call_operand.vmem [shape: bf16[32,2048], index: 6, kind: input, shape index: {}]
  %s7 = inlined_call_operand.vmem [shape: f32[1,2048], index: 7, kind: input, shape index: {}]
  %s8 = inlined_call_operand.vmem [shape: bf16[2048,32], index: 8, kind: input, shape index: {}]
  %s9 = inlined_call_operand.vmem [shape: f32[1,32], index: 9, kind: input, shape index: {}]
  %s10 = inlined_call_operand.vmem [shape: f32[1,32], index: 10, kind: input, shape index: {}]
  %s11 = inlined_call_operand.vmem [shape: f32[1,32], index: 11, kind: input, shape index: {}]
  %s12 = inlined_call_operand.vmem [shape: f32[1,32], index: 12, kind: input, shape index: {}]
  %s13 = inlined_call_operand.vmem [shape: f32[1,32], index: 13, kind: input, shape index: {}]
  %s14 = inlined_call_operand.vmem [shape: bf16[32,96], index: 14, kind: input, shape index: {}]
  %s15 = inlined_call_operand.vmem [shape: f32[1,96], index: 15, kind: input, shape index: {}]
  %s16 = inlined_call_operand.vmem [shape: bf16[32,32], index: 16, kind: input, shape index: {}]
  %s17 = inlined_call_operand.vmem [shape: f32[1,32], index: 17, kind: input, shape index: {}]
  %s18 = inlined_call_operand.vmem [shape: bf16[32,2048], index: 18, kind: input, shape index: {}]
  %s19 = inlined_call_operand.vmem [shape: f32[1,2048], index: 19, kind: input, shape index: {}]
  %s20 = inlined_call_operand.vmem [shape: bf16[2048,32], index: 20, kind: input, shape index: {}]
  %s21 = inlined_call_operand.vmem [shape: f32[1,32], index: 21, kind: input, shape index: {}]
  %s22 = inlined_call_operand.vmem [shape: f32[1,32], index: 22, kind: input, shape index: {}]
  %s23 = inlined_call_operand.vmem [shape: f32[1,32], index: 23, kind: input, shape index: {}]
  %s24 = inlined_call_operand.vmem [shape: f32[1,32], index: 24, kind: input, shape index: {}]
  %s25 = inlined_call_operand.vmem [shape: f32[1,32], index: 25, kind: input, shape index: {}]
  %s26 = inlined_call_operand.vmem [shape: f32[4,32], index: 26, kind: output, shape index: {}]
  %s27 = sld [smem:[#allocation0]]
  $region114: #{transformer_recommender.1} parent=0
    _
  %s29 = ssub.s32 1, %s27
  %s30 = scalar_select 0, %s29, %s27
  // Predicated region
  $region2: #{transformer_recommender.1} parent=0 // pred_check
    _
  $region3: #{transformer_recommender.1} parent=0 // pred_check_branch
    %32 = sbr.rel (0) target = $region5
  $region4: #{transformer_recommender.1} parent=0 // pred_region
    _
  $region5: #{transformer_recommender.1} parent=0 // pred_fallthru
    _
  // Predicated region
  $region6: #{transformer_recommender.1} parent=0 // pred_check
    _
  $region7: #{transformer_recommender.1} parent=0 // pred_check_branch
    %34 = sbr.rel (0) target = $region9
  $region8: #{transformer_recommender.1} parent=0 // pred_region
    _
  $region9: #{transformer_recommender.1} parent=0 // pred_fallthru
    _
  // Predicated region
  $region10: #{transformer_recommender.1} parent=0 // pred_check
    _
  $region11: #{transformer_recommender.1} parent=0 // pred_check_branch
    %36 = sbr.rel (0) target = $region13
  $region12: #{transformer_recommender.1} parent=0 // pred_region
    _
  $region13: #{transformer_recommender.1} parent=0 // pred_fallthru
    _
  // Predicated region
  $region14: #{transformer_recommender.1} parent=0 // pred_check
    _
  $region15: #{transformer_recommender.1} parent=0 // pred_check_branch
    %38 = sbr.rel (0) target = $region17
  $region16: #{transformer_recommender.1} parent=0 // pred_region
    _
  $region17: #{transformer_recommender.1} parent=0 // pred_fallthru
    _
  // Predicated region
  $region18: #{transformer_recommender.1} parent=0 // pred_check
    _
  $region19: #{transformer_recommender.1} parent=0 // pred_check_branch
    %40 = sbr.rel (0) target = $region21
  $region20: #{transformer_recommender.1} parent=0 // pred_region
    _
  $region21: #{transformer_recommender.1} parent=0 // pred_fallthru
    _
  // Predicated region
  $region22: #{transformer_recommender.1} parent=0 // pred_check
    _
  $region23: #{transformer_recommender.1} parent=0 // pred_check_branch
    %42 = sbr.rel (0) target = $region25
  $region24: #{transformer_recommender.1} parent=0 // pred_region
    _
  $region25: #{transformer_recommender.1} parent=0 // pred_fallthru
    _
  // Predicated region
  $region26: #{transformer_recommender.1} parent=0 // pred_check
    _
  $region27: #{transformer_recommender.1} parent=0 // pred_check_branch
    %44 = sbr.rel (0) target = $region29
  $region28: #{transformer_recommender.1} parent=0 // pred_region
    _
  $region29: #{transformer_recommender.1} parent=0 // pred_fallthru
    _
  // Predicated region
  $region30: #{transformer_recommender.1} parent=0 // pred_check
    _
  $region31: #{transformer_recommender.1} parent=0 // pred_check_branch
    %46 = sbr.rel (0) target = $region33
  $region32: #{transformer_recommender.1} parent=0 // pred_region
    _
  $region33: #{transformer_recommender.1} parent=0 // pred_fallthru
    _
  // Predicated region
  $region34: #{transformer_recommender.1} parent=0 // pred_check
    _
  $region35: #{transformer_recommender.1} parent=0 // pred_check_branch
    %48 = sbr.rel (0) target = $region37
  $region36: #{transformer_recommender.1} parent=0 // pred_region
    _
  $region37: #{transformer_recommender.1} parent=0 // pred_fallthru
    _
  // Predicated region
  $region38: #{transformer_recommender.1} parent=0 // pred_check
    _
  $region39: #{transformer_recommender.1} parent=0 // pred_check_branch
    %50 = sbr.rel (0) target = $region41
  $region40: #{transformer_recommender.1} parent=0 // pred_region
    _
  $region41: #{transformer_recommender.1} parent=0 // pred_fallthru
    _
  // Predicated region
  $region42: #{transformer_recommender.1} parent=0 // pred_check
    _
  $region43: #{transformer_recommender.1} parent=0 // pred_check_branch
    %52 = sbr.rel (0) target = $region45
  $region44: #{transformer_recommender.1} parent=0 // pred_region
    _
  $region45: #{transformer_recommender.1} parent=0 // pred_fallthru
    _
  // Predicated region
  $region46: #{transformer_recommender.1} parent=0 // pred_check
    _
  $region47: #{transformer_recommender.1} parent=0 // pred_check_branch
    %54 = sbr.rel (0) target = $region49
  $region48: #{transformer_recommender.1} parent=0 // pred_region
    _
  $region49: #{transformer_recommender.1} parent=0 // pred_fallthru
    _
  // Predicated region
  $region50: #{transformer_recommender.1} parent=0 // pred_check
    _
  $region51: #{transformer_recommender.1} parent=0 // pred_check_branch
    %56 = sbr.rel (0) target = $region53
  $region52: #{transformer_recommender.1} parent=0 // pred_region
    _
  $region53: #{transformer_recommender.1} parent=0 // pred_fallthru
    _
  // Predicated region
  $region54: #{transformer_recommender.1} parent=0 // pred_check
    _
  $region55: #{transformer_recommender.1} parent=0 // pred_check_branch
    %58 = sbr.rel (0) target = $region57
  $region56: #{transformer_recommender.1} parent=0 // pred_region
    _
  $region57: #{transformer_recommender.1} parent=0 // pred_fallthru
    _
  // Predicated region
  $region58: #{transformer_recommender.1} parent=0 // pred_check
    _
  $region59: #{transformer_recommender.1} parent=0 // pred_check_branch
    %60 = sbr.rel (0) target = $region61
  $region60: #{transformer_recommender.1} parent=0 // pred_region
    _
  $region61: #{transformer_recommender.1} parent=0 // pred_fallthru
    _
  // Predicated region
  $region62: #{transformer_recommender.1} parent=0 // pred_check
    _
  $region63: #{transformer_recommender.1} parent=0 // pred_check_branch
    %62 = sbr.rel (0) target = $region65
  $region64: #{transformer_recommender.1} parent=0 // pred_region
    _
  $region65: #{transformer_recommender.1} parent=0 // pred_fallthru
    _
  // Predicated region
  $region66: #{transformer_recommender.1} parent=0 // pred_check
    _
  $region67: #{transformer_recommender.1} parent=0 // pred_check_branch
    %64 = sbr.rel (0) target = $region69
  $region68: #{transformer_recommender.1} parent=0 // pred_region
    _
  $region69: #{transformer_recommender.1} parent=0 // pred_fallthru
    _
  // Predicated region
  $region70: #{transformer_recommender.1} parent=0 // pred_check
    _
  $region71: #{transformer_recommender.1} parent=0 // pred_check_branch
    %66 = sbr.rel (0) target = $region73
  $region72: #{transformer_recommender.1} parent=0 // pred_region
    _
  $region73: #{transformer_recommender.1} parent=0 // pred_fallthru
    _
  // Predicated region
  $region74: #{transformer_recommender.1} parent=0 // pred_check
    _
  $region75: #{transformer_recommender.1} parent=0 // pred_check_branch
    %68 = sbr.rel (0) target = $region77
  $region76: #{transformer_recommender.1} parent=0 // pred_region
    _
  $region77: #{transformer_recommender.1} parent=0 // pred_fallthru
    _
  // Predicated region
  $region78: #{transformer_recommender.1} parent=0 // pred_check
    _
  $region79: #{transformer_recommender.1} parent=0 // pred_check_branch
    %70 = sbr.rel (0) target = $region81
  $region80: #{transformer_recommender.1} parent=0 // pred_region
    _
  $region81: #{transformer_recommender.1} parent=0 // pred_fallthru
    _
  // Predicated region
  $region82: #{transformer_recommender.1} parent=0 // pred_check
    _
  $region83: #{transformer_recommender.1} parent=0 // pred_check_branch
    %72 = sbr.rel (0) target = $region85
  $region84: #{transformer_recommender.1} parent=0 // pred_region
    _
  $region85: #{transformer_recommender.1} parent=0 // pred_fallthru
    _
  // Predicated region
  $region86: #{transformer_recommender.1} parent=0 // pred_check
    _
  $region87: #{transformer_recommender.1} parent=0 // pred_check_branch
    %74 = sbr.rel (0) target = $region89
  $region88: #{transformer_recommender.1} parent=0 // pred_region
    _
  $region89: #{transformer_recommender.1} parent=0 // pred_fallthru
    _
  // Predicated region
  $region90: #{transformer_recommender.1} parent=0 // pred_check
    _
  $region91: #{transformer_recommender.1} parent=0 // pred_check_branch
    %76 = sbr.rel (0) target = $region93
  $region92: #{transformer_recommender.1} parent=0 // pred_region
    _
  $region93: #{transformer_recommender.1} parent=0 // pred_fallthru
    _
  // Predicated region
  $region94: #{transformer_recommender.1} parent=0 // pred_check
    _
  $region95: #{transformer_recommender.1} parent=0 // pred_check_branch
    %78 = sbr.rel (0) target = $region97
  $region96: #{transformer_recommender.1} parent=0 // pred_region
    _
  $region97: #{transformer_recommender.1} parent=0 // pred_fallthru
    _
  // Predicated region
  $region98: #{transformer_recommender.1} parent=0 // pred_check
    _
  $region99: #{transformer_recommender.1} parent=0 // pred_check_branch
    %80 = sbr.rel (0) target = $region101
  $region100: #{transformer_recommender.1} parent=0 // pred_region
    _
  $region101: #{transformer_recommender.1} parent=0 // pred_fallthru
    _
  // Predicated region
  $region102: #{transformer_recommender.1} parent=0 // pred_check
    _
  $region103: #{transformer_recommender.1} parent=0 // pred_check_branch
    %82 = sbr.rel (0) target = $region105
  $region104: #{transformer_recommender.1} parent=0 // pred_region
    _
  $region105: #{transformer_recommender.1} parent=0 // pred_fallthru
    _
  %v84 = vld [vmem:[%s0] sm:$0xff]
  %v85 = vld [vmem:[%s0 + $0x8] sm:$0xff]
  %v86 = vld [vmem:[%s0 + $0x10] sm:$0xff]
  %v87 = vld [vmem:[%s0 + $0x18] sm:$0xff]
  %v88 = vmul.f32 %v84, 5.656854
  %v89 = vmul.f32 %v85, 5.656854
  %v90 = vmul.f32 %v86, 5.656854
  %v91 = vmul.f32 %v87, 5.656854
  %v92 = vld [vmem:[%s1] sm:$0xff]
  %v93 = vadd.f32 %v88, %v92
  %v94 = vadd.f32 %v89, %v92
  %v95 = vadd.f32 %v90, %v92
  %v96 = vadd.f32 %v91, %v92
  %v97 = vld [vmem:[%s2] sm:$0xf]
  %v98 = vld [vmem:[%s2 + $0x4] sm:$0xf]
  %v99 = vld [vmem:[%s2 + $0x8] sm:$0xf]
  %v100 = vld [vmem:[%s2 + $0xc] sm:$0xf]
  %v101 = vld [vmem:[%s4] sm:$0xf]
  %v102 = vld [vmem:[%s4 + $0x4] sm:$0xf]
  %v103 = vld [vmem:[%s4 + $0x8] sm:$0xf]
  %v104 = vld [vmem:[%s4 + $0xc] sm:$0xf]
  %v105 = vld [vmem:[%s6] sm:$0xff]
  %v106 = vld [vmem:[%s6 + $0x8] sm:$0xff]
  %v107 = vld [vmem:[%s6 + $0x10] sm:$0xff]
  %v108 = vld [vmem:[%s6 + $0x18] sm:$0xff]
  %v109 = vld [vmem:[%s6 + $0x20] sm:$0xff]
  %v110 = vld [vmem:[%s6 + $0x28] sm:$0xff]
  %v111 = vld [vmem:[%s6 + $0x30] sm:$0xff]
  %v112 = vld [vmem:[%s6 + $0x38] sm:$0xff]
  %v113 = vld [vmem:[%s6 + $0x40] sm:$0xff]
  %v114 = vld [vmem:[%s6 + $0x48] sm:$0xff]
  %v115 = vld [vmem:[%s6 + $0x50] sm:$0xff]
  %v116 = vld [vmem:[%s6 + $0x58] sm:$0xff]
  %v117 = vld [vmem:[%s6 + $0x60] sm:$0xff]
  %v118 = vld [vmem:[%s6 + $0x68] sm:$0xff]
  %v119 = vld [vmem:[%s6 + $0x70] sm:$0xff]
  %v120 = vld [vmem:[%s6 + $0x78] sm:$0xff]
  %v121 = vld [vmem:[%s6 + $0x80] sm:$0xff]
  %v122 = vld [vmem:[%s6 + $0x88] sm:$0xff]
  %v123 = vld [vmem:[%s6 + $0x90] sm:$0xff]
  %v124 = vld [vmem:[%s6 + $0x98] sm:$0xff]
  %v125 = vld [vmem:[%s6 + $0xa0] sm:$0xff]
  %v126 = vld [vmem:[%s6 + $0xa8] sm:$0xff]
  %v127 = vld [vmem:[%s6 + $0xb0] sm:$0xff]
  %v128 = vld [vmem:[%s6 + $0xb8] sm:$0xff]
  %v129 = vld [vmem:[%s6 + $0xc0] sm:$0xff]
  %v130 = vld [vmem:[%s6 + $0xc8] sm:$0xff]
  %v131 = vld [vmem:[%s6 + $0xd0] sm:$0xff]
  %v132 = vld [vmem:[%s6 + $0xd8] sm:$0xff]
  %v133 = vld [vmem:[%s6 + $0xe0] sm:$0xff]
  %v134 = vld [vmem:[%s6 + $0xe8] sm:$0xff]
  %v135 = vld [vmem:[%s6 + $0xf0] sm:$0xff]
  %v136 = vld [vmem:[%s6 + $0xf8] sm:$0xff]
  %v137 = vld [vmem:[%s8] sm:$0xf]
  %v138 = vld [vmem:[%s8 + $0x4] sm:$0xf]
  %v139 = vld [vmem:[%s8 + $0x8] sm:$0xf]
  %v140 = vld [vmem:[%s8 + $0xc] sm:$0xf]
  %v141 = vld [vmem:[%s8 + $0x10] sm:$0xf]
  %v142 = vld [vmem:[%s8 + $0x14] sm:$0xf]
  %v143 = vld [vmem:[%s8 + $0x18] sm:$0xf]
  %v144 = vld [vmem:[%s8 + $0x1c] sm:$0xf]
  %v145 = vld [vmem:[%s8 + $0x20] sm:$0xf]
  %v146 = vld [vmem:[%s8 + $0x24] sm:$0xf]
  %v147 = vld [vmem:[%s8 + $0x28] sm:$0xf]
  %v148 = vld [vmem:[%s8 + $0x2c] sm:$0xf]
  %v149 = vld [vmem:[%s8 + $0x30] sm:$0xf]
  %v150 = vld [vmem:[%s8 + $0x34] sm:$0xf]
  %v151 = vld [vmem:[%s8 + $0x38] sm:$0xf]
  %v152 = vld [vmem:[%s8 + $0x3c] sm:$0xf]
  %v153 = vld [vmem:[%s8 + $0x40] sm:$0xf]
  %v154 = vld [vmem:[%s8 + $0x44] sm:$0xf]
  %v155 = vld [vmem:[%s8 + $0x48] sm:$0xf]
  %v156 = vld [vmem:[%s8 + $0x4c] sm:$0xf]
  %v157 = vld [vmem:[%s8 + $0x50] sm:$0xf]
  %v158 = vld [vmem:[%s8 + $0x54] sm:$0xf]
  %v159 = vld [vmem:[%s8 + $0x58] sm:$0xf]
  %v160 = vld [vmem:[%s8 + $0x5c] sm:$0xf]
  %v161 = vld [vmem:[%s8 + $0x60] sm:$0xf]
  %v162 = vld [vmem:[%s8 + $0x64] sm:$0xf]
  %v163 = vld [vmem:[%s8 + $0x68] sm:$0xf]
  %v164 = vld [vmem:[%s8 + $0x6c] sm:$0xf]
  %v165 = vld [vmem:[%s8 + $0x70] sm:$0xf]
  %v166 = vld [vmem:[%s8 + $0x74] sm:$0xf]
  %v167 = vld [vmem:[%s8 + $0x78] sm:$0xf]
  %v168 = vld [vmem:[%s8 + $0x7c] sm:$0xf]
  %v169 = vld [vmem:[%s8 + $0x80] sm:$0xf]
  %v170 = vld [vmem:[%s8 + $0x84] sm:$0xf]
  %v171 = vld [vmem:[%s8 + $0x88] sm:$0xf]
  %v172 = vld [vmem:[%s8 + $0x8c] sm:$0xf]
  %v173 = vld [vmem:[%s8 + $0x90] sm:$0xf]
  %v174 = vld [vmem:[%s8 + $0x94] sm:$0xf]
  %v175 = vld [vmem:[%s8 + $0x98] sm:$0xf]
  %v176 = vld [vmem:[%s8 + $0x9c] sm:$0xf]
  %v177 = vld [vmem:[%s8 + $0xa0] sm:$0xf]
  %v178 = vld [vmem:[%s8 + $0xa4] sm:$0xf]
  %v179 = vld [vmem:[%s8 + $0xa8] sm:$0xf]
  %v180 = vld [vmem:[%s8 + $0xac] sm:$0xf]
  %v181 = vld [vmem:[%s8 + $0xb0] sm:$0xf]
  %v182 = vld [vmem:[%s8 + $0xb4] sm:$0xf]
  %v183 = vld [vmem:[%s8 + $0xb8] sm:$0xf]
  %v184 = vld [vmem:[%s8 + $0xbc] sm:$0xf]
  %v185 = vld [vmem:[%s8 + $0xc0] sm:$0xf]
  %v186 = vld [vmem:[%s8 + $0xc4] sm:$0xf]
  %v187 = vld [vmem:[%s8 + $0xc8] sm:$0xf]
  %v188 = vld [vmem:[%s8 + $0xcc] sm:$0xf]
  %v189 = vld [vmem:[%s8 + $0xd0] sm:$0xf]
  %v190 = vld [vmem:[%s8 + $0xd4] sm:$0xf]
  %v191 = vld [vmem:[%s8 + $0xd8] sm:$0xf]
  %v192 = vld [vmem:[%s8 + $0xdc] sm:$0xf]
  %v193 = vld [vmem:[%s8 + $0xe0] sm:$0xf]
  %v194 = vld [vmem:[%s8 + $0xe4] sm:$0xf]
  %v195 = vld [vmem:[%s8 + $0xe8] sm:$0xf]
  %v196 = vld [vmem:[%s8 + $0xec] sm:$0xf]
  %v197 = vld [vmem:[%s8 + $0xf0] sm:$0xf]
  %v198 = vld [vmem:[%s8 + $0xf4] sm:$0xf]
  %v199 = vld [vmem:[%s8 + $0xf8] sm:$0xf]
  %v200 = vld [vmem:[%s8 + $0xfc] sm:$0xf]
  %v201 = vld [vmem:[%s8 + $0x100] sm:$0xf]
  %v202 = vld [vmem:[%s8 + $0x104] sm:$0xf]
  %v203 = vld [vmem:[%s8 + $0x108] sm:$0xf]
  %v204 = vld [vmem:[%s8 + $0x10c] sm:$0xf]
  %v205 = vld [vmem:[%s8 + $0x110] sm:$0xf]
  %v206 = vld [vmem:[%s8 + $0x114] sm:$0xf]
  %v207 = vld [vmem:[%s8 + $0x118] sm:$0xf]
  %v208 = vld [vmem:[%s8 + $0x11c] sm:$0xf]
  %v209 = vld [vmem:[%s8 + $0x120] sm:$0xf]
  %v210 = vld [vmem:[%s8 + $0x124] sm:$0xf]
  %v211 = vld [vmem:[%s8 + $0x128] sm:$0xf]
  %v212 = vld [vmem:[%s8 + $0x12c] sm:$0xf]
  %v213 = vld [vmem:[%s8 + $0x130] sm:$0xf]
  %v214 = vld [vmem:[%s8 + $0x134] sm:$0xf]
  %v215 = vld [vmem:[%s8 + $0x138] sm:$0xf]
  %v216 = vld [vmem:[%s8 + $0x13c] sm:$0xf]
  %v217 = vld [vmem:[%s8 + $0x140] sm:$0xf]
  %v218 = vld [vmem:[%s8 + $0x144] sm:$0xf]
  %v219 = vld [vmem:[%s8 + $0x148] sm:$0xf]
  %v220 = vld [vmem:[%s8 + $0x14c] sm:$0xf]
  %v221 = vld [vmem:[%s8 + $0x150] sm:$0xf]
  %v222 = vld [vmem:[%s8 + $0x154] sm:$0xf]
  %v223 = vld [vmem:[%s8 + $0x158] sm:$0xf]
  %v224 = vld [vmem:[%s8 + $0x15c] sm:$0xf]
  %v225 = vld [vmem:[%s8 + $0x160] sm:$0xf]
  %v226 = vld [vmem:[%s8 + $0x164] sm:$0xf]
  %v227 = vld [vmem:[%s8 + $0x168] sm:$0xf]
  %v228 = vld [vmem:[%s8 + $0x16c] sm:$0xf]
  %v229 = vld [vmem:[%s8 + $0x170] sm:$0xf]
  %v230 = vld [vmem:[%s8 + $0x174] sm:$0xf]
  %v231 = vld [vmem:[%s8 + $0x178] sm:$0xf]
  %v232 = vld [vmem:[%s8 + $0x17c] sm:$0xf]
  %v233 = vld [vmem:[%s8 + $0x180] sm:$0xf]
  %v234 = vld [vmem:[%s8 + $0x184] sm:$0xf]
  %v235 = vld [vmem:[%s8 + $0x188] sm:$0xf]
  %v236 = vld [vmem:[%s8 + $0x18c] sm:$0xf]
  %v237 = vld [vmem:[%s8 + $0x190] sm:$0xf]
  %v238 = vld [vmem:[%s8 + $0x194] sm:$0xf]
  %v239 = vld [vmem:[%s8 + $0x198] sm:$0xf]
  %v240 = vld [vmem:[%s8 + $0x19c] sm:$0xf]
  %v241 = vld [vmem:[%s8 + $0x1a0] sm:$0xf]
  %v242 = vld [vmem:[%s8 + $0x1a4] sm:$0xf]
  %v243 = vld [vmem:[%s8 + $0x1a8] sm:$0xf]
  %v244 = vld [vmem:[%s8 + $0x1ac] sm:$0xf]
  %v245 = vld [vmem:[%s8 + $0x1b0] sm:$0xf]
  %v246 = vld [vmem:[%s8 + $0x1b4] sm:$0xf]
  %v247 = vld [vmem:[%s8 + $0x1b8] sm:$0xf]
  %v248 = vld [vmem:[%s8 + $0x1bc] sm:$0xf]
  %v249 = vld [vmem:[%s8 + $0x1c0] sm:$0xf]
  %v250 = vld [vmem:[%s8 + $0x1c4] sm:$0xf]
  %v251 = vld [vmem:[%s8 + $0x1c8] sm:$0xf]
  %v252 = vld [vmem:[%s8 + $0x1cc] sm:$0xf]
  %v253 = vld [vmem:[%s8 + $0x1d0] sm:$0xf]
  %v254 = vld [vmem:[%s8 + $0x1d4] sm:$0xf]
  %v255 = vld [vmem:[%s8 + $0x1d8] sm:$0xf]
  %v256 = vld [vmem:[%s8 + $0x1dc] sm:$0xf]
  %v257 = vld [vmem:[%s8 + $0x1e0] sm:$0xf]
  %v258 = vld [vmem:[%s8 + $0x1e4] sm:$0xf]
  %v259 = vld [vmem:[%s8 + $0x1e8] sm:$0xf]
  %v260 = vld [vmem:[%s8 + $0x1ec] sm:$0xf]
  %v261 = vld [vmem:[%s8 + $0x1f0] sm:$0xf]
  %v262 = vld [vmem:[%s8 + $0x1f4] sm:$0xf]
  %v263 = vld [vmem:[%s8 + $0x1f8] sm:$0xf]
  %v264 = vld [vmem:[%s8 + $0x1fc] sm:$0xf]
  %v265 = vld [vmem:[%s8 + $0x200] sm:$0xf]
  %v266 = vld [vmem:[%s8 + $0x204] sm:$0xf]
  %v267 = vld [vmem:[%s8 + $0x208] sm:$0xf]
  %v268 = vld [vmem:[%s8 + $0x20c] sm:$0xf]
  %v269 = vld [vmem:[%s8 + $0x210] sm:$0xf]
  %v270 = vld [vmem:[%s8 + $0x214] sm:$0xf]
  %v271 = vld [vmem:[%s8 + $0x218] sm:$0xf]
  %v272 = vld [vmem:[%s8 + $0x21c] sm:$0xf]
  %v273 = vld [vmem:[%s8 + $0x220] sm:$0xf]
  %v274 = vld [vmem:[%s8 + $0x224] sm:$0xf]
  %v275 = vld [vmem:[%s8 + $0x228] sm:$0xf]
  %v276 = vld [vmem:[%s8 + $0x22c] sm:$0xf]
  %v277 = vld [vmem:[%s8 + $0x230] sm:$0xf]
  %v278 = vld [vmem:[%s8 + $0x234] sm:$0xf]
  %v279 = vld [vmem:[%s8 + $0x238] sm:$0xf]
  %v280 = vld [vmem:[%s8 + $0x23c] sm:$0xf]
  %v281 = vld [vmem:[%s8 + $0x240] sm:$0xf]
  %v282 = vld [vmem:[%s8 + $0x244] sm:$0xf]
  %v283 = vld [vmem:[%s8 + $0x248] sm:$0xf]
  %v284 = vld [vmem:[%s8 + $0x24c] sm:$0xf]
  %v285 = vld [vmem:[%s8 + $0x250] sm:$0xf]
  %v286 = vld [vmem:[%s8 + $0x254] sm:$0xf]
  %v287 = vld [vmem:[%s8 + $0x258] sm:$0xf]
  %v288 = vld [vmem:[%s8 + $0x25c] sm:$0xf]
  %v289 = vld [vmem:[%s8 + $0x260] sm:$0xf]
  %v290 = vld [vmem:[%s8 + $0x264] sm:$0xf]
  %v291 = vld [vmem:[%s8 + $0x268] sm:$0xf]
  %v292 = vld [vmem:[%s8 + $0x26c] sm:$0xf]
  %v293 = vld [vmem:[%s8 + $0x270] sm:$0xf]
  %v294 = vld [vmem:[%s8 + $0x274] sm:$0xf]
  %v295 = vld [vmem:[%s8 + $0x278] sm:$0xf]
  %v296 = vld [vmem:[%s8 + $0x27c] sm:$0xf]
  %v297 = vld [vmem:[%s8 + $0x280] sm:$0xf]
  %v298 = vld [vmem:[%s8 + $0x284] sm:$0xf]
  %v299 = vld [vmem:[%s8 + $0x288] sm:$0xf]
  %v300 = vld [vmem:[%s8 + $0x28c] sm:$0xf]
  %v301 = vld [vmem:[%s8 + $0x290] sm:$0xf]
  %v302 = vld [vmem:[%s8 + $0x294] sm:$0xf]
  %v303 = vld [vmem:[%s8 + $0x298] sm:$0xf]
  %v304 = vld [vmem:[%s8 + $0x29c] sm:$0xf]
  %v305 = vld [vmem:[%s8 + $0x2a0] sm:$0xf]
  %v306 = vld [vmem:[%s8 + $0x2a4] sm:$0xf]
  %v307 = vld [vmem:[%s8 + $0x2a8] sm:$0xf]
  %v308 = vld [vmem:[%s8 + $0x2ac] sm:$0xf]
  %v309 = vld [vmem:[%s8 + $0x2b0] sm:$0xf]
  %v310 = vld [vmem:[%s8 + $0x2b4] sm:$0xf]
  %v311 = vld [vmem:[%s8 + $0x2b8] sm:$0xf]
  %v312 = vld [vmem:[%s8 + $0x2bc] sm:$0xf]
  %v313 = vld [vmem:[%s8 + $0x2c0] sm:$0xf]
  %v314 = vld [vmem:[%s8 + $0x2c4] sm:$0xf]
  %v315 = vld [vmem:[%s8 + $0x2c8] sm:$0xf]
  %v316 = vld [vmem:[%s8 + $0x2cc] sm:$0xf]
  %v317 = vld [vmem:[%s8 + $0x2d0] sm:$0xf]
  %v318 = vld [vmem:[%s8 + $0x2d4] sm:$0xf]
  %v319 = vld [vmem:[%s8 + $0x2d8] sm:$0xf]
  %v320 = vld [vmem:[%s8 + $0x2dc] sm:$0xf]
  %v321 = vld [vmem:[%s8 + $0x2e0] sm:$0xf]
  %v322 = vld [vmem:[%s8 + $0x2e4] sm:$0xf]
  %v323 = vld [vmem:[%s8 + $0x2e8] sm:$0xf]
  %v324 = vld [vmem:[%s8 + $0x2ec] sm:$0xf]
  %v325 = vld [vmem:[%s8 + $0x2f0] sm:$0xf]
  %v326 = vld [vmem:[%s8 + $0x2f4] sm:$0xf]
  %v327 = vld [vmem:[%s8 + $0x2f8] sm:$0xf]
  %v328 = vld [vmem:[%s8 + $0x2fc] sm:$0xf]
  %v329 = vld [vmem:[%s8 + $0x300] sm:$0xf]
  %v330 = vld [vmem:[%s8 + $0x304] sm:$0xf]
  %v331 = vld [vmem:[%s8 + $0x308] sm:$0xf]
  %v332 = vld [vmem:[%s8 + $0x30c] sm:$0xf]
  %v333 = vld [vmem:[%s8 + $0x310] sm:$0xf]
  %v334 = vld [vmem:[%s8 + $0x314] sm:$0xf]
  %v335 = vld [vmem:[%s8 + $0x318] sm:$0xf]
  %v336 = vld [vmem:[%s8 + $0x31c] sm:$0xf]
  %v337 = vld [vmem:[%s8 + $0x320] sm:$0xf]
  %v338 = vld [vmem:[%s8 + $0x324] sm:$0xf]
  %v339 = vld [vmem:[%s8 + $0x328] sm:$0xf]
  %v340 = vld [vmem:[%s8 + $0x32c] sm:$0xf]
  %v341 = vld [vmem:[%s8 + $0x330] sm:$0xf]
  %v342 = vld [vmem:[%s8 + $0x334] sm:$0xf]
  %v343 = vld [vmem:[%s8 + $0x338] sm:$0xf]
  %v344 = vld [vmem:[%s8 + $0x33c] sm:$0xf]
  %v345 = vld [vmem:[%s8 + $0x340] sm:$0xf]
  %v346 = vld [vmem:[%s8 + $0x344] sm:$0xf]
  %v347 = vld [vmem:[%s8 + $0x348] sm:$0xf]
  %v348 = vld [vmem:[%s8 + $0x34c] sm:$0xf]
  %v349 = vld [vmem:[%s8 + $0x350] sm:$0xf]
  %v350 = vld [vmem:[%s8 + $0x354] sm:$0xf]
  %v351 = vld [vmem:[%s8 + $0x358] sm:$0xf]
  %v352 = vld [vmem:[%s8 + $0x35c] sm:$0xf]
  %v353 = vld [vmem:[%s8 + $0x360] sm:$0xf]
  %v354 = vld [vmem:[%s8 + $0x364] sm:$0xf]
  %v355 = vld [vmem:[%s8 + $0x368] sm:$0xf]
  %v356 = vld [vmem:[%s8 + $0x36c] sm:$0xf]
  %v357 = vld [vmem:[%s8 + $0x370] sm:$0xf]
  %v358 = vld [vmem:[%s8 + $0x374] sm:$0xf]
  %v359 = vld [vmem:[%s8 + $0x378] sm:$0xf]
  %v360 = vld [vmem:[%s8 + $0x37c] sm:$0xf]
  %v361 = vld [vmem:[%s8 + $0x380] sm:$0xf]
  %v362 = vld [vmem:[%s8 + $0x384] sm:$0xf]
  %v363 = vld [vmem:[%s8 + $0x388] sm:$0xf]
  %v364 = vld [vmem:[%s8 + $0x38c] sm:$0xf]
  %v365 = vld [vmem:[%s8 + $0x390] sm:$0xf]
  %v366 = vld [vmem:[%s8 + $0x394] sm:$0xf]
  %v367 = vld [vmem:[%s8 + $0x398] sm:$0xf]
  %v368 = vld [vmem:[%s8 + $0x39c] sm:$0xf]
  %v369 = vld [vmem:[%s8 + $0x3a0] sm:$0xf]
  %v370 = vld [vmem:[%s8 + $0x3a4] sm:$0xf]
  %v371 = vld [vmem:[%s8 + $0x3a8] sm:$0xf]
  %v372 = vld [vmem:[%s8 + $0x3ac] sm:$0xf]
  %v373 = vld [vmem:[%s8 + $0x3b0] sm:$0xf]
  %v374 = vld [vmem:[%s8 + $0x3b4] sm:$0xf]
  %v375 = vld [vmem:[%s8 + $0x3b8] sm:$0xf]
  %v376 = vld [vmem:[%s8 + $0x3bc] sm:$0xf]
  %v377 = vld [vmem:[%s8 + $0x3c0] sm:$0xf]
  %v378 = vld [vmem:[%s8 + $0x3c4] sm:$0xf]
  %v379 = vld [vmem:[%s8 + $0x3c8] sm:$0xf]
  %v380 = vld [vmem:[%s8 + $0x3cc] sm:$0xf]
  %v381 = vld [vmem:[%s8 + $0x3d0] sm:$0xf]
  %v382 = vld [vmem:[%s8 + $0x3d4] sm:$0xf]
  %v383 = vld [vmem:[%s8 + $0x3d8] sm:$0xf]
  %v384 = vld [vmem:[%s8 + $0x3dc] sm:$0xf]
  %v385 = vld [vmem:[%s8 + $0x3e0] sm:$0xf]
  %v386 = vld [vmem:[%s8 + $0x3e4] sm:$0xf]
  %v387 = vld [vmem:[%s8 + $0x3e8] sm:$0xf]
  %v388 = vld [vmem:[%s8 + $0x3ec] sm:$0xf]
  %v389 = vld [vmem:[%s8 + $0x3f0] sm:$0xf]
  %v390 = vld [vmem:[%s8 + $0x3f4] sm:$0xf]
  %v391 = vld [vmem:[%s8 + $0x3f8] sm:$0xf]
  %v392 = vld [vmem:[%s8 + $0x3fc] sm:$0xf]
  %v393 = vpack.c.bf16 %v94, %v93
  %v394 = vpack.c.bf16 %v96, %v95
  %v395 = vld [vmem:[%s3] sm:$0x1]
  %v397 = vlaneseq
  %v398 = vshrl.u32 %v397, 7
  %v399 = vsub.s32 0, %v398
  %v400 = vrot.slane %v395, %v399
  %v406 = vunpack.c.l.b16 %v97
  %v407 = vunpack.c.l.b16 %v98
  %v408 = vunpack.c.l.b16 %v99
  %v409 = vunpack.c.l.b16 %v100
  %v410 = vpack.c.b16 %v407, %v406
  %v411 = vpack.c.b16 %v409, %v408
  %vm414 = vcmask 261120
  %v416 = vsel %vm414, %v393, 0
  %v419 = vsel %vm414, %v394, 0
  %421 = vmatprep.subr.bf16.mxu0 0
  %422 = vmatpush1.bf16.msra.mxu0 %v410
  %423 = vmatprep.subr.bf16.mxu0 0
  %424 = vmatpush1.bf16.msra.mxu0 %v411
  %425 = vmatprep.subr.bf16.mxu0 0
  %426 = vmatpush1.bf16.msra.mxu0 0
  %427 = vmatprep.subr.bf16.mxu0 0
  %428 = vmatpush1.bf16.msra.mxu0 0
  %429 = vmatprep.subr.bf16.mxu0 0
  %430 = vmatpush1.bf16.msra.mxu0 0
  %431 = vmatprep.subr.bf16.mxu0 0
  %432 = vmatpush1.bf16.msra.mxu0 0
  %433 = vmatprep.subr.bf16.mxu0 0
  %434 = vmatpush1.bf16.msra.mxu0 0
  %435 = vmatprep.subr.bf16.mxu0 0
  %436 = vmatpush1.bf16.msra.mxu0 0
  %437 = vmatprep.subr.bf16.mxu0 0
  %438 = vmatpush1.bf16.msra.mxu0 0
  %439 = vmatprep.subr.bf16.mxu0 0
  %440 = vmatpush1.bf16.msra.mxu0 0
  %441 = vmatprep.subr.bf16.mxu0 0
  %442 = vmatpush1.bf16.msra.mxu0 0
  %443 = vmatprep.subr.bf16.mxu0 0
  %444 = vmatpush1.bf16.msra.mxu0 0
  %445 = vmatprep.subr.bf16.mxu0 0
  %446 = vmatpush1.bf16.msra.mxu0 0
  %447 = vmatprep.subr.bf16.mxu0 0
  %448 = vmatpush1.bf16.msra.mxu0 0
  %449 = vmatprep.subr.bf16.mxu0 0
  %450 = vmatpush1.bf16.msra.mxu0 0
  %451 = vmatprep.subr.bf16.mxu0 0
  %452 = vmatpush1.bf16.msra.mxu0 0
  %453 = vmatprep.mubr.bf16.mxu0 0
  %454 = vmatmul.mubr.bf16.gmra.mrb[0].mxu0 %v416
  %v455 = vpop.f32.mrb[0].mxu0
  %v456 = vadd.f32 %v400, %v455
  %v457 = vpop.f32.mrb[0].mxu0
  %v458 = vpop.f32.mrb[0].mxu0
  %v459 = vadd.f32 %v400, %v458
  %v460 = vpop.f32.mrb[0].mxu0
  %461 = vmatprep.mubr.bf16.mxu0 0
  %462 = vmatmul.mubr.bf16.gmra.mrb[0].mxu0 %v419
  %v463 = vpop.f32.mrb[0].mxu0
  %v464 = vadd.f32 %v400, %v463
  %v465 = vpop.f32.mrb[0].mxu0
  %v466 = vpop.f32.mrb[0].mxu0
  %v467 = vadd.f32 %v400, %v466
  %v468 = vpop.f32.mrb[0].mxu0
  %469 = vdwg.mxu0
  %v470 = vpack.c.bf16 %v456, %v456
  %v471 = vpack.c.bf16 %v459, %v459
  %v472 = vpack.c.bf16 %v464, %v464
  %v473 = vpack.c.bf16 %v467, %v467
  %475 = vrot.lane.b32.xlu0 %v470, 96
  %v476 = vpop.permute.xlu0 %475
  %vm477 = vcmask 64512
  %v479 = vsel %vm477, %v470, 0
  %v482 = vsel %vm477, %v476, 0
  %484 = vmatprep.subr.bf16.mxu0 0
  %485 = vmatpush1.bf16.xpose.msra.mxu0 %v482
  %486 = vmatprep.subr.bf16.mxu0 0
  %487 = vmatpush1.bf16.xpose.msra.mxu0 0
  %488 = vmatprep.subr.bf16.mxu0 0
  %489 = vmatpush1.bf16.xpose.msra.mxu0 0
  %490 = vmatprep.subr.bf16.mxu0 0
  %491 = vmatpush1.bf16.xpose.msra.mxu0 0
  %492 = vmatprep.subr.bf16.mxu0 0
  %493 = vmatpush1.bf16.xpose.msra.mxu0 0
  %494 = vmatprep.subr.bf16.mxu0 0
  %495 = vmatpush1.bf16.xpose.msra.mxu0 0
  %496 = vmatprep.subr.bf16.mxu0 0
  %497 = vmatpush1.bf16.xpose.msra.mxu0 0
  %498 = vmatprep.subr.bf16.mxu0 0
  %499 = vmatpush1.bf16.xpose.msra.mxu0 0
  %500 = vmatprep.subr.bf16.mxu0 0
  %501 = vmatpush1.bf16.xpose.msra.mxu0 0
  %502 = vmatprep.subr.bf16.mxu0 0
  %503 = vmatpush1.bf16.xpose.msra.mxu0 0
  %504 = vmatprep.subr.bf16.mxu0 0
  %505 = vmatpush1.bf16.xpose.msra.mxu0 0
  %506 = vmatprep.subr.bf16.mxu0 0
  %507 = vmatpush1.bf16.xpose.msra.mxu0 0
  %508 = vmatprep.subr.bf16.mxu0 0
  %509 = vmatpush1.bf16.xpose.msra.mxu0 0
  %510 = vmatprep.subr.bf16.mxu0 0
  %511 = vmatpush1.bf16.xpose.msra.mxu0 0
  %512 = vmatprep.subr.bf16.mxu0 0
  %513 = vmatpush1.bf16.xpose.msra.mxu0 0
  %514 = vmatprep.subr.bf16.mxu0 0
  %515 = vmatpush1.bf16.xpose.msra.mxu0 0
  %516 = vmatprep.mubr.bf16.mxu0 0
  %517 = vmatmul.mubr.bf16.gmra.mrb[0].mxu0 %v479
  %v518 = vpop.f32.mrb[0].mxu0
  %v519 = vadd.f32 0.0, %v518
  %v520 = vpop.f32.mrb[0].mxu0
  %v521 = vpop.f32.mrb[0].mxu0
  %v522 = vpop.f32.mrb[0].mxu0
  %523 = vdwg.mxu0
  %525 = vrot.lane.b32.xlu0 %v471, 96
  %v526 = vpop.permute.xlu0 %525
  %v528 = vsel %vm477, %v471, 0
  %v531 = vsel %vm477, %v526, 0
  %533 = vmatprep.subr.bf16.mxu0 0
  %534 = vmatpush1.bf16.xpose.msra.mxu0 %v531
  %535 = vmatprep.subr.bf16.mxu0 0
  %536 = vmatpush1.bf16.xpose.msra.mxu0 0
  %537 = vmatprep.subr.bf16.mxu0 0
  %538 = vmatpush1.bf16.xpose.msra.mxu0 0
  %539 = vmatprep.subr.bf16.mxu0 0
  %540 = vmatpush1.bf16.xpose.msra.mxu0 0
  %541 = vmatprep.subr.bf16.mxu0 0
  %542 = vmatpush1.bf16.xpose.msra.mxu0 0
  %543 = vmatprep.subr.bf16.mxu0 0
  %544 = vmatpush1.bf16.xpose.msra.mxu0 0
  %545 = vmatprep.subr.bf16.mxu0 0
  %546 = vmatpush1.bf16.xpose.msra.mxu0 0
  %547 = vmatprep.subr.bf16.mxu0 0
  %548 = vmatpush1.bf16.xpose.msra.mxu0 0
  %549 = vmatprep.subr.bf16.mxu0 0
  %550 = vmatpush1.bf16.xpose.msra.mxu0 0
  %551 = vmatprep.subr.bf16.mxu0 0
  %552 = vmatpush1.bf16.xpose.msra.mxu0 0
  %553 = vmatprep.subr.bf16.mxu0 0
  %554 = vmatpush1.bf16.xpose.msra.mxu0 0
  %555 = vmatprep.subr.bf16.mxu0 0
  %556 = vmatpush1.bf16.xpose.msra.mxu0 0
  %557 = vmatprep.subr.bf16.mxu0 0
  %558 = vmatpush1.bf16.xpose.msra.mxu0 0
  %559 = vmatprep.subr.bf16.mxu0 0
  %560 = vmatpush1.bf16.xpose.msra.mxu0 0
  %561 = vmatprep.subr.bf16.mxu0 0
  %562 = vmatpush1.bf16.xpose.msra.mxu0 0
  %563 = vmatprep.subr.bf16.mxu0 0
  %564 = vmatpush1.bf16.xpose.msra.mxu0 0
  %565 = vmatprep.mubr.bf16.mxu0 0
  %566 = vmatmul.mubr.bf16.gmra.mrb[0].mxu0 %v528
  %v567 = vpop.f32.mrb[0].mxu0
  %v568 = vadd.f32 0.0, %v567
  %v569 = vpop.f32.mrb[0].mxu0
  %v570 = vpop.f32.mrb[0].mxu0
  %v571 = vpop.f32.mrb[0].mxu0
  %572 = vdwg.mxu0
  %574 = vrot.lane.b32.xlu0 %v472, 96
  %v575 = vpop.permute.xlu0 %574
  %v577 = vsel %vm477, %v472, 0
  %v580 = vsel %vm477, %v575, 0
  %582 = vmatprep.subr.bf16.mxu0 0
  %583 = vmatpush1.bf16.xpose.msra.mxu0 %v580
  %584 = vmatprep.subr.bf16.mxu0 0
  %585 = vmatpush1.bf16.xpose.msra.mxu0 0
  %586 = vmatprep.subr.bf16.mxu0 0
  %587 = vmatpush1.bf16.xpose.msra.mxu0 0
  %588 = vmatprep.subr.bf16.mxu0 0
  %589 = vmatpush1.bf16.xpose.msra.mxu0 0
  %590 = vmatprep.subr.bf16.mxu0 0
  %591 = vmatpush1.bf16.xpose.msra.mxu0 0
  %592 = vmatprep.subr.bf16.mxu0 0
  %593 = vmatpush1.bf16.xpose.msra.mxu0 0
  %594 = vmatprep.subr.bf16.mxu0 0
  %595 = vmatpush1.bf16.xpose.msra.mxu0 0
  %596 = vmatprep.subr.bf16.mxu0 0
  %597 = vmatpush1.bf16.xpose.msra.mxu0 0
  %598 = vmatprep.subr.bf16.mxu0 0
  %599 = vmatpush1.bf16.xpose.msra.mxu0 0
  %600 = vmatprep.subr.bf16.mxu0 0
  %601 = vmatpush1.bf16.xpose.msra.mxu0 0
  %602 = vmatprep.subr.bf16.mxu0 0
  %603 = vmatpush1.bf16.xpose.msra.mxu0 0
  %604 = vmatprep.subr.bf16.mxu0 0
  %605 = vmatpush1.bf16.xpose.msra.mxu0 0
  %606 = vmatprep.subr.bf16.mxu0 0
  %607 = vmatpush1.bf16.xpose.msra.mxu0 0
  %608 = vmatprep.subr.bf16.mxu0 0
  %609 = vmatpush1.bf16.xpose.msra.mxu0 0
  %610 = vmatprep.subr.bf16.mxu0 0
  %611 = vmatpush1.bf16.xpose.msra.mxu0 0
  %612 = vmatprep.subr.bf16.mxu0 0
  %613 = vmatpush1.bf16.xpose.msra.mxu0 0
  %614 = vmatprep.mubr.bf16.mxu0 0
  %615 = vmatmul.mubr.bf16.gmra.mrb[0].mxu0 %v577
  %v616 = vpop.f32.mrb[0].mxu0
  %v617 = vadd.f32 0.0, %v616
  %v618 = vpop.f32.mrb[0].mxu0
  %v619 = vpop.f32.mrb[0].mxu0
  %v620 = vpop.f32.mrb[0].mxu0
  %621 = vdwg.mxu0
  %623 = vrot.lane.b32.xlu0 %v473, 96
  %v624 = vpop.permute.xlu0 %623
  %v626 = vsel %vm477, %v473, 0
  %v629 = vsel %vm477, %v624, 0
  %631 = vmatprep.subr.bf16.mxu0 0
  %632 = vmatpush1.bf16.xpose.msra.mxu0 %v629
  %633 = vmatprep.subr.bf16.mxu0 0
  %634 = vmatpush1.bf16.xpose.msra.mxu0 0
  %635 = vmatprep.subr.bf16.mxu0 0
  %636 = vmatpush1.bf16.xpose.msra.mxu0 0
  %637 = vmatprep.subr.bf16.mxu0 0
  %638 = vmatpush1.bf16.xpose.msra.mxu0 0
  %639 = vmatprep.subr.bf16.mxu0 0
  %640 = vmatpush1.bf16.xpose.msra.mxu0 0
  %641 = vmatprep.subr.bf16.mxu0 0
  %642 = vmatpush1.bf16.xpose.msra.mxu0 0
  %643 = vmatprep.subr.bf16.mxu0 0
  %644 = vmatpush1.bf16.xpose.msra.mxu0 0
  %645 = vmatprep.subr.bf16.mxu0 0
  %646 = vmatpush1.bf16.xpose.msra.mxu0 0
  %647 = vmatprep.subr.bf16.mxu0 0
  %648 = vmatpush1.bf16.xpose.msra.mxu0 0
  %649 = vmatprep.subr.bf16.mxu0 0
  %650 = vmatpush1.bf16.xpose.msra.mxu0 0
  %651 = vmatprep.subr.bf16.mxu0 0
  %652 = vmatpush1.bf16.xpose.msra.mxu0 0
  %653 = vmatprep.subr.bf16.mxu0 0
  %654 = vmatpush1.bf16.xpose.msra.mxu0 0
  %655 = vmatprep.subr.bf16.mxu0 0
  %656 = vmatpush1.bf16.xpose.msra.mxu0 0
  %657 = vmatprep.subr.bf16.mxu0 0
  %658 = vmatpush1.bf16.xpose.msra.mxu0 0
  %659 = vmatprep.subr.bf16.mxu0 0
  %660 = vmatpush1.bf16.xpose.msra.mxu0 0
  %661 = vmatprep.subr.bf16.mxu0 0
  %662 = vmatpush1.bf16.xpose.msra.mxu0 0
  %663 = vmatprep.mubr.bf16.mxu0 0
  %664 = vmatmul.mubr.bf16.gmra.mrb[0].mxu0 %v626
  %v665 = vpop.f32.mrb[0].mxu0
  %v666 = vadd.f32 0.0, %v665
  %v667 = vpop.f32.mrb[0].mxu0
  %v668 = vpop.f32.mrb[0].mxu0
  %v669 = vpop.f32.mrb[0].mxu0
  %670 = vdwg.mxu0
  %v671 = vmul.f32 %v519, 0.35355338
  %v672 = vmul.f32 %v568, 0.35355338
  %v673 = vmul.f32 %v617, 0.35355338
  %v674 = vmul.f32 %v666, 0.35355338
  %v675 = vsel %vm477, %v671, -inf
  %676 = vmax.xlane.f32.xlu0 %v675
  %v677 = vpop.xlane.xlu0 %676
  %v678 = vsel %vm477, %v672, -inf
  %679 = vmax.xlane.f32.xlu0 %v678
  %v680 = vpop.xlane.xlu0 %679
  %v681 = vsel %vm477, %v673, -inf
  %682 = vmax.xlane.f32.xlu0 %v681
  %v683 = vpop.xlane.xlu0 %682
  %v684 = vsel %vm477, %v674, -inf
  %685 = vmax.xlane.f32.xlu0 %v684
  %v686 = vpop.xlane.xlu0 %685
  %v687 = vsub.f32 %v671, %v677
  %v688 = vsub.f32 %v672, %v680
  %v689 = vsub.f32 %v673, %v683
  %v690 = vsub.f32 %v674, %v686
  %v691 = vmul.f32 %v687, 1.442695
  %v692 = vpow.pop %v691
  %v693 = vmul.f32 %v688, 1.442695
  %v694 = vpow.pop %v693
  %v695 = vmul.f32 %v689, 1.442695
  %v696 = vpow.pop %v695
  %v697 = vmul.f32 %v690, 1.442695
  %v698 = vpow.pop %v697
  %v699 = vsel %vm477, %v692, 0.0
  %700 = vadd.xlane.f32.xlu0 %v699
  %v701 = vpop.xlane.xlu0 %700
  %v702 = vsel %vm477, %v694, 0.0
  %703 = vadd.xlane.f32.xlu0 %v702
  %v704 = vpop.xlane.xlu0 %703
  %v705 = vsel %vm477, %v696, 0.0
  %706 = vadd.xlane.f32.xlu0 %v705
  %v707 = vpop.xlane.xlu0 %706
  %v708 = vsel %vm477, %v698, 0.0
  %709 = vadd.xlane.f32.xlu0 %v708
  %v710 = vpop.xlane.xlu0 %709
  %v711 = vrcp.pop %v701
  %v712 = vrcp.pop %v704
  %v713 = vrcp.pop %v707
  %v714 = vrcp.pop %v710
  %v715 = vmul.f32 %v692, %v711
  %v716 = vmul.f32 %v694, %v712
  %v717 = vmul.f32 %v696, %v713
  %v718 = vmul.f32 %v698, %v714
  %v719 = vpack.c.bf16 %v715, %v715
  %v720 = vpack.c.bf16 %v716, %v716
  %v721 = vpack.c.bf16 %v717, %v717
  %v722 = vpack.c.bf16 %v718, %v718
  %723 = vrot.lane.b32.xlu0 %v470, 64
  %v724 = vpop.permute.xlu0 %723
  %v726 = vsel %vm477, %v719, 0
  %vm728 = vcmask 1043456
  %v730 = vsel %vm728, %v724, 0
  %732 = vmatprep.subr.bf16.mxu0 0
  %733 = vmatpush1.bf16.msra.mxu0 %v730
  %734 = vmatprep.subr.bf16.mxu0 0
  %735 = vmatpush1.bf16.msra.mxu0 0
  %736 = vmatprep.subr.bf16.mxu0 0
  %737 = vmatpush1.bf16.msra.mxu0 0
  %738 = vmatprep.subr.bf16.mxu0 0
  %739 = vmatpush1.bf16.msra.mxu0 0
  %740 = vmatprep.subr.bf16.mxu0 0
  %741 = vmatpush1.bf16.msra.mxu0 0
  %742 = vmatprep.subr.bf16.mxu0 0
  %743 = vmatpush1.bf16.msra.mxu0 0
  %744 = vmatprep.subr.bf16.mxu0 0
  %745 = vmatpush1.bf16.msra.mxu0 0
  %746 = vmatprep.subr.bf16.mxu0 0
  %747 = vmatpush1.bf16.msra.mxu0 0
  %748 = vmatprep.subr.bf16.mxu0 0
  %749 = vmatpush1.bf16.msra.mxu0 0
  %750 = vmatprep.subr.bf16.mxu0 0
  %751 = vmatpush1.bf16.msra.mxu0 0
  %752 = vmatprep.subr.bf16.mxu0 0
  %753 = vmatpush1.bf16.msra.mxu0 0
  %754 = vmatprep.subr.bf16.mxu0 0
  %755 = vmatpush1.bf16.msra.mxu0 0
  %756 = vmatprep.subr.bf16.mxu0 0
  %757 = vmatpush1.bf16.msra.mxu0 0
  %758 = vmatprep.subr.bf16.mxu0 0
  %759 = vmatpush1.bf16.msra.mxu0 0
  %760 = vmatprep.subr.bf16.mxu0 0
  %761 = vmatpush1.bf16.msra.mxu0 0
  %762 = vmatprep.subr.bf16.mxu0 0
  %763 = vmatpush1.bf16.msra.mxu0 0
  %764 = vmatprep.mubr.bf16.mxu0 0
  %765 = vmatmul.mubr.bf16.gmra.mrb[0].mxu0 %v726
  %v766 = vpop.f32.mrb[0].mxu0
  %v767 = vadd.f32 0.0, %v766
  %v768 = vpop.f32.mrb[0].mxu0
  %v769 = vpop.f32.mrb[0].mxu0
  %v770 = vpop.f32.mrb[0].mxu0
  %771 = vdwg.mxu0
  %772 = vrot.lane.b32.xlu0 %v471, 64
  %v773 = vpop.permute.xlu0 %772
  %v775 = vsel %vm477, %v720, 0
  %v778 = vsel %vm728, %v773, 0
  %780 = vmatprep.subr.bf16.mxu0 0
  %781 = vmatpush1.bf16.msra.mxu0 %v778
  %782 = vmatprep.subr.bf16.mxu0 0
  %783 = vmatpush1.bf16.msra.mxu0 0
  %784 = vmatprep.subr.bf16.mxu0 0
  %785 = vmatpush1.bf16.msra.mxu0 0
  %786 = vmatprep.subr.bf16.mxu0 0
  %787 = vmatpush1.bf16.msra.mxu0 0
  %788 = vmatprep.subr.bf16.mxu0 0
  %789 = vmatpush1.bf16.msra.mxu0 0
  %790 = vmatprep.subr.bf16.mxu0 0
  %791 = vmatpush1.bf16.msra.mxu0 0
  %792 = vmatprep.subr.bf16.mxu0 0
  %793 = vmatpush1.bf16.msra.mxu0 0
  %794 = vmatprep.subr.bf16.mxu0 0
  %795 = vmatpush1.bf16.msra.mxu0 0
  %796 = vmatprep.subr.bf16.mxu0 0
  %797 = vmatpush1.bf16.msra.mxu0 0
  %798 = vmatprep.subr.bf16.mxu0 0
  %799 = vmatpush1.bf16.msra.mxu0 0
  %800 = vmatprep.subr.bf16.mxu0 0
  %801 = vmatpush1.bf16.msra.mxu0 0
  %802 = vmatprep.subr.bf16.mxu0 0
  %803 = vmatpush1.bf16.msra.mxu0 0
  %804 = vmatprep.subr.bf16.mxu0 0
  %805 = vmatpush1.bf16.msra.mxu0 0
  %806 = vmatprep.subr.bf16.mxu0 0
  %807 = vmatpush1.bf16.msra.mxu0 0
  %808 = vmatprep.subr.bf16.mxu0 0
  %809 = vmatpush1.bf16.msra.mxu0 0
  %810 = vmatprep.subr.bf16.mxu0 0
  %811 = vmatpush1.bf16.msra.mxu0 0
  %812 = vmatprep.mubr.bf16.mxu0 0
  %813 = vmatmul.mubr.bf16.gmra.mrb[0].mxu0 %v775
  %v814 = vpop.f32.mrb[0].mxu0
  %v815 = vadd.f32 0.0, %v814
  %v816 = vpop.f32.mrb[0].mxu0
  %v817 = vpop.f32.mrb[0].mxu0
  %v818 = vpop.f32.mrb[0].mxu0
  %819 = vdwg.mxu0
  %820 = vrot.lane.b32.xlu0 %v472, 64
  %v821 = vpop.permute.xlu0 %820
  %v823 = vsel %vm477, %v721, 0
  %v826 = vsel %vm728, %v821, 0
  %828 = vmatprep.subr.bf16.mxu0 0
  %829 = vmatpush1.bf16.msra.mxu0 %v826
  %830 = vmatprep.subr.bf16.mxu0 0
  %831 = vmatpush1.bf16.msra.mxu0 0
  %832 = vmatprep.subr.bf16.mxu0 0
  %833 = vmatpush1.bf16.msra.mxu0 0
  %834 = vmatprep.subr.bf16.mxu0 0
  %835 = vmatpush1.bf16.msra.mxu0 0
  %836 = vmatprep.subr.bf16.mxu0 0
  %837 = vmatpush1.bf16.msra.mxu0 0
  %838 = vmatprep.subr.bf16.mxu0 0
  %839 = vmatpush1.bf16.msra.mxu0 0
  %840 = vmatprep.subr.bf16.mxu0 0
  %841 = vmatpush1.bf16.msra.mxu0 0
  %842 = vmatprep.subr.bf16.mxu0 0
  %843 = vmatpush1.bf16.msra.mxu0 0
  %844 = vmatprep.subr.bf16.mxu0 0
  %845 = vmatpush1.bf16.msra.mxu0 0
  %846 = vmatprep.subr.bf16.mxu0 0
  %847 = vmatpush1.bf16.msra.mxu0 0
  %848 = vmatprep.subr.bf16.mxu0 0
  %849 = vmatpush1.bf16.msra.mxu0 0
  %850 = vmatprep.subr.bf16.mxu0 0
  %851 = vmatpush1.bf16.msra.mxu0 0
  %852 = vmatprep.subr.bf16.mxu0 0
  %853 = vmatpush1.bf16.msra.mxu0 0
  %854 = vmatprep.subr.bf16.mxu0 0
  %855 = vmatpush1.bf16.msra.mxu0 0
  %856 = vmatprep.subr.bf16.mxu0 0
  %857 = vmatpush1.bf16.msra.mxu0 0
  %858 = vmatprep.subr.bf16.mxu0 0
  %859 = vmatpush1.bf16.msra.mxu0 0
  %860 = vmatprep.mubr.bf16.mxu0 0
  %861 = vmatmul.mubr.bf16.gmra.mrb[0].mxu0 %v823
  %v862 = vpop.f32.mrb[0].mxu0
  %v863 = vadd.f32 0.0, %v862
  %v864 = vpop.f32.mrb[0].mxu0
  %v865 = vpop.f32.mrb[0].mxu0
  %v866 = vpop.f32.mrb[0].mxu0
  %867 = vdwg.mxu0
  %868 = vrot.lane.b32.xlu0 %v473, 64
  %v869 = vpop.permute.xlu0 %868
  %v871 = vsel %vm477, %v722, 0
  %v874 = vsel %vm728, %v869, 0
  %876 = vmatprep.subr.bf16.mxu0 0
  %877 = vmatpush1.bf16.msra.mxu0 %v874
  %878 = vmatprep.subr.bf16.mxu0 0
  %879 = vmatpush1.bf16.msra.mxu0 0
  %880 = vmatprep.subr.bf16.mxu0 0
  %881 = vmatpush1.bf16.msra.mxu0 0
  %882 = vmatprep.subr.bf16.mxu0 0
  %883 = vmatpush1.bf16.msra.mxu0 0
  %884 = vmatprep.subr.bf16.mxu0 0
  %885 = vmatpush1.bf16.msra.mxu0 0
  %886 = vmatprep.subr.bf16.mxu0 0
  %887 = vmatpush1.bf16.msra.mxu0 0
  %888 = vmatprep.subr.bf16.mxu0 0
  %889 = vmatpush1.bf16.msra.mxu0 0
  %890 = vmatprep.subr.bf16.mxu0 0
  %891 = vmatpush1.bf16.msra.mxu0 0
  %892 = vmatprep.subr.bf16.mxu0 0
  %893 = vmatpush1.bf16.msra.mxu0 0
  %894 = vmatprep.subr.bf16.mxu0 0
  %895 = vmatpush1.bf16.msra.mxu0 0
  %896 = vmatprep.subr.bf16.mxu0 0
  %897 = vmatpush1.bf16.msra.mxu0 0
  %898 = vmatprep.subr.bf16.mxu0 0
  %899 = vmatpush1.bf16.msra.mxu0 0
  %900 = vmatprep.subr.bf16.mxu0 0
  %901 = vmatpush1.bf16.msra.mxu0 0
  %902 = vmatprep.subr.bf16.mxu0 0
  %903 = vmatpush1.bf16.msra.mxu0 0
  %904 = vmatprep.subr.bf16.mxu0 0
  %905 = vmatpush1.bf16.msra.mxu0 0
  %906 = vmatprep.subr.bf16.mxu0 0
  %907 = vmatpush1.bf16.msra.mxu0 0
  %908 = vmatprep.mubr.bf16.mxu0 0
  %909 = vmatmul.mubr.bf16.gmra.mrb[0].mxu0 %v871
  %v910 = vpop.f32.mrb[0].mxu0
  %v911 = vadd.f32 0.0, %v910
  %v912 = vpop.f32.mrb[0].mxu0
  %v913 = vpop.f32.mrb[0].mxu0
  %v914 = vpop.f32.mrb[0].mxu0
  %915 = vdwg.mxu0
  %916 = vrot.lane.b32.xlu0 %v470, 120
  %v917 = vpop.permute.xlu0 %916
  %918 = vrot.lane.b32.xlu0 %v470, 88
  %v919 = vpop.permute.xlu0 %918
  %v921 = vsel %vm477, %v917, 0
  %v924 = vsel %vm477, %v919, 0
  %926 = vmatprep.subr.bf16.mxu0 0
  %927 = vmatpush1.bf16.xpose.msra.mxu0 %v924
  %928 = vmatprep.subr.bf16.mxu0 0
  %929 = vmatpush1.bf16.xpose.msra.mxu0 0
  %930 = vmatprep.subr.bf16.mxu0 0
  %931 = vmatpush1.bf16.xpose.msra.mxu0 0
  %932 = vmatprep.subr.bf16.mxu0 0
  %933 = vmatpush1.bf16.xpose.msra.mxu0 0
  %934 = vmatprep.subr.bf16.mxu0 0
  %935 = vmatpush1.bf16.xpose.msra.mxu0 0
  %936 = vmatprep.subr.bf16.mxu0 0
  %937 = vmatpush1.bf16.xpose.msra.mxu0 0
  %938 = vmatprep.subr.bf16.mxu0 0
  %939 = vmatpush1.bf16.xpose.msra.mxu0 0
  %940 = vmatprep.subr.bf16.mxu0 0
  %941 = vmatpush1.bf16.xpose.msra.mxu0 0
  %942 = vmatprep.subr.bf16.mxu0 0
  %943 = vmatpush1.bf16.xpose.msra.mxu0 0
  %944 = vmatprep.subr.bf16.mxu0 0
  %945 = vmatpush1.bf16.xpose.msra.mxu0 0
  %946 = vmatprep.subr.bf16.mxu0 0
  %947 = vmatpush1.bf16.xpose.msra.mxu0 0
  %948 = vmatprep.subr.bf16.mxu0 0
  %949 = vmatpush1.bf16.xpose.msra.mxu0 0
  %950 = vmatprep.subr.bf16.mxu0 0
  %951 = vmatpush1.bf16.xpose.msra.mxu0 0
  %952 = vmatprep.subr.bf16.mxu0 0
  %953 = vmatpush1.bf16.xpose.msra.mxu0 0
  %954 = vmatprep.subr.bf16.mxu0 0
  %955 = vmatpush1.bf16.xpose.msra.mxu0 0
  %956 = vmatprep.subr.bf16.mxu0 0
  %957 = vmatpush1.bf16.xpose.msra.mxu0 0
  %958 = vmatprep.mubr.bf16.mxu0 0
  %959 = vmatmul.mubr.bf16.gmra.mrb[0].mxu0 %v921
  %v960 = vpop.f32.mrb[0].mxu0
  %v961 = vadd.f32 0.0, %v960
  %v962 = vpop.f32.mrb[0].mxu0
  %v963 = vpop.f32.mrb[0].mxu0
  %v964 = vpop.f32.mrb[0].mxu0
  %965 = vdwg.mxu0
  %966 = vrot.lane.b32.xlu0 %v471, 120
  %v967 = vpop.permute.xlu0 %966
  %968 = vrot.lane.b32.xlu0 %v471, 88
  %v969 = vpop.permute.xlu0 %968
  %v971 = vsel %vm477, %v967, 0
  %v974 = vsel %vm477, %v969, 0
  %976 = vmatprep.subr.bf16.mxu0 0
  %977 = vmatpush1.bf16.xpose.msra.mxu0 %v974
  %978 = vmatprep.subr.bf16.mxu0 0
  %979 = vmatpush1.bf16.xpose.msra.mxu0 0
  %980 = vmatprep.subr.bf16.mxu0 0
  %981 = vmatpush1.bf16.xpose.msra.mxu0 0
  %982 = vmatprep.subr.bf16.mxu0 0
  %983 = vmatpush1.bf16.xpose.msra.mxu0 0
  %984 = vmatprep.subr.bf16.mxu0 0
  %985 = vmatpush1.bf16.xpose.msra.mxu0 0
  %986 = vmatprep.subr.bf16.mxu0 0
  %987 = vmatpush1.bf16.xpose.msra.mxu0 0
  %988 = vmatprep.subr.bf16.mxu0 0
  %989 = vmatpush1.bf16.xpose.msra.mxu0 0
  %990 = vmatprep.subr.bf16.mxu0 0
  %991 = vmatpush1.bf16.xpose.msra.mxu0 0
  %992 = vmatprep.subr.bf16.mxu0 0
  %993 = vmatpush1.bf16.xpose.msra.mxu0 0
  %994 = vmatprep.subr.bf16.mxu0 0
  %995 = vmatpush1.bf16.xpose.msra.mxu0 0
  %996 = vmatprep.subr.bf16.mxu0 0
  %997 = vmatpush1.bf16.xpose.msra.mxu0 0
  %998 = vmatprep.subr.bf16.mxu0 0
  %999 = vmatpush1.bf16.xpose.msra.mxu0 0
  %1000 = vmatprep.subr.bf16.mxu0 0
  %1001 = vmatpush1.bf16.xpose.msra.mxu0 0
  %1002 = vmatprep.subr.bf16.mxu0 0
  %1003 = vmatpush1.bf16.xpose.msra.mxu0 0
  %1004 = vmatprep.subr.bf16.mxu0 0
  %1005 = vmatpush1.bf16.xpose.msra.mxu0 0
  %1006 = vmatprep.subr.bf16.mxu0 0
  %1007 = vmatpush1.bf16.xpose.msra.mxu0 0
  %1008 = vmatprep.mubr.bf16.mxu0 0
  %1009 = vmatmul.mubr.bf16.gmra.mrb[0].mxu0 %v971
  %v1010 = vpop.f32.mrb[0].mxu0
  %v1011 = vadd.f32 0.0, %v1010
  %v1012 = vpop.f32.mrb[0].mxu0
  %v1013 = vpop.f32.mrb[0].mxu0
  %v1014 = vpop.f32.mrb[0].mxu0
  %1015 = vdwg.mxu0
  %1016 = vrot.lane.b32.xlu0 %v472, 120
  %v1017 = vpop.permute.xlu0 %1016
  %1018 = vrot.lane.b32.xlu0 %v472, 88
  %v1019 = vpop.permute.xlu0 %1018
  %v1021 = vsel %vm477, %v1017, 0
  %v1024 = vsel %vm477, %v1019, 0
  %1026 = vmatprep.subr.bf16.mxu0 0
  %1027 = vmatpush1.bf16.xpose.msra.mxu0 %v1024
  %1028 = vmatprep.subr.bf16.mxu0 0
  %1029 = vmatpush1.bf16.xpose.msra.mxu0 0
  %1030 = vmatprep.subr.bf16.mxu0 0
  %1031 = vmatpush1.bf16.xpose.msra.mxu0 0
  %1032 = vmatprep.subr.bf16.mxu0 0
  %1033 = vmatpush1.bf16.xpose.msra.mxu0 0
  %1034 = vmatprep.subr.bf16.mxu0 0
  %1035 = vmatpush1.bf16.xpose.msra.mxu0 0
  %1036 = vmatprep.subr.bf16.mxu0 0
  %1037 = vmatpush1.bf16.xpose.msra.mxu0 0
  %1038 = vmatprep.subr.bf16.mxu0 0
  %1039 = vmatpush1.bf16.xpose.msra.mxu0 0
  %1040 = vmatprep.subr.bf16.mxu0 0
  %1041 = vmatpush1.bf16.xpose.msra.mxu0 0
  %1042 = vmatprep.subr.bf16.mxu0 0
  %1043 = vmatpush1.bf16.xpose.msra.mxu0 0
  %1044 = vmatprep.subr.bf16.mxu0 0
  %1045 = vmatpush1.bf16.xpose.msra.mxu0 0
  %1046 = vmatprep.subr.bf16.mxu0 0
  %1047 = vmatpush1.bf16.xpose.msra.mxu0 0
  %1048 = vmatprep.subr.bf16.mxu0 0
  %1049 = vmatpush1.bf16.xpose.msra.mxu0 0
  %1050 = vmatprep.subr.bf16.mxu0 0
  %1051 = vmatpush1.bf16.xpose.msra.mxu0 0
  %1052 = vmatprep.subr.bf16.mxu0 0
  %1053 = vmatpush1.bf16.xpose.msra.mxu0 0
  %1054 = vmatprep.subr.bf16.mxu0 0
  %1055 = vmatpush1.bf16.xpose.msra.mxu0 0
  %1056 = vmatprep.subr.bf16.mxu0 0
  %1057 = vmatpush1.bf16.xpose.msra.mxu0 0
  %1058 = vmatprep.mubr.bf16.mxu0 0
  %1059 = vmatmul.mubr.bf16.gmra.mrb[0].mxu0 %v1021
  %v1060 = vpop.f32.mrb[0].mxu0
  %v1061 = vadd.f32 0.0, %v1060
  %v1062 = vpop.f32.mrb[0].mxu0
  %v1063 = vpop.f32.mrb[0].mxu0
  %v1064 = vpop.f32.mrb[0].mxu0
  %1065 = vdwg.mxu0
  %1066 = vrot.lane.b32.xlu0 %v473, 120
  %v1067 = vpop.permute.xlu0 %1066
  %1068 = vrot.lane.b32.xlu0 %v473, 88
  %v1069 = vpop.permute.xlu0 %1068
  %v1071 = vsel %vm477, %v1067, 0
  %v1074 = vsel %vm477, %v1069, 0
  %1076 = vmatprep.subr.bf16.mxu0 0
  %1077 = vmatpush1.bf16.xpose.msra.mxu0 %v1074
  %1078 = vmatprep.subr.bf16.mxu0 0
  %1079 = vmatpush1.bf16.xpose.msra.mxu0 0
  %1080 = vmatprep.subr.bf16.mxu0 0
  %1081 = vmatpush1.bf16.xpose.msra.mxu0 0
  %1082 = vmatprep.subr.bf16.mxu0 0
  %1083 = vmatpush1.bf16.xpose.msra.mxu0 0
  %1084 = vmatprep.subr.bf16.mxu0 0
  %1085 = vmatpush1.bf16.xpose.msra.mxu0 0
  %1086 = vmatprep.subr.bf16.mxu0 0
  %1087 = vmatpush1.bf16.xpose.msra.mxu0 0
  %1088 = vmatprep.subr.bf16.mxu0 0
  %1089 = vmatpush1.bf16.xpose.msra.mxu0 0
  %1090 = vmatprep.subr.bf16.mxu0 0
  %1091 = vmatpush1.bf16.xpose.msra.mxu0 0
  %1092 = vmatprep.subr.bf16.mxu0 0
  %1093 = vmatpush1.bf16.xpose.msra.mxu0 0
  %1094 = vmatprep.subr.bf16.mxu0 0
  %1095 = vmatpush1.bf16.xpose.msra.mxu0 0
  %1096 = vmatprep.subr.bf16.mxu0 0
  %1097 = vmatpush1.bf16.xpose.msra.mxu0 0
  %1098 = vmatprep.subr.bf16.mxu0 0
  %1099 = vmatpush1.bf16.xpose.msra.mxu0 0
  %1100 = vmatprep.subr.bf16.mxu0 0
  %1101 = vmatpush1.bf16.xpose.msra.mxu0 0
  %1102 = vmatprep.subr.bf16.mxu0 0
  %1103 = vmatpush1.bf16.xpose.msra.mxu0 0
  %1104 = vmatprep.subr.bf16.mxu0 0
  %1105 = vmatpush1.bf16.xpose.msra.mxu0 0
  %1106 = vmatprep.subr.bf16.mxu0 0
  %1107 = vmatpush1.bf16.xpose.msra.mxu0 0
  %1108 = vmatprep.mubr.bf16.mxu0 0
  %1109 = vmatmul.mubr.bf16.gmra.mrb[0].mxu0 %v1071
  %v1110 = vpop.f32.mrb[0].mxu0
  %v1111 = vadd.f32 0.0, %v1110
  %v1112 = vpop.f32.mrb[0].mxu0
  %v1113 = vpop.f32.mrb[0].mxu0
  %v1114 = vpop.f32.mrb[0].mxu0
  %1115 = vdwg.mxu0
  %v1116 = vmul.f32 %v961, 0.35355338
  %v1117 = vmul.f32 %v1011, 0.35355338
  %v1118 = vmul.f32 %v1061, 0.35355338
  %v1119 = vmul.f32 %v1111, 0.35355338
  %v1120 = vsel %vm477, %v1116, -inf
  %1121 = vmax.xlane.f32.xlu0 %v1120
  %v1122 = vpop.xlane.xlu0 %1121
  %v1123 = vsel %vm477, %v1117, -inf
  %1124 = vmax.xlane.f32.xlu0 %v1123
  %v1125 = vpop.xlane.xlu0 %1124
  %v1126 = vsel %vm477, %v1118, -inf
  %1127 = vmax.xlane.f32.xlu0 %v1126
  %v1128 = vpop.xlane.xlu0 %1127
  %v1129 = vsel %vm477, %v1119, -inf
  %1130 = vmax.xlane.f32.xlu0 %v1129
  %v1131 = vpop.xlane.xlu0 %1130
  %v1132 = vsub.f32 %v1116, %v1122
  %v1133 = vsub.f32 %v1117, %v1125
  %v1134 = vsub.f32 %v1118, %v1128
  %v1135 = vsub.f32 %v1119, %v1131
  %v1136 = vmul.f32 %v1132, 1.442695
  %v1137 = vpow.pop %v1136
  %v1138 = vmul.f32 %v1133, 1.442695
  %v1139 = vpow.pop %v1138
  %v1140 = vmul.f32 %v1134, 1.442695
  %v1141 = vpow.pop %v1140
  %v1142 = vmul.f32 %v1135, 1.442695
  %v1143 = vpow.pop %v1142
  %v1144 = vsel %vm477, %v1137, 0.0
  %1145 = vadd.xlane.f32.xlu0 %v1144
  %v1146 = vpop.xlane.xlu0 %1145
  %v1147 = vsel %vm477, %v1139, 0.0
  %1148 = vadd.xlane.f32.xlu0 %v1147
  %v1149 = vpop.xlane.xlu0 %1148
  %v1150 = vsel %vm477, %v1141, 0.0
  %1151 = vadd.xlane.f32.xlu0 %v1150
  %v1152 = vpop.xlane.xlu0 %1151
  %v1153 = vsel %vm477, %v1143, 0.0
  %1154 = vadd.xlane.f32.xlu0 %v1153
  %v1155 = vpop.xlane.xlu0 %1154
  %v1156 = vrcp.pop %v1146
  %v1157 = vrcp.pop %v1149
  %v1158 = vrcp.pop %v1152
  %v1159 = vrcp.pop %v1155
  %v1160 = vmul.f32 %v1137, %v1156
  %v1161 = vmul.f32 %v1139, %v1157
  %v1162 = vmul.f32 %v1141, %v1158
  %v1163 = vmul.f32 %v1143, %v1159
  %v1164 = vpack.c.bf16 %v1160, %v1160
  %v1165 = vpack.c.bf16 %v1161, %v1161
  %v1166 = vpack.c.bf16 %v1162, %v1162
  %v1167 = vpack.c.bf16 %v1163, %v1163
  %1168 = vrot.lane.b32.xlu0 %v470, 56
  %v1169 = vpop.permute.xlu0 %1168
  %v1171 = vsel %vm477, %v1164, 0
  %v1174 = vsel %vm728, %v1169, 0
  %1176 = vmatprep.subr.bf16.mxu0 0
  %1177 = vmatpush1.bf16.msra.mxu0 %v1174
  %1178 = vmatprep.subr.bf16.mxu0 0
  %1179 = vmatpush1.bf16.msra.mxu0 0
  %1180 = vmatprep.subr.bf16.mxu0 0
  %1181 = vmatpush1.bf16.msra.mxu0 0
  %1182 = vmatprep.subr.bf16.mxu0 0
  %1183 = vmatpush1.bf16.msra.mxu0 0
  %1184 = vmatprep.subr.bf16.mxu0 0
  %1185 = vmatpush1.bf16.msra.mxu0 0
  %1186 = vmatprep.subr.bf16.mxu0 0
  %1187 = vmatpush1.bf16.msra.mxu0 0
  %1188 = vmatprep.subr.bf16.mxu0 0
  %1189 = vmatpush1.bf16.msra.mxu0 0
  %1190 = vmatprep.subr.bf16.mxu0 0
  %1191 = vmatpush1.bf16.msra.mxu0 0
  %1192 = vmatprep.subr.bf16.mxu0 0
  %1193 = vmatpush1.bf16.msra.mxu0 0
  %1194 = vmatprep.subr.bf16.mxu0 0
  %1195 = vmatpush1.bf16.msra.mxu0 0
  %1196 = vmatprep.subr.bf16.mxu0 0
  %1197 = vmatpush1.bf16.msra.mxu0 0
  %1198 = vmatprep.subr.bf16.mxu0 0
  %1199 = vmatpush1.bf16.msra.mxu0 0
  %1200 = vmatprep.subr.bf16.mxu0 0
  %1201 = vmatpush1.bf16.msra.mxu0 0
  %1202 = vmatprep.subr.bf16.mxu0 0
  %1203 = vmatpush1.bf16.msra.mxu0 0
  %1204 = vmatprep.subr.bf16.mxu0 0
  %1205 = vmatpush1.bf16.msra.mxu0 0
  %1206 = vmatprep.subr.bf16.mxu0 0
  %1207 = vmatpush1.bf16.msra.mxu0 0
  %1208 = vmatprep.mubr.bf16.mxu0 0
  %1209 = vmatmul.mubr.bf16.gmra.mrb[0].mxu0 %v1171
  %v1210 = vpop.f32.mrb[0].mxu0
  %v1211 = vadd.f32 0.0, %v1210
  %v1212 = vpop.f32.mrb[0].mxu0
  %v1213 = vpop.f32.mrb[0].mxu0
  %v1214 = vpop.f32.mrb[0].mxu0
  %1215 = vdwg.mxu0
  %1216 = vrot.lane.b32.xlu0 %v471, 56
  %v1217 = vpop.permute.xlu0 %1216
  %v1219 = vsel %vm477, %v1165, 0
  %v1222 = vsel %vm728, %v1217, 0
  %1224 = vmatprep.subr.bf16.mxu0 0
  %1225 = vmatpush1.bf16.msra.mxu0 %v1222
  %1226 = vmatprep.subr.bf16.mxu0 0
  %1227 = vmatpush1.bf16.msra.mxu0 0
  %1228 = vmatprep.subr.bf16.mxu0 0
  %1229 = vmatpush1.bf16.msra.mxu0 0
  %1230 = vmatprep.subr.bf16.mxu0 0
  %1231 = vmatpush1.bf16.msra.mxu0 0
  %1232 = vmatprep.subr.bf16.mxu0 0
  %1233 = vmatpush1.bf16.msra.mxu0 0
  %1234 = vmatprep.subr.bf16.mxu0 0
  %1235 = vmatpush1.bf16.msra.mxu0 0
  %1236 = vmatprep.subr.bf16.mxu0 0
  %1237 = vmatpush1.bf16.msra.mxu0 0
  %1238 = vmatprep.subr.bf16.mxu0 0
  %1239 = vmatpush1.bf16.msra.mxu0 0
  %1240 = vmatprep.subr.bf16.mxu0 0
  %1241 = vmatpush1.bf16.msra.mxu0 0
  %1242 = vmatprep.subr.bf16.mxu0 0
  %1243 = vmatpush1.bf16.msra.mxu0 0
  %1244 = vmatprep.subr.bf16.mxu0 0
  %1245 = vmatpush1.bf16.msra.mxu0 0
  %1246 = vmatprep.subr.bf16.mxu0 0
  %1247 = vmatpush1.bf16.msra.mxu0 0
  %1248 = vmatprep.subr.bf16.mxu0 0
  %1249 = vmatpush1.bf16.msra.mxu0 0
  %1250 = vmatprep.subr.bf16.mxu0 0
  %1251 = vmatpush1.bf16.msra.mxu0 0
  %1252 = vmatprep.subr.bf16.mxu0 0
  %1253 = vmatpush1.bf16.msra.mxu0 0
  %1254 = vmatprep.subr.bf16.mxu0 0
  %1255 = vmatpush1.bf16.msra.mxu0 0
  %1256 = vmatprep.mubr.bf16.mxu0 0
  %1257 = vmatmul.mubr.bf16.gmra.mrb[0].mxu0 %v1219
  %v1258 = vpop.f32.mrb[0].mxu0
  %v1259 = vadd.f32 0.0, %v1258
  %v1260 = vpop.f32.mrb[0].mxu0
  %v1261 = vpop.f32.mrb[0].mxu0
  %v1262 = vpop.f32.mrb[0].mxu0
  %1263 = vdwg.mxu0
  %1264 = vrot.lane.b32.xlu0 %v472, 56
  %v1265 = vpop.permute.xlu0 %1264
  %v1267 = vsel %vm477, %v1166, 0
  %v1270 = vsel %vm728, %v1265, 0
  %1272 = vmatprep.subr.bf16.mxu0 0
  %1273 = vmatpush1.bf16.msra.mxu0 %v1270
  %1274 = vmatprep.subr.bf16.mxu0 0
  %1275 = vmatpush1.bf16.msra.mxu0 0
  %1276 = vmatprep.subr.bf16.mxu0 0
  %1277 = vmatpush1.bf16.msra.mxu0 0
  %1278 = vmatprep.subr.bf16.mxu0 0
  %1279 = vmatpush1.bf16.msra.mxu0 0
  %1280 = vmatprep.subr.bf16.mxu0 0
  %1281 = vmatpush1.bf16.msra.mxu0 0
  %1282 = vmatprep.subr.bf16.mxu0 0
  %1283 = vmatpush1.bf16.msra.mxu0 0
  %1284 = vmatprep.subr.bf16.mxu0 0
  %1285 = vmatpush1.bf16.msra.mxu0 0
  %1286 = vmatprep.subr.bf16.mxu0 0
  %1287 = vmatpush1.bf16.msra.mxu0 0
  %1288 = vmatprep.subr.bf16.mxu0 0
  %1289 = vmatpush1.bf16.msra.mxu0 0
  %1290 = vmatprep.subr.bf16.mxu0 0
  %1291 = vmatpush1.bf16.msra.mxu0 0
  %1292 = vmatprep.subr.bf16.mxu0 0
  %1293 = vmatpush1.bf16.msra.mxu0 0
  %1294 = vmatprep.subr.bf16.mxu0 0
  %1295 = vmatpush1.bf16.msra.mxu0 0
  %1296 = vmatprep.subr.bf16.mxu0 0
  %1297 = vmatpush1.bf16.msra.mxu0 0
  %1298 = vmatprep.subr.bf16.mxu0 0
  %1299 = vmatpush1.bf16.msra.mxu0 0
  %1300 = vmatprep.subr.bf16.mxu0 0
  %1301 = vmatpush1.bf16.msra.mxu0 0
  %1302 = vmatprep.subr.bf16.mxu0 0
  %1303 = vmatpush1.bf16.msra.mxu0 0
  %1304 = vmatprep.mubr.bf16.mxu0 0
  %1305 = vmatmul.mubr.bf16.gmra.mrb[0].mxu0 %v1267
  %v1306 = vpop.f32.mrb[0].mxu0
  %v1307 = vadd.f32 0.0, %v1306
  %v1308 = vpop.f32.mrb[0].mxu0
  %v1309 = vpop.f32.mrb[0].mxu0
  %v1310 = vpop.f32.mrb[0].mxu0
  %1311 = vdwg.mxu0
  %1312 = vrot.lane.b32.xlu0 %v473, 56
  %v1313 = vpop.permute.xlu0 %1312
  %v1315 = vsel %vm477, %v1167, 0
  %v1318 = vsel %vm728, %v1313, 0
  %1320 = vmatprep.subr.bf16.mxu0 0
  %1321 = vmatpush1.bf16.msra.mxu0 %v1318
  %1322 = vmatprep.subr.bf16.mxu0 0
  %1323 = vmatpush1.bf16.msra.mxu0 0
  %1324 = vmatprep.subr.bf16.mxu0 0
  %1325 = vmatpush1.bf16.msra.mxu0 0
  %1326 = vmatprep.subr.bf16.mxu0 0
  %1327 = vmatpush1.bf16.msra.mxu0 0
  %1328 = vmatprep.subr.bf16.mxu0 0
  %1329 = vmatpush1.bf16.msra.mxu0 0
  %1330 = vmatprep.subr.bf16.mxu0 0
  %1331 = vmatpush1.bf16.msra.mxu0 0
  %1332 = vmatprep.subr.bf16.mxu0 0
  %1333 = vmatpush1.bf16.msra.mxu0 0
  %1334 = vmatprep.subr.bf16.mxu0 0
  %1335 = vmatpush1.bf16.msra.mxu0 0
  %1336 = vmatprep.subr.bf16.mxu0 0
  %1337 = vmatpush1.bf16.msra.mxu0 0
  %1338 = vmatprep.subr.bf16.mxu0 0
  %1339 = vmatpush1.bf16.msra.mxu0 0
  %1340 = vmatprep.subr.bf16.mxu0 0
  %1341 = vmatpush1.bf16.msra.mxu0 0
  %1342 = vmatprep.subr.bf16.mxu0 0
  %1343 = vmatpush1.bf16.msra.mxu0 0
  %1344 = vmatprep.subr.bf16.mxu0 0
  %1345 = vmatpush1.bf16.msra.mxu0 0
  %1346 = vmatprep.subr.bf16.mxu0 0
  %1347 = vmatpush1.bf16.msra.mxu0 0
  %1348 = vmatprep.subr.bf16.mxu0 0
  %1349 = vmatpush1.bf16.msra.mxu0 0
  %1350 = vmatprep.subr.bf16.mxu0 0
  %1351 = vmatpush1.bf16.msra.mxu0 0
  %1352 = vmatprep.mubr.bf16.mxu0 0
  %1353 = vmatmul.mubr.bf16.gmra.mrb[0].mxu0 %v1315
  %v1354 = vpop.f32.mrb[0].mxu0
  %v1355 = vadd.f32 0.0, %v1354
  %v1356 = vpop.f32.mrb[0].mxu0
  %v1357 = vpop.f32.mrb[0].mxu0
  %v1358 = vpop.f32.mrb[0].mxu0
  %1359 = vdwg.mxu0
  %1360 = vrot.lane.b32.xlu0 %v470, 112
  %v1361 = vpop.permute.xlu0 %1360
  %1362 = vrot.lane.b32.xlu0 %v470, 80
  %v1363 = vpop.permute.xlu0 %1362
  %v1365 = vsel %vm477, %v1361, 0
  %v1368 = vsel %vm477, %v1363, 0
  %1370 = vmatprep.subr.bf16.mxu0 0
  %1371 = vmatpush1.bf16.xpose.msra.mxu0 %v1368
  %1372 = vmatprep.subr.bf16.mxu0 0
  %1373 = vmatpush1.bf16.xpose.msra.mxu0 0
  %1374 = vmatprep.subr.bf16.mxu0 0
  %1375 = vmatpush1.bf16.xpose.msra.mxu0 0
  %1376 = vmatprep.subr.bf16.mxu0 0
  %1377 = vmatpush1.bf16.xpose.msra.mxu0 0
  %1378 = vmatprep.subr.bf16.mxu0 0
  %1379 = vmatpush1.bf16.xpose.msra.mxu0 0
  %1380 = vmatprep.subr.bf16.mxu0 0
  %1381 = vmatpush1.bf16.xpose.msra.mxu0 0
  %1382 = vmatprep.subr.bf16.mxu0 0
  %1383 = vmatpush1.bf16.xpose.msra.mxu0 0
  %1384 = vmatprep.subr.bf16.mxu0 0
  %1385 = vmatpush1.bf16.xpose.msra.mxu0 0
  %1386 = vmatprep.subr.bf16.mxu0 0
  %1387 = vmatpush1.bf16.xpose.msra.mxu0 0
  %1388 = vmatprep.subr.bf16.mxu0 0
  %1389 = vmatpush1.bf16.xpose.msra.mxu0 0
  %1390 = vmatprep.subr.bf16.mxu0 0
  %1391 = vmatpush1.bf16.xpose.msra.mxu0 0
  %1392 = vmatprep.subr.bf16.mxu0 0
  %1393 = vmatpush1.bf16.xpose.msra.mxu0 0
  %1394 = vmatprep.subr.bf16.mxu0 0
  %1395 = vmatpush1.bf16.xpose.msra.mxu0 0
  %1396 = vmatprep.subr.bf16.mxu0 0
  %1397 = vmatpush1.bf16.xpose.msra.mxu0 0
  %1398 = vmatprep.subr.bf16.mxu0 0
  %1399 = vmatpush1.bf16.xpose.msra.mxu0 0
  %1400 = vmatprep.subr.bf16.mxu0 0
  %1401 = vmatpush1.bf16.xpose.msra.mxu0 0
  %1402 = vmatprep.mubr.bf16.mxu0 0
  %1403 = vmatmul.mubr.bf16.gmra.mrb[0].mxu0 %v1365
  %v1404 = vpop.f32.mrb[0].mxu0
  %v1405 = vadd.f32 0.0, %v1404
  %v1406 = vpop.f32.mrb[0].mxu0
  %v1407 = vpop.f32.mrb[0].mxu0
  %v1408 = vpop.f32.mrb[0].mxu0
  %1409 = vdwg.mxu0
  %1410 = vrot.lane.b32.xlu0 %v471, 112
  %v1411 = vpop.permute.xlu0 %1410
  %1412 = vrot.lane.b32.xlu0 %v471, 80
  %v1413 = vpop.permute.xlu0 %1412
  %v1415 = vsel %vm477, %v1411, 0
  %v1418 = vsel %vm477, %v1413, 0
  %1420 = vmatprep.subr.bf16.mxu0 0
  %1421 = vmatpush1.bf16.xpose.msra.mxu0 %v1418
  %1422 = vmatprep.subr.bf16.mxu0 0
  %1423 = vmatpush1.bf16.xpose.msra.mxu0 0
  %1424 = vmatprep.subr.bf16.mxu0 0
  %1425 = vmatpush1.bf16.xpose.msra.mxu0 0
  %1426 = vmatprep.subr.bf16.mxu0 0
  %1427 = vmatpush1.bf16.xpose.msra.mxu0 0
  %1428 = vmatprep.subr.bf16.mxu0 0
  %1429 = vmatpush1.bf16.xpose.msra.mxu0 0
  %1430 = vmatprep.subr.bf16.mxu0 0
  %1431 = vmatpush1.bf16.xpose.msra.mxu0 0
  %1432 = vmatprep.subr.bf16.mxu0 0
  %1433 = vmatpush1.bf16.xpose.msra.mxu0 0
  %1434 = vmatprep.subr.bf16.mxu0 0
  %1435 = vmatpush1.bf16.xpose.msra.mxu0 0
  %1436 = vmatprep.subr.bf16.mxu0 0
  %1437 = vmatpush1.bf16.xpose.msra.mxu0 0
  %1438 = vmatprep.subr.bf16.mxu0 0
  %1439 = vmatpush1.bf16.xpose.msra.mxu0 0
  %1440 = vmatprep.subr.bf16.mxu0 0
  %1441 = vmatpush1.bf16.xpose.msra.mxu0 0
  %1442 = vmatprep.subr.bf16.mxu0 0
  %1443 = vmatpush1.bf16.xpose.msra.mxu0 0
  %1444 = vmatprep.subr.bf16.mxu0 0
  %1445 = vmatpush1.bf16.xpose.msra.mxu0 0
  %1446 = vmatprep.subr.bf16.mxu0 0
  %1447 = vmatpush1.bf16.xpose.msra.mxu0 0
  %1448 = vmatprep.subr.bf16.mxu0 0
  %1449 = vmatpush1.bf16.xpose.msra.mxu0 0
  %1450 = vmatprep.subr.bf16.mxu0 0
  %1451 = vmatpush1.bf16.xpose.msra.mxu0 0
  %1452 = vmatprep.mubr.bf16.mxu0 0
  %1453 = vmatmul.mubr.bf16.gmra.mrb[0].mxu0 %v1415
  %v1454 = vpop.f32.mrb[0].mxu0
  %v1455 = vadd.f32 0.0, %v1454
  %v1456 = vpop.f32.mrb[0].mxu0
  %v1457 = vpop.f32.mrb[0].mxu0
  %v1458 = vpop.f32.mrb[0].mxu0
  %1459 = vdwg.mxu0
  %1460 = vrot.lane.b32.xlu0 %v472, 112
  %v1461 = vpop.permute.xlu0 %1460
  %1462 = vrot.lane.b32.xlu0 %v472, 80
  %v1463 = vpop.permute.xlu0 %1462
  %v1465 = vsel %vm477, %v1461, 0
  %v1468 = vsel %vm477, %v1463, 0
  %1470 = vmatprep.subr.bf16.mxu0 0
  %1471 = vmatpush1.bf16.xpose.msra.mxu0 %v1468
  %1472 = vmatprep.subr.bf16.mxu0 0
  %1473 = vmatpush1.bf16.xpose.msra.mxu0 0
  %1474 = vmatprep.subr.bf16.mxu0 0
  %1475 = vmatpush1.bf16.xpose.msra.mxu0 0
  %1476 = vmatprep.subr.bf16.mxu0 0
  %1477 = vmatpush1.bf16.xpose.msra.mxu0 0
  %1478 = vmatprep.subr.bf16.mxu0 0
  %1479 = vmatpush1.bf16.xpose.msra.mxu0 0
  %1480 = vmatprep.subr.bf16.mxu0 0
  %1481 = vmatpush1.bf16.xpose.msra.mxu0 0
  %1482 = vmatprep.subr.bf16.mxu0 0
  %1483 = vmatpush1.bf16.xpose.msra.mxu0 0
  %1484 = vmatprep.subr.bf16.mxu0 0
  %1485 = vmatpush1.bf16.xpose.msra.mxu0 0
  %1486 = vmatprep.subr.bf16.mxu0 0
  %1487 = vmatpush1.bf16.xpose.msra.mxu0 0
  %1488 = vmatprep.subr.bf16.mxu0 0
  %1489 = vmatpush1.bf16.xpose.msra.mxu0 0
  %1490 = vmatprep.subr.bf16.mxu0 0
  %1491 = vmatpush1.bf16.xpose.msra.mxu0 0
  %1492 = vmatprep.subr.bf16.mxu0 0
  %1493 = vmatpush1.bf16.xpose.msra.mxu0 0
  %1494 = vmatprep.subr.bf16.mxu0 0
  %1495 = vmatpush1.bf16.xpose.msra.mxu0 0
  %1496 = vmatprep.subr.bf16.mxu0 0
  %1497 = vmatpush1.bf16.xpose.msra.mxu0 0
  %1498 = vmatprep.subr.bf16.mxu0 0
  %1499 = vmatpush1.bf16.xpose.msra.mxu0 0
  %1500 = vmatprep.subr.bf16.mxu0 0
  %1501 = vmatpush1.bf16.xpose.msra.mxu0 0
  %1502 = vmatprep.mubr.bf16.mxu0 0
  %1503 = vmatmul.mubr.bf16.gmra.mrb[0].mxu0 %v1465
  %v1504 = vpop.f32.mrb[0].mxu0
  %v1505 = vadd.f32 0.0, %v1504
  %v1506 = vpop.f32.mrb[0].mxu0
  %v1507 = vpop.f32.mrb[0].mxu0
  %v1508 = vpop.f32.mrb[0].mxu0
  %1509 = vdwg.mxu0
  %1510 = vrot.lane.b32.xlu0 %v473, 112
  %v1511 = vpop.permute.xlu0 %1510
  %1512 = vrot.lane.b32.xlu0 %v473, 80
  %v1513 = vpop.permute.xlu0 %1512
  %v1515 = vsel %vm477, %v1511, 0
  %v1518 = vsel %vm477, %v1513, 0
  %1520 = vmatprep.subr.bf16.mxu0 0
  %1521 = vmatpush1.bf16.xpose.msra.mxu0 %v1518
  %1522 = vmatprep.subr.bf16.mxu0 0
  %1523 = vmatpush1.bf16.xpose.msra.mxu0 0
  %1524 = vmatprep.subr.bf16.mxu0 0
  %1525 = vmatpush1.bf16.xpose.msra.mxu0 0
  %1526 = vmatprep.subr.bf16.mxu0 0
  %1527 = vmatpush1.bf16.xpose.msra.mxu0 0
  %1528 = vmatprep.subr.bf16.mxu0 0
  %1529 = vmatpush1.bf16.xpose.msra.mxu0 0
  %1530 = vmatprep.subr.bf16.mxu0 0
  %1531 = vmatpush1.bf16.xpose.msra.mxu0 0
  %1532 = vmatprep.subr.bf16.mxu0 0
  %1533 = vmatpush1.bf16.xpose.msra.mxu0 0
  %1534 = vmatprep.subr.bf16.mxu0 0
  %1535 = vmatpush1.bf16.xpose.msra.mxu0 0
  %1536 = vmatprep.subr.bf16.mxu0 0
  %1537 = vmatpush1.bf16.xpose.msra.mxu0 0
  %1538 = vmatprep.subr.bf16.mxu0 0
  %1539 = vmatpush1.bf16.xpose.msra.mxu0 0
  %1540 = vmatprep.subr.bf16.mxu0 0
  %1541 = vmatpush1.bf16.xpose.msra.mxu0 0
  %1542 = vmatprep.subr.bf16.mxu0 0
  %1543 = vmatpush1.bf16.xpose.msra.mxu0 0
  %1544 = vmatprep.subr.bf16.mxu0 0
  %1545 = vmatpush1.bf16.xpose.msra.mxu0 0
  %1546 = vmatprep.subr.bf16.mxu0 0
  %1547 = vmatpush1.bf16.xpose.msra.mxu0 0
  %1548 = vmatprep.subr.bf16.mxu0 0
  %1549 = vmatpush1.bf16.xpose.msra.mxu0 0
  %1550 = vmatprep.subr.bf16.mxu0 0
  %1551 = vmatpush1.bf16.xpose.msra.mxu0 0
  %1552 = vmatprep.mubr.bf16.mxu0 0
  %1553 = vmatmul.mubr.bf16.gmra.mrb[0].mxu0 %v1515
  %v1554 = vpop.f32.mrb[0].mxu0
  %v1555 = vadd.f32 0.0, %v1554
  %v1556 = vpop.f32.mrb[0].mxu0
  %v1557 = vpop.f32.mrb[0].mxu0
  %v1558 = vpop.f32.mrb[0].mxu0
  %1559 = vdwg.mxu0
  %v1560 = vmul.f32 %v1405, 0.35355338
  %v1561 = vmul.f32 %v1455, 0.35355338
  %v1562 = vmul.f32 %v1505, 0.35355338
  %v1563 = vmul.f32 %v1555, 0.35355338
  %v1564 = vsel %vm477, %v1560, -inf
  %1565 = vmax.xlane.f32.xlu0 %v1564
  %v1566 = vpop.xlane.xlu0 %1565
  %v1567 = vsel %vm477, %v1561, -inf
  %1568 = vmax.xlane.f32.xlu0 %v1567
  %v1569 = vpop.xlane.xlu0 %1568
  %v1570 = vsel %vm477, %v1562, -inf
  %1571 = vmax.xlane.f32.xlu0 %v1570
  %v1572 = vpop.xlane.xlu0 %1571
  %v1573 = vsel %vm477, %v1563, -inf
  %1574 = vmax.xlane.f32.xlu0 %v1573
  %v1575 = vpop.xlane.xlu0 %1574
  %v1576 = vsub.f32 %v1560, %v1566
  %v1577 = vsub.f32 %v1561, %v1569
  %v1578 = vsub.f32 %v1562, %v1572
  %v1579 = vsub.f32 %v1563, %v1575
  %v1580 = vmul.f32 %v1576, 1.442695
  %v1581 = vpow.pop %v1580
  %v1582 = vmul.f32 %v1577, 1.442695
  %v1583 = vpow.pop %v1582
  %v1584 = vmul.f32 %v1578, 1.442695
  %v1585 = vpow.pop %v1584
  %v1586 = vmul.f32 %v1579, 1.442695
  %v1587 = vpow.pop %v1586
  %v1588 = vsel %vm477, %v1581, 0.0
  %1589 = vadd.xlane.f32.xlu0 %v1588
  %v1590 = vpop.xlane.xlu0 %1589
  %v1591 = vsel %vm477, %v1583, 0.0
  %1592 = vadd.xlane.f32.xlu0 %v1591
  %v1593 = vpop.xlane.xlu0 %1592
  %v1594 = vsel %vm477, %v1585, 0.0
  %1595 = vadd.xlane.f32.xlu0 %v1594
  %v1596 = vpop.xlane.xlu0 %1595
  %v1597 = vsel %vm477, %v1587, 0.0
  %1598 = vadd.xlane.f32.xlu0 %v1597
  %v1599 = vpop.xlane.xlu0 %1598
  %v1600 = vrcp.pop %v1590
  %v1601 = vrcp.pop %v1593
  %v1602 = vrcp.pop %v1596
  %v1603 = vrcp.pop %v1599
  %v1604 = vmul.f32 %v1581, %v1600
  %v1605 = vmul.f32 %v1583, %v1601
  %v1606 = vmul.f32 %v1585, %v1602
  %v1607 = vmul.f32 %v1587, %v1603
  %v1608 = vpack.c.bf16 %v1604, %v1604
  %v1609 = vpack.c.bf16 %v1605, %v1605
  %v1610 = vpack.c.bf16 %v1606, %v1606
  %v1611 = vpack.c.bf16 %v1607, %v1607
  %1612 = vrot.lane.b32.xlu0 %v470, 48
  %v1613 = vpop.permute.xlu0 %1612
  %v1615 = vsel %vm477, %v1608, 0
  %v1618 = vsel %vm728, %v1613, 0
  %1620 = vmatprep.subr.bf16.mxu0 0
  %1621 = vmatpush1.bf16.msra.mxu0 %v1618
  %1622 = vmatprep.subr.bf16.mxu0 0
  %1623 = vmatpush1.bf16.msra.mxu0 0
  %1624 = vmatprep.subr.bf16.mxu0 0
  %1625 = vmatpush1.bf16.msra.mxu0 0
  %1626 = vmatprep.subr.bf16.mxu0 0
  %1627 = vmatpush1.bf16.msra.mxu0 0
  %1628 = vmatprep.subr.bf16.mxu0 0
  %1629 = vmatpush1.bf16.msra.mxu0 0
  %1630 = vmatprep.subr.bf16.mxu0 0
  %1631 = vmatpush1.bf16.msra.mxu0 0
  %1632 = vmatprep.subr.bf16.mxu0 0
  %1633 = vmatpush1.bf16.msra.mxu0 0
  %1634 = vmatprep.subr.bf16.mxu0 0
  %1635 = vmatpush1.bf16.msra.mxu0 0
  %1636 = vmatprep.subr.bf16.mxu0 0
  %1637 = vmatpush1.bf16.msra.mxu0 0
  %1638 = vmatprep.subr.bf16.mxu0 0
  %1639 = vmatpush1.bf16.msra.mxu0 0
  %1640 = vmatprep.subr.bf16.mxu0 0
  %1641 = vmatpush1.bf16.msra.mxu0 0
  %1642 = vmatprep.subr.bf16.mxu0 0
  %1643 = vmatpush1.bf16.msra.mxu0 0
  %1644 = vmatprep.subr.bf16.mxu0 0
  %1645 = vmatpush1.bf16.msra.mxu0 0
  %1646 = vmatprep.subr.bf16.mxu0 0
  %1647 = vmatpush1.bf16.msra.mxu0 0
  %1648 = vmatprep.subr.bf16.mxu0 0
  %1649 = vmatpush1.bf16.msra.mxu0 0
  %1650 = vmatprep.subr.bf16.mxu0 0
  %1651 = vmatpush1.bf16.msra.mxu0 0
  %1652 = vmatprep.mubr.bf16.mxu0 0
  %1653 = vmatmul.mubr.bf16.gmra.mrb[0].mxu0 %v1615
  %v1654 = vpop.f32.mrb[0].mxu0
  %v1655 = vadd.f32 0.0, %v1654
  %v1656 = vpop.f32.mrb[0].mxu0
  %v1657 = vpop.f32.mrb[0].mxu0
  %v1658 = vpop.f32.mrb[0].mxu0
  %1659 = vdwg.mxu0
  %1660 = vrot.lane.b32.xlu0 %v471, 48
  %v1661 = vpop.permute.xlu0 %1660
  %v1663 = vsel %vm477, %v1609, 0
  %v1666 = vsel %vm728, %v1661, 0
  %1668 = vmatprep.subr.bf16.mxu0 0
  %1669 = vmatpush1.bf16.msra.mxu0 %v1666
  %1670 = vmatprep.subr.bf16.mxu0 0
  %1671 = vmatpush1.bf16.msra.mxu0 0
  %1672 = vmatprep.subr.bf16.mxu0 0
  %1673 = vmatpush1.bf16.msra.mxu0 0
  %1674 = vmatprep.subr.bf16.mxu0 0
  %1675 = vmatpush1.bf16.msra.mxu0 0
  %1676 = vmatprep.subr.bf16.mxu0 0
  %1677 = vmatpush1.bf16.msra.mxu0 0
  %1678 = vmatprep.subr.bf16.mxu0 0
  %1679 = vmatpush1.bf16.msra.mxu0 0
  %1680 = vmatprep.subr.bf16.mxu0 0
  %1681 = vmatpush1.bf16.msra.mxu0 0
  %1682 = vmatprep.subr.bf16.mxu0 0
  %1683 = vmatpush1.bf16.msra.mxu0 0
  %1684 = vmatprep.subr.bf16.mxu0 0
  %1685 = vmatpush1.bf16.msra.mxu0 0
  %1686 = vmatprep.subr.bf16.mxu0 0
  %1687 = vmatpush1.bf16.msra.mxu0 0
  %1688 = vmatprep.subr.bf16.mxu0 0
  %1689 = vmatpush1.bf16.msra.mxu0 0
  %1690 = vmatprep.subr.bf16.mxu0 0
  %1691 = vmatpush1.bf16.msra.mxu0 0
  %1692 = vmatprep.subr.bf16.mxu0 0
  %1693 = vmatpush1.bf16.msra.mxu0 0
  %1694 = vmatprep.subr.bf16.mxu0 0
  %1695 = vmatpush1.bf16.msra.mxu0 0
  %1696 = vmatprep.subr.bf16.mxu0 0
  %1697 = vmatpush1.bf16.msra.mxu0 0
  %1698 = vmatprep.subr.bf16.mxu0 0
  %1699 = vmatpush1.bf16.msra.mxu0 0
  %1700 = vmatprep.mubr.bf16.mxu0 0
  %1701 = vmatmul.mubr.bf16.gmra.mrb[0].mxu0 %v1663
  %v1702 = vpop.f32.mrb[0].mxu0
  %v1703 = vadd.f32 0.0, %v1702
  %v1704 = vpop.f32.mrb[0].mxu0
  %v1705 = vpop.f32.mrb[0].mxu0
  %v1706 = vpop.f32.mrb[0].mxu0
  %1707 = vdwg.mxu0
  %1708 = vrot.lane.b32.xlu0 %v472, 48
  %v1709 = vpop.permute.xlu0 %1708
  %v1711 = vsel %vm477, %v1610, 0
  %v1714 = vsel %vm728, %v1709, 0
  %1716 = vmatprep.subr.bf16.mxu0 0
  %1717 = vmatpush1.bf16.msra.mxu0 %v1714
  %1718 = vmatprep.subr.bf16.mxu0 0
  %1719 = vmatpush1.bf16.msra.mxu0 0
  %1720 = vmatprep.subr.bf16.mxu0 0
  %1721 = vmatpush1.bf16.msra.mxu0 0
  %1722 = vmatprep.subr.bf16.mxu0 0
  %1723 = vmatpush1.bf16.msra.mxu0 0
  %1724 = vmatprep.subr.bf16.mxu0 0
  %1725 = vmatpush1.bf16.msra.mxu0 0
  %1726 = vmatprep.subr.bf16.mxu0 0
  %1727 = vmatpush1.bf16.msra.mxu0 0
  %1728 = vmatprep.subr.bf16.mxu0 0
  %1729 = vmatpush1.bf16.msra.mxu0 0
  %1730 = vmatprep.subr.bf16.mxu0 0
  %1731 = vmatpush1.bf16.msra.mxu0 0
  %1732 = vmatprep.subr.bf16.mxu0 0
  %1733 = vmatpush1.bf16.msra.mxu0 0
  %1734 = vmatprep.subr.bf16.mxu0 0
  %1735 = vmatpush1.bf16.msra.mxu0 0
  %1736 = vmatprep.subr.bf16.mxu0 0
  %1737 = vmatpush1.bf16.msra.mxu0 0
  %1738 = vmatprep.subr.bf16.mxu0 0
  %1739 = vmatpush1.bf16.msra.mxu0 0
  %1740 = vmatprep.subr.bf16.mxu0 0
  %1741 = vmatpush1.bf16.msra.mxu0 0
  %1742 = vmatprep.subr.bf16.mxu0 0
  %1743 = vmatpush1.bf16.msra.mxu0 0
  %1744 = vmatprep.subr.bf16.mxu0 0
  %1745 = vmatpush1.bf16.msra.mxu0 0
  %1746 = vmatprep.subr.bf16.mxu0 0
  %1747 = vmatpush1.bf16.msra.mxu0 0
  %1748 = vmatprep.mubr.bf16.mxu0 0
  %1749 = vmatmul.mubr.bf16.gmra.mrb[0].mxu0 %v1711
  %v1750 = vpop.f32.mrb[0].mxu0
  %v1751 = vadd.f32 0.0, %v1750
  %v1752 = vpop.f32.mrb[0].mxu0
  %v1753 = vpop.f32.mrb[0].mxu0
  %v1754 = vpop.f32.mrb[0].mxu0
  %1755 = vdwg.mxu0
  %1756 = vrot.lane.b32.xlu0 %v473, 48
  %v1757 = vpop.permute.xlu0 %1756
  %v1759 = vsel %vm477, %v1611, 0
  %v1762 = vsel %vm728, %v1757, 0
  %1764 = vmatprep.subr.bf16.mxu0 0
  %1765 = vmatpush1.bf16.msra.mxu0 %v1762
  %1766 = vmatprep.subr.bf16.mxu0 0
  %1767 = vmatpush1.bf16.msra.mxu0 0
  %1768 = vmatprep.subr.bf16.mxu0 0
  %1769 = vmatpush1.bf16.msra.mxu0 0
  %1770 = vmatprep.subr.bf16.mxu0 0
  %1771 = vmatpush1.bf16.msra.mxu0 0
  %1772 = vmatprep.subr.bf16.mxu0 0
  %1773 = vmatpush1.bf16.msra.mxu0 0
  %1774 = vmatprep.subr.bf16.mxu0 0
  %1775 = vmatpush1.bf16.msra.mxu0 0
  %1776 = vmatprep.subr.bf16.mxu0 0
  %1777 = vmatpush1.bf16.msra.mxu0 0
  %1778 = vmatprep.subr.bf16.mxu0 0
  %1779 = vmatpush1.bf16.msra.mxu0 0
  %1780 = vmatprep.subr.bf16.mxu0 0
  %1781 = vmatpush1.bf16.msra.mxu0 0
  %1782 = vmatprep.subr.bf16.mxu0 0
  %1783 = vmatpush1.bf16.msra.mxu0 0
  %1784 = vmatprep.subr.bf16.mxu0 0
  %1785 = vmatpush1.bf16.msra.mxu0 0
  %1786 = vmatprep.subr.bf16.mxu0 0
  %1787 = vmatpush1.bf16.msra.mxu0 0
  %1788 = vmatprep.subr.bf16.mxu0 0
  %1789 = vmatpush1.bf16.msra.mxu0 0
  %1790 = vmatprep.subr.bf16.mxu0 0
  %1791 = vmatpush1.bf16.msra.mxu0 0
  %1792 = vmatprep.subr.bf16.mxu0 0
  %1793 = vmatpush1.bf16.msra.mxu0 0
  %1794 = vmatprep.subr.bf16.mxu0 0
  %1795 = vmatpush1.bf16.msra.mxu0 0
  %1796 = vmatprep.mubr.bf16.mxu0 0
  %1797 = vmatmul.mubr.bf16.gmra.mrb[0].mxu0 %v1759
  %v1798 = vpop.f32.mrb[0].mxu0
  %v1799 = vadd.f32 0.0, %v1798
  %v1800 = vpop.f32.mrb[0].mxu0
  %v1801 = vpop.f32.mrb[0].mxu0
  %v1802 = vpop.f32.mrb[0].mxu0
  %1803 = vdwg.mxu0
  %1804 = vrot.lane.b32.xlu0 %v470, 104
  %v1805 = vpop.permute.xlu0 %1804
  %1806 = vrot.lane.b32.xlu0 %v470, 72
  %v1807 = vpop.permute.xlu0 %1806
  %v1809 = vsel %vm477, %v1805, 0
  %v1812 = vsel %vm477, %v1807, 0
  %1814 = vmatprep.subr.bf16.mxu0 0
  %1815 = vmatpush1.bf16.xpose.msra.mxu0 %v1812
  %1816 = vmatprep.subr.bf16.mxu0 0
  %1817 = vmatpush1.bf16.xpose.msra.mxu0 0
  %1818 = vmatprep.subr.bf16.mxu0 0
  %1819 = vmatpush1.bf16.xpose.msra.mxu0 0
  %1820 = vmatprep.subr.bf16.mxu0 0
  %1821 = vmatpush1.bf16.xpose.msra.mxu0 0
  %1822 = vmatprep.subr.bf16.mxu0 0
  %1823 = vmatpush1.bf16.xpose.msra.mxu0 0
  %1824 = vmatprep.subr.bf16.mxu0 0
  %1825 = vmatpush1.bf16.xpose.msra.mxu0 0
  %1826 = vmatprep.subr.bf16.mxu0 0
  %1827 = vmatpush1.bf16.xpose.msra.mxu0 0
  %1828 = vmatprep.subr.bf16.mxu0 0
  %1829 = vmatpush1.bf16.xpose.msra.mxu0 0
  %1830 = vmatprep.subr.bf16.mxu0 0
  %1831 = vmatpush1.bf16.xpose.msra.mxu0 0
  %1832 = vmatprep.subr.bf16.mxu0 0
  %1833 = vmatpush1.bf16.xpose.msra.mxu0 0
  %1834 = vmatprep.subr.bf16.mxu0 0
  %1835 = vmatpush1.bf16.xpose.msra.mxu0 0
  %1836 = vmatprep.subr.bf16.mxu0 0
  %1837 = vmatpush1.bf16.xpose.msra.mxu0 0
  %1838 = vmatprep.subr.bf16.mxu0 0
  %1839 = vmatpush1.bf16.xpose.msra.mxu0 0
  %1840 = vmatprep.subr.bf16.mxu0 0
  %1841 = vmatpush1.bf16.xpose.msra.mxu0 0
  %1842 = vmatprep.subr.bf16.mxu0 0
  %1843 = vmatpush1.bf16.xpose.msra.mxu0 0
  %1844 = vmatprep.subr.bf16.mxu0 0
  %1845 = vmatpush1.bf16.xpose.msra.mxu0 0
  %1846 = vmatprep.mubr.bf16.mxu0 0
  %1847 = vmatmul.mubr.bf16.gmra.mrb[0].mxu0 %v1809
  %v1848 = vpop.f32.mrb[0].mxu0
  %v1849 = vadd.f32 0.0, %v1848
  %v1850 = vpop.f32.mrb[0].mxu0
  %v1851 = vpop.f32.mrb[0].mxu0
  %v1852 = vpop.f32.mrb[0].mxu0
  %1853 = vdwg.mxu0
  %1854 = vrot.lane.b32.xlu0 %v471, 104
  %v1855 = vpop.permute.xlu0 %1854
  %1856 = vrot.lane.b32.xlu0 %v471, 72
  %v1857 = vpop.permute.xlu0 %1856
  %v1859 = vsel %vm477, %v1855, 0
  %v1862 = vsel %vm477, %v1857, 0
  %1864 = vmatprep.subr.bf16.mxu0 0
  %1865 = vmatpush1.bf16.xpose.msra.mxu0 %v1862
  %1866 = vmatprep.subr.bf16.mxu0 0
  %1867 = vmatpush1.bf16.xpose.msra.mxu0 0
  %1868 = vmatprep.subr.bf16.mxu0 0
  %1869 = vmatpush1.bf16.xpose.msra.mxu0 0
  %1870 = vmatprep.subr.bf16.mxu0 0
  %1871 = vmatpush1.bf16.xpose.msra.mxu0 0
  %1872 = vmatprep.subr.bf16.mxu0 0
  %1873 = vmatpush1.bf16.xpose.msra.mxu0 0
  %1874 = vmatprep.subr.bf16.mxu0 0
  %1875 = vmatpush1.bf16.xpose.msra.mxu0 0
  %1876 = vmatprep.subr.bf16.mxu0 0
  %1877 = vmatpush1.bf16.xpose.msra.mxu0 0
  %1878 = vmatprep.subr.bf16.mxu0 0
  %1879 = vmatpush1.bf16.xpose.msra.mxu0 0
  %1880 = vmatprep.subr.bf16.mxu0 0
  %1881 = vmatpush1.bf16.xpose.msra.mxu0 0
  %1882 = vmatprep.subr.bf16.mxu0 0
  %1883 = vmatpush1.bf16.xpose.msra.mxu0 0
  %1884 = vmatprep.subr.bf16.mxu0 0
  %1885 = vmatpush1.bf16.xpose.msra.mxu0 0
  %1886 = vmatprep.subr.bf16.mxu0 0
  %1887 = vmatpush1.bf16.xpose.msra.mxu0 0
  %1888 = vmatprep.subr.bf16.mxu0 0
  %1889 = vmatpush1.bf16.xpose.msra.mxu0 0
  %1890 = vmatprep.subr.bf16.mxu0 0
  %1891 = vmatpush1.bf16.xpose.msra.mxu0 0
  %1892 = vmatprep.subr.bf16.mxu0 0
  %1893 = vmatpush1.bf16.xpose.msra.mxu0 0
  %1894 = vmatprep.subr.bf16.mxu0 0
  %1895 = vmatpush1.bf16.xpose.msra.mxu0 0
  %1896 = vmatprep.mubr.bf16.mxu0 0
  %1897 = vmatmul.mubr.bf16.gmra.mrb[0].mxu0 %v1859
  %v1898 = vpop.f32.mrb[0].mxu0
  %v1899 = vadd.f32 0.0, %v1898
  %v1900 = vpop.f32.mrb[0].mxu0
  %v1901 = vpop.f32.mrb[0].mxu0
  %v1902 = vpop.f32.mrb[0].mxu0
  %1903 = vdwg.mxu0
  %1904 = vrot.lane.b32.xlu0 %v472, 104
  %v1905 = vpop.permute.xlu0 %1904
  %1906 = vrot.lane.b32.xlu0 %v472, 72
  %v1907 = vpop.permute.xlu0 %1906
  %v1909 = vsel %vm477, %v1905, 0
  %v1912 = vsel %vm477, %v1907, 0
  %1914 = vmatprep.subr.bf16.mxu0 0
  %1915 = vmatpush1.bf16.xpose.msra.mxu0 %v1912
  %1916 = vmatprep.subr.bf16.mxu0 0
  %1917 = vmatpush1.bf16.xpose.msra.mxu0 0
  %1918 = vmatprep.subr.bf16.mxu0 0
  %1919 = vmatpush1.bf16.xpose.msra.mxu0 0
  %1920 = vmatprep.subr.bf16.mxu0 0
  %1921 = vmatpush1.bf16.xpose.msra.mxu0 0
  %1922 = vmatprep.subr.bf16.mxu0 0
  %1923 = vmatpush1.bf16.xpose.msra.mxu0 0
  %1924 = vmatprep.subr.bf16.mxu0 0
  %1925 = vmatpush1.bf16.xpose.msra.mxu0 0
  %1926 = vmatprep.subr.bf16.mxu0 0
  %1927 = vmatpush1.bf16.xpose.msra.mxu0 0
  %1928 = vmatprep.subr.bf16.mxu0 0
  %1929 = vmatpush1.bf16.xpose.msra.mxu0 0
  %1930 = vmatprep.subr.bf16.mxu0 0
  %1931 = vmatpush1.bf16.xpose.msra.mxu0 0
  %1932 = vmatprep.subr.bf16.mxu0 0
  %1933 = vmatpush1.bf16.xpose.msra.mxu0 0
  %1934 = vmatprep.subr.bf16.mxu0 0
  %1935 = vmatpush1.bf16.xpose.msra.mxu0 0
  %1936 = vmatprep.subr.bf16.mxu0 0
  %1937 = vmatpush1.bf16.xpose.msra.mxu0 0
  %1938 = vmatprep.subr.bf16.mxu0 0
  %1939 = vmatpush1.bf16.xpose.msra.mxu0 0
  %1940 = vmatprep.subr.bf16.mxu0 0
  %1941 = vmatpush1.bf16.xpose.msra.mxu0 0
  %1942 = vmatprep.subr.bf16.mxu0 0
  %1943 = vmatpush1.bf16.xpose.msra.mxu0 0
  %1944 = vmatprep.subr.bf16.mxu0 0
  %1945 = vmatpush1.bf16.xpose.msra.mxu0 0
  %1946 = vmatprep.mubr.bf16.mxu0 0
  %1947 = vmatmul.mubr.bf16.gmra.mrb[0].mxu0 %v1909
  %v1948 = vpop.f32.mrb[0].mxu0
  %v1949 = vadd.f32 0.0, %v1948
  %v1950 = vpop.f32.mrb[0].mxu0
  %v1951 = vpop.f32.mrb[0].mxu0
  %v1952 = vpop.f32.mrb[0].mxu0
  %1953 = vdwg.mxu0
  %1954 = vrot.lane.b32.xlu0 %v473, 104
  %v1955 = vpop.permute.xlu0 %1954
  %1956 = vrot.lane.b32.xlu0 %v473, 72
  %v1957 = vpop.permute.xlu0 %1956
  %v1959 = vsel %vm477, %v1955, 0
  %v1962 = vsel %vm477, %v1957, 0
  %1964 = vmatprep.subr.bf16.mxu0 0
  %1965 = vmatpush1.bf16.xpose.msra.mxu0 %v1962
  %1966 = vmatprep.subr.bf16.mxu0 0
  %1967 = vmatpush1.bf16.xpose.msra.mxu0 0
  %1968 = vmatprep.subr.bf16.mxu0 0
  %1969 = vmatpush1.bf16.xpose.msra.mxu0 0
  %1970 = vmatprep.subr.bf16.mxu0 0
  %1971 = vmatpush1.bf16.xpose.msra.mxu0 0
  %1972 = vmatprep.subr.bf16.mxu0 0
  %1973 = vmatpush1.bf16.xpose.msra.mxu0 0
  %1974 = vmatprep.subr.bf16.mxu0 0
  %1975 = vmatpush1.bf16.xpose.msra.mxu0 0
  %1976 = vmatprep.subr.bf16.mxu0 0
  %1977 = vmatpush1.bf16.xpose.msra.mxu0 0
  %1978 = vmatprep.subr.bf16.mxu0 0
  %1979 = vmatpush1.bf16.xpose.msra.mxu0 0
  %1980 = vmatprep.subr.bf16.mxu0 0
  %1981 = vmatpush1.bf16.xpose.msra.mxu0 0
  %1982 = vmatprep.subr.bf16.mxu0 0
  %1983 = vmatpush1.bf16.xpose.msra.mxu0 0
  %1984 = vmatprep.subr.bf16.mxu0 0
  %1985 = vmatpush1.bf16.xpose.msra.mxu0 0
  %1986 = vmatprep.subr.bf16.mxu0 0
  %1987 = vmatpush1.bf16.xpose.msra.mxu0 0
  %1988 = vmatprep.subr.bf16.mxu0 0
  %1989 = vmatpush1.bf16.xpose.msra.mxu0 0
  %1990 = vmatprep.subr.bf16.mxu0 0
  %1991 = vmatpush1.bf16.xpose.msra.mxu0 0
  %1992 = vmatprep.subr.bf16.mxu0 0
  %1993 = vmatpush1.bf16.xpose.msra.mxu0 0
  %1994 = vmatprep.subr.bf16.mxu0 0
  %1995 = vmatpush1.bf16.xpose.msra.mxu0 0
  %1996 = vmatprep.mubr.bf16.mxu0 0
  %1997 = vmatmul.mubr.bf16.gmra.mrb[0].mxu0 %v1959
  %v1998 = vpop.f32.mrb[0].mxu0
  %v1999 = vadd.f32 0.0, %v1998
  %v2000 = vpop.f32.mrb[0].mxu0
  %v2001 = vpop.f32.mrb[0].mxu0
  %v2002 = vpop.f32.mrb[0].mxu0
  %2003 = vdwg.mxu0
  %v2004 = vmul.f32 %v1849, 0.35355338
  %v2005 = vmul.f32 %v1899, 0.35355338
  %v2006 = vmul.f32 %v1949, 0.35355338
  %v2007 = vmul.f32 %v1999, 0.35355338
  %v2008 = vsel %vm477, %v2004, -inf
  %2009 = vmax.xlane.f32.xlu0 %v2008
  %v2010 = vpop.xlane.xlu0 %2009
  %v2011 = vsel %vm477, %v2005, -inf
  %2012 = vmax.xlane.f32.xlu0 %v2011
  %v2013 = vpop.xlane.xlu0 %2012
  %v2014 = vsel %vm477, %v2006, -inf
  %2015 = vmax.xlane.f32.xlu0 %v2014
  %v2016 = vpop.xlane.xlu0 %2015
  %v2017 = vsel %vm477, %v2007, -inf
  %2018 = vmax.xlane.f32.xlu0 %v2017
  %v2019 = vpop.xlane.xlu0 %2018
  %v2020 = vsub.f32 %v2004, %v2010
  %v2021 = vsub.f32 %v2005, %v2013
  %v2022 = vsub.f32 %v2006, %v2016
  %v2023 = vsub.f32 %v2007, %v2019
  %v2024 = vmul.f32 %v2020, 1.442695
  %v2025 = vpow.pop %v2024
  %v2026 = vmul.f32 %v2021, 1.442695
  %v2027 = vpow.pop %v2026
  %v2028 = vmul.f32 %v2022, 1.442695
  %v2029 = vpow.pop %v2028
  %v2030 = vmul.f32 %v2023, 1.442695
  %v2031 = vpow.pop %v2030
  %v2032 = vsel %vm477, %v2025, 0.0
  %2033 = vadd.xlane.f32.xlu0 %v2032
  %v2034 = vpop.xlane.xlu0 %2033
  %v2035 = vsel %vm477, %v2027, 0.0
  %2036 = vadd.xlane.f32.xlu0 %v2035
  %v2037 = vpop.xlane.xlu0 %2036
  %v2038 = vsel %vm477, %v2029, 0.0
  %2039 = vadd.xlane.f32.xlu0 %v2038
  %v2040 = vpop.xlane.xlu0 %2039
  %v2041 = vsel %vm477, %v2031, 0.0
  %2042 = vadd.xlane.f32.xlu0 %v2041
  %v2043 = vpop.xlane.xlu0 %2042
  %v2044 = vrcp.pop %v2034
  %v2045 = vrcp.pop %v2037
  %v2046 = vrcp.pop %v2040
  %v2047 = vrcp.pop %v2043
  %v2048 = vmul.f32 %v2025, %v2044
  %v2049 = vmul.f32 %v2027, %v2045
  %v2050 = vmul.f32 %v2029, %v2046
  %v2051 = vmul.f32 %v2031, %v2047
  %v2052 = vpack.c.bf16 %v2048, %v2048
  %v2053 = vpack.c.bf16 %v2049, %v2049
  %v2054 = vpack.c.bf16 %v2050, %v2050
  %v2055 = vpack.c.bf16 %v2051, %v2051
  %2056 = vrot.lane.b32.xlu0 %v470, 40
  %v2057 = vpop.permute.xlu0 %2056
  %v2059 = vsel %vm477, %v2052, 0
  %v2062 = vsel %vm728, %v2057, 0
  %2064 = vmatprep.subr.bf16.mxu0 0
  %2065 = vmatpush1.bf16.msra.mxu0 %v2062
  %2066 = vmatprep.subr.bf16.mxu0 0
  %2067 = vmatpush1.bf16.msra.mxu0 0
  %2068 = vmatprep.subr.bf16.mxu0 0
  %2069 = vmatpush1.bf16.msra.mxu0 0
  %2070 = vmatprep.subr.bf16.mxu0 0
  %2071 = vmatpush1.bf16.msra.mxu0 0
  %2072 = vmatprep.subr.bf16.mxu0 0
  %2073 = vmatpush1.bf16.msra.mxu0 0
  %2074 = vmatprep.subr.bf16.mxu0 0
  %2075 = vmatpush1.bf16.msra.mxu0 0
  %2076 = vmatprep.subr.bf16.mxu0 0
  %2077 = vmatpush1.bf16.msra.mxu0 0
  %2078 = vmatprep.subr.bf16.mxu0 0
  %2079 = vmatpush1.bf16.msra.mxu0 0
  %2080 = vmatprep.subr.bf16.mxu0 0
  %2081 = vmatpush1.bf16.msra.mxu0 0
  %2082 = vmatprep.subr.bf16.mxu0 0
  %2083 = vmatpush1.bf16.msra.mxu0 0
  %2084 = vmatprep.subr.bf16.mxu0 0
  %2085 = vmatpush1.bf16.msra.mxu0 0
  %2086 = vmatprep.subr.bf16.mxu0 0
  %2087 = vmatpush1.bf16.msra.mxu0 0
  %2088 = vmatprep.subr.bf16.mxu0 0
  %2089 = vmatpush1.bf16.msra.mxu0 0
  %2090 = vmatprep.subr.bf16.mxu0 0
  %2091 = vmatpush1.bf16.msra.mxu0 0
  %2092 = vmatprep.subr.bf16.mxu0 0
  %2093 = vmatpush1.bf16.msra.mxu0 0
  %2094 = vmatprep.subr.bf16.mxu0 0
  %2095 = vmatpush1.bf16.msra.mxu0 0
  %2096 = vmatprep.mubr.bf16.mxu0 0
  %2097 = vmatmul.mubr.bf16.gmra.mrb[0].mxu0 %v2059
  %v2098 = vpop.f32.mrb[0].mxu0
  %v2099 = vadd.f32 0.0, %v2098
  %v2100 = vpop.f32.mrb[0].mxu0
  %v2101 = vpop.f32.mrb[0].mxu0
  %v2102 = vpop.f32.mrb[0].mxu0
  %2103 = vdwg.mxu0
  %2104 = vrot.lane.b32.xlu0 %v471, 40
  %v2105 = vpop.permute.xlu0 %2104
  %v2107 = vsel %vm477, %v2053, 0
  %v2110 = vsel %vm728, %v2105, 0
  %2112 = vmatprep.subr.bf16.mxu0 0
  %2113 = vmatpush1.bf16.msra.mxu0 %v2110
  %2114 = vmatprep.subr.bf16.mxu0 0
  %2115 = vmatpush1.bf16.msra.mxu0 0
  %2116 = vmatprep.subr.bf16.mxu0 0
  %2117 = vmatpush1.bf16.msra.mxu0 0
  %2118 = vmatprep.subr.bf16.mxu0 0
  %2119 = vmatpush1.bf16.msra.mxu0 0
  %2120 = vmatprep.subr.bf16.mxu0 0
  %2121 = vmatpush1.bf16.msra.mxu0 0
  %2122 = vmatprep.subr.bf16.mxu0 0
  %2123 = vmatpush1.bf16.msra.mxu0 0
  %2124 = vmatprep.subr.bf16.mxu0 0
  %2125 = vmatpush1.bf16.msra.mxu0 0
  %2126 = vmatprep.subr.bf16.mxu0 0
  %2127 = vmatpush1.bf16.msra.mxu0 0
  %2128 = vmatprep.subr.bf16.mxu0 0
  %2129 = vmatpush1.bf16.msra.mxu0 0
  %2130 = vmatprep.subr.bf16.mxu0 0
  %2131 = vmatpush1.bf16.msra.mxu0 0
  %2132 = vmatprep.subr.bf16.mxu0 0
  %2133 = vmatpush1.bf16.msra.mxu0 0
  %2134 = vmatprep.subr.bf16.mxu0 0
  %2135 = vmatpush1.bf16.msra.mxu0 0
  %2136 = vmatprep.subr.bf16.mxu0 0
  %2137 = vmatpush1.bf16.msra.mxu0 0
  %2138 = vmatprep.subr.bf16.mxu0 0
  %2139 = vmatpush1.bf16.msra.mxu0 0
  %2140 = vmatprep.subr.bf16.mxu0 0
  %2141 = vmatpush1.bf16.msra.mxu0 0
  %2142 = vmatprep.subr.bf16.mxu0 0
  %2143 = vmatpush1.bf16.msra.mxu0 0
  %2144 = vmatprep.mubr.bf16.mxu0 0
  %2145 = vmatmul.mubr.bf16.gmra.mrb[0].mxu0 %v2107
  %v2146 = vpop.f32.mrb[0].mxu0
  %v2147 = vadd.f32 0.0, %v2146
  %v2148 = vpop.f32.mrb[0].mxu0
  %v2149 = vpop.f32.mrb[0].mxu0
  %v2150 = vpop.f32.mrb[0].mxu0
  %2151 = vdwg.mxu0
  %2152 = vrot.lane.b32.xlu0 %v472, 40
  %v2153 = vpop.permute.xlu0 %2152
  %v2155 = vsel %vm477, %v2054, 0
  %v2158 = vsel %vm728, %v2153, 0
  %2160 = vmatprep.subr.bf16.mxu0 0
  %2161 = vmatpush1.bf16.msra.mxu0 %v2158
  %2162 = vmatprep.subr.bf16.mxu0 0
  %2163 = vmatpush1.bf16.msra.mxu0 0
  %2164 = vmatprep.subr.bf16.mxu0 0
  %2165 = vmatpush1.bf16.msra.mxu0 0
  %2166 = vmatprep.subr.bf16.mxu0 0
  %2167 = vmatpush1.bf16.msra.mxu0 0
  %2168 = vmatprep.subr.bf16.mxu0 0
  %2169 = vmatpush1.bf16.msra.mxu0 0
  %2170 = vmatprep.subr.bf16.mxu0 0
  %2171 = vmatpush1.bf16.msra.mxu0 0
  %2172 = vmatprep.subr.bf16.mxu0 0
  %2173 = vmatpush1.bf16.msra.mxu0 0
  %2174 = vmatprep.subr.bf16.mxu0 0
  %2175 = vmatpush1.bf16.msra.mxu0 0
  %2176 = vmatprep.subr.bf16.mxu0 0
  %2177 = vmatpush1.bf16.msra.mxu0 0
  %2178 = vmatprep.subr.bf16.mxu0 0
  %2179 = vmatpush1.bf16.msra.mxu0 0
  %2180 = vmatprep.subr.bf16.mxu0 0
  %2181 = vmatpush1.bf16.msra.mxu0 0
  %2182 = vmatprep.subr.bf16.mxu0 0
  %2183 = vmatpush1.bf16.msra.mxu0 0
  %2184 = vmatprep.subr.bf16.mxu0 0
  %2185 = vmatpush1.bf16.msra.mxu0 0
  %2186 = vmatprep.subr.bf16.mxu0 0
  %2187 = vmatpush1.bf16.msra.mxu0 0
  %2188 = vmatprep.subr.bf16.mxu0 0
  %2189 = vmatpush1.bf16.msra.mxu0 0
  %2190 = vmatprep.subr.bf16.mxu0 0
  %2191 = vmatpush1.bf16.msra.mxu0 0
  %2192 = vmatprep.mubr.bf16.mxu0 0
  %2193 = vmatmul.mubr.bf16.gmra.mrb[0].mxu0 %v2155
  %v2194 = vpop.f32.mrb[0].mxu0
  %v2195 = vadd.f32 0.0, %v2194
  %v2196 = vpop.f32.mrb[0].mxu0
  %v2197 = vpop.f32.mrb[0].mxu0
  %v2198 = vpop.f32.mrb[0].mxu0
  %2199 = vdwg.mxu0
  %2200 = vrot.lane.b32.xlu0 %v473, 40
  %v2201 = vpop.permute.xlu0 %2200
  %v2203 = vsel %vm477, %v2055, 0
  %v2206 = vsel %vm728, %v2201, 0
  %2208 = vmatprep.subr.bf16.mxu0 0
  %2209 = vmatpush1.bf16.msra.mxu0 %v2206
  %2210 = vmatprep.subr.bf16.mxu0 0
  %2211 = vmatpush1.bf16.msra.mxu0 0
  %2212 = vmatprep.subr.bf16.mxu0 0
  %2213 = vmatpush1.bf16.msra.mxu0 0
  %2214 = vmatprep.subr.bf16.mxu0 0
  %2215 = vmatpush1.bf16.msra.mxu0 0
  %2216 = vmatprep.subr.bf16.mxu0 0
  %2217 = vmatpush1.bf16.msra.mxu0 0
  %2218 = vmatprep.subr.bf16.mxu0 0
  %2219 = vmatpush1.bf16.msra.mxu0 0
  %2220 = vmatprep.subr.bf16.mxu0 0
  %2221 = vmatpush1.bf16.msra.mxu0 0
  %2222 = vmatprep.subr.bf16.mxu0 0
  %2223 = vmatpush1.bf16.msra.mxu0 0
  %2224 = vmatprep.subr.bf16.mxu0 0
  %2225 = vmatpush1.bf16.msra.mxu0 0
  %2226 = vmatprep.subr.bf16.mxu0 0
  %2227 = vmatpush1.bf16.msra.mxu0 0
  %2228 = vmatprep.subr.bf16.mxu0 0
  %2229 = vmatpush1.bf16.msra.mxu0 0
  %2230 = vmatprep.subr.bf16.mxu0 0
  %2231 = vmatpush1.bf16.msra.mxu0 0
  %2232 = vmatprep.subr.bf16.mxu0 0
  %2233 = vmatpush1.bf16.msra.mxu0 0
  %2234 = vmatprep.subr.bf16.mxu0 0
  %2235 = vmatpush1.bf16.msra.mxu0 0
  %2236 = vmatprep.subr.bf16.mxu0 0
  %2237 = vmatpush1.bf16.msra.mxu0 0
  %2238 = vmatprep.subr.bf16.mxu0 0
  %2239 = vmatpush1.bf16.msra.mxu0 0
  %2240 = vmatprep.mubr.bf16.mxu0 0
  %2241 = vmatmul.mubr.bf16.gmra.mrb[0].mxu0 %v2203
  %v2242 = vpop.f32.mrb[0].mxu0
  %v2243 = vadd.f32 0.0, %v2242
  %v2244 = vpop.f32.mrb[0].mxu0
  %v2245 = vpop.f32.mrb[0].mxu0
  %v2246 = vpop.f32.mrb[0].mxu0
  %2247 = vdwg.mxu0
  %2252 = vrot.lane.b32.xlu0 %v1211, 8
  %v2253 = vpop.permute.xlu0 %2252
  %2254 = vrot.lane.b32.xlu0 %v1259, 8
  %v2255 = vpop.permute.xlu0 %2254
  %2256 = vrot.lane.b32.xlu0 %v1307, 8
  %v2257 = vpop.permute.xlu0 %2256
  %2258 = vrot.lane.b32.xlu0 %v1355, 8
  %v2259 = vpop.permute.xlu0 %2258
  %2268 = vrot.lane.b32.xlu0 %v1655, 16
  %v2269 = vpop.permute.xlu0 %2268
  %2270 = vrot.lane.b32.xlu0 %v1703, 16
  %v2271 = vpop.permute.xlu0 %2270
  %2272 = vrot.lane.b32.xlu0 %v1751, 16
  %v2273 = vpop.permute.xlu0 %2272
  %2274 = vrot.lane.b32.xlu0 %v1799, 16
  %v2275 = vpop.permute.xlu0 %2274
  %2284 = vrot.lane.b32.xlu0 %v2099, 24
  %v2285 = vpop.permute.xlu0 %2284
  %2286 = vrot.lane.b32.xlu0 %v2147, 24
  %v2287 = vpop.permute.xlu0 %2286
  %2288 = vrot.lane.b32.xlu0 %v2195, 24
  %v2289 = vpop.permute.xlu0 %2288
  %2290 = vrot.lane.b32.xlu0 %v2243, 24
  %v2291 = vpop.permute.xlu0 %2290
  %v2296 = vsel %vm477, %v767, %v2253
  %v2297 = vsel %vm477, %v815, %v2255
  %v2298 = vsel %vm477, %v863, %v2257
  %v2299 = vsel %vm477, %v911, %v2259
  %vm2300 = vcmask 130048
  %v2301 = vsel %vm2300, %v2296, %v2269
  %v2302 = vsel %vm2300, %v2297, %v2271
  %v2303 = vsel %vm2300, %v2298, %v2273
  %v2304 = vsel %vm2300, %v2299, %v2275
  %vm2305 = vcmask 195584
  %v2306 = vsel %vm2305, %v2301, %v2285
  %v2307 = vsel %vm2305, %v2302, %v2287
  %v2308 = vsel %vm2305, %v2303, %v2289
  %v2309 = vsel %vm2305, %v2304, %v2291
  %v2310 = vpack.c.bf16 %v2307, %v2306
  %v2311 = vpack.c.bf16 %v2309, %v2308
  %v2312 = vld [vmem:[%s5] sm:$0x1]
  %v2314 = vlaneseq
  %v2315 = vshrl.u32 %v2314, 7
  %v2316 = vsub.s32 0, %v2315
  %v2317 = vrot.slane %v2312, %v2316
  %v2323 = vunpack.c.l.b16 %v101
  %v2324 = vunpack.c.l.b16 %v102
  %v2325 = vunpack.c.l.b16 %v103
  %v2326 = vunpack.c.l.b16 %v104
  %v2327 = vpack.c.b16 %v2324, %v2323
  %v2328 = vpack.c.b16 %v2326, %v2325
  %v2332 = vsel %vm414, %v2310, 0
  %v2335 = vsel %vm414, %v2311, 0
  %2337 = vmatprep.subr.bf16.mxu0 0
  %2338 = vmatpush1.bf16.msra.mxu0 %v2327
  %2339 = vmatprep.subr.bf16.mxu0 0
  %2340 = vmatpush1.bf16.msra.mxu0 %v2328
  %2341 = vmatprep.subr.bf16.mxu0 0
  %2342 = vmatpush1.bf16.msra.mxu0 0
  %2343 = vmatprep.subr.bf16.mxu0 0
  %2344 = vmatpush1.bf16.msra.mxu0 0
  %2345 = vmatprep.subr.bf16.mxu0 0
  %2346 = vmatpush1.bf16.msra.mxu0 0
  %2347 = vmatprep.subr.bf16.mxu0 0
  %2348 = vmatpush1.bf16.msra.mxu0 0
  %2349 = vmatprep.subr.bf16.mxu0 0
  %2350 = vmatpush1.bf16.msra.mxu0 0
  %2351 = vmatprep.subr.bf16.mxu0 0
  %2352 = vmatpush1.bf16.msra.mxu0 0
  %2353 = vmatprep.subr.bf16.mxu0 0
  %2354 = vmatpush1.bf16.msra.mxu0 0
  %2355 = vmatprep.subr.bf16.mxu0 0
  %2356 = vmatpush1.bf16.msra.mxu0 0
  %2357 = vmatprep.subr.bf16.mxu0 0
  %2358 = vmatpush1.bf16.msra.mxu0 0
  %2359 = vmatprep.subr.bf16.mxu0 0
  %2360 = vmatpush1.bf16.msra.mxu0 0
  %2361 = vmatprep.subr.bf16.mxu0 0
  %2362 = vmatpush1.bf16.msra.mxu0 0
  %2363 = vmatprep.subr.bf16.mxu0 0
  %2364 = vmatpush1.bf16.msra.mxu0 0
  %2365 = vmatprep.subr.bf16.mxu0 0
  %2366 = vmatpush1.bf16.msra.mxu0 0
  %2367 = vmatprep.subr.bf16.mxu0 0
  %2368 = vmatpush1.bf16.msra.mxu0 0
  %2369 = vmatprep.mubr.bf16.mxu0 0
  %2370 = vmatmul.mubr.bf16.gmra.mrb[0].mxu0 %v2332
  %v2371 = vpop.f32.mrb[0].mxu0
  %v2372 = vadd.f32 %v2317, %v2371
  %v2373 = vpop.f32.mrb[0].mxu0
  %v2374 = vpop.f32.mrb[0].mxu0
  %v2375 = vadd.f32 %v2317, %v2374
  %v2376 = vpop.f32.mrb[0].mxu0
  %2377 = vmatprep.mubr.bf16.mxu0 0
  %2378 = vmatmul.mubr.bf16.gmra.mrb[0].mxu0 %v2335
  %v2379 = vpop.f32.mrb[0].mxu0
  %v2380 = vadd.f32 %v2317, %v2379
  %v2381 = vpop.f32.mrb[0].mxu0
  %v2382 = vpop.f32.mrb[0].mxu0
  %v2383 = vadd.f32 %v2317, %v2382
  %v2384 = vpop.f32.mrb[0].mxu0
  %2385 = vdwg.mxu0
  %v2386 = vadd.f32 %v93, %v2372
  %v2387 = vadd.f32 %v94, %v2375
  %v2388 = vadd.f32 %v95, %v2380
  %v2389 = vadd.f32 %v96, %v2383
  %v2390 = vsel %vm414, %v2386, 0.0
  %2391 = vadd.xlane.f32.xlu0 %v2390
  %v2392 = vpop.xlane.xlu0 %2391
  %v2393 = vsel %vm414, %v2387, 0.0
  %2394 = vadd.xlane.f32.xlu0 %v2393
  %v2395 = vpop.xlane.xlu0 %2394
  %v2396 = vsel %vm414, %v2388, 0.0
  %2397 = vadd.xlane.f32.xlu0 %v2396
  %v2398 = vpop.xlane.xlu0 %2397
  %v2399 = vsel %vm414, %v2389, 0.0
  %2400 = vadd.xlane.f32.xlu0 %v2399
  %v2401 = vpop.xlane.xlu0 %2400
  %v2402 = vrcp.pop 32.0
  %v2403 = vmul.f32 %v2392, %v2402
  %v2404 = vmul.f32 %v2395, %v2402
  %v2405 = vmul.f32 %v2398, %v2402
  %v2406 = vmul.f32 %v2401, %v2402
  %v2407 = vsub.f32 %v2386, %v2403
  %v2408 = vsub.f32 %v2387, %v2404
  %v2409 = vsub.f32 %v2388, %v2405
  %v2410 = vsub.f32 %v2389, %v2406
  %v2411 = vmul.f32 %v2407, %v2407
  %v2412 = vmul.f32 %v2408, %v2408
  %v2413 = vmul.f32 %v2409, %v2409
  %v2414 = vmul.f32 %v2410, %v2410
  %v2415 = vsel %vm414, %v2411, 0.0
  %2416 = vadd.xlane.f32.xlu0 %v2415
  %v2417 = vpop.xlane.xlu0 %2416
  %v2418 = vsel %vm414, %v2412, 0.0
  %2419 = vadd.xlane.f32.xlu0 %v2418
  %v2420 = vpop.xlane.xlu0 %2419
  %v2421 = vsel %vm414, %v2413, 0.0
  %2422 = vadd.xlane.f32.xlu0 %v2421
  %v2423 = vpop.xlane.xlu0 %2422
  %v2424 = vsel %vm414, %v2414, 0.0
  %2425 = vadd.xlane.f32.xlu0 %v2424
  %v2426 = vpop.xlane.xlu0 %2425
  %v2427 = vmul.f32 %v2417, %v2402
  %v2428 = vmul.f32 %v2420, %v2402
  %v2429 = vmul.f32 %v2423, %v2402
  %v2430 = vmul.f32 %v2426, %v2402
  %v2431 = vadd.f32 %v2427, 1e-05
  %v2432 = vadd.f32 %v2428, 1e-05
  %v2433 = vadd.f32 %v2429, 1e-05
  %v2434 = vadd.f32 %v2430, 1e-05
  %v2435 = vrsqrt.pop %v2431
  %v2436 = vrsqrt.pop %v2432
  %v2437 = vrsqrt.pop %v2433
  %v2438 = vrsqrt.pop %v2434
  %v2439 = vmul.f32 %v2407, %v2435
  %v2440 = vmul.f32 %v2408, %v2436
  %v2441 = vmul.f32 %v2409, %v2437
  %v2442 = vmul.f32 %v2410, %v2438
  %v2443 = vld [vmem:[%s10] sm:$0x1]
  %v2445 = vlaneseq
  %v2446 = vshrl.u32 %v2445, 7
  %v2447 = vsub.s32 0, %v2446
  %v2448 = vrot.slane %v2443, %v2447
  %v2450 = vmul.f32 %v2439, %v2448
  %v2451 = vmul.f32 %v2440, %v2448
  %v2452 = vmul.f32 %v2441, %v2448
  %v2453 = vmul.f32 %v2442, %v2448
  %v2454 = vld [vmem:[%s11] sm:$0x1]
  %v2456 = vlaneseq
  %v2457 = vshrl.u32 %v2456, 7
  %v2458 = vsub.s32 0, %v2457
  %v2459 = vrot.slane %v2454, %v2458
  %v2461 = vadd.f32 %v2450, %v2459
  %v2462 = vadd.f32 %v2451, %v2459
  %v2463 = vadd.f32 %v2452, %v2459
  %v2464 = vadd.f32 %v2453, %v2459
  %v2465 = vpack.c.bf16 %v2462, %v2461
  %v2466 = vpack.c.bf16 %v2464, %v2463
  %v2467 = vld [vmem:[%s7] sm:$0xff]
  %v2468 = vld [vmem:[%s7 + $0x8] sm:$0xff]
  %v2471 = vlaneseq
  %v2472 = vshrl.u32 %v2471, 7
  %v2473 = vsub.s32 0, %v2472
  %v2474 = vrot.slane %v2467, %v2473
  %v2475 = vlaneseq
  %v2476 = vshrl.u32 %v2475, 7
  %v2477 = vsub.s32 1, %v2476
  %v2478 = vrot.slane %v2467, %v2477
  %v2479 = vlaneseq
  %v2480 = vshrl.u32 %v2479, 7
  %v2481 = vsub.s32 2, %v2480
  %v2482 = vrot.slane %v2467, %v2481
  %v2483 = vlaneseq
  %v2484 = vshrl.u32 %v2483, 7
  %v2485 = vsub.s32 3, %v2484
  %v2486 = vrot.slane %v2467, %v2485
  %v2487 = vlaneseq
  %v2488 = vshrl.u32 %v2487, 7
  %v2489 = vsub.s32 4, %v2488
  %v2490 = vrot.slane %v2467, %v2489
  %v2491 = vlaneseq
  %v2492 = vshrl.u32 %v2491, 7
  %v2493 = vsub.s32 5, %v2492
  %v2494 = vrot.slane %v2467, %v2493
  %v2495 = vlaneseq
  %v2496 = vshrl.u32 %v2495, 7
  %v2497 = vsub.s32 6, %v2496
  %v2498 = vrot.slane %v2467, %v2497
  %v2499 = vlaneseq
  %v2500 = vshrl.u32 %v2499, 7
  %v2501 = vsub.s32 7, %v2500
  %v2502 = vrot.slane %v2467, %v2501
  %v2503 = vlaneseq
  %v2504 = vshrl.u32 %v2503, 7
  %v2505 = vsub.s32 0, %v2504
  %v2506 = vrot.slane %v2468, %v2505
  %v2507 = vlaneseq
  %v2508 = vshrl.u32 %v2507, 7
  %v2509 = vsub.s32 1, %v2508
  %v2510 = vrot.slane %v2468, %v2509
  %v2511 = vlaneseq
  %v2512 = vshrl.u32 %v2511, 7
  %v2513 = vsub.s32 2, %v2512
  %v2514 = vrot.slane %v2468, %v2513
  %v2515 = vlaneseq
  %v2516 = vshrl.u32 %v2515, 7
  %v2517 = vsub.s32 3, %v2516
  %v2518 = vrot.slane %v2468, %v2517
  %v2519 = vlaneseq
  %v2520 = vshrl.u32 %v2519, 7
  %v2521 = vsub.s32 4, %v2520
  %v2522 = vrot.slane %v2468, %v2521
  %v2523 = vlaneseq
  %v2524 = vshrl.u32 %v2523, 7
  %v2525 = vsub.s32 5, %v2524
  %v2526 = vrot.slane %v2468, %v2525
  %v2527 = vlaneseq
  %v2528 = vshrl.u32 %v2527, 7
  %v2529 = vsub.s32 6, %v2528
  %v2530 = vrot.slane %v2468, %v2529
  %v2531 = vlaneseq
  %v2532 = vshrl.u32 %v2531, 7
  %v2533 = vsub.s32 7, %v2532
  %v2534 = vrot.slane %v2468, %v2533
  %v2583 = vunpack.c.l.b16 %v105
  %v2584 = vunpack.c.h.b16 %v105
  %v2585 = vunpack.c.l.b16 %v106
  %v2586 = vunpack.c.h.b16 %v106
  %v2587 = vunpack.c.l.b16 %v107
  %v2588 = vunpack.c.h.b16 %v107
  %v2589 = vunpack.c.l.b16 %v108
  %v2590 = vunpack.c.h.b16 %v108
  %v2591 = vunpack.c.l.b16 %v109
  %v2592 = vunpack.c.h.b16 %v109
  %v2593 = vunpack.c.l.b16 %v110
  %v2594 = vunpack.c.h.b16 %v110
  %v2595 = vunpack.c.l.b16 %v111
  %v2596 = vunpack.c.h.b16 %v111
  %v2597 = vunpack.c.l.b16 %v112
  %v2598 = vunpack.c.h.b16 %v112
  %v2599 = vunpack.c.l.b16 %v113
  %v2600 = vunpack.c.h.b16 %v113
  %v2601 = vunpack.c.l.b16 %v114
  %v2602 = vunpack.c.h.b16 %v114
  %v2603 = vunpack.c.l.b16 %v115
  %v2604 = vunpack.c.h.b16 %v115
  %v2605 = vunpack.c.l.b16 %v116
  %v2606 = vunpack.c.h.b16 %v116
  %v2607 = vunpack.c.l.b16 %v117
  %v2608 = vunpack.c.h.b16 %v117
  %v2609 = vunpack.c.l.b16 %v118
  %v2610 = vunpack.c.h.b16 %v118
  %v2611 = vunpack.c.l.b16 %v119
  %v2612 = vunpack.c.h.b16 %v119
  %v2613 = vunpack.c.l.b16 %v120
  %v2614 = vunpack.c.h.b16 %v120
  %v2615 = vunpack.c.l.b16 %v121
  %v2616 = vunpack.c.h.b16 %v121
  %v2617 = vunpack.c.l.b16 %v122
  %v2618 = vunpack.c.h.b16 %v122
  %v2619 = vunpack.c.l.b16 %v123
  %v2620 = vunpack.c.h.b16 %v123
  %v2621 = vunpack.c.l.b16 %v124
  %v2622 = vunpack.c.h.b16 %v124
  %v2623 = vunpack.c.l.b16 %v125
  %v2624 = vunpack.c.h.b16 %v125
  %v2625 = vunpack.c.l.b16 %v126
  %v2626 = vunpack.c.h.b16 %v126
  %v2627 = vunpack.c.l.b16 %v127
  %v2628 = vunpack.c.h.b16 %v127
  %v2629 = vunpack.c.l.b16 %v128
  %v2630 = vunpack.c.h.b16 %v128
  %v2631 = vunpack.c.l.b16 %v129
  %v2632 = vunpack.c.h.b16 %v129
  %v2633 = vunpack.c.l.b16 %v130
  %v2634 = vunpack.c.h.b16 %v130
  %v2635 = vunpack.c.l.b16 %v131
  %v2636 = vunpack.c.h.b16 %v131
  %v2637 = vunpack.c.l.b16 %v132
  %v2638 = vunpack.c.h.b16 %v132
  %v2639 = vunpack.c.l.b16 %v133
  %v2640 = vunpack.c.h.b16 %v133
  %v2641 = vunpack.c.l.b16 %v134
  %v2642 = vunpack.c.h.b16 %v134
  %v2643 = vunpack.c.l.b16 %v135
  %v2644 = vunpack.c.h.b16 %v135
  %v2645 = vunpack.c.l.b16 %v136
  %v2646 = vunpack.c.h.b16 %v136
  %v2647 = vpack.c.b16 %v2599, %v2583
  %v2648 = vpack.c.b16 %v2600, %v2584
  %v2649 = vpack.c.b16 %v2601, %v2585
  %v2650 = vpack.c.b16 %v2602, %v2586
  %v2651 = vpack.c.b16 %v2603, %v2587
  %v2652 = vpack.c.b16 %v2604, %v2588
  %v2653 = vpack.c.b16 %v2605, %v2589
  %v2654 = vpack.c.b16 %v2606, %v2590
  %v2655 = vpack.c.b16 %v2607, %v2591
  %v2656 = vpack.c.b16 %v2608, %v2592
  %v2657 = vpack.c.b16 %v2609, %v2593
  %v2658 = vpack.c.b16 %v2610, %v2594
  %v2659 = vpack.c.b16 %v2611, %v2595
  %v2660 = vpack.c.b16 %v2612, %v2596
  %v2661 = vpack.c.b16 %v2613, %v2597
  %v2662 = vpack.c.b16 %v2614, %v2598
  %v2663 = vpack.c.b16 %v2631, %v2615
  %v2664 = vpack.c.b16 %v2632, %v2616
  %v2665 = vpack.c.b16 %v2633, %v2617
  %v2666 = vpack.c.b16 %v2634, %v2618
  %v2667 = vpack.c.b16 %v2635, %v2619
  %v2668 = vpack.c.b16 %v2636, %v2620
  %v2669 = vpack.c.b16 %v2637, %v2621
  %v2670 = vpack.c.b16 %v2638, %v2622
  %v2671 = vpack.c.b16 %v2639, %v2623
  %v2672 = vpack.c.b16 %v2640, %v2624
  %v2673 = vpack.c.b16 %v2641, %v2625
  %v2674 = vpack.c.b16 %v2642, %v2626
  %v2675 = vpack.c.b16 %v2643, %v2627
  %v2676 = vpack.c.b16 %v2644, %v2628
  %v2677 = vpack.c.b16 %v2645, %v2629
  %v2678 = vpack.c.b16 %v2646, %v2630
  %v2712 = vsel %vm414, %v2465, 0
  %v2715 = vsel %vm414, %v2466, 0
  %2717 = vmatprep.subr.bf16.mxu0 %v2648
  %2718 = vmatpush1.bf16.msra.mxu0 %v2647
  %2719 = vmatprep.subr.bf16.mxu0 %v2664
  %2720 = vmatpush1.bf16.msra.mxu0 %v2663
  %2721 = vmatprep.subr.bf16.mxu0 0
  %2722 = vmatpush1.bf16.msra.mxu0 0
  %2723 = vmatprep.subr.bf16.mxu0 0
  %2724 = vmatpush1.bf16.msra.mxu0 0
  %2725 = vmatprep.subr.bf16.mxu0 0
  %2726 = vmatpush1.bf16.msra.mxu0 0
  %2727 = vmatprep.subr.bf16.mxu0 0
  %2728 = vmatpush1.bf16.msra.mxu0 0
  %2729 = vmatprep.subr.bf16.mxu0 0
  %2730 = vmatpush1.bf16.msra.mxu0 0
  %2731 = vmatprep.subr.bf16.mxu0 0
  %2732 = vmatpush1.bf16.msra.mxu0 0
  %2733 = vmatprep.subr.bf16.mxu0 0
  %2734 = vmatpush1.bf16.msra.mxu0 0
  %2735 = vmatprep.subr.bf16.mxu0 0
  %2736 = vmatpush1.bf16.msra.mxu0 0
  %2737 = vmatprep.subr.bf16.mxu0 0
  %2738 = vmatpush1.bf16.msra.mxu0 0
  %2739 = vmatprep.subr.bf16.mxu0 0
  %2740 = vmatpush1.bf16.msra.mxu0 0
  %2741 = vmatprep.subr.bf16.mxu0 0
  %2742 = vmatpush1.bf16.msra.mxu0 0
  %2743 = vmatprep.subr.bf16.mxu0 0
  %2744 = vmatpush1.bf16.msra.mxu0 0
  %2745 = vmatprep.subr.bf16.mxu0 0
  %2746 = vmatpush1.bf16.msra.mxu0 0
  %2747 = vmatprep.subr.bf16.mxu0 0
  %2748 = vmatpush1.bf16.msra.mxu0 0
  %2749 = vmatprep.mubr.bf16.mxu0 0
  %2750 = vmatmul.mubr.bf16.gmra.mrb[0].mxu0 %v2712
  %v2751 = vpop.f32.mrb[0].mxu0
  %v2752 = vadd.f32 %v2474, %v2751
  %v2753 = vpop.f32.mrb[0].mxu0
  %v2754 = vadd.f32 %v2478, %v2753
  %v2755 = vpop.f32.mrb[0].mxu0
  %v2756 = vadd.f32 %v2474, %v2755
  %v2757 = vpop.f32.mrb[0].mxu0
  %v2758 = vadd.f32 %v2478, %v2757
  %2759 = vmatprep.mubr.bf16.mxu0 0
  %2760 = vmatmul.mubr.bf16.gmra.mrb[0].mxu0 %v2715
  %v2761 = vpop.f32.mrb[0].mxu0
  %v2762 = vadd.f32 %v2474, %v2761
  %v2763 = vpop.f32.mrb[0].mxu0
  %v2764 = vadd.f32 %v2478, %v2763
  %v2765 = vpop.f32.mrb[0].mxu0
  %v2766 = vadd.f32 %v2474, %v2765
  %v2767 = vpop.f32.mrb[0].mxu0
  %v2768 = vadd.f32 %v2478, %v2767
  %2769 = vdwg.mxu0
  %2770 = vmatprep.subr.bf16.mxu0 %v2650
  %2771 = vmatpush1.bf16.msra.mxu0 %v2649
  %2772 = vmatprep.subr.bf16.mxu0 %v2666
  %2773 = vmatpush1.bf16.msra.mxu0 %v2665
  %2774 = vmatprep.subr.bf16.mxu0 0
  %2775 = vmatpush1.bf16.msra.mxu0 0
  %2776 = vmatprep.subr.bf16.mxu0 0
  %2777 = vmatpush1.bf16.msra.mxu0 0
  %2778 = vmatprep.subr.bf16.mxu0 0
  %2779 = vmatpush1.bf16.msra.mxu0 0
  %2780 = vmatprep.subr.bf16.mxu0 0
  %2781 = vmatpush1.bf16.msra.mxu0 0
  %2782 = vmatprep.subr.bf16.mxu0 0
  %2783 = vmatpush1.bf16.msra.mxu0 0
  %2784 = vmatprep.subr.bf16.mxu0 0
  %2785 = vmatpush1.bf16.msra.mxu0 0
  %2786 = vmatprep.subr.bf16.mxu0 0
  %2787 = vmatpush1.bf16.msra.mxu0 0
  %2788 = vmatprep.subr.bf16.mxu0 0
  %2789 = vmatpush1.bf16.msra.mxu0 0
  %2790 = vmatprep.subr.bf16.mxu0 0
  %2791 = vmatpush1.bf16.msra.mxu0 0
  %2792 = vmatprep.subr.bf16.mxu0 0
  %2793 = vmatpush1.bf16.msra.mxu0 0
  %2794 = vmatprep.subr.bf16.mxu0 0
  %2795 = vmatpush1.bf16.msra.mxu0 0
  %2796 = vmatprep.subr.bf16.mxu0 0
  %2797 = vmatpush1.bf16.msra.mxu0 0
  %2798 = vmatprep.subr.bf16.mxu0 0
  %2799 = vmatpush1.bf16.msra.mxu0 0
  %2800 = vmatprep.subr.bf16.mxu0 0
  %2801 = vmatpush1.bf16.msra.mxu0 0
  %2802 = vmatprep.mubr.bf16.mxu0 0
  %2803 = vmatmul.mubr.bf16.gmra.mrb[0].mxu0 %v2712
  %v2804 = vpop.f32.mrb[0].mxu0
  %v2805 = vadd.f32 %v2482, %v2804
  %v2806 = vpop.f32.mrb[0].mxu0
  %v2807 = vadd.f32 %v2486, %v2806
  %v2808 = vpop.f32.mrb[0].mxu0
  %v2809 = vadd.f32 %v2482, %v2808
  %v2810 = vpop.f32.mrb[0].mxu0
  %v2811 = vadd.f32 %v2486, %v2810
  %2812 = vmatprep.mubr.bf16.mxu0 0
  %2813 = vmatmul.mubr.bf16.gmra.mrb[0].mxu0 %v2715
  %v2814 = vpop.f32.mrb[0].mxu0
  %v2815 = vadd.f32 %v2482, %v2814
  %v2816 = vpop.f32.mrb[0].mxu0
  %v2817 = vadd.f32 %v2486, %v2816
  %v2818 = vpop.f32.mrb[0].mxu0
  %v2819 = vadd.f32 %v2482, %v2818
  %v2820 = vpop.f32.mrb[0].mxu0
  %v2821 = vadd.f32 %v2486, %v2820
  %2822 = vdwg.mxu0
  %2823 = vmatprep.subr.bf16.mxu0 %v2652
  %2824 = vmatpush1.bf16.msra.mxu0 %v2651
  %2825 = vmatprep.subr.bf16.mxu0 %v2668
  %2826 = vmatpush1.bf16.msra.mxu0 %v2667
  %2827 = vmatprep.subr.bf16.mxu0 0
  %2828 = vmatpush1.bf16.msra.mxu0 0
  %2829 = vmatprep.subr.bf16.mxu0 0
  %2830 = vmatpush1.bf16.msra.mxu0 0
  %2831 = vmatprep.subr.bf16.mxu0 0
  %2832 = vmatpush1.bf16.msra.mxu0 0
  %2833 = vmatprep.subr.bf16.mxu0 0
  %2834 = vmatpush1.bf16.msra.mxu0 0
  %2835 = vmatprep.subr.bf16.mxu0 0
  %2836 = vmatpush1.bf16.msra.mxu0 0
  %2837 = vmatprep.subr.bf16.mxu0 0
  %2838 = vmatpush1.bf16.msra.mxu0 0
  %2839 = vmatprep.subr.bf16.mxu0 0
  %2840 = vmatpush1.bf16.msra.mxu0 0
  %2841 = vmatprep.subr.bf16.mxu0 0
  %2842 = vmatpush1.bf16.msra.mxu0 0
  %2843 = vmatprep.subr.bf16.mxu0 0
  %2844 = vmatpush1.bf16.msra.mxu0 0
  %2845 = vmatprep.subr.bf16.mxu0 0
  %2846 = vmatpush1.bf16.msra.mxu0 0
  %2847 = vmatprep.subr.bf16.mxu0 0
  %2848 = vmatpush1.bf16.msra.mxu0 0
  %2849 = vmatprep.subr.bf16.mxu0 0
  %2850 = vmatpush1.bf16.msra.mxu0 0
  %2851 = vmatprep.subr.bf16.mxu0 0
  %2852 = vmatpush1.bf16.msra.mxu0 0
  %2853 = vmatprep.subr.bf16.mxu0 0
  %2854 = vmatpush1.bf16.msra.mxu0 0
  %2855 = vmatprep.mubr.bf16.mxu0 0
  %2856 = vmatmul.mubr.bf16.gmra.mrb[0].mxu0 %v2712
  %v2857 = vpop.f32.mrb[0].mxu0
  %v2858 = vadd.f32 %v2490, %v2857
  %v2859 = vpop.f32.mrb[0].mxu0
  %v2860 = vadd.f32 %v2494, %v2859
  %v2861 = vpop.f32.mrb[0].mxu0
  %v2862 = vadd.f32 %v2490, %v2861
  %v2863 = vpop.f32.mrb[0].mxu0
  %v2864 = vadd.f32 %v2494, %v2863
  %2865 = vmatprep.mubr.bf16.mxu0 0
  %2866 = vmatmul.mubr.bf16.gmra.mrb[0].mxu0 %v2715
  %v2867 = vpop.f32.mrb[0].mxu0
  %v2868 = vadd.f32 %v2490, %v2867
  %v2869 = vpop.f32.mrb[0].mxu0
  %v2870 = vadd.f32 %v2494, %v2869
  %v2871 = vpop.f32.mrb[0].mxu0
  %v2872 = vadd.f32 %v2490, %v2871
  %v2873 = vpop.f32.mrb[0].mxu0
  %v2874 = vadd.f32 %v2494, %v2873
  %2875 = vdwg.mxu0
  %2876 = vmatprep.subr.bf16.mxu0 %v2654
  %2877 = vmatpush1.bf16.msra.mxu0 %v2653
  %2878 = vmatprep.subr.bf16.mxu0 %v2670
  %2879 = vmatpush1.bf16.msra.mxu0 %v2669
  %2880 = vmatprep.subr.bf16.mxu0 0
  %2881 = vmatpush1.bf16.msra.mxu0 0
  %2882 = vmatprep.subr.bf16.mxu0 0
  %2883 = vmatpush1.bf16.msra.mxu0 0
  %2884 = vmatprep.subr.bf16.mxu0 0
  %2885 = vmatpush1.bf16.msra.mxu0 0
  %2886 = vmatprep.subr.bf16.mxu0 0
  %2887 = vmatpush1.bf16.msra.mxu0 0
  %2888 = vmatprep.subr.bf16.mxu0 0
  %2889 = vmatpush1.bf16.msra.mxu0 0
  %2890 = vmatprep.subr.bf16.mxu0 0
  %2891 = vmatpush1.bf16.msra.mxu0 0
  %2892 = vmatprep.subr.bf16.mxu0 0
  %2893 = vmatpush1.bf16.msra.mxu0 0
  %2894 = vmatprep.subr.bf16.mxu0 0
  %2895 = vmatpush1.bf16.msra.mxu0 0
  %2896 = vmatprep.subr.bf16.mxu0 0
  %2897 = vmatpush1.bf16.msra.mxu0 0
  %2898 = vmatprep.subr.bf16.mxu0 0
  %2899 = vmatpush1.bf16.msra.mxu0 0
  %2900 = vmatprep.subr.bf16.mxu0 0
  %2901 = vmatpush1.bf16.msra.mxu0 0
  %2902 = vmatprep.subr.bf16.mxu0 0
  %2903 = vmatpush1.bf16.msra.mxu0 0
  %2904 = vmatprep.subr.bf16.mxu0 0
  %2905 = vmatpush1.bf16.msra.mxu0 0
  %2906 = vmatprep.subr.bf16.mxu0 0
  %2907 = vmatpush1.bf16.msra.mxu0 0
  %2908 = vmatprep.mubr.bf16.mxu0 0
  %2909 = vmatmul.mubr.bf16.gmra.mrb[0].mxu0 %v2712
  %v2910 = vpop.f32.mrb[0].mxu0
  %v2911 = vadd.f32 %v2498, %v2910
  %v2912 = vpop.f32.mrb[0].mxu0
  %v2913 = vadd.f32 %v2502, %v2912
  %v2914 = vpop.f32.mrb[0].mxu0
  %v2915 = vadd.f32 %v2498, %v2914
  %v2916 = vpop.f32.mrb[0].mxu0
  %v2917 = vadd.f32 %v2502, %v2916
  %2918 = vmatprep.mubr.bf16.mxu0 0
  %2919 = vmatmul.mubr.bf16.gmra.mrb[0].mxu0 %v2715
  %v2920 = vpop.f32.mrb[0].mxu0
  %v2921 = vadd.f32 %v2498, %v2920
  %v2922 = vpop.f32.mrb[0].mxu0
  %v2923 = vadd.f32 %v2502, %v2922
  %v2924 = vpop.f32.mrb[0].mxu0
  %v2925 = vadd.f32 %v2498, %v2924
  %v2926 = vpop.f32.mrb[0].mxu0
  %v2927 = vadd.f32 %v2502, %v2926
  %2928 = vdwg.mxu0
  %2929 = vmatprep.subr.bf16.mxu0 %v2656
  %2930 = vmatpush1.bf16.msra.mxu0 %v2655
  %2931 = vmatprep.subr.bf16.mxu0 %v2672
  %2932 = vmatpush1.bf16.msra.mxu0 %v2671
  %2933 = vmatprep.subr.bf16.mxu0 0
  %2934 = vmatpush1.bf16.msra.mxu0 0
  %2935 = vmatprep.subr.bf16.mxu0 0
  %2936 = vmatpush1.bf16.msra.mxu0 0
  %2937 = vmatprep.subr.bf16.mxu0 0
  %2938 = vmatpush1.bf16.msra.mxu0 0
  %2939 = vmatprep.subr.bf16.mxu0 0
  %2940 = vmatpush1.bf16.msra.mxu0 0
  %2941 = vmatprep.subr.bf16.mxu0 0
  %2942 = vmatpush1.bf16.msra.mxu0 0
  %2943 = vmatprep.subr.bf16.mxu0 0
  %2944 = vmatpush1.bf16.msra.mxu0 0
  %2945 = vmatprep.subr.bf16.mxu0 0
  %2946 = vmatpush1.bf16.msra.mxu0 0
  %2947 = vmatprep.subr.bf16.mxu0 0
  %2948 = vmatpush1.bf16.msra.mxu0 0
  %2949 = vmatprep.subr.bf16.mxu0 0
  %2950 = vmatpush1.bf16.msra.mxu0 0
  %2951 = vmatprep.subr.bf16.mxu0 0
  %2952 = vmatpush1.bf16.msra.mxu0 0
  %2953 = vmatprep.subr.bf16.mxu0 0
  %2954 = vmatpush1.bf16.msra.mxu0 0
  %2955 = vmatprep.subr.bf16.mxu0 0
  %2956 = vmatpush1.bf16.msra.mxu0 0
  %2957 = vmatprep.subr.bf16.mxu0 0
  %2958 = vmatpush1.bf16.msra.mxu0 0
  %2959 = vmatprep.subr.bf16.mxu0 0
  %2960 = vmatpush1.bf16.msra.mxu0 0
  %2961 = vmatprep.mubr.bf16.mxu0 0
  %2962 = vmatmul.mubr.bf16.gmra.mrb[0].mxu0 %v2712
  %v2963 = vpop.f32.mrb[0].mxu0
  %v2964 = vadd.f32 %v2506, %v2963
  %v2965 = vpop.f32.mrb[0].mxu0
  %v2966 = vadd.f32 %v2510, %v2965
  %v2967 = vpop.f32.mrb[0].mxu0
  %v2968 = vadd.f32 %v2506, %v2967
  %v2969 = vpop.f32.mrb[0].mxu0
  %v2970 = vadd.f32 %v2510, %v2969
  %2971 = vmatprep.mubr.bf16.mxu0 0
  %2972 = vmatmul.mubr.bf16.gmra.mrb[0].mxu0 %v2715
  %v2973 = vpop.f32.mrb[0].mxu0
  %v2974 = vadd.f32 %v2506, %v2973
  %v2975 = vpop.f32.mrb[0].mxu0
  %v2976 = vadd.f32 %v2510, %v2975
  %v2977 = vpop.f32.mrb[0].mxu0
  %v2978 = vadd.f32 %v2506, %v2977
  %v2979 = vpop.f32.mrb[0].mxu0
  %v2980 = vadd.f32 %v2510, %v2979
  %2981 = vdwg.mxu0
  %2982 = vmatprep.subr.bf16.mxu0 %v2658
  %2983 = vmatpush1.bf16.msra.mxu0 %v2657
  %2984 = vmatprep.subr.bf16.mxu0 %v2674
  %2985 = vmatpush1.bf16.msra.mxu0 %v2673
  %2986 = vmatprep.subr.bf16.mxu0 0
  %2987 = vmatpush1.bf16.msra.mxu0 0
  %2988 = vmatprep.subr.bf16.mxu0 0
  %2989 = vmatpush1.bf16.msra.mxu0 0
  %2990 = vmatprep.subr.bf16.mxu0 0
  %2991 = vmatpush1.bf16.msra.mxu0 0
  %2992 = vmatprep.subr.bf16.mxu0 0
  %2993 = vmatpush1.bf16.msra.mxu0 0
  %2994 = vmatprep.subr.bf16.mxu0 0
  %2995 = vmatpush1.bf16.msra.mxu0 0
  %2996 = vmatprep.subr.bf16.mxu0 0
  %2997 = vmatpush1.bf16.msra.mxu0 0
  %2998 = vmatprep.subr.bf16.mxu0 0
  %2999 = vmatpush1.bf16.msra.mxu0 0
  %3000 = vmatprep.subr.bf16.mxu0 0
  %3001 = vmatpush1.bf16.msra.mxu0 0
  %3002 = vmatprep.subr.bf16.mxu0 0
  %3003 = vmatpush1.bf16.msra.mxu0 0
  %3004 = vmatprep.subr.bf16.mxu0 0
  %3005 = vmatpush1.bf16.msra.mxu0 0
  %3006 = vmatprep.subr.bf16.mxu0 0
  %3007 = vmatpush1.bf16.msra.mxu0 0
  %3008 = vmatprep.subr.bf16.mxu0 0
  %3009 = vmatpush1.bf16.msra.mxu0 0
  %3010 = vmatprep.subr.bf16.mxu0 0
  %3011 = vmatpush1.bf16.msra.mxu0 0
  %3012 = vmatprep.subr.bf16.mxu0 0
  %3013 = vmatpush1.bf16.msra.mxu0 0
  %3014 = vmatprep.mubr.bf16.mxu0 0
  %3015 = vmatmul.mubr.bf16.gmra.mrb[0].mxu0 %v2712
  %v3016 = vpop.f32.mrb[0].mxu0
  %v3017 = vadd.f32 %v2514, %v3016
  %v3018 = vpop.f32.mrb[0].mxu0
  %v3019 = vadd.f32 %v2518, %v3018
  %v3020 = vpop.f32.mrb[0].mxu0
  %v3021 = vadd.f32 %v2514, %v3020
  %v3022 = vpop.f32.mrb[0].mxu0
  %v3023 = vadd.f32 %v2518, %v3022
  %3024 = vmatprep.mubr.bf16.mxu0 0
  %3025 = vmatmul.mubr.bf16.gmra.mrb[0].mxu0 %v2715
  %v3026 = vpop.f32.mrb[0].mxu0
  %v3027 = vadd.f32 %v2514, %v3026
  %v3028 = vpop.f32.mrb[0].mxu0
  %v3029 = vadd.f32 %v2518, %v3028
  %v3030 = vpop.f32.mrb[0].mxu0
  %v3031 = vadd.f32 %v2514, %v3030
  %v3032 = vpop.f32.mrb[0].mxu0
  %v3033 = vadd.f32 %v2518, %v3032
  %3034 = vdwg.mxu0
  %3035 = vmatprep.subr.bf16.mxu0 %v2660
  %3036 = vmatpush1.bf16.msra.mxu0 %v2659
  %3037 = vmatprep.subr.bf16.mxu0 %v2676
  %3038 = vmatpush1.bf16.msra.mxu0 %v2675
  %3039 = vmatprep.subr.bf16.mxu0 0
  %3040 = vmatpush1.bf16.msra.mxu0 0
  %3041 = vmatprep.subr.bf16.mxu0 0
  %3042 = vmatpush1.bf16.msra.mxu0 0
  %3043 = vmatprep.subr.bf16.mxu0 0
  %3044 = vmatpush1.bf16.msra.mxu0 0
  %3045 = vmatprep.subr.bf16.mxu0 0
  %3046 = vmatpush1.bf16.msra.mxu0 0
  %3047 = vmatprep.subr.bf16.mxu0 0
  %3048 = vmatpush1.bf16.msra.mxu0 0
  %3049 = vmatprep.subr.bf16.mxu0 0
  %3050 = vmatpush1.bf16.msra.mxu0 0
  %3051 = vmatprep.subr.bf16.mxu0 0
  %3052 = vmatpush1.bf16.msra.mxu0 0
  %3053 = vmatprep.subr.bf16.mxu0 0
  %3054 = vmatpush1.bf16.msra.mxu0 0
  %3055 = vmatprep.subr.bf16.mxu0 0
  %3056 = vmatpush1.bf16.msra.mxu0 0
  %3057 = vmatprep.subr.bf16.mxu0 0
  %3058 = vmatpush1.bf16.msra.mxu0 0
  %3059 = vmatprep.subr.bf16.mxu0 0
  %3060 = vmatpush1.bf16.msra.mxu0 0
  %3061 = vmatprep.subr.bf16.mxu0 0
  %3062 = vmatpush1.bf16.msra.mxu0 0
  %3063 = vmatprep.subr.bf16.mxu0 0
  %3064 = vmatpush1.bf16.msra.mxu0 0
  %3065 = vmatprep.subr.bf16.mxu0 0
  %3066 = vmatpush1.bf16.msra.mxu0 0
  %3067 = vmatprep.mubr.bf16.mxu0 0
  %3068 = vmatmul.mubr.bf16.gmra.mrb[0].mxu0 %v2712
  %v3069 = vpop.f32.mrb[0].mxu0
  %v3070 = vadd.f32 %v2522, %v3069
  %v3071 = vpop.f32.mrb[0].mxu0
  %v3072 = vadd.f32 %v2526, %v3071
  %v3073 = vpop.f32.mrb[0].mxu0
  %v3074 = vadd.f32 %v2522, %v3073
  %v3075 = vpop.f32.mrb[0].mxu0
  %v3076 = vadd.f32 %v2526, %v3075
  %3077 = vmatprep.mubr.bf16.mxu0 0
  %3078 = vmatmul.mubr.bf16.gmra.mrb[0].mxu0 %v2715
  %v3079 = vpop.f32.mrb[0].mxu0
  %v3080 = vadd.f32 %v2522, %v3079
  %v3081 = vpop.f32.mrb[0].mxu0
  %v3082 = vadd.f32 %v2526, %v3081
  %v3083 = vpop.f32.mrb[0].mxu0
  %v3084 = vadd.f32 %v2522, %v3083
  %v3085 = vpop.f32.mrb[0].mxu0
  %v3086 = vadd.f32 %v2526, %v3085
  %3087 = vdwg.mxu0
  %3088 = vmatprep.subr.bf16.mxu0 %v2662
  %3089 = vmatpush1.bf16.msra.mxu0 %v2661
  %3090 = vmatprep.subr.bf16.mxu0 %v2678
  %3091 = vmatpush1.bf16.msra.mxu0 %v2677
  %3092 = vmatprep.subr.bf16.mxu0 0
  %3093 = vmatpush1.bf16.msra.mxu0 0
  %3094 = vmatprep.subr.bf16.mxu0 0
  %3095 = vmatpush1.bf16.msra.mxu0 0
  %3096 = vmatprep.subr.bf16.mxu0 0
  %3097 = vmatpush1.bf16.msra.mxu0 0
  %3098 = vmatprep.subr.bf16.mxu0 0
  %3099 = vmatpush1.bf16.msra.mxu0 0
  %3100 = vmatprep.subr.bf16.mxu0 0
  %3101 = vmatpush1.bf16.msra.mxu0 0
  %3102 = vmatprep.subr.bf16.mxu0 0
  %3103 = vmatpush1.bf16.msra.mxu0 0
  %3104 = vmatprep.subr.bf16.mxu0 0
  %3105 = vmatpush1.bf16.msra.mxu0 0
  %3106 = vmatprep.subr.bf16.mxu0 0
  %3107 = vmatpush1.bf16.msra.mxu0 0
  %3108 = vmatprep.subr.bf16.mxu0 0
  %3109 = vmatpush1.bf16.msra.mxu0 0
  %3110 = vmatprep.subr.bf16.mxu0 0
  %3111 = vmatpush1.bf16.msra.mxu0 0
  %3112 = vmatprep.subr.bf16.mxu0 0
  %3113 = vmatpush1.bf16.msra.mxu0 0
  %3114 = vmatprep.subr.bf16.mxu0 0
  %3115 = vmatpush1.bf16.msra.mxu0 0
  %3116 = vmatprep.subr.bf16.mxu0 0
  %3117 = vmatpush1.bf16.msra.mxu0 0
  %3118 = vmatprep.subr.bf16.mxu0 0
  %3119 = vmatpush1.bf16.msra.mxu0 0
  %3120 = vmatprep.mubr.bf16.mxu0 0
  %3121 = vmatmul.mubr.bf16.gmra.mrb[0].mxu0 %v2712
  %v3122 = vpop.f32.mrb[0].mxu0
  %v3123 = vadd.f32 %v2530, %v3122
  %v3124 = vpop.f32.mrb[0].mxu0
  %v3125 = vadd.f32 %v2534, %v3124
  %v3126 = vpop.f32.mrb[0].mxu0
  %v3127 = vadd.f32 %v2530, %v3126
  %v3128 = vpop.f32.mrb[0].mxu0
  %v3129 = vadd.f32 %v2534, %v3128
  %3130 = vmatprep.mubr.bf16.mxu0 0
  %3131 = vmatmul.mubr.bf16.gmra.mrb[0].mxu0 %v2715
  %v3132 = vpop.f32.mrb[0].mxu0
  %v3133 = vadd.f32 %v2530, %v3132
  %v3134 = vpop.f32.mrb[0].mxu0
  %v3135 = vadd.f32 %v2534, %v3134
  %v3136 = vpop.f32.mrb[0].mxu0
  %v3137 = vadd.f32 %v2530, %v3136
  %v3138 = vpop.f32.mrb[0].mxu0
  %v3139 = vadd.f32 %v2534, %v3138
  %3140 = vdwg.mxu0
  %v3141 = vmax.f32 %v2752, 0.0
  %v3142 = vmax.f32 %v2754, 0.0
  %v3143 = vmax.f32 %v2805, 0.0
  %v3144 = vmax.f32 %v2807, 0.0
  %v3145 = vmax.f32 %v2858, 0.0
  %v3146 = vmax.f32 %v2860, 0.0
  %v3147 = vmax.f32 %v2911, 0.0
  %v3148 = vmax.f32 %v2913, 0.0
  %v3149 = vmax.f32 %v2964, 0.0
  %v3150 = vmax.f32 %v2966, 0.0
  %v3151 = vmax.f32 %v3017, 0.0
  %v3152 = vmax.f32 %v3019, 0.0
  %v3153 = vmax.f32 %v3070, 0.0
  %v3154 = vmax.f32 %v3072, 0.0
  %v3155 = vmax.f32 %v3123, 0.0
  %v3156 = vmax.f32 %v3125, 0.0
  %v3157 = vmax.f32 %v2756, 0.0
  %v3158 = vmax.f32 %v2758, 0.0
  %v3159 = vmax.f32 %v2809, 0.0
  %v3160 = vmax.f32 %v2811, 0.0
  %v3161 = vmax.f32 %v2862, 0.0
  %v3162 = vmax.f32 %v2864, 0.0
  %v3163 = vmax.f32 %v2915, 0.0
  %v3164 = vmax.f32 %v2917, 0.0
  %v3165 = vmax.f32 %v2968, 0.0
  %v3166 = vmax.f32 %v2970, 0.0
  %v3167 = vmax.f32 %v3021, 0.0
  %v3168 = vmax.f32 %v3023, 0.0
  %v3169 = vmax.f32 %v3074, 0.0
  %v3170 = vmax.f32 %v3076, 0.0
  %v3171 = vmax.f32 %v3127, 0.0
  %v3172 = vmax.f32 %v3129, 0.0
  %v3173 = vmax.f32 %v2762, 0.0
  %v3174 = vmax.f32 %v2764, 0.0
  %v3175 = vmax.f32 %v2815, 0.0
  %v3176 = vmax.f32 %v2817, 0.0
  %v3177 = vmax.f32 %v2868, 0.0
  %v3178 = vmax.f32 %v2870, 0.0
  %v3179 = vmax.f32 %v2921, 0.0
  %v3180 = vmax.f32 %v2923, 0.0
  %v3181 = vmax.f32 %v2974, 0.0
  %v3182 = vmax.f32 %v2976, 0.0
  %v3183 = vmax.f32 %v3027, 0.0
  %v3184 = vmax.f32 %v3029, 0.0
  %v3185 = vmax.f32 %v3080, 0.0
  %v3186 = vmax.f32 %v3082, 0.0
  %v3187 = vmax.f32 %v3133, 0.0
  %v3188 = vmax.f32 %v3135, 0.0
  %v3189 = vmax.f32 %v2766, 0.0
  %v3190 = vmax.f32 %v2768, 0.0
  %v3191 = vmax.f32 %v2819, 0.0
  %v3192 = vmax.f32 %v2821, 0.0
  %v3193 = vmax.f32 %v2872, 0.0
  %v3194 = vmax.f32 %v2874, 0.0
  %v3195 = vmax.f32 %v2925, 0.0
  %v3196 = vmax.f32 %v2927, 0.0
  %v3197 = vmax.f32 %v2978, 0.0
  %v3198 = vmax.f32 %v2980, 0.0
  %v3199 = vmax.f32 %v3031, 0.0
  %v3200 = vmax.f32 %v3033, 0.0
  %v3201 = vmax.f32 %v3084, 0.0
  %v3202 = vmax.f32 %v3086, 0.0
  %v3203 = vmax.f32 %v3137, 0.0
  %v3204 = vmax.f32 %v3139, 0.0
  %v3205 = vpack.c.bf16 %v3157, %v3141
  %v3206 = vpack.c.bf16 %v3158, %v3142
  %v3207 = vpack.c.bf16 %v3159, %v3143
  %v3208 = vpack.c.bf16 %v3160, %v3144
  %v3209 = vpack.c.bf16 %v3161, %v3145
  %v3210 = vpack.c.bf16 %v3162, %v3146
  %v3211 = vpack.c.bf16 %v3163, %v3147
  %v3212 = vpack.c.bf16 %v3164, %v3148
  %v3213 = vpack.c.bf16 %v3165, %v3149
  %v3214 = vpack.c.bf16 %v3166, %v3150
  %v3215 = vpack.c.bf16 %v3167, %v3151
  %v3216 = vpack.c.bf16 %v3168, %v3152
  %v3217 = vpack.c.bf16 %v3169, %v3153
  %v3218 = vpack.c.bf16 %v3170, %v3154
  %v3219 = vpack.c.bf16 %v3171, %v3155
  %v3220 = vpack.c.bf16 %v3172, %v3156
  %v3221 = vpack.c.bf16 %v3189, %v3173
  %v3222 = vpack.c.bf16 %v3190, %v3174
  %v3223 = vpack.c.bf16 %v3191, %v3175
  %v3224 = vpack.c.bf16 %v3192, %v3176
  %v3225 = vpack.c.bf16 %v3193, %v3177
  %v3226 = vpack.c.bf16 %v3194, %v3178
  %v3227 = vpack.c.bf16 %v3195, %v3179
  %v3228 = vpack.c.bf16 %v3196, %v3180
  %v3229 = vpack.c.bf16 %v3197, %v3181
  %v3230 = vpack.c.bf16 %v3198, %v3182
  %v3231 = vpack.c.bf16 %v3199, %v3183
  %v3232 = vpack.c.bf16 %v3200, %v3184
  %v3233 = vpack.c.bf16 %v3201, %v3185
  %v3234 = vpack.c.bf16 %v3202, %v3186
  %v3235 = vpack.c.bf16 %v3203, %v3187
  %v3236 = vpack.c.bf16 %v3204, %v3188
  %v3237 = vld [vmem:[%s9] sm:$0x1]
  %v3239 = vlaneseq
  %v3240 = vshrl.u32 %v3239, 7
  %v3241 = vsub.s32 0, %v3240
  %v3242 = vrot.slane %v3237, %v3241
  %v3500 = vunpack.c.l.b16 %v137
  %v3501 = vunpack.c.l.b16 %v138
  %v3502 = vunpack.c.l.b16 %v139
  %v3503 = vunpack.c.l.b16 %v140
  %v3504 = vunpack.c.l.b16 %v141
  %v3505 = vunpack.c.l.b16 %v142
  %v3506 = vunpack.c.l.b16 %v143
  %v3507 = vunpack.c.l.b16 %v144
  %v3508 = vunpack.c.l.b16 %v145
  %v3509 = vunpack.c.l.b16 %v146
  %v3510 = vunpack.c.l.b16 %v147
  %v3511 = vunpack.c.l.b16 %v148
  %v3512 = vunpack.c.l.b16 %v149
  %v3513 = vunpack.c.l.b16 %v150
  %v3514 = vunpack.c.l.b16 %v151
  %v3515 = vunpack.c.l.b16 %v152
  %v3516 = vunpack.c.l.b16 %v153
  %v3517 = vunpack.c.l.b16 %v154
  %v3518 = vunpack.c.l.b16 %v155
  %v3519 = vunpack.c.l.b16 %v156
  %v3520 = vunpack.c.l.b16 %v157
  %v3521 = vunpack.c.l.b16 %v158
  %v3522 = vunpack.c.l.b16 %v159
  %v3523 = vunpack.c.l.b16 %v160
  %v3524 = vunpack.c.l.b16 %v161
  %v3525 = vunpack.c.l.b16 %v162
  %v3526 = vunpack.c.l.b16 %v163
  %v3527 = vunpack.c.l.b16 %v164
  %v3528 = vunpack.c.l.b16 %v165
  %v3529 = vunpack.c.l.b16 %v166
  %v3530 = vunpack.c.l.b16 %v167
  %v3531 = vunpack.c.l.b16 %v168
  %v3532 = vunpack.c.l.b16 %v169
  %v3533 = vunpack.c.l.b16 %v170
  %v3534 = vunpack.c.l.b16 %v171
  %v3535 = vunpack.c.l.b16 %v172
  %v3536 = vunpack.c.l.b16 %v173
  %v3537 = vunpack.c.l.b16 %v174
  %v3538 = vunpack.c.l.b16 %v175
  %v3539 = vunpack.c.l.b16 %v176
  %v3540 = vunpack.c.l.b16 %v177
  %v3541 = vunpack.c.l.b16 %v178
  %v3542 = vunpack.c.l.b16 %v179
  %v3543 = vunpack.c.l.b16 %v180
  %v3544 = vunpack.c.l.b16 %v181
  %v3545 = vunpack.c.l.b16 %v182
  %v3546 = vunpack.c.l.b16 %v183
  %v3547 = vunpack.c.l.b16 %v184
  %v3548 = vunpack.c.l.b16 %v185
  %v3549 = vunpack.c.l.b16 %v186
  %v3550 = vunpack.c.l.b16 %v187
  %v3551 = vunpack.c.l.b16 %v188
  %v3552 = vunpack.c.l.b16 %v189
  %v3553 = vunpack.c.l.b16 %v190
  %v3554 = vunpack.c.l.b16 %v191
  %v3555 = vunpack.c.l.b16 %v192
  %v3556 = vunpack.c.l.b16 %v193
  %v3557 = vunpack.c.l.b16 %v194
  %v3558 = vunpack.c.l.b16 %v195
  %v3559 = vunpack.c.l.b16 %v196
  %v3560 = vunpack.c.l.b16 %v197
  %v3561 = vunpack.c.l.b16 %v198
  %v3562 = vunpack.c.l.b16 %v199
  %v3563 = vunpack.c.l.b16 %v200
  %v3564 = vunpack.c.l.b16 %v201
  %v3565 = vunpack.c.l.b16 %v202
  %v3566 = vunpack.c.l.b16 %v203
  %v3567 = vunpack.c.l.b16 %v204
  %v3568 = vunpack.c.l.b16 %v205
  %v3569 = vunpack.c.l.b16 %v206
  %v3570 = vunpack.c.l.b16 %v207
  %v3571 = vunpack.c.l.b16 %v208
  %v3572 = vunpack.c.l.b16 %v209
  %v3573 = vunpack.c.l.b16 %v210
  %v3574 = vunpack.c.l.b16 %v211
  %v3575 = vunpack.c.l.b16 %v212
  %v3576 = vunpack.c.l.b16 %v213
  %v3577 = vunpack.c.l.b16 %v214
  %v3578 = vunpack.c.l.b16 %v215
  %v3579 = vunpack.c.l.b16 %v216
  %v3580 = vunpack.c.l.b16 %v217
  %v3581 = vunpack.c.l.b16 %v218
  %v3582 = vunpack.c.l.b16 %v219
  %v3583 = vunpack.c.l.b16 %v220
  %v3584 = vunpack.c.l.b16 %v221
  %v3585 = vunpack.c.l.b16 %v222
  %v3586 = vunpack.c.l.b16 %v223
  %v3587 = vunpack.c.l.b16 %v224
  %v3588 = vunpack.c.l.b16 %v225
  %v3589 = vunpack.c.l.b16 %v226
  %v3590 = vunpack.c.l.b16 %v227
  %v3591 = vunpack.c.l.b16 %v228
  %v3592 = vunpack.c.l.b16 %v229
  %v3593 = vunpack.c.l.b16 %v230
  %v3594 = vunpack.c.l.b16 %v231
  %v3595 = vunpack.c.l.b16 %v232
  %v3596 = vunpack.c.l.b16 %v233
  %v3597 = vunpack.c.l.b16 %v234
  %v3598 = vunpack.c.l.b16 %v235
  %v3599 = vunpack.c.l.b16 %v236
  %v3600 = vunpack.c.l.b16 %v237
  %v3601 = vunpack.c.l.b16 %v238
  %v3602 = vunpack.c.l.b16 %v239
  %v3603 = vunpack.c.l.b16 %v240
  %v3604 = vunpack.c.l.b16 %v241
  %v3605 = vunpack.c.l.b16 %v242
  %v3606 = vunpack.c.l.b16 %v243
  %v3607 = vunpack.c.l.b16 %v244
  %v3608 = vunpack.c.l.b16 %v245
  %v3609 = vunpack.c.l.b16 %v246
  %v3610 = vunpack.c.l.b16 %v247
  %v3611 = vunpack.c.l.b16 %v248
  %v3612 = vunpack.c.l.b16 %v249
  %v3613 = vunpack.c.l.b16 %v250
  %v3614 = vunpack.c.l.b16 %v251
  %v3615 = vunpack.c.l.b16 %v252
  %v3616 = vunpack.c.l.b16 %v253
  %v3617 = vunpack.c.l.b16 %v254
  %v3618 = vunpack.c.l.b16 %v255
  %v3619 = vunpack.c.l.b16 %v256
  %v3620 = vunpack.c.l.b16 %v257
  %v3621 = vunpack.c.l.b16 %v258
  %v3622 = vunpack.c.l.b16 %v259
  %v3623 = vunpack.c.l.b16 %v260
  %v3624 = vunpack.c.l.b16 %v261
  %v3625 = vunpack.c.l.b16 %v262
  %v3626 = vunpack.c.l.b16 %v263
  %v3627 = vunpack.c.l.b16 %v264
  %v3628 = vunpack.c.l.b16 %v265
  %v3629 = vunpack.c.l.b16 %v266
  %v3630 = vunpack.c.l.b16 %v267
  %v3631 = vunpack.c.l.b16 %v268
  %v3632 = vunpack.c.l.b16 %v269
  %v3633 = vunpack.c.l.b16 %v270
  %v3634 = vunpack.c.l.b16 %v271
  %v3635 = vunpack.c.l.b16 %v272
  %v3636 = vunpack.c.l.b16 %v273
  %v3637 = vunpack.c.l.b16 %v274
  %v3638 = vunpack.c.l.b16 %v275
  %v3639 = vunpack.c.l.b16 %v276
  %v3640 = vunpack.c.l.b16 %v277
  %v3641 = vunpack.c.l.b16 %v278
  %v3642 = vunpack.c.l.b16 %v279
  %v3643 = vunpack.c.l.b16 %v280
  %v3644 = vunpack.c.l.b16 %v281
  %v3645 = vunpack.c.l.b16 %v282
  %v3646 = vunpack.c.l.b16 %v283
  %v3647 = vunpack.c.l.b16 %v284
  %v3648 = vunpack.c.l.b16 %v285
  %v3649 = vunpack.c.l.b16 %v286
  %v3650 = vunpack.c.l.b16 %v287
  %v3651 = vunpack.c.l.b16 %v288
  %v3652 = vunpack.c.l.b16 %v289
  %v3653 = vunpack.c.l.b16 %v290
  %v3654 = vunpack.c.l.b16 %v291
  %v3655 = vunpack.c.l.b16 %v292
  %v3656 = vunpack.c.l.b16 %v293
  %v3657 = vunpack.c.l.b16 %v294
  %v3658 = vunpack.c.l.b16 %v295
  %v3659 = vunpack.c.l.b16 %v296
  %v3660 = vunpack.c.l.b16 %v297
  %v3661 = vunpack.c.l.b16 %v298
  %v3662 = vunpack.c.l.b16 %v299
  %v3663 = vunpack.c.l.b16 %v300
  %v3664 = vunpack.c.l.b16 %v301
  %v3665 = vunpack.c.l.b16 %v302
  %v3666 = vunpack.c.l.b16 %v303
  %v3667 = vunpack.c.l.b16 %v304
  %v3668 = vunpack.c.l.b16 %v305
  %v3669 = vunpack.c.l.b16 %v306
  %v3670 = vunpack.c.l.b16 %v307
  %v3671 = vunpack.c.l.b16 %v308
  %v3672 = vunpack.c.l.b16 %v309
  %v3673 = vunpack.c.l.b16 %v310
  %v3674 = vunpack.c.l.b16 %v311
  %v3675 = vunpack.c.l.b16 %v312
  %v3676 = vunpack.c.l.b16 %v313
  %v3677 = vunpack.c.l.b16 %v314
  %v3678 = vunpack.c.l.b16 %v315
  %v3679 = vunpack.c.l.b16 %v316
  %v3680 = vunpack.c.l.b16 %v317
  %v3681 = vunpack.c.l.b16 %v318
  %v3682 = vunpack.c.l.b16 %v319
  %v3683 = vunpack.c.l.b16 %v320
  %v3684 = vunpack.c.l.b16 %v321
  %v3685 = vunpack.c.l.b16 %v322
  %v3686 = vunpack.c.l.b16 %v323
  %v3687 = vunpack.c.l.b16 %v324
  %v3688 = vunpack.c.l.b16 %v325
  %v3689 = vunpack.c.l.b16 %v326
  %v3690 = vunpack.c.l.b16 %v327
  %v3691 = vunpack.c.l.b16 %v328
  %v3692 = vunpack.c.l.b16 %v329
  %v3693 = vunpack.c.l.b16 %v330
  %v3694 = vunpack.c.l.b16 %v331
  %v3695 = vunpack.c.l.b16 %v332
  %v3696 = vunpack.c.l.b16 %v333
  %v3697 = vunpack.c.l.b16 %v334
  %v3698 = vunpack.c.l.b16 %v335
  %v3699 = vunpack.c.l.b16 %v336
  %v3700 = vunpack.c.l.b16 %v337
  %v3701 = vunpack.c.l.b16 %v338
  %v3702 = vunpack.c.l.b16 %v339
  %v3703 = vunpack.c.l.b16 %v340
  %v3704 = vunpack.c.l.b16 %v341
  %v3705 = vunpack.c.l.b16 %v342
  %v3706 = vunpack.c.l.b16 %v343
  %v3707 = vunpack.c.l.b16 %v344
  %v3708 = vunpack.c.l.b16 %v345
  %v3709 = vunpack.c.l.b16 %v346
  %v3710 = vunpack.c.l.b16 %v347
  %v3711 = vunpack.c.l.b16 %v348
  %v3712 = vunpack.c.l.b16 %v349
  %v3713 = vunpack.c.l.b16 %v350
  %v3714 = vunpack.c.l.b16 %v351
  %v3715 = vunpack.c.l.b16 %v352
  %v3716 = vunpack.c.l.b16 %v353
  %v3717 = vunpack.c.l.b16 %v354
  %v3718 = vunpack.c.l.b16 %v355
  %v3719 = vunpack.c.l.b16 %v356
  %v3720 = vunpack.c.l.b16 %v357
  %v3721 = vunpack.c.l.b16 %v358
  %v3722 = vunpack.c.l.b16 %v359
  %v3723 = vunpack.c.l.b16 %v360
  %v3724 = vunpack.c.l.b16 %v361
  %v3725 = vunpack.c.l.b16 %v362
  %v3726 = vunpack.c.l.b16 %v363
  %v3727 = vunpack.c.l.b16 %v364
  %v3728 = vunpack.c.l.b16 %v365
  %v3729 = vunpack.c.l.b16 %v366
  %v3730 = vunpack.c.l.b16 %v367
  %v3731 = vunpack.c.l.b16 %v368
  %v3732 = vunpack.c.l.b16 %v369
  %v3733 = vunpack.c.l.b16 %v370
  %v3734 = vunpack.c.l.b16 %v371
  %v3735 = vunpack.c.l.b16 %v372
  %v3736 = vunpack.c.l.b16 %v373
  %v3737 = vunpack.c.l.b16 %v374
  %v3738 = vunpack.c.l.b16 %v375
  %v3739 = vunpack.c.l.b16 %v376
  %v3740 = vunpack.c.l.b16 %v377
  %v3741 = vunpack.c.l.b16 %v378
  %v3742 = vunpack.c.l.b16 %v379
  %v3743 = vunpack.c.l.b16 %v380
  %v3744 = vunpack.c.l.b16 %v381
  %v3745 = vunpack.c.l.b16 %v382
  %v3746 = vunpack.c.l.b16 %v383
  %v3747 = vunpack.c.l.b16 %v384
  %v3748 = vunpack.c.l.b16 %v385
  %v3749 = vunpack.c.l.b16 %v386
  %v3750 = vunpack.c.l.b16 %v387
  %v3751 = vunpack.c.l.b16 %v388
  %v3752 = vunpack.c.l.b16 %v389
  %v3753 = vunpack.c.l.b16 %v390
  %v3754 = vunpack.c.l.b16 %v391
  %v3755 = vunpack.c.l.b16 %v392
  %v3756 = vpack.c.b16 %v3501, %v3500
  %v3757 = vpack.c.b16 %v3503, %v3502
  %v3758 = vpack.c.b16 %v3505, %v3504
  %v3759 = vpack.c.b16 %v3507, %v3506
  %v3760 = vpack.c.b16 %v3509, %v3508
  %v3761 = vpack.c.b16 %v3511, %v3510
  %v3762 = vpack.c.b16 %v3513, %v3512
  %v3763 = vpack.c.b16 %v3515, %v3514
  %v3764 = vpack.c.b16 %v3517, %v3516
  %v3765 = vpack.c.b16 %v3519, %v3518
  %v3766 = vpack.c.b16 %v3521, %v3520
  %v3767 = vpack.c.b16 %v3523, %v3522
  %v3768 = vpack.c.b16 %v3525, %v3524
  %v3769 = vpack.c.b16 %v3527, %v3526
  %v3770 = vpack.c.b16 %v3529, %v3528
  %v3771 = vpack.c.b16 %v3531, %v3530
  %v3772 = vpack.c.b16 %v3533, %v3532
  %v3773 = vpack.c.b16 %v3535, %v3534
  %v3774 = vpack.c.b16 %v3537, %v3536
  %v3775 = vpack.c.b16 %v3539, %v3538
  %v3776 = vpack.c.b16 %v3541, %v3540
  %v3777 = vpack.c.b16 %v3543, %v3542
  %v3778 = vpack.c.b16 %v3545, %v3544
  %v3779 = vpack.c.b16 %v3547, %v3546
  %v3780 = vpack.c.b16 %v3549, %v3548
  %v3781 = vpack.c.b16 %v3551, %v3550
  %v3782 = vpack.c.b16 %v3553, %v3552
  %v3783 = vpack.c.b16 %v3555, %v3554
  %v3784 = vpack.c.b16 %v3557, %v3556
  %v3785 = vpack.c.b16 %v3559, %v3558
  %v3786 = vpack.c.b16 %v3561, %v3560
  %v3787 = vpack.c.b16 %v3563, %v3562
  %v3788 = vpack.c.b16 %v3565, %v3564
  %v3789 = vpack.c.b16 %v3567, %v3566
  %v3790 = vpack.c.b16 %v3569, %v3568
  %v3791 = vpack.c.b16 %v3571, %v3570
  %v3792 = vpack.c.b16 %v3573, %v3572
  %v3793 = vpack.c.b16 %v3575, %v3574
  %v3794 = vpack.c.b16 %v3577, %v3576
  %v3795 = vpack.c.b16 %v3579, %v3578
  %v3796 = vpack.c.b16 %v3581, %v3580
  %v3797 = vpack.c.b16 %v3583, %v3582
  %v3798 = vpack.c.b16 %v3585, %v3584
  %v3799 = vpack.c.b16 %v3587, %v3586
  %v3800 = vpack.c.b16 %v3589, %v3588
  %v3801 = vpack.c.b16 %v3591, %v3590
  %v3802 = vpack.c.b16 %v3593, %v3592
  %v3803 = vpack.c.b16 %v3595, %v3594
  %v3804 = vpack.c.b16 %v3597, %v3596
  %v3805 = vpack.c.b16 %v3599, %v3598
  %v3806 = vpack.c.b16 %v3601, %v3600
  %v3807 = vpack.c.b16 %v3603, %v3602
  %v3808 = vpack.c.b16 %v3605, %v3604
  %v3809 = vpack.c.b16 %v3607, %v3606
  %v3810 = vpack.c.b16 %v3609, %v3608
  %v3811 = vpack.c.b16 %v3611, %v3610
  %v3812 = vpack.c.b16 %v3613, %v3612
  %v3813 = vpack.c.b16 %v3615, %v3614
  %v3814 = vpack.c.b16 %v3617, %v3616
  %v3815 = vpack.c.b16 %v3619, %v3618
  %v3816 = vpack.c.b16 %v3621, %v3620
  %v3817 = vpack.c.b16 %v3623, %v3622
  %v3818 = vpack.c.b16 %v3625, %v3624
  %v3819 = vpack.c.b16 %v3627, %v3626
  %v3820 = vpack.c.b16 %v3629, %v3628
  %v3821 = vpack.c.b16 %v3631, %v3630
  %v3822 = vpack.c.b16 %v3633, %v3632
  %v3823 = vpack.c.b16 %v3635, %v3634
  %v3824 = vpack.c.b16 %v3637, %v3636
  %v3825 = vpack.c.b16 %v3639, %v3638
  %v3826 = vpack.c.b16 %v3641, %v3640
  %v3827 = vpack.c.b16 %v3643, %v3642
  %v3828 = vpack.c.b16 %v3645, %v3644
  %v3829 = vpack.c.b16 %v3647, %v3646
  %v3830 = vpack.c.b16 %v3649, %v3648
  %v3831 = vpack.c.b16 %v3651, %v3650
  %v3832 = vpack.c.b16 %v3653, %v3652
  %v3833 = vpack.c.b16 %v3655, %v3654
  %v3834 = vpack.c.b16 %v3657, %v3656
  %v3835 = vpack.c.b16 %v3659, %v3658
  %v3836 = vpack.c.b16 %v3661, %v3660
  %v3837 = vpack.c.b16 %v3663, %v3662
  %v3838 = vpack.c.b16 %v3665, %v3664
  %v3839 = vpack.c.b16 %v3667, %v3666
  %v3840 = vpack.c.b16 %v3669, %v3668
  %v3841 = vpack.c.b16 %v3671, %v3670
  %v3842 = vpack.c.b16 %v3673, %v3672
  %v3843 = vpack.c.b16 %v3675, %v3674
  %v3844 = vpack.c.b16 %v3677, %v3676
  %v3845 = vpack.c.b16 %v3679, %v3678
  %v3846 = vpack.c.b16 %v3681, %v3680
  %v3847 = vpack.c.b16 %v3683, %v3682
  %v3848 = vpack.c.b16 %v3685, %v3684
  %v3849 = vpack.c.b16 %v3687, %v3686
  %v3850 = vpack.c.b16 %v3689, %v3688
  %v3851 = vpack.c.b16 %v3691, %v3690
  %v3852 = vpack.c.b16 %v3693, %v3692
  %v3853 = vpack.c.b16 %v3695, %v3694
  %v3854 = vpack.c.b16 %v3697, %v3696
  %v3855 = vpack.c.b16 %v3699, %v3698
  %v3856 = vpack.c.b16 %v3701, %v3700
  %v3857 = vpack.c.b16 %v3703, %v3702
  %v3858 = vpack.c.b16 %v3705, %v3704
  %v3859 = vpack.c.b16 %v3707, %v3706
  %v3860 = vpack.c.b16 %v3709, %v3708
  %v3861 = vpack.c.b16 %v3711, %v3710
  %v3862 = vpack.c.b16 %v3713, %v3712
  %v3863 = vpack.c.b16 %v3715, %v3714
  %v3864 = vpack.c.b16 %v3717, %v3716
  %v3865 = vpack.c.b16 %v3719, %v3718
  %v3866 = vpack.c.b16 %v3721, %v3720
  %v3867 = vpack.c.b16 %v3723, %v3722
  %v3868 = vpack.c.b16 %v3725, %v3724
  %v3869 = vpack.c.b16 %v3727, %v3726
  %v3870 = vpack.c.b16 %v3729, %v3728
  %v3871 = vpack.c.b16 %v3731, %v3730
  %v3872 = vpack.c.b16 %v3733, %v3732
  %v3873 = vpack.c.b16 %v3735, %v3734
  %v3874 = vpack.c.b16 %v3737, %v3736
  %v3875 = vpack.c.b16 %v3739, %v3738
  %v3876 = vpack.c.b16 %v3741, %v3740
  %v3877 = vpack.c.b16 %v3743, %v3742
  %v3878 = vpack.c.b16 %v3745, %v3744
  %v3879 = vpack.c.b16 %v3747, %v3746
  %v3880 = vpack.c.b16 %v3749, %v3748
  %v3881 = vpack.c.b16 %v3751, %v3750
  %v3882 = vpack.c.b16 %v3753, %v3752
  %v3883 = vpack.c.b16 %v3755, %v3754
  %4012 = vmatprep.subr.bf16.mxu0 0
  %4013 = vmatpush1.bf16.msra.mxu0 %v3756
  %4014 = vmatprep.subr.bf16.mxu0 0
  %4015 = vmatpush1.bf16.msra.mxu0 %v3757
  %4016 = vmatprep.subr.bf16.mxu0 0
  %4017 = vmatpush1.bf16.msra.mxu0 %v3758
  %4018 = vmatprep.subr.bf16.mxu0 0
  %4019 = vmatpush1.bf16.msra.mxu0 %v3759
  %4020 = vmatprep.subr.bf16.mxu0 0
  %4021 = vmatpush1.bf16.msra.mxu0 %v3760
  %4022 = vmatprep.subr.bf16.mxu0 0
  %4023 = vmatpush1.bf16.msra.mxu0 %v3761
  %4024 = vmatprep.subr.bf16.mxu0 0
  %4025 = vmatpush1.bf16.msra.mxu0 %v3762
  %4026 = vmatprep.subr.bf16.mxu0 0
  %4027 = vmatpush1.bf16.msra.mxu0 %v3763
  %4028 = vmatprep.subr.bf16.mxu0 0
  %4029 = vmatpush1.bf16.msra.mxu0 %v3764
  %4030 = vmatprep.subr.bf16.mxu0 0
  %4031 = vmatpush1.bf16.msra.mxu0 %v3765
  %4032 = vmatprep.subr.bf16.mxu0 0
  %4033 = vmatpush1.bf16.msra.mxu0 %v3766
  %4034 = vmatprep.subr.bf16.mxu0 0
  %4035 = vmatpush1.bf16.msra.mxu0 %v3767
  %4036 = vmatprep.subr.bf16.mxu0 0
  %4037 = vmatpush1.bf16.msra.mxu0 %v3768
  %4038 = vmatprep.subr.bf16.mxu0 0
  %4039 = vmatpush1.bf16.msra.mxu0 %v3769
  %4040 = vmatprep.subr.bf16.mxu0 0
  %4041 = vmatpush1.bf16.msra.mxu0 %v3770
  %4042 = vmatprep.subr.bf16.mxu0 0
  %4043 = vmatpush1.bf16.msra.mxu0 %v3771
  %4044 = vmatprep.mubr.bf16.mxu0 %v3206
  %4045 = vmatmul.mubr.bf16.gmra.mrb[0].mxu0 %v3205
  %v4046 = vpop.f32.mrb[0].mxu0
  %v4047 = vadd.f32 %v3242, %v4046
  %v4048 = vpop.f32.mrb[0].mxu0
  %v4049 = vpop.f32.mrb[0].mxu0
  %v4050 = vadd.f32 %v3242, %v4049
  %v4051 = vpop.f32.mrb[0].mxu0
  %4052 = vmatprep.mubr.bf16.mxu0 %v3222
  %4053 = vmatmul.mubr.bf16.gmra.mrb[0].mxu0 %v3221
  %v4054 = vpop.f32.mrb[0].mxu0
  %v4055 = vadd.f32 %v3242, %v4054
  %v4056 = vpop.f32.mrb[0].mxu0
  %v4057 = vpop.f32.mrb[0].mxu0
  %v4058 = vadd.f32 %v3242, %v4057
  %v4059 = vpop.f32.mrb[0].mxu0
  %4060 = vdwg.mxu0
  %4061 = vmatprep.subr.bf16.mxu0 0
  %4062 = vmatpush1.bf16.msra.mxu0 %v3772
  %4063 = vmatprep.subr.bf16.mxu0 0
  %4064 = vmatpush1.bf16.msra.mxu0 %v3773
  %4065 = vmatprep.subr.bf16.mxu0 0
  %4066 = vmatpush1.bf16.msra.mxu0 %v3774
  %4067 = vmatprep.subr.bf16.mxu0 0
  %4068 = vmatpush1.bf16.msra.mxu0 %v3775
  %4069 = vmatprep.subr.bf16.mxu0 0
  %4070 = vmatpush1.bf16.msra.mxu0 %v3776
  %4071 = vmatprep.subr.bf16.mxu0 0
  %4072 = vmatpush1.bf16.msra.mxu0 %v3777
  %4073 = vmatprep.subr.bf16.mxu0 0
  %4074 = vmatpush1.bf16.msra.mxu0 %v3778
  %4075 = vmatprep.subr.bf16.mxu0 0
  %4076 = vmatpush1.bf16.msra.mxu0 %v3779
  %4077 = vmatprep.subr.bf16.mxu0 0
  %4078 = vmatpush1.bf16.msra.mxu0 %v3780
  %4079 = vmatprep.subr.bf16.mxu0 0
  %4080 = vmatpush1.bf16.msra.mxu0 %v3781
  %4081 = vmatprep.subr.bf16.mxu0 0
  %4082 = vmatpush1.bf16.msra.mxu0 %v3782
  %4083 = vmatprep.subr.bf16.mxu0 0
  %4084 = vmatpush1.bf16.msra.mxu0 %v3783
  %4085 = vmatprep.subr.bf16.mxu0 0
  %4086 = vmatpush1.bf16.msra.mxu0 %v3784
  %4087 = vmatprep.subr.bf16.mxu0 0
  %4088 = vmatpush1.bf16.msra.mxu0 %v3785
  %4089 = vmatprep.subr.bf16.mxu0 0
  %4090 = vmatpush1.bf16.msra.mxu0 %v3786
  %4091 = vmatprep.subr.bf16.mxu0 0
  %4092 = vmatpush1.bf16.msra.mxu0 %v3787
  %4093 = vmatprep.mubr.bf16.mxu0 %v3208
  %4094 = vmatmul.mubr.bf16.gmra.mrb[0].mxu0 %v3207
  %v4095 = vpop.f32.mrb[0].mxu0
  %v4096 = vadd.f32 %v4047, %v4095
  %v4097 = vpop.f32.mrb[0].mxu0
  %v4098 = vpop.f32.mrb[0].mxu0
  %v4099 = vadd.f32 %v4050, %v4098
  %v4100 = vpop.f32.mrb[0].mxu0
  %4101 = vmatprep.mubr.bf16.mxu0 %v3224
  %4102 = vmatmul.mubr.bf16.gmra.mrb[0].mxu0 %v3223
  %v4103 = vpop.f32.mrb[0].mxu0
  %v4104 = vadd.f32 %v4055, %v4103
  %v4105 = vpop.f32.mrb[0].mxu0
  %v4106 = vpop.f32.mrb[0].mxu0
  %v4107 = vadd.f32 %v4058, %v4106
  %v4108 = vpop.f32.mrb[0].mxu0
  %4109 = vdwg.mxu0
  %4110 = vmatprep.subr.bf16.mxu0 0
  %4111 = vmatpush1.bf16.msra.mxu0 %v3788
  %4112 = vmatprep.subr.bf16.mxu0 0
  %4113 = vmatpush1.bf16.msra.mxu0 %v3789
  %4114 = vmatprep.subr.bf16.mxu0 0
  %4115 = vmatpush1.bf16.msra.mxu0 %v3790
  %4116 = vmatprep.subr.bf16.mxu0 0
  %4117 = vmatpush1.bf16.msra.mxu0 %v3791
  %4118 = vmatprep.subr.bf16.mxu0 0
  %4119 = vmatpush1.bf16.msra.mxu0 %v3792
  %4120 = vmatprep.subr.bf16.mxu0 0
  %4121 = vmatpush1.bf16.msra.mxu0 %v3793
  %4122 = vmatprep.subr.bf16.mxu0 0
  %4123 = vmatpush1.bf16.msra.mxu0 %v3794
  %4124 = vmatprep.subr.bf16.mxu0 0
  %4125 = vmatpush1.bf16.msra.mxu0 %v3795
  %4126 = vmatprep.subr.bf16.mxu0 0
  %4127 = vmatpush1.bf16.msra.mxu0 %v3796
  %4128 = vmatprep.subr.bf16.mxu0 0
  %4129 = vmatpush1.bf16.msra.mxu0 %v3797
  %4130 = vmatprep.subr.bf16.mxu0 0
  %4131 = vmatpush1.bf16.msra.mxu0 %v3798
  %4132 = vmatprep.subr.bf16.mxu0 0
  %4133 = vmatpush1.bf16.msra.mxu0 %v3799
  %4134 = vmatprep.subr.bf16.mxu0 0
  %4135 = vmatpush1.bf16.msra.mxu0 %v3800
  %4136 = vmatprep.subr.bf16.mxu0 0
  %4137 = vmatpush1.bf16.msra.mxu0 %v3801
  %4138 = vmatprep.subr.bf16.mxu0 0
  %4139 = vmatpush1.bf16.msra.mxu0 %v3802
  %4140 = vmatprep.subr.bf16.mxu0 0
  %4141 = vmatpush1.bf16.msra.mxu0 %v3803
  %4142 = vmatprep.mubr.bf16.mxu0 %v3210
  %4143 = vmatmul.mubr.bf16.gmra.mrb[0].mxu0 %v3209
  %v4144 = vpop.f32.mrb[0].mxu0
  %v4145 = vadd.f32 %v4096, %v4144
  %v4146 = vpop.f32.mrb[0].mxu0
  %v4147 = vpop.f32.mrb[0].mxu0
  %v4148 = vadd.f32 %v4099, %v4147
  %v4149 = vpop.f32.mrb[0].mxu0
  %4150 = vmatprep.mubr.bf16.mxu0 %v3226
  %4151 = vmatmul.mubr.bf16.gmra.mrb[0].mxu0 %v3225
  %v4152 = vpop.f32.mrb[0].mxu0
  %v4153 = vadd.f32 %v4104, %v4152
  %v4154 = vpop.f32.mrb[0].mxu0
  %v4155 = vpop.f32.mrb[0].mxu0
  %v4156 = vadd.f32 %v4107, %v4155
  %v4157 = vpop.f32.mrb[0].mxu0
  %4158 = vdwg.mxu0
  %4159 = vmatprep.subr.bf16.mxu0 0
  %4160 = vmatpush1.bf16.msra.mxu0 %v3804
  %4161 = vmatprep.subr.bf16.mxu0 0
  %4162 = vmatpush1.bf16.msra.mxu0 %v3805
  %4163 = vmatprep.subr.bf16.mxu0 0
  %4164 = vmatpush1.bf16.msra.mxu0 %v3806
  %4165 = vmatprep.subr.bf16.mxu0 0
  %4166 = vmatpush1.bf16.msra.mxu0 %v3807
  %4167 = vmatprep.subr.bf16.mxu0 0
  %4168 = vmatpush1.bf16.msra.mxu0 %v3808
  %4169 = vmatprep.subr.bf16.mxu0 0
  %4170 = vmatpush1.bf16.msra.mxu0 %v3809
  %4171 = vmatprep.subr.bf16.mxu0 0
  %4172 = vmatpush1.bf16.msra.mxu0 %v3810
  %4173 = vmatprep.subr.bf16.mxu0 0
  %4174 = vmatpush1.bf16.msra.mxu0 %v3811
  %4175 = vmatprep.subr.bf16.mxu0 0
  %4176 = vmatpush1.bf16.msra.mxu0 %v3812
  %4177 = vmatprep.subr.bf16.mxu0 0
  %4178 = vmatpush1.bf16.msra.mxu0 %v3813
  %4179 = vmatprep.subr.bf16.mxu0 0
  %4180 = vmatpush1.bf16.msra.mxu0 %v3814
  %4181 = vmatprep.subr.bf16.mxu0 0
  %4182 = vmatpush1.bf16.msra.mxu0 %v3815
  %4183 = vmatprep.subr.bf16.mxu0 0
  %4184 = vmatpush1.bf16.msra.mxu0 %v3816
  %4185 = vmatprep.subr.bf16.mxu0 0
  %4186 = vmatpush1.bf16.msra.mxu0 %v3817
  %4187 = vmatprep.subr.bf16.mxu0 0
  %4188 = vmatpush1.bf16.msra.mxu0 %v3818
  %4189 = vmatprep.subr.bf16.mxu0 0
  %4190 = vmatpush1.bf16.msra.mxu0 %v3819
  %4191 = vmatprep.mubr.bf16.mxu0 %v3212
  %4192 = vmatmul.mubr.bf16.gmra.mrb[0].mxu0 %v3211
  %v4193 = vpop.f32.mrb[0].mxu0
  %v4194 = vadd.f32 %v4145, %v4193
  %v4195 = vpop.f32.mrb[0].mxu0
  %v4196 = vpop.f32.mrb[0].mxu0
  %v4197 = vadd.f32 %v4148, %v4196
  %v4198 = vpop.f32.mrb[0].mxu0
  %4199 = vmatprep.mubr.bf16.mxu0 %v3228
  %4200 = vmatmul.mubr.bf16.gmra.mrb[0].mxu0 %v3227
  %v4201 = vpop.f32.mrb[0].mxu0
  %v4202 = vadd.f32 %v4153, %v4201
  %v4203 = vpop.f32.mrb[0].mxu0
  %v4204 = vpop.f32.mrb[0].mxu0
  %v4205 = vadd.f32 %v4156, %v4204
  %v4206 = vpop.f32.mrb[0].mxu0
  %4207 = vdwg.mxu0
  %4208 = vmatprep.subr.bf16.mxu0 0
  %4209 = vmatpush1.bf16.msra.mxu0 %v3820
  %4210 = vmatprep.subr.bf16.mxu0 0
  %4211 = vmatpush1.bf16.msra.mxu0 %v3821
  %4212 = vmatprep.subr.bf16.mxu0 0
  %4213 = vmatpush1.bf16.msra.mxu0 %v3822
  %4214 = vmatprep.subr.bf16.mxu0 0
  %4215 = vmatpush1.bf16.msra.mxu0 %v3823
  %4216 = vmatprep.subr.bf16.mxu0 0
  %4217 = vmatpush1.bf16.msra.mxu0 %v3824
  %4218 = vmatprep.subr.bf16.mxu0 0
  %4219 = vmatpush1.bf16.msra.mxu0 %v3825
  %4220 = vmatprep.subr.bf16.mxu0 0
  %4221 = vmatpush1.bf16.msra.mxu0 %v3826
  %4222 = vmatprep.subr.bf16.mxu0 0
  %4223 = vmatpush1.bf16.msra.mxu0 %v3827
  %4224 = vmatprep.subr.bf16.mxu0 0
  %4225 = vmatpush1.bf16.msra.mxu0 %v3828
  %4226 = vmatprep.subr.bf16.mxu0 0
  %4227 = vmatpush1.bf16.msra.mxu0 %v3829
  %4228 = vmatprep.subr.bf16.mxu0 0
  %4229 = vmatpush1.bf16.msra.mxu0 %v3830
  %4230 = vmatprep.subr.bf16.mxu0 0
  %4231 = vmatpush1.bf16.msra.mxu0 %v3831
  %4232 = vmatprep.subr.bf16.mxu0 0
  %4233 = vmatpush1.bf16.msra.mxu0 %v3832
  %4234 = vmatprep.subr.bf16.mxu0 0
  %4235 = vmatpush1.bf16.msra.mxu0 %v3833
  %4236 = vmatprep.subr.bf16.mxu0 0
  %4237 = vmatpush1.bf16.msra.mxu0 %v3834
  %4238 = vmatprep.subr.bf16.mxu0 0
  %4239 = vmatpush1.bf16.msra.mxu0 %v3835
  %4240 = vmatprep.mubr.bf16.mxu0 %v3214
  %4241 = vmatmul.mubr.bf16.gmra.mrb[0].mxu0 %v3213
  %v4242 = vpop.f32.mrb[0].mxu0
  %v4243 = vadd.f32 %v4194, %v4242
  %v4244 = vpop.f32.mrb[0].mxu0
  %v4245 = vpop.f32.mrb[0].mxu0
  %v4246 = vadd.f32 %v4197, %v4245
  %v4247 = vpop.f32.mrb[0].mxu0
  %4248 = vmatprep.mubr.bf16.mxu0 %v3230
  %4249 = vmatmul.mubr.bf16.gmra.mrb[0].mxu0 %v3229
  %v4250 = vpop.f32.mrb[0].mxu0
  %v4251 = vadd.f32 %v4202, %v4250
  %v4252 = vpop.f32.mrb[0].mxu0
  %v4253 = vpop.f32.mrb[0].mxu0
  %v4254 = vadd.f32 %v4205, %v4253
  %v4255 = vpop.f32.mrb[0].mxu0
  %4256 = vdwg.mxu0
  %4257 = vmatprep.subr.bf16.mxu0 0
  %4258 = vmatpush1.bf16.msra.mxu0 %v3836
  %4259 = vmatprep.subr.bf16.mxu0 0
  %4260 = vmatpush1.bf16.msra.mxu0 %v3837
  %4261 = vmatprep.subr.bf16.mxu0 0
  %4262 = vmatpush1.bf16.msra.mxu0 %v3838
  %4263 = vmatprep.subr.bf16.mxu0 0
  %4264 = vmatpush1.bf16.msra.mxu0 %v3839
  %4265 = vmatprep.subr.bf16.mxu0 0
  %4266 = vmatpush1.bf16.msra.mxu0 %v3840
  %4267 = vmatprep.subr.bf16.mxu0 0
  %4268 = vmatpush1.bf16.msra.mxu0 %v3841
  %4269 = vmatprep.subr.bf16.mxu0 0
  %4270 = vmatpush1.bf16.msra.mxu0 %v3842
  %4271 = vmatprep.subr.bf16.mxu0 0
  %4272 = vmatpush1.bf16.msra.mxu0 %v3843
  %4273 = vmatprep.subr.bf16.mxu0 0
  %4274 = vmatpush1.bf16.msra.mxu0 %v3844
  %4275 = vmatprep.subr.bf16.mxu0 0
  %4276 = vmatpush1.bf16.msra.mxu0 %v3845
  %4277 = vmatprep.subr.bf16.mxu0 0
  %4278 = vmatpush1.bf16.msra.mxu0 %v3846
  %4279 = vmatprep.subr.bf16.mxu0 0
  %4280 = vmatpush1.bf16.msra.mxu0 %v3847
  %4281 = vmatprep.subr.bf16.mxu0 0
  %4282 = vmatpush1.bf16.msra.mxu0 %v3848
  %4283 = vmatprep.subr.bf16.mxu0 0
  %4284 = vmatpush1.bf16.msra.mxu0 %v3849
  %4285 = vmatprep.subr.bf16.mxu0 0
  %4286 = vmatpush1.bf16.msra.mxu0 %v3850
  %4287 = vmatprep.subr.bf16.mxu0 0
  %4288 = vmatpush1.bf16.msra.mxu0 %v3851
  %4289 = vmatprep.mubr.bf16.mxu0 %v3216
  %4290 = vmatmul.mubr.bf16.gmra.mrb[0].mxu0 %v3215
  %v4291 = vpop.f32.mrb[0].mxu0
  %v4292 = vadd.f32 %v4243, %v4291
  %v4293 = vpop.f32.mrb[0].mxu0
  %v4294 = vpop.f32.mrb[0].mxu0
  %v4295 = vadd.f32 %v4246, %v4294
  %v4296 = vpop.f32.mrb[0].mxu0
  %4297 = vmatprep.mubr.bf16.mxu0 %v3232
  %4298 = vmatmul.mubr.bf16.gmra.mrb[0].mxu0 %v3231
  %v4299 = vpop.f32.mrb[0].mxu0
  %v4300 = vadd.f32 %v4251, %v4299
  %v4301 = vpop.f32.mrb[0].mxu0
  %v4302 = vpop.f32.mrb[0].mxu0
  %v4303 = vadd.f32 %v4254, %v4302
  %v4304 = vpop.f32.mrb[0].mxu0
  %4305 = vdwg.mxu0
  %4306 = vmatprep.subr.bf16.mxu0 0
  %4307 = vmatpush1.bf16.msra.mxu0 %v3852
  %4308 = vmatprep.subr.bf16.mxu0 0
  %4309 = vmatpush1.bf16.msra.mxu0 %v3853
  %4310 = vmatprep.subr.bf16.mxu0 0
  %4311 = vmatpush1.bf16.msra.mxu0 %v3854
  %4312 = vmatprep.subr.bf16.mxu0 0
  %4313 = vmatpush1.bf16.msra.mxu0 %v3855
  %4314 = vmatprep.subr.bf16.mxu0 0
  %4315 = vmatpush1.bf16.msra.mxu0 %v3856
  %4316 = vmatprep.subr.bf16.mxu0 0
  %4317 = vmatpush1.bf16.msra.mxu0 %v3857
  %4318 = vmatprep.subr.bf16.mxu0 0
  %4319 = vmatpush1.bf16.msra.mxu0 %v3858
  %4320 = vmatprep.subr.bf16.mxu0 0
  %4321 = vmatpush1.bf16.msra.mxu0 %v3859
  %4322 = vmatprep.subr.bf16.mxu0 0
  %4323 = vmatpush1.bf16.msra.mxu0 %v3860
  %4324 = vmatprep.subr.bf16.mxu0 0
  %4325 = vmatpush1.bf16.msra.mxu0 %v3861
  %4326 = vmatprep.subr.bf16.mxu0 0
  %4327 = vmatpush1.bf16.msra.mxu0 %v3862
  %4328 = vmatprep.subr.bf16.mxu0 0
  %4329 = vmatpush1.bf16.msra.mxu0 %v3863
  %4330 = vmatprep.subr.bf16.mxu0 0
  %4331 = vmatpush1.bf16.msra.mxu0 %v3864
  %4332 = vmatprep.subr.bf16.mxu0 0
  %4333 = vmatpush1.bf16.msra.mxu0 %v3865
  %4334 = vmatprep.subr.bf16.mxu0 0
  %4335 = vmatpush1.bf16.msra.mxu0 %v3866
  %4336 = vmatprep.subr.bf16.mxu0 0
  %4337 = vmatpush1.bf16.msra.mxu0 %v3867
  %4338 = vmatprep.mubr.bf16.mxu0 %v3218
  %4339 = vmatmul.mubr.bf16.gmra.mrb[0].mxu0 %v3217
  %v4340 = vpop.f32.mrb[0].mxu0
  %v4341 = vadd.f32 %v4292, %v4340
  %v4342 = vpop.f32.mrb[0].mxu0
  %v4343 = vpop.f32.mrb[0].mxu0
  %v4344 = vadd.f32 %v4295, %v4343
  %v4345 = vpop.f32.mrb[0].mxu0
  %4346 = vmatprep.mubr.bf16.mxu0 %v3234
  %4347 = vmatmul.mubr.bf16.gmra.mrb[0].mxu0 %v3233
  %v4348 = vpop.f32.mrb[0].mxu0
  %v4349 = vadd.f32 %v4300, %v4348
  %v4350 = vpop.f32.mrb[0].mxu0
  %v4351 = vpop.f32.mrb[0].mxu0
  %v4352 = vadd.f32 %v4303, %v4351
  %v4353 = vpop.f32.mrb[0].mxu0
  %4354 = vdwg.mxu0
  %4355 = vmatprep.subr.bf16.mxu0 0
  %4356 = vmatpush1.bf16.msra.mxu0 %v3868
  %4357 = vmatprep.subr.bf16.mxu0 0
  %4358 = vmatpush1.bf16.msra.mxu0 %v3869
  %4359 = vmatprep.subr.bf16.mxu0 0
  %4360 = vmatpush1.bf16.msra.mxu0 %v3870
  %4361 = vmatprep.subr.bf16.mxu0 0
  %4362 = vmatpush1.bf16.msra.mxu0 %v3871
  %4363 = vmatprep.subr.bf16.mxu0 0
  %4364 = vmatpush1.bf16.msra.mxu0 %v3872
  %4365 = vmatprep.subr.bf16.mxu0 0
  %4366 = vmatpush1.bf16.msra.mxu0 %v3873
  %4367 = vmatprep.subr.bf16.mxu0 0
  %4368 = vmatpush1.bf16.msra.mxu0 %v3874
  %4369 = vmatprep.subr.bf16.mxu0 0
  %4370 = vmatpush1.bf16.msra.mxu0 %v3875
  %4371 = vmatprep.subr.bf16.mxu0 0
  %4372 = vmatpush1.bf16.msra.mxu0 %v3876
  %4373 = vmatprep.subr.bf16.mxu0 0
  %4374 = vmatpush1.bf16.msra.mxu0 %v3877
  %4375 = vmatprep.subr.bf16.mxu0 0
  %4376 = vmatpush1.bf16.msra.mxu0 %v3878
  %4377 = vmatprep.subr.bf16.mxu0 0
  %4378 = vmatpush1.bf16.msra.mxu0 %v3879
  %4379 = vmatprep.subr.bf16.mxu0 0
  %4380 = vmatpush1.bf16.msra.mxu0 %v3880
  %4381 = vmatprep.subr.bf16.mxu0 0
  %4382 = vmatpush1.bf16.msra.mxu0 %v3881
  %4383 = vmatprep.subr.bf16.mxu0 0
  %4384 = vmatpush1.bf16.msra.mxu0 %v3882
  %4385 = vmatprep.subr.bf16.mxu0 0
  %4386 = vmatpush1.bf16.msra.mxu0 %v3883
  %4387 = vmatprep.mubr.bf16.mxu0 %v3220
  %4388 = vmatmul.mubr.bf16.gmra.mrb[0].mxu0 %v3219
  %v4389 = vpop.f32.mrb[0].mxu0
  %v4390 = vadd.f32 %v4341, %v4389
  %v4391 = vpop.f32.mrb[0].mxu0
  %v4392 = vpop.f32.mrb[0].mxu0
  %v4393 = vadd.f32 %v4344, %v4392
  %v4394 = vpop.f32.mrb[0].mxu0
  %4395 = vmatprep.mubr.bf16.mxu0 %v3236
  %4396 = vmatmul.mubr.bf16.gmra.mrb[0].mxu0 %v3235
  %v4397 = vpop.f32.mrb[0].mxu0
  %v4398 = vadd.f32 %v4349, %v4397
  %v4399 = vpop.f32.mrb[0].mxu0
  %v4400 = vpop.f32.mrb[0].mxu0
  %v4401 = vadd.f32 %v4352, %v4400
  %v4402 = vpop.f32.mrb[0].mxu0
  %4403 = vdwg.mxu0
  %v4404 = vadd.f32 %v2461, %v4390
  %v4405 = vadd.f32 %v2462, %v4393
  %v4406 = vadd.f32 %v2463, %v4398
  %v4407 = vadd.f32 %v2464, %v4401
  %v4408 = vsel %vm414, %v4404, 0.0
  %4409 = vadd.xlane.f32.xlu0 %v4408
  %v4410 = vpop.xlane.xlu0 %4409
  %v4411 = vsel %vm414, %v4405, 0.0
  %4412 = vadd.xlane.f32.xlu0 %v4411
  %v4413 = vpop.xlane.xlu0 %4412
  %v4414 = vsel %vm414, %v4406, 0.0
  %4415 = vadd.xlane.f32.xlu0 %v4414
  %v4416 = vpop.xlane.xlu0 %4415
  %v4417 = vsel %vm414, %v4407, 0.0
  %4418 = vadd.xlane.f32.xlu0 %v4417
  %v4419 = vpop.xlane.xlu0 %4418
  %v4420 = vmul.f32 %v4410, %v2402
  %v4421 = vmul.f32 %v4413, %v2402
  %v4422 = vmul.f32 %v4416, %v2402
  %v4423 = vmul.f32 %v4419, %v2402
  %v4424 = vsub.f32 %v4404, %v4420
  %v4425 = vsub.f32 %v4405, %v4421
  %v4426 = vsub.f32 %v4406, %v4422
  %v4427 = vsub.f32 %v4407, %v4423
  %v4428 = vmul.f32 %v4424, %v4424
  %v4429 = vmul.f32 %v4425, %v4425
  %v4430 = vmul.f32 %v4426, %v4426
  %v4431 = vmul.f32 %v4427, %v4427
  %v4432 = vsel %vm414, %v4428, 0.0
  %4433 = vadd.xlane.f32.xlu0 %v4432
  %v4434 = vpop.xlane.xlu0 %4433
  %v4435 = vsel %vm414, %v4429, 0.0
  %4436 = vadd.xlane.f32.xlu0 %v4435
  %v4437 = vpop.xlane.xlu0 %4436
  %v4438 = vsel %vm414, %v4430, 0.0
  %4439 = vadd.xlane.f32.xlu0 %v4438
  %v4440 = vpop.xlane.xlu0 %4439
  %v4441 = vsel %vm414, %v4431, 0.0
  %4442 = vadd.xlane.f32.xlu0 %v4441
  %v4443 = vpop.xlane.xlu0 %4442
  %v4444 = vmul.f32 %v4434, %v2402
  %v4445 = vmul.f32 %v4437, %v2402
  %v4446 = vmul.f32 %v4440, %v2402
  %v4447 = vmul.f32 %v4443, %v2402
  %v4448 = vadd.f32 %v4444, 1e-05
  %v4449 = vadd.f32 %v4445, 1e-05
  %v4450 = vadd.f32 %v4446, 1e-05
  %v4451 = vadd.f32 %v4447, 1e-05
  %v4452 = vrsqrt.pop %v4448
  %v4453 = vrsqrt.pop %v4449
  %v4454 = vrsqrt.pop %v4450
  %v4455 = vrsqrt.pop %v4451
  %v4456 = vmul.f32 %v4424, %v4452
  %v4457 = vmul.f32 %v4425, %v4453
  %v4458 = vmul.f32 %v4426, %v4454
  %v4459 = vmul.f32 %v4427, %v4455
  %v4460 = vld [vmem:[%s12] sm:$0x1]
  %v4462 = vlaneseq
  %v4463 = vshrl.u32 %v4462, 7
  %v4464 = vsub.s32 0, %v4463
  %v4465 = vrot.slane %v4460, %v4464
  %v4467 = vmul.f32 %v4456, %v4465
  %v4468 = vmul.f32 %v4457, %v4465
  %v4469 = vmul.f32 %v4458, %v4465
  %v4470 = vmul.f32 %v4459, %v4465
  %v4471 = vld [vmem:[%s13] sm:$0x1]
  %v4473 = vlaneseq
  %v4474 = vshrl.u32 %v4473, 7
  %v4475 = vsub.s32 0, %v4474
  %v4476 = vrot.slane %v4471, %v4475
  %v4478 = vadd.f32 %v4467, %v4476
  %v4479 = vadd.f32 %v4468, %v4476
  %v4480 = vadd.f32 %v4469, %v4476
  %v4481 = vadd.f32 %v4470, %v4476
  %v4482 = vld [vmem:[%s14] sm:$0xf]
  %v4483 = vld [vmem:[%s14 + $0x4] sm:$0xf]
  %v4484 = vld [vmem:[%s14 + $0x8] sm:$0xf]
  %v4485 = vld [vmem:[%s14 + $0xc] sm:$0xf]
  %v4486 = vld [vmem:[%s16] sm:$0xf]
  %v4487 = vld [vmem:[%s16 + $0x4] sm:$0xf]
  %v4488 = vld [vmem:[%s16 + $0x8] sm:$0xf]
  %v4489 = vld [vmem:[%s16 + $0xc] sm:$0xf]
  %v4490 = vld [vmem:[%s18] sm:$0xff]
  %v4491 = vld [vmem:[%s18 + $0x8] sm:$0xff]
  %v4492 = vld [vmem:[%s18 + $0x10] sm:$0xff]
  %v4493 = vld [vmem:[%s18 + $0x18] sm:$0xff]
  %v4494 = vld [vmem:[%s18 + $0x20] sm:$0xff]
  %v4495 = vld [vmem:[%s18 + $0x28] sm:$0xff]
  %v4496 = vld [vmem:[%s18 + $0x30] sm:$0xff]
  %v4497 = vld [vmem:[%s18 + $0x38] sm:$0xff]
  %v4498 = vld [vmem:[%s18 + $0x40] sm:$0xff]
  %v4499 = vld [vmem:[%s18 + $0x48] sm:$0xff]
  %v4500 = vld [vmem:[%s18 + $0x50] sm:$0xff]
  %v4501 = vld [vmem:[%s18 + $0x58] sm:$0xff]
  %v4502 = vld [vmem:[%s18 + $0x60] sm:$0xff]
  %v4503 = vld [vmem:[%s18 + $0x68] sm:$0xff]
  %v4504 = vld [vmem:[%s18 + $0x70] sm:$0xff]
  %v4505 = vld [vmem:[%s18 + $0x78] sm:$0xff]
  %v4506 = vld [vmem:[%s18 + $0x80] sm:$0xff]
  %v4507 = vld [vmem:[%s18 + $0x88] sm:$0xff]
  %v4508 = vld [vmem:[%s18 + $0x90] sm:$0xff]
  %v4509 = vld [vmem:[%s18 + $0x98] sm:$0xff]
  %v4510 = vld [vmem:[%s18 + $0xa0] sm:$0xff]
  %v4511 = vld [vmem:[%s18 + $0xa8] sm:$0xff]
  %v4512 = vld [vmem:[%s18 + $0xb0] sm:$0xff]
  %v4513 = vld [vmem:[%s18 + $0xb8] sm:$0xff]
  %v4514 = vld [vmem:[%s18 + $0xc0] sm:$0xff]
  %v4515 = vld [vmem:[%s18 + $0xc8] sm:$0xff]
  %v4516 = vld [vmem:[%s18 + $0xd0] sm:$0xff]
  %v4517 = vld [vmem:[%s18 + $0xd8] sm:$0xff]
  %v4518 = vld [vmem:[%s18 + $0xe0] sm:$0xff]
  %v4519 = vld [vmem:[%s18 + $0xe8] sm:$0xff]
  %v4520 = vld [vmem:[%s18 + $0xf0] sm:$0xff]
  %v4521 = vld [vmem:[%s18 + $0xf8] sm:$0xff]
  %v4522 = vld [vmem:[%s20] sm:$0xf]
  %v4523 = vld [vmem:[%s20 + $0x4] sm:$0xf]
  %v4524 = vld [vmem:[%s20 + $0x8] sm:$0xf]
  %v4525 = vld [vmem:[%s20 + $0xc] sm:$0xf]
  %v4526 = vld [vmem:[%s20 + $0x10] sm:$0xf]
  %v4527 = vld [vmem:[%s20 + $0x14] sm:$0xf]
  %v4528 = vld [vmem:[%s20 + $0x18] sm:$0xf]
  %v4529 = vld [vmem:[%s20 + $0x1c] sm:$0xf]
  %v4530 = vld [vmem:[%s20 + $0x20] sm:$0xf]
  %v4531 = vld [vmem:[%s20 + $0x24] sm:$0xf]
  %v4532 = vld [vmem:[%s20 + $0x28] sm:$0xf]
  %v4533 = vld [vmem:[%s20 + $0x2c] sm:$0xf]
  %v4534 = vld [vmem:[%s20 + $0x30] sm:$0xf]
  %v4535 = vld [vmem:[%s20 + $0x34] sm:$0xf]
  %v4536 = vld [vmem:[%s20 + $0x38] sm:$0xf]
  %v4537 = vld [vmem:[%s20 + $0x3c] sm:$0xf]
  %v4538 = vld [vmem:[%s20 + $0x40] sm:$0xf]
  %v4539 = vld [vmem:[%s20 + $0x44] sm:$0xf]
  %v4540 = vld [vmem:[%s20 + $0x48] sm:$0xf]
  %v4541 = vld [vmem:[%s20 + $0x4c] sm:$0xf]
  %v4542 = vld [vmem:[%s20 + $0x50] sm:$0xf]
  %v4543 = vld [vmem:[%s20 + $0x54] sm:$0xf]
  %v4544 = vld [vmem:[%s20 + $0x58] sm:$0xf]
  %v4545 = vld [vmem:[%s20 + $0x5c] sm:$0xf]
  %v4546 = vld [vmem:[%s20 + $0x60] sm:$0xf]
  %v4547 = vld [vmem:[%s20 + $0x64] sm:$0xf]
  %v4548 = vld [vmem:[%s20 + $0x68] sm:$0xf]
  %v4549 = vld [vmem:[%s20 + $0x6c] sm:$0xf]
  %v4550 = vld [vmem:[%s20 + $0x70] sm:$0xf]
  %v4551 = vld [vmem:[%s20 + $0x74] sm:$0xf]
  %v4552 = vld [vmem:[%s20 + $0x78] sm:$0xf]
  %v4553 = vld [vmem:[%s20 + $0x7c] sm:$0xf]
  %v4554 = vld [vmem:[%s20 + $0x80] sm:$0xf]
  %v4555 = vld [vmem:[%s20 + $0x84] sm:$0xf]
  %v4556 = vld [vmem:[%s20 + $0x88] sm:$0xf]
  %v4557 = vld [vmem:[%s20 + $0x8c] sm:$0xf]
  %v4558 = vld [vmem:[%s20 + $0x90] sm:$0xf]
  %v4559 = vld [vmem:[%s20 + $0x94] sm:$0xf]
  %v4560 = vld [vmem:[%s20 + $0x98] sm:$0xf]
  %v4561 = vld [vmem:[%s20 + $0x9c] sm:$0xf]
  %v4562 = vld [vmem:[%s20 + $0xa0] sm:$0xf]
  %v4563 = vld [vmem:[%s20 + $0xa4] sm:$0xf]
  %v4564 = vld [vmem:[%s20 + $0xa8] sm:$0xf]
  %v4565 = vld [vmem:[%s20 + $0xac] sm:$0xf]
  %v4566 = vld [vmem:[%s20 + $0xb0] sm:$0xf]
  %v4567 = vld [vmem:[%s20 + $0xb4] sm:$0xf]
  %v4568 = vld [vmem:[%s20 + $0xb8] sm:$0xf]
  %v4569 = vld [vmem:[%s20 + $0xbc] sm:$0xf]
  %v4570 = vld [vmem:[%s20 + $0xc0] sm:$0xf]
  %v4571 = vld [vmem:[%s20 + $0xc4] sm:$0xf]
  %v4572 = vld [vmem:[%s20 + $0xc8] sm:$0xf]
  %v4573 = vld [vmem:[%s20 + $0xcc] sm:$0xf]
  %v4574 = vld [vmem:[%s20 + $0xd0] sm:$0xf]
  %v4575 = vld [vmem:[%s20 + $0xd4] sm:$0xf]
  %v4576 = vld [vmem:[%s20 + $0xd8] sm:$0xf]
  %v4577 = vld [vmem:[%s20 + $0xdc] sm:$0xf]
  %v4578 = vld [vmem:[%s20 + $0xe0] sm:$0xf]
  %v4579 = vld [vmem:[%s20 + $0xe4] sm:$0xf]
  %v4580 = vld [vmem:[%s20 + $0xe8] sm:$0xf]
  %v4581 = vld [vmem:[%s20 + $0xec] sm:$0xf]
  %v4582 = vld [vmem:[%s20 + $0xf0] sm:$0xf]
  %v4583 = vld [vmem:[%s20 + $0xf4] sm:$0xf]
  %v4584 = vld [vmem:[%s20 + $0xf8] sm:$0xf]
  %v4585 = vld [vmem:[%s20 + $0xfc] sm:$0xf]
  %v4586 = vld [vmem:[%s20 + $0x100] sm:$0xf]
  %v4587 = vld [vmem:[%s20 + $0x104] sm:$0xf]
  %v4588 = vld [vmem:[%s20 + $0x108] sm:$0xf]
  %v4589 = vld [vmem:[%s20 + $0x10c] sm:$0xf]
  %v4590 = vld [vmem:[%s20 + $0x110] sm:$0xf]
  %v4591 = vld [vmem:[%s20 + $0x114] sm:$0xf]
  %v4592 = vld [vmem:[%s20 + $0x118] sm:$0xf]
  %v4593 = vld [vmem:[%s20 + $0x11c] sm:$0xf]
  %v4594 = vld [vmem:[%s20 + $0x120] sm:$0xf]
  %v4595 = vld [vmem:[%s20 + $0x124] sm:$0xf]
  %v4596 = vld [vmem:[%s20 + $0x128] sm:$0xf]
  %v4597 = vld [vmem:[%s20 + $0x12c] sm:$0xf]
  %v4598 = vld [vmem:[%s20 + $0x130] sm:$0xf]
  %v4599 = vld [vmem:[%s20 + $0x134] sm:$0xf]
  %v4600 = vld [vmem:[%s20 + $0x138] sm:$0xf]
  %v4601 = vld [vmem:[%s20 + $0x13c] sm:$0xf]
  %v4602 = vld [vmem:[%s20 + $0x140] sm:$0xf]
  %v4603 = vld [vmem:[%s20 + $0x144] sm:$0xf]
  %v4604 = vld [vmem:[%s20 + $0x148] sm:$0xf]
  %v4605 = vld [vmem:[%s20 + $0x14c] sm:$0xf]
  %v4606 = vld [vmem:[%s20 + $0x150] sm:$0xf]
  %v4607 = vld [vmem:[%s20 + $0x154] sm:$0xf]
  %v4608 = vld [vmem:[%s20 + $0x158] sm:$0xf]
  %v4609 = vld [vmem:[%s20 + $0x15c] sm:$0xf]
  %v4610 = vld [vmem:[%s20 + $0x160] sm:$0xf]
  %v4611 = vld [vmem:[%s20 + $0x164] sm:$0xf]
  %v4612 = vld [vmem:[%s20 + $0x168] sm:$0xf]
  %v4613 = vld [vmem:[%s20 + $0x16c] sm:$0xf]
  %v4614 = vld [vmem:[%s20 + $0x170] sm:$0xf]
  %v4615 = vld [vmem:[%s20 + $0x174] sm:$0xf]
  %v4616 = vld [vmem:[%s20 + $0x178] sm:$0xf]
  %v4617 = vld [vmem:[%s20 + $0x17c] sm:$0xf]
  %v4618 = vld [vmem:[%s20 + $0x180] sm:$0xf]
  %v4619 = vld [vmem:[%s20 + $0x184] sm:$0xf]
  %v4620 = vld [vmem:[%s20 + $0x188] sm:$0xf]
  %v4621 = vld [vmem:[%s20 + $0x18c] sm:$0xf]
  %v4622 = vld [vmem:[%s20 + $0x190] sm:$0xf]
  %v4623 = vld [vmem:[%s20 + $0x194] sm:$0xf]
  %v4624 = vld [vmem:[%s20 + $0x198] sm:$0xf]
  %v4625 = vld [vmem:[%s20 + $0x19c] sm:$0xf]
  %v4626 = vld [vmem:[%s20 + $0x1a0] sm:$0xf]
  %v4627 = vld [vmem:[%s20 + $0x1a4] sm:$0xf]
  %v4628 = vld [vmem:[%s20 + $0x1a8] sm:$0xf]
  %v4629 = vld [vmem:[%s20 + $0x1ac] sm:$0xf]
  %v4630 = vld [vmem:[%s20 + $0x1b0] sm:$0xf]
  %v4631 = vld [vmem:[%s20 + $0x1b4] sm:$0xf]
  %v4632 = vld [vmem:[%s20 + $0x1b8] sm:$0xf]
  %v4633 = vld [vmem:[%s20 + $0x1bc] sm:$0xf]
  %v4634 = vld [vmem:[%s20 + $0x1c0] sm:$0xf]
  %v4635 = vld [vmem:[%s20 + $0x1c4] sm:$0xf]
  %v4636 = vld [vmem:[%s20 + $0x1c8] sm:$0xf]
  %v4637 = vld [vmem:[%s20 + $0x1cc] sm:$0xf]
  %v4638 = vld [vmem:[%s20 + $0x1d0] sm:$0xf]
  %v4639 = vld [vmem:[%s20 + $0x1d4] sm:$0xf]
  %v4640 = vld [vmem:[%s20 + $0x1d8] sm:$0xf]
  %v4641 = vld [vmem:[%s20 + $0x1dc] sm:$0xf]
  %v4642 = vld [vmem:[%s20 + $0x1e0] sm:$0xf]
  %v4643 = vld [vmem:[%s20 + $0x1e4] sm:$0xf]
  %v4644 = vld [vmem:[%s20 + $0x1e8] sm:$0xf]
  %v4645 = vld [vmem:[%s20 + $0x1ec] sm:$0xf]
  %v4646 = vld [vmem:[%s20 + $0x1f0] sm:$0xf]
  %v4647 = vld [vmem:[%s20 + $0x1f4] sm:$0xf]
  %v4648 = vld [vmem:[%s20 + $0x1f8] sm:$0xf]
  %v4649 = vld [vmem:[%s20 + $0x1fc] sm:$0xf]
  %v4650 = vld [vmem:[%s20 + $0x200] sm:$0xf]
  %v4651 = vld [vmem:[%s20 + $0x204] sm:$0xf]
  %v4652 = vld [vmem:[%s20 + $0x208] sm:$0xf]
  %v4653 = vld [vmem:[%s20 + $0x20c] sm:$0xf]
  %v4654 = vld [vmem:[%s20 + $0x210] sm:$0xf]
  %v4655 = vld [vmem:[%s20 + $0x214] sm:$0xf]
  %v4656 = vld [vmem:[%s20 + $0x218] sm:$0xf]
  %v4657 = vld [vmem:[%s20 + $0x21c] sm:$0xf]
  %v4658 = vld [vmem:[%s20 + $0x220] sm:$0xf]
  %v4659 = vld [vmem:[%s20 + $0x224] sm:$0xf]
  %v4660 = vld [vmem:[%s20 + $0x228] sm:$0xf]
  %v4661 = vld [vmem:[%s20 + $0x22c] sm:$0xf]
  %v4662 = vld [vmem:[%s20 + $0x230] sm:$0xf]
  %v4663 = vld [vmem:[%s20 + $0x234] sm:$0xf]
  %v4664 = vld [vmem:[%s20 + $0x238] sm:$0xf]
  %v4665 = vld [vmem:[%s20 + $0x23c] sm:$0xf]
  %v4666 = vld [vmem:[%s20 + $0x240] sm:$0xf]
  %v4667 = vld [vmem:[%s20 + $0x244] sm:$0xf]
  %v4668 = vld [vmem:[%s20 + $0x248] sm:$0xf]
  %v4669 = vld [vmem:[%s20 + $0x24c] sm:$0xf]
  %v4670 = vld [vmem:[%s20 + $0x250] sm:$0xf]
  %v4671 = vld [vmem:[%s20 + $0x254] sm:$0xf]
  %v4672 = vld [vmem:[%s20 + $0x258] sm:$0xf]
  %v4673 = vld [vmem:[%s20 + $0x25c] sm:$0xf]
  %v4674 = vld [vmem:[%s20 + $0x260] sm:$0xf]
  %v4675 = vld [vmem:[%s20 + $0x264] sm:$0xf]
  %v4676 = vld [vmem:[%s20 + $0x268] sm:$0xf]
  %v4677 = vld [vmem:[%s20 + $0x26c] sm:$0xf]
  %v4678 = vld [vmem:[%s20 + $0x270] sm:$0xf]
  %v4679 = vld [vmem:[%s20 + $0x274] sm:$0xf]
  %v4680 = vld [vmem:[%s20 + $0x278] sm:$0xf]
  %v4681 = vld [vmem:[%s20 + $0x27c] sm:$0xf]
  %v4682 = vld [vmem:[%s20 + $0x280] sm:$0xf]
  %v4683 = vld [vmem:[%s20 + $0x284] sm:$0xf]
  %v4684 = vld [vmem:[%s20 + $0x288] sm:$0xf]
  %v4685 = vld [vmem:[%s20 + $0x28c] sm:$0xf]
  %v4686 = vld [vmem:[%s20 + $0x290] sm:$0xf]
  %v4687 = vld [vmem:[%s20 + $0x294] sm:$0xf]
  %v4688 = vld [vmem:[%s20 + $0x298] sm:$0xf]
  %v4689 = vld [vmem:[%s20 + $0x29c] sm:$0xf]
  %v4690 = vld [vmem:[%s20 + $0x2a0] sm:$0xf]
  %v4691 = vld [vmem:[%s20 + $0x2a4] sm:$0xf]
  %v4692 = vld [vmem:[%s20 + $0x2a8] sm:$0xf]
  %v4693 = vld [vmem:[%s20 + $0x2ac] sm:$0xf]
  %v4694 = vld [vmem:[%s20 + $0x2b0] sm:$0xf]
  %v4695 = vld [vmem:[%s20 + $0x2b4] sm:$0xf]
  %v4696 = vld [vmem:[%s20 + $0x2b8] sm:$0xf]
  %v4697 = vld [vmem:[%s20 + $0x2bc] sm:$0xf]
  %v4698 = vld [vmem:[%s20 + $0x2c0] sm:$0xf]
  %v4699 = vld [vmem:[%s20 + $0x2c4] sm:$0xf]
  %v4700 = vld [vmem:[%s20 + $0x2c8] sm:$0xf]
  %v4701 = vld [vmem:[%s20 + $0x2cc] sm:$0xf]
  %v4702 = vld [vmem:[%s20 + $0x2d0] sm:$0xf]
  %v4703 = vld [vmem:[%s20 + $0x2d4] sm:$0xf]
  %v4704 = vld [vmem:[%s20 + $0x2d8] sm:$0xf]
  %v4705 = vld [vmem:[%s20 + $0x2dc] sm:$0xf]
  %v4706 = vld [vmem:[%s20 + $0x2e0] sm:$0xf]
  %v4707 = vld [vmem:[%s20 + $0x2e4] sm:$0xf]
  %v4708 = vld [vmem:[%s20 + $0x2e8] sm:$0xf]
  %v4709 = vld [vmem:[%s20 + $0x2ec] sm:$0xf]
  %v4710 = vld [vmem:[%s20 + $0x2f0] sm:$0xf]
  %v4711 = vld [vmem:[%s20 + $0x2f4] sm:$0xf]
  %v4712 = vld [vmem:[%s20 + $0x2f8] sm:$0xf]
  %v4713 = vld [vmem:[%s20 + $0x2fc] sm:$0xf]
  %v4714 = vld [vmem:[%s20 + $0x300] sm:$0xf]
  %v4715 = vld [vmem:[%s20 + $0x304] sm:$0xf]
  %v4716 = vld [vmem:[%s20 + $0x308] sm:$0xf]
  %v4717 = vld [vmem:[%s20 + $0x30c] sm:$0xf]
  %v4718 = vld [vmem:[%s20 + $0x310] sm:$0xf]
  %v4719 = vld [vmem:[%s20 + $0x314] sm:$0xf]
  %v4720 = vld [vmem:[%s20 + $0x318] sm:$0xf]
  %v4721 = vld [vmem:[%s20 + $0x31c] sm:$0xf]
  %v4722 = vld [vmem:[%s20 + $0x320] sm:$0xf]
  %v4723 = vld [vmem:[%s20 + $0x324] sm:$0xf]
  %v4724 = vld [vmem:[%s20 + $0x328] sm:$0xf]
  %v4725 = vld [vmem:[%s20 + $0x32c] sm:$0xf]
  %v4726 = vld [vmem:[%s20 + $0x330] sm:$0xf]
  %v4727 = vld [vmem:[%s20 + $0x334] sm:$0xf]
  %v4728 = vld [vmem:[%s20 + $0x338] sm:$0xf]
  %v4729 = vld [vmem:[%s20 + $0x33c] sm:$0xf]
  %v4730 = vld [vmem:[%s20 + $0x340] sm:$0xf]
  %v4731 = vld [vmem:[%s20 + $0x344] sm:$0xf]
  %v4732 = vld [vmem:[%s20 + $0x348] sm:$0xf]
  %v4733 = vld [vmem:[%s20 + $0x34c] sm:$0xf]
  %v4734 = vld [vmem:[%s20 + $0x350] sm:$0xf]
  %v4735 = vld [vmem:[%s20 + $0x354] sm:$0xf]
  %v4736 = vld [vmem:[%s20 + $0x358] sm:$0xf]
  %v4737 = vld [vmem:[%s20 + $0x35c] sm:$0xf]
  %v4738 = vld [vmem:[%s20 + $0x360] sm:$0xf]
  %v4739 = vld [vmem:[%s20 + $0x364] sm:$0xf]
  %v4740 = vld [vmem:[%s20 + $0x368] sm:$0xf]
  %v4741 = vld [vmem:[%s20 + $0x36c] sm:$0xf]
  %v4742 = vld [vmem:[%s20 + $0x370] sm:$0xf]
  %v4743 = vld [vmem:[%s20 + $0x374] sm:$0xf]
  %v4744 = vld [vmem:[%s20 + $0x378] sm:$0xf]
  %v4745 = vld [vmem:[%s20 + $0x37c] sm:$0xf]
  %v4746 = vld [vmem:[%s20 + $0x380] sm:$0xf]
  %v4747 = vld [vmem:[%s20 + $0x384] sm:$0xf]
  %v4748 = vld [vmem:[%s20 + $0x388] sm:$0xf]
  %v4749 = vld [vmem:[%s20 + $0x38c] sm:$0xf]
  %v4750 = vld [vmem:[%s20 + $0x390] sm:$0xf]
  %v4751 = vld [vmem:[%s20 + $0x394] sm:$0xf]
  %v4752 = vld [vmem:[%s20 + $0x398] sm:$0xf]
  %v4753 = vld [vmem:[%s20 + $0x39c] sm:$0xf]
  %v4754 = vld [vmem:[%s20 + $0x3a0] sm:$0xf]
  %v4755 = vld [vmem:[%s20 + $0x3a4] sm:$0xf]
  %v4756 = vld [vmem:[%s20 + $0x3a8] sm:$0xf]
  %v4757 = vld [vmem:[%s20 + $0x3ac] sm:$0xf]
  %v4758 = vld [vmem:[%s20 + $0x3b0] sm:$0xf]
  %v4759 = vld [vmem:[%s20 + $0x3b4] sm:$0xf]
  %v4760 = vld [vmem:[%s20 + $0x3b8] sm:$0xf]
  %v4761 = vld [vmem:[%s20 + $0x3bc] sm:$0xf]
  %v4762 = vld [vmem:[%s20 + $0x3c0] sm:$0xf]
  %v4763 = vld [vmem:[%s20 + $0x3c4] sm:$0xf]
  %v4764 = vld [vmem:[%s20 + $0x3c8] sm:$0xf]
  %v4765 = vld [vmem:[%s20 + $0x3cc] sm:$0xf]
  %v4766 = vld [vmem:[%s20 + $0x3d0] sm:$0xf]
  %v4767 = vld [vmem:[%s20 + $0x3d4] sm:$0xf]
  %v4768 = vld [vmem:[%s20 + $0x3d8] sm:$0xf]
  %v4769 = vld [vmem:[%s20 + $0x3dc] sm:$0xf]
  %v4770 = vld [vmem:[%s20 + $0x3e0] sm:$0xf]
  %v4771 = vld [vmem:[%s20 + $0x3e4] sm:$0xf]
  %v4772 = vld [vmem:[%s20 + $0x3e8] sm:$0xf]
  %v4773 = vld [vmem:[%s20 + $0x3ec] sm:$0xf]
  %v4774 = vld [vmem:[%s20 + $0x3f0] sm:$0xf]
  %v4775 = vld [vmem:[%s20 + $0x3f4] sm:$0xf]
  %v4776 = vld [vmem:[%s20 + $0x3f8] sm:$0xf]
  %v4777 = vld [vmem:[%s20 + $0x3fc] sm:$0xf]
  %v4778 = vpack.c.bf16 %v4479, %v4478
  %v4779 = vpack.c.bf16 %v4481, %v4480
  %v4780 = vld [vmem:[%s15] sm:$0x1]
  %v4782 = vlaneseq
  %v4783 = vshrl.u32 %v4782, 7
  %v4784 = vsub.s32 0, %v4783
  %v4785 = vrot.slane %v4780, %v4784
  %v4791 = vunpack.c.l.b16 %v4482
  %v4792 = vunpack.c.l.b16 %v4483
  %v4793 = vunpack.c.l.b16 %v4484
  %v4794 = vunpack.c.l.b16 %v4485
  %v4795 = vpack.c.b16 %v4792, %v4791
  %v4796 = vpack.c.b16 %v4794, %v4793
  %v4800 = vsel %vm414, %v4778, 0
  %v4803 = vsel %vm414, %v4779, 0
  %4805 = vmatprep.subr.bf16.mxu0 0
  %4806 = vmatpush1.bf16.msra.mxu0 %v4795
  %4807 = vmatprep.subr.bf16.mxu0 0
  %4808 = vmatpush1.bf16.msra.mxu0 %v4796
  %4809 = vmatprep.subr.bf16.mxu0 0
  %4810 = vmatpush1.bf16.msra.mxu0 0
  %4811 = vmatprep.subr.bf16.mxu0 0
  %4812 = vmatpush1.bf16.msra.mxu0 0
  %4813 = vmatprep.subr.bf16.mxu0 0
  %4814 = vmatpush1.bf16.msra.mxu0 0
  %4815 = vmatprep.subr.bf16.mxu0 0
  %4816 = vmatpush1.bf16.msra.mxu0 0
  %4817 = vmatprep.subr.bf16.mxu0 0
  %4818 = vmatpush1.bf16.msra.mxu0 0
  %4819 = vmatprep.subr.bf16.mxu0 0
  %4820 = vmatpush1.bf16.msra.mxu0 0
  %4821 = vmatprep.subr.bf16.mxu0 0
  %4822 = vmatpush1.bf16.msra.mxu0 0
  %4823 = vmatprep.subr.bf16.mxu0 0
  %4824 = vmatpush1.bf16.msra.mxu0 0
  %4825 = vmatprep.subr.bf16.mxu0 0
  %4826 = vmatpush1.bf16.msra.mxu0 0
  %4827 = vmatprep.subr.bf16.mxu0 0
  %4828 = vmatpush1.bf16.msra.mxu0 0
  %4829 = vmatprep.subr.bf16.mxu0 0
  %4830 = vmatpush1.bf16.msra.mxu0 0
  %4831 = vmatprep.subr.bf16.mxu0 0
  %4832 = vmatpush1.bf16.msra.mxu0 0
  %4833 = vmatprep.subr.bf16.mxu0 0
  %4834 = vmatpush1.bf16.msra.mxu0 0
  %4835 = vmatprep.subr.bf16.mxu0 0
  %4836 = vmatpush1.bf16.msra.mxu0 0
  %4837 = vmatprep.mubr.bf16.mxu0 0
  %4838 = vmatmul.mubr.bf16.gmra.mrb[0].mxu0 %v4800
  %v4839 = vpop.f32.mrb[0].mxu0
  %v4840 = vadd.f32 %v4785, %v4839
  %v4841 = vpop.f32.mrb[0].mxu0
  %v4842 = vpop.f32.mrb[0].mxu0
  %v4843 = vadd.f32 %v4785, %v4842
  %v4844 = vpop.f32.mrb[0].mxu0
  %4845 = vmatprep.mubr.bf16.mxu0 0
  %4846 = vmatmul.mubr.bf16.gmra.mrb[0].mxu0 %v4803
  %v4847 = vpop.f32.mrb[0].mxu0
  %v4848 = vadd.f32 %v4785, %v4847
  %v4849 = vpop.f32.mrb[0].mxu0
  %v4850 = vpop.f32.mrb[0].mxu0
  %v4851 = vadd.f32 %v4785, %v4850
  %v4852 = vpop.f32.mrb[0].mxu0
  %4853 = vdwg.mxu0
  %v4854 = vpack.c.bf16 %v4840, %v4840
  %v4855 = vpack.c.bf16 %v4843, %v4843
  %v4856 = vpack.c.bf16 %v4848, %v4848
  %v4857 = vpack.c.bf16 %v4851, %v4851
  %4859 = vrot.lane.b32.xlu0 %v4854, 96
  %v4860 = vpop.permute.xlu0 %4859
  %v4862 = vsel %vm477, %v4854, 0
  %v4865 = vsel %vm477, %v4860, 0
  %4867 = vmatprep.subr.bf16.mxu0 0
  %4868 = vmatpush1.bf16.xpose.msra.mxu0 %v4865
  %4869 = vmatprep.subr.bf16.mxu0 0
  %4870 = vmatpush1.bf16.xpose.msra.mxu0 0
  %4871 = vmatprep.subr.bf16.mxu0 0
  %4872 = vmatpush1.bf16.xpose.msra.mxu0 0
  %4873 = vmatprep.subr.bf16.mxu0 0
  %4874 = vmatpush1.bf16.xpose.msra.mxu0 0
  %4875 = vmatprep.subr.bf16.mxu0 0
  %4876 = vmatpush1.bf16.xpose.msra.mxu0 0
  %4877 = vmatprep.subr.bf16.mxu0 0
  %4878 = vmatpush1.bf16.xpose.msra.mxu0 0
  %4879 = vmatprep.subr.bf16.mxu0 0
  %4880 = vmatpush1.bf16.xpose.msra.mxu0 0
  %4881 = vmatprep.subr.bf16.mxu0 0
  %4882 = vmatpush1.bf16.xpose.msra.mxu0 0
  %4883 = vmatprep.subr.bf16.mxu0 0
  %4884 = vmatpush1.bf16.xpose.msra.mxu0 0
  %4885 = vmatprep.subr.bf16.mxu0 0
  %4886 = vmatpush1.bf16.xpose.msra.mxu0 0
  %4887 = vmatprep.subr.bf16.mxu0 0
  %4888 = vmatpush1.bf16.xpose.msra.mxu0 0
  %4889 = vmatprep.subr.bf16.mxu0 0
  %4890 = vmatpush1.bf16.xpose.msra.mxu0 0
  %4891 = vmatprep.subr.bf16.mxu0 0
  %4892 = vmatpush1.bf16.xpose.msra.mxu0 0
  %4893 = vmatprep.subr.bf16.mxu0 0
  %4894 = vmatpush1.bf16.xpose.msra.mxu0 0
  %4895 = vmatprep.subr.bf16.mxu0 0
  %4896 = vmatpush1.bf16.xpose.msra.mxu0 0
  %4897 = vmatprep.subr.bf16.mxu0 0
  %4898 = vmatpush1.bf16.xpose.msra.mxu0 0
  %4899 = vmatprep.mubr.bf16.mxu0 0
  %4900 = vmatmul.mubr.bf16.gmra.mrb[0].mxu0 %v4862
  %v4901 = vpop.f32.mrb[0].mxu0
  %v4902 = vadd.f32 0.0, %v4901
  %v4903 = vpop.f32.mrb[0].mxu0
  %v4904 = vpop.f32.mrb[0].mxu0
  %v4905 = vpop.f32.mrb[0].mxu0
  %4906 = vdwg.mxu0
  %4908 = vrot.lane.b32.xlu0 %v4855, 96
  %v4909 = vpop.permute.xlu0 %4908
  %v4911 = vsel %vm477, %v4855, 0
  %v4914 = vsel %vm477, %v4909, 0
  %4916 = vmatprep.subr.bf16.mxu0 0
  %4917 = vmatpush1.bf16.xpose.msra.mxu0 %v4914
  %4918 = vmatprep.subr.bf16.mxu0 0
  %4919 = vmatpush1.bf16.xpose.msra.mxu0 0
  %4920 = vmatprep.subr.bf16.mxu0 0
  %4921 = vmatpush1.bf16.xpose.msra.mxu0 0
  %4922 = vmatprep.subr.bf16.mxu0 0
  %4923 = vmatpush1.bf16.xpose.msra.mxu0 0
  %4924 = vmatprep.subr.bf16.mxu0 0
  %4925 = vmatpush1.bf16.xpose.msra.mxu0 0
  %4926 = vmatprep.subr.bf16.mxu0 0
  %4927 = vmatpush1.bf16.xpose.msra.mxu0 0
  %4928 = vmatprep.subr.bf16.mxu0 0
  %4929 = vmatpush1.bf16.xpose.msra.mxu0 0
  %4930 = vmatprep.subr.bf16.mxu0 0
  %4931 = vmatpush1.bf16.xpose.msra.mxu0 0
  %4932 = vmatprep.subr.bf16.mxu0 0
  %4933 = vmatpush1.bf16.xpose.msra.mxu0 0
  %4934 = vmatprep.subr.bf16.mxu0 0
  %4935 = vmatpush1.bf16.xpose.msra.mxu0 0
  %4936 = vmatprep.subr.bf16.mxu0 0
  %4937 = vmatpush1.bf16.xpose.msra.mxu0 0
  %4938 = vmatprep.subr.bf16.mxu0 0
  %4939 = vmatpush1.bf16.xpose.msra.mxu0 0
  %4940 = vmatprep.subr.bf16.mxu0 0
  %4941 = vmatpush1.bf16.xpose.msra.mxu0 0
  %4942 = vmatprep.subr.bf16.mxu0 0
  %4943 = vmatpush1.bf16.xpose.msra.mxu0 0
  %4944 = vmatprep.subr.bf16.mxu0 0
  %4945 = vmatpush1.bf16.xpose.msra.mxu0 0
  %4946 = vmatprep.subr.bf16.mxu0 0
  %4947 = vmatpush1.bf16.xpose.msra.mxu0 0
  %4948 = vmatprep.mubr.bf16.mxu0 0
  %4949 = vmatmul.mubr.bf16.gmra.mrb[0].mxu0 %v4911
  %v4950 = vpop.f32.mrb[0].mxu0
  %v4951 = vadd.f32 0.0, %v4950
  %v4952 = vpop.f32.mrb[0].mxu0
  %v4953 = vpop.f32.mrb[0].mxu0
  %v4954 = vpop.f32.mrb[0].mxu0
  %4955 = vdwg.mxu0
  %4957 = vrot.lane.b32.xlu0 %v4856, 96
  %v4958 = vpop.permute.xlu0 %4957
  %v4960 = vsel %vm477, %v4856, 0
  %v4963 = vsel %vm477, %v4958, 0
  %4965 = vmatprep.subr.bf16.mxu0 0
  %4966 = vmatpush1.bf16.xpose.msra.mxu0 %v4963
  %4967 = vmatprep.subr.bf16.mxu0 0
  %4968 = vmatpush1.bf16.xpose.msra.mxu0 0
  %4969 = vmatprep.subr.bf16.mxu0 0
  %4970 = vmatpush1.bf16.xpose.msra.mxu0 0
  %4971 = vmatprep.subr.bf16.mxu0 0
  %4972 = vmatpush1.bf16.xpose.msra.mxu0 0
  %4973 = vmatprep.subr.bf16.mxu0 0
  %4974 = vmatpush1.bf16.xpose.msra.mxu0 0
  %4975 = vmatprep.subr.bf16.mxu0 0
  %4976 = vmatpush1.bf16.xpose.msra.mxu0 0
  %4977 = vmatprep.subr.bf16.mxu0 0
  %4978 = vmatpush1.bf16.xpose.msra.mxu0 0
  %4979 = vmatprep.subr.bf16.mxu0 0
  %4980 = vmatpush1.bf16.xpose.msra.mxu0 0
  %4981 = vmatprep.subr.bf16.mxu0 0
  %4982 = vmatpush1.bf16.xpose.msra.mxu0 0
  %4983 = vmatprep.subr.bf16.mxu0 0
  %4984 = vmatpush1.bf16.xpose.msra.mxu0 0
  %4985 = vmatprep.subr.bf16.mxu0 0
  %4986 = vmatpush1.bf16.xpose.msra.mxu0 0
  %4987 = vmatprep.subr.bf16.mxu0 0
  %4988 = vmatpush1.bf16.xpose.msra.mxu0 0
  %4989 = vmatprep.subr.bf16.mxu0 0
  %4990 = vmatpush1.bf16.xpose.msra.mxu0 0
  %4991 = vmatprep.subr.bf16.mxu0 0
  %4992 = vmatpush1.bf16.xpose.msra.mxu0 0
  %4993 = vmatprep.subr.bf16.mxu0 0
  %4994 = vmatpush1.bf16.xpose.msra.mxu0 0
  %4995 = vmatprep.subr.bf16.mxu0 0
  %4996 = vmatpush1.bf16.xpose.msra.mxu0 0
  %4997 = vmatprep.mubr.bf16.mxu0 0
  %4998 = vmatmul.mubr.bf16.gmra.mrb[0].mxu0 %v4960
  %v4999 = vpop.f32.mrb[0].mxu0
  %v5000 = vadd.f32 0.0, %v4999
  %v5001 = vpop.f32.mrb[0].mxu0
  %v5002 = vpop.f32.mrb[0].mxu0
  %v5003 = vpop.f32.mrb[0].mxu0
  %5004 = vdwg.mxu0
  %5006 = vrot.lane.b32.xlu0 %v4857, 96
  %v5007 = vpop.permute.xlu0 %5006
  %v5009 = vsel %vm477, %v4857, 0
  %v5012 = vsel %vm477, %v5007, 0
  %5014 = vmatprep.subr.bf16.mxu0 0
  %5015 = vmatpush1.bf16.xpose.msra.mxu0 %v5012
  %5016 = vmatprep.subr.bf16.mxu0 0
  %5017 = vmatpush1.bf16.xpose.msra.mxu0 0
  %5018 = vmatprep.subr.bf16.mxu0 0
  %5019 = vmatpush1.bf16.xpose.msra.mxu0 0
  %5020 = vmatprep.subr.bf16.mxu0 0
  %5021 = vmatpush1.bf16.xpose.msra.mxu0 0
  %5022 = vmatprep.subr.bf16.mxu0 0
  %5023 = vmatpush1.bf16.xpose.msra.mxu0 0
  %5024 = vmatprep.subr.bf16.mxu0 0
  %5025 = vmatpush1.bf16.xpose.msra.mxu0 0
  %5026 = vmatprep.subr.bf16.mxu0 0
  %5027 = vmatpush1.bf16.xpose.msra.mxu0 0
  %5028 = vmatprep.subr.bf16.mxu0 0
  %5029 = vmatpush1.bf16.xpose.msra.mxu0 0
  %5030 = vmatprep.subr.bf16.mxu0 0
  %5031 = vmatpush1.bf16.xpose.msra.mxu0 0
  %5032 = vmatprep.subr.bf16.mxu0 0
  %5033 = vmatpush1.bf16.xpose.msra.mxu0 0
  %5034 = vmatprep.subr.bf16.mxu0 0
  %5035 = vmatpush1.bf16.xpose.msra.mxu0 0
  %5036 = vmatprep.subr.bf16.mxu0 0
  %5037 = vmatpush1.bf16.xpose.msra.mxu0 0
  %5038 = vmatprep.subr.bf16.mxu0 0
  %5039 = vmatpush1.bf16.xpose.msra.mxu0 0
  %5040 = vmatprep.subr.bf16.mxu0 0
  %5041 = vmatpush1.bf16.xpose.msra.mxu0 0
  %5042 = vmatprep.subr.bf16.mxu0 0
  %5043 = vmatpush1.bf16.xpose.msra.mxu0 0
  %5044 = vmatprep.subr.bf16.mxu0 0
  %5045 = vmatpush1.bf16.xpose.msra.mxu0 0
  %5046 = vmatprep.mubr.bf16.mxu0 0
  %5047 = vmatmul.mubr.bf16.gmra.mrb[0].mxu0 %v5009
  %v5048 = vpop.f32.mrb[0].mxu0
  %v5049 = vadd.f32 0.0, %v5048
  %v5050 = vpop.f32.mrb[0].mxu0
  %v5051 = vpop.f32.mrb[0].mxu0
  %v5052 = vpop.f32.mrb[0].mxu0
  %5053 = vdwg.mxu0
  %v5054 = vmul.f32 %v4902, 0.35355338
  %v5055 = vmul.f32 %v4951, 0.35355338
  %v5056 = vmul.f32 %v5000, 0.35355338
  %v5057 = vmul.f32 %v5049, 0.35355338
  %v5058 = vsel %vm477, %v5054, -inf
  %5059 = vmax.xlane.f32.xlu0 %v5058
  %v5060 = vpop.xlane.xlu0 %5059
  %v5061 = vsel %vm477, %v5055, -inf
  %5062 = vmax.xlane.f32.xlu0 %v5061
  %v5063 = vpop.xlane.xlu0 %5062
  %v5064 = vsel %vm477, %v5056, -inf
  %5065 = vmax.xlane.f32.xlu0 %v5064
  %v5066 = vpop.xlane.xlu0 %5065
  %v5067 = vsel %vm477, %v5057, -inf
  %5068 = vmax.xlane.f32.xlu0 %v5067
  %v5069 = vpop.xlane.xlu0 %5068
  %v5070 = vsub.f32 %v5054, %v5060
  %v5071 = vsub.f32 %v5055, %v5063
  %v5072 = vsub.f32 %v5056, %v5066
  %v5073 = vsub.f32 %v5057, %v5069
  %v5074 = vmul.f32 %v5070, 1.442695
  %v5075 = vpow.pop %v5074
  %v5076 = vmul.f32 %v5071, 1.442695
  %v5077 = vpow.pop %v5076
  %v5078 = vmul.f32 %v5072, 1.442695
  %v5079 = vpow.pop %v5078
  %v5080 = vmul.f32 %v5073, 1.442695
  %v5081 = vpow.pop %v5080
  %v5082 = vsel %vm477, %v5075, 0.0
  %5083 = vadd.xlane.f32.xlu0 %v5082
  %v5084 = vpop.xlane.xlu0 %5083
  %v5085 = vsel %vm477, %v5077, 0.0
  %5086 = vadd.xlane.f32.xlu0 %v5085
  %v5087 = vpop.xlane.xlu0 %5086
  %v5088 = vsel %vm477, %v5079, 0.0
  %5089 = vadd.xlane.f32.xlu0 %v5088
  %v5090 = vpop.xlane.xlu0 %5089
  %v5091 = vsel %vm477, %v5081, 0.0
  %5092 = vadd.xlane.f32.xlu0 %v5091
  %v5093 = vpop.xlane.xlu0 %5092
  %v5094 = vrcp.pop %v5084
  %v5095 = vrcp.pop %v5087
  %v5096 = vrcp.pop %v5090
  %v5097 = vrcp.pop %v5093
  %v5098 = vmul.f32 %v5075, %v5094
  %v5099 = vmul.f32 %v5077, %v5095
  %v5100 = vmul.f32 %v5079, %v5096
  %v5101 = vmul.f32 %v5081, %v5097
  %v5102 = vpack.c.bf16 %v5098, %v5098
  %v5103 = vpack.c.bf16 %v5099, %v5099
  %v5104 = vpack.c.bf16 %v5100, %v5100
  %v5105 = vpack.c.bf16 %v5101, %v5101
  %5106 = vrot.lane.b32.xlu0 %v4854, 64
  %v5107 = vpop.permute.xlu0 %5106
  %v5109 = vsel %vm477, %v5102, 0
  %v5112 = vsel %vm728, %v5107, 0
  %5114 = vmatprep.subr.bf16.mxu0 0
  %5115 = vmatpush1.bf16.msra.mxu0 %v5112
  %5116 = vmatprep.subr.bf16.mxu0 0
  %5117 = vmatpush1.bf16.msra.mxu0 0
  %5118 = vmatprep.subr.bf16.mxu0 0
  %5119 = vmatpush1.bf16.msra.mxu0 0
  %5120 = vmatprep.subr.bf16.mxu0 0
  %5121 = vmatpush1.bf16.msra.mxu0 0
  %5122 = vmatprep.subr.bf16.mxu0 0
  %5123 = vmatpush1.bf16.msra.mxu0 0
  %5124 = vmatprep.subr.bf16.mxu0 0
  %5125 = vmatpush1.bf16.msra.mxu0 0
  %5126 = vmatprep.subr.bf16.mxu0 0
  %5127 = vmatpush1.bf16.msra.mxu0 0
  %5128 = vmatprep.subr.bf16.mxu0 0
  %5129 = vmatpush1.bf16.msra.mxu0 0
  %5130 = vmatprep.subr.bf16.mxu0 0
  %5131 = vmatpush1.bf16.msra.mxu0 0
  %5132 = vmatprep.subr.bf16.mxu0 0
  %5133 = vmatpush1.bf16.msra.mxu0 0
  %5134 = vmatprep.subr.bf16.mxu0 0
  %5135 = vmatpush1.bf16.msra.mxu0 0
  %5136 = vmatprep.subr.bf16.mxu0 0
  %5137 = vmatpush1.bf16.msra.mxu0 0
  %5138 = vmatprep.subr.bf16.mxu0 0
  %5139 = vmatpush1.bf16.msra.mxu0 0
  %5140 = vmatprep.subr.bf16.mxu0 0
  %5141 = vmatpush1.bf16.msra.mxu0 0
  %5142 = vmatprep.subr.bf16.mxu0 0
  %5143 = vmatpush1.bf16.msra.mxu0 0
  %5144 = vmatprep.subr.bf16.mxu0 0
  %5145 = vmatpush1.bf16.msra.mxu0 0
  %5146 = vmatprep.mubr.bf16.mxu0 0
  %5147 = vmatmul.mubr.bf16.gmra.mrb[0].mxu0 %v5109
  %v5148 = vpop.f32.mrb[0].mxu0
  %v5149 = vadd.f32 0.0, %v5148
  %v5150 = vpop.f32.mrb[0].mxu0
  %v5151 = vpop.f32.mrb[0].mxu0
  %v5152 = vpop.f32.mrb[0].mxu0
  %5153 = vdwg.mxu0
  %5154 = vrot.lane.b32.xlu0 %v4855, 64
  %v5155 = vpop.permute.xlu0 %5154
  %v5157 = vsel %vm477, %v5103, 0
  %v5160 = vsel %vm728, %v5155, 0
  %5162 = vmatprep.subr.bf16.mxu0 0
  %5163 = vmatpush1.bf16.msra.mxu0 %v5160
  %5164 = vmatprep.subr.bf16.mxu0 0
  %5165 = vmatpush1.bf16.msra.mxu0 0
  %5166 = vmatprep.subr.bf16.mxu0 0
  %5167 = vmatpush1.bf16.msra.mxu0 0
  %5168 = vmatprep.subr.bf16.mxu0 0
  %5169 = vmatpush1.bf16.msra.mxu0 0
  %5170 = vmatprep.subr.bf16.mxu0 0
  %5171 = vmatpush1.bf16.msra.mxu0 0
  %5172 = vmatprep.subr.bf16.mxu0 0
  %5173 = vmatpush1.bf16.msra.mxu0 0
  %5174 = vmatprep.subr.bf16.mxu0 0
  %5175 = vmatpush1.bf16.msra.mxu0 0
  %5176 = vmatprep.subr.bf16.mxu0 0
  %5177 = vmatpush1.bf16.msra.mxu0 0
  %5178 = vmatprep.subr.bf16.mxu0 0
  %5179 = vmatpush1.bf16.msra.mxu0 0
  %5180 = vmatprep.subr.bf16.mxu0 0
  %5181 = vmatpush1.bf16.msra.mxu0 0
  %5182 = vmatprep.subr.bf16.mxu0 0
  %5183 = vmatpush1.bf16.msra.mxu0 0
  %5184 = vmatprep.subr.bf16.mxu0 0
  %5185 = vmatpush1.bf16.msra.mxu0 0
  %5186 = vmatprep.subr.bf16.mxu0 0
  %5187 = vmatpush1.bf16.msra.mxu0 0
  %5188 = vmatprep.subr.bf16.mxu0 0
  %5189 = vmatpush1.bf16.msra.mxu0 0
  %5190 = vmatprep.subr.bf16.mxu0 0
  %5191 = vmatpush1.bf16.msra.mxu0 0
  %5192 = vmatprep.subr.bf16.mxu0 0
  %5193 = vmatpush1.bf16.msra.mxu0 0
  %5194 = vmatprep.mubr.bf16.mxu0 0
  %5195 = vmatmul.mubr.bf16.gmra.mrb[0].mxu0 %v5157
  %v5196 = vpop.f32.mrb[0].mxu0
  %v5197 = vadd.f32 0.0, %v5196
  %v5198 = vpop.f32.mrb[0].mxu0
  %v5199 = vpop.f32.mrb[0].mxu0
  %v5200 = vpop.f32.mrb[0].mxu0
  %5201 = vdwg.mxu0
  %5202 = vrot.lane.b32.xlu0 %v4856, 64
  %v5203 = vpop.permute.xlu0 %5202
  %v5205 = vsel %vm477, %v5104, 0
  %v5208 = vsel %vm728, %v5203, 0
  %5210 = vmatprep.subr.bf16.mxu0 0
  %5211 = vmatpush1.bf16.msra.mxu0 %v5208
  %5212 = vmatprep.subr.bf16.mxu0 0
  %5213 = vmatpush1.bf16.msra.mxu0 0
  %5214 = vmatprep.subr.bf16.mxu0 0
  %5215 = vmatpush1.bf16.msra.mxu0 0
  %5216 = vmatprep.subr.bf16.mxu0 0
  %5217 = vmatpush1.bf16.msra.mxu0 0
  %5218 = vmatprep.subr.bf16.mxu0 0
  %5219 = vmatpush1.bf16.msra.mxu0 0
  %5220 = vmatprep.subr.bf16.mxu0 0
  %5221 = vmatpush1.bf16.msra.mxu0 0
  %5222 = vmatprep.subr.bf16.mxu0 0
  %5223 = vmatpush1.bf16.msra.mxu0 0
  %5224 = vmatprep.subr.bf16.mxu0 0
  %5225 = vmatpush1.bf16.msra.mxu0 0
  %5226 = vmatprep.subr.bf16.mxu0 0
  %5227 = vmatpush1.bf16.msra.mxu0 0
  %5228 = vmatprep.subr.bf16.mxu0 0
  %5229 = vmatpush1.bf16.msra.mxu0 0
  %5230 = vmatprep.subr.bf16.mxu0 0
  %5231 = vmatpush1.bf16.msra.mxu0 0
  %5232 = vmatprep.subr.bf16.mxu0 0
  %5233 = vmatpush1.bf16.msra.mxu0 0
  %5234 = vmatprep.subr.bf16.mxu0 0
  %5235 = vmatpush1.bf16.msra.mxu0 0
  %5236 = vmatprep.subr.bf16.mxu0 0
  %5237 = vmatpush1.bf16.msra.mxu0 0
  %5238 = vmatprep.subr.bf16.mxu0 0
  %5239 = vmatpush1.bf16.msra.mxu0 0
  %5240 = vmatprep.subr.bf16.mxu0 0
  %5241 = vmatpush1.bf16.msra.mxu0 0
  %5242 = vmatprep.mubr.bf16.mxu0 0
  %5243 = vmatmul.mubr.bf16.gmra.mrb[0].mxu0 %v5205
  %v5244 = vpop.f32.mrb[0].mxu0
  %v5245 = vadd.f32 0.0, %v5244
  %v5246 = vpop.f32.mrb[0].mxu0
  %v5247 = vpop.f32.mrb[0].mxu0
  %v5248 = vpop.f32.mrb[0].mxu0
  %5249 = vdwg.mxu0
  %5250 = vrot.lane.b32.xlu0 %v4857, 64
  %v5251 = vpop.permute.xlu0 %5250
  %v5253 = vsel %vm477, %v5105, 0
  %v5256 = vsel %vm728, %v5251, 0
  %5258 = vmatprep.subr.bf16.mxu0 0
  %5259 = vmatpush1.bf16.msra.mxu0 %v5256
  %5260 = vmatprep.subr.bf16.mxu0 0
  %5261 = vmatpush1.bf16.msra.mxu0 0
  %5262 = vmatprep.subr.bf16.mxu0 0
  %5263 = vmatpush1.bf16.msra.mxu0 0
  %5264 = vmatprep.subr.bf16.mxu0 0
  %5265 = vmatpush1.bf16.msra.mxu0 0
  %5266 = vmatprep.subr.bf16.mxu0 0
  %5267 = vmatpush1.bf16.msra.mxu0 0
  %5268 = vmatprep.subr.bf16.mxu0 0
  %5269 = vmatpush1.bf16.msra.mxu0 0
  %5270 = vmatprep.subr.bf16.mxu0 0
  %5271 = vmatpush1.bf16.msra.mxu0 0
  %5272 = vmatprep.subr.bf16.mxu0 0
  %5273 = vmatpush1.bf16.msra.mxu0 0
  %5274 = vmatprep.subr.bf16.mxu0 0
  %5275 = vmatpush1.bf16.msra.mxu0 0
  %5276 = vmatprep.subr.bf16.mxu0 0
  %5277 = vmatpush1.bf16.msra.mxu0 0
  %5278 = vmatprep.subr.bf16.mxu0 0
  %5279 = vmatpush1.bf16.msra.mxu0 0
  %5280 = vmatprep.subr.bf16.mxu0 0
  %5281 = vmatpush1.bf16.msra.mxu0 0
  %5282 = vmatprep.subr.bf16.mxu0 0
  %5283 = vmatpush1.bf16.msra.mxu0 0
  %5284 = vmatprep.subr.bf16.mxu0 0
  %5285 = vmatpush1.bf16.msra.mxu0 0
  %5286 = vmatprep.subr.bf16.mxu0 0
  %5287 = vmatpush1.bf16.msra.mxu0 0
  %5288 = vmatprep.subr.bf16.mxu0 0
  %5289 = vmatpush1.bf16.msra.mxu0 0
  %5290 = vmatprep.mubr.bf16.mxu0 0
  %5291 = vmatmul.mubr.bf16.gmra.mrb[0].mxu0 %v5253
  %v5292 = vpop.f32.mrb[0].mxu0
  %v5293 = vadd.f32 0.0, %v5292
  %v5294 = vpop.f32.mrb[0].mxu0
  %v5295 = vpop.f32.mrb[0].mxu0
  %v5296 = vpop.f32.mrb[0].mxu0
  %5297 = vdwg.mxu0
  %5298 = vrot.lane.b32.xlu0 %v4854, 120
  %v5299 = vpop.permute.xlu0 %5298
  %5300 = vrot.lane.b32.xlu0 %v4854, 88
  %v5301 = vpop.permute.xlu0 %5300
  %v5303 = vsel %vm477, %v5299, 0
  %v5306 = vsel %vm477, %v5301, 0
  %5308 = vmatprep.subr.bf16.mxu0 0
  %5309 = vmatpush1.bf16.xpose.msra.mxu0 %v5306
  %5310 = vmatprep.subr.bf16.mxu0 0
  %5311 = vmatpush1.bf16.xpose.msra.mxu0 0
  %5312 = vmatprep.subr.bf16.mxu0 0
  %5313 = vmatpush1.bf16.xpose.msra.mxu0 0
  %5314 = vmatprep.subr.bf16.mxu0 0
  %5315 = vmatpush1.bf16.xpose.msra.mxu0 0
  %5316 = vmatprep.subr.bf16.mxu0 0
  %5317 = vmatpush1.bf16.xpose.msra.mxu0 0
  %5318 = vmatprep.subr.bf16.mxu0 0
  %5319 = vmatpush1.bf16.xpose.msra.mxu0 0
  %5320 = vmatprep.subr.bf16.mxu0 0
  %5321 = vmatpush1.bf16.xpose.msra.mxu0 0
  %5322 = vmatprep.subr.bf16.mxu0 0
  %5323 = vmatpush1.bf16.xpose.msra.mxu0 0
  %5324 = vmatprep.subr.bf16.mxu0 0
  %5325 = vmatpush1.bf16.xpose.msra.mxu0 0
  %5326 = vmatprep.subr.bf16.mxu0 0
  %5327 = vmatpush1.bf16.xpose.msra.mxu0 0
  %5328 = vmatprep.subr.bf16.mxu0 0
  %5329 = vmatpush1.bf16.xpose.msra.mxu0 0
  %5330 = vmatprep.subr.bf16.mxu0 0
  %5331 = vmatpush1.bf16.xpose.msra.mxu0 0
  %5332 = vmatprep.subr.bf16.mxu0 0
  %5333 = vmatpush1.bf16.xpose.msra.mxu0 0
  %5334 = vmatprep.subr.bf16.mxu0 0
  %5335 = vmatpush1.bf16.xpose.msra.mxu0 0
  %5336 = vmatprep.subr.bf16.mxu0 0
  %5337 = vmatpush1.bf16.xpose.msra.mxu0 0
  %5338 = vmatprep.subr.bf16.mxu0 0
  %5339 = vmatpush1.bf16.xpose.msra.mxu0 0
  %5340 = vmatprep.mubr.bf16.mxu0 0
  %5341 = vmatmul.mubr.bf16.gmra.mrb[0].mxu0 %v5303
  %v5342 = vpop.f32.mrb[0].mxu0
  %v5343 = vadd.f32 0.0, %v5342
  %v5344 = vpop.f32.mrb[0].mxu0
  %v5345 = vpop.f32.mrb[0].mxu0
  %v5346 = vpop.f32.mrb[0].mxu0
  %5347 = vdwg.mxu0
  %5348 = vrot.lane.b32.xlu0 %v4855, 120
  %v5349 = vpop.permute.xlu0 %5348
  %5350 = vrot.lane.b32.xlu0 %v4855, 88
  %v5351 = vpop.permute.xlu0 %5350
  %v5353 = vsel %vm477, %v5349, 0
  %v5356 = vsel %vm477, %v5351, 0
  %5358 = vmatprep.subr.bf16.mxu0 0
  %5359 = vmatpush1.bf16.xpose.msra.mxu0 %v5356
  %5360 = vmatprep.subr.bf16.mxu0 0
  %5361 = vmatpush1.bf16.xpose.msra.mxu0 0
  %5362 = vmatprep.subr.bf16.mxu0 0
  %5363 = vmatpush1.bf16.xpose.msra.mxu0 0
  %5364 = vmatprep.subr.bf16.mxu0 0
  %5365 = vmatpush1.bf16.xpose.msra.mxu0 0
  %5366 = vmatprep.subr.bf16.mxu0 0
  %5367 = vmatpush1.bf16.xpose.msra.mxu0 0
  %5368 = vmatprep.subr.bf16.mxu0 0
  %5369 = vmatpush1.bf16.xpose.msra.mxu0 0
  %5370 = vmatprep.subr.bf16.mxu0 0
  %5371 = vmatpush1.bf16.xpose.msra.mxu0 0
  %5372 = vmatprep.subr.bf16.mxu0 0
  %5373 = vmatpush1.bf16.xpose.msra.mxu0 0
  %5374 = vmatprep.subr.bf16.mxu0 0
  %5375 = vmatpush1.bf16.xpose.msra.mxu0 0
  %5376 = vmatprep.subr.bf16.mxu0 0
  %5377 = vmatpush1.bf16.xpose.msra.mxu0 0
  %5378 = vmatprep.subr.bf16.mxu0 0
  %5379 = vmatpush1.bf16.xpose.msra.mxu0 0
  %5380 = vmatprep.subr.bf16.mxu0 0
  %5381 = vmatpush1.bf16.xpose.msra.mxu0 0
  %5382 = vmatprep.subr.bf16.mxu0 0
  %5383 = vmatpush1.bf16.xpose.msra.mxu0 0
  %5384 = vmatprep.subr.bf16.mxu0 0
  %5385 = vmatpush1.bf16.xpose.msra.mxu0 0
  %5386 = vmatprep.subr.bf16.mxu0 0
  %5387 = vmatpush1.bf16.xpose.msra.mxu0 0
  %5388 = vmatprep.subr.bf16.mxu0 0
  %5389 = vmatpush1.bf16.xpose.msra.mxu0 0
  %5390 = vmatprep.mubr.bf16.mxu0 0
  %5391 = vmatmul.mubr.bf16.gmra.mrb[0].mxu0 %v5353
  %v5392 = vpop.f32.mrb[0].mxu0
  %v5393 = vadd.f32 0.0, %v5392
  %v5394 = vpop.f32.mrb[0].mxu0
  %v5395 = vpop.f32.mrb[0].mxu0
  %v5396 = vpop.f32.mrb[0].mxu0
  %5397 = vdwg.mxu0
  %5398 = vrot.lane.b32.xlu0 %v4856, 120
  %v5399 = vpop.permute.xlu0 %5398
  %5400 = vrot.lane.b32.xlu0 %v4856, 88
  %v5401 = vpop.permute.xlu0 %5400
  %v5403 = vsel %vm477, %v5399, 0
  %v5406 = vsel %vm477, %v5401, 0
  %5408 = vmatprep.subr.bf16.mxu0 0
  %5409 = vmatpush1.bf16.xpose.msra.mxu0 %v5406
  %5410 = vmatprep.subr.bf16.mxu0 0
  %5411 = vmatpush1.bf16.xpose.msra.mxu0 0
  %5412 = vmatprep.subr.bf16.mxu0 0
  %5413 = vmatpush1.bf16.xpose.msra.mxu0 0
  %5414 = vmatprep.subr.bf16.mxu0 0
  %5415 = vmatpush1.bf16.xpose.msra.mxu0 0
  %5416 = vmatprep.subr.bf16.mxu0 0
  %5417 = vmatpush1.bf16.xpose.msra.mxu0 0
  %5418 = vmatprep.subr.bf16.mxu0 0
  %5419 = vmatpush1.bf16.xpose.msra.mxu0 0
  %5420 = vmatprep.subr.bf16.mxu0 0
  %5421 = vmatpush1.bf16.xpose.msra.mxu0 0
  %5422 = vmatprep.subr.bf16.mxu0 0
  %5423 = vmatpush1.bf16.xpose.msra.mxu0 0
  %5424 = vmatprep.subr.bf16.mxu0 0
  %5425 = vmatpush1.bf16.xpose.msra.mxu0 0
  %5426 = vmatprep.subr.bf16.mxu0 0
  %5427 = vmatpush1.bf16.xpose.msra.mxu0 0
  %5428 = vmatprep.subr.bf16.mxu0 0
  %5429 = vmatpush1.bf16.xpose.msra.mxu0 0
  %5430 = vmatprep.subr.bf16.mxu0 0
  %5431 = vmatpush1.bf16.xpose.msra.mxu0 0
  %5432 = vmatprep.subr.bf16.mxu0 0
  %5433 = vmatpush1.bf16.xpose.msra.mxu0 0
  %5434 = vmatprep.subr.bf16.mxu0 0
  %5435 = vmatpush1.bf16.xpose.msra.mxu0 0
  %5436 = vmatprep.subr.bf16.mxu0 0
  %5437 = vmatpush1.bf16.xpose.msra.mxu0 0
  %5438 = vmatprep.subr.bf16.mxu0 0
  %5439 = vmatpush1.bf16.xpose.msra.mxu0 0
  %5440 = vmatprep.mubr.bf16.mxu0 0
  %5441 = vmatmul.mubr.bf16.gmra.mrb[0].mxu0 %v5403
  %v5442 = vpop.f32.mrb[0].mxu0
  %v5443 = vadd.f32 0.0, %v5442
  %v5444 = vpop.f32.mrb[0].mxu0
  %v5445 = vpop.f32.mrb[0].mxu0
  %v5446 = vpop.f32.mrb[0].mxu0
  %5447 = vdwg.mxu0
  %5448 = vrot.lane.b32.xlu0 %v4857, 120
  %v5449 = vpop.permute.xlu0 %5448
  %5450 = vrot.lane.b32.xlu0 %v4857, 88
  %v5451 = vpop.permute.xlu0 %5450
  %v5453 = vsel %vm477, %v5449, 0
  %v5456 = vsel %vm477, %v5451, 0
  %5458 = vmatprep.subr.bf16.mxu0 0
  %5459 = vmatpush1.bf16.xpose.msra.mxu0 %v5456
  %5460 = vmatprep.subr.bf16.mxu0 0
  %5461 = vmatpush1.bf16.xpose.msra.mxu0 0
  %5462 = vmatprep.subr.bf16.mxu0 0
  %5463 = vmatpush1.bf16.xpose.msra.mxu0 0
  %5464 = vmatprep.subr.bf16.mxu0 0
  %5465 = vmatpush1.bf16.xpose.msra.mxu0 0
  %5466 = vmatprep.subr.bf16.mxu0 0
  %5467 = vmatpush1.bf16.xpose.msra.mxu0 0
  %5468 = vmatprep.subr.bf16.mxu0 0
  %5469 = vmatpush1.bf16.xpose.msra.mxu0 0
  %5470 = vmatprep.subr.bf16.mxu0 0
  %5471 = vmatpush1.bf16.xpose.msra.mxu0 0
  %5472 = vmatprep.subr.bf16.mxu0 0
  %5473 = vmatpush1.bf16.xpose.msra.mxu0 0
  %5474 = vmatprep.subr.bf16.mxu0 0
  %5475 = vmatpush1.bf16.xpose.msra.mxu0 0
  %5476 = vmatprep.subr.bf16.mxu0 0
  %5477 = vmatpush1.bf16.xpose.msra.mxu0 0
  %5478 = vmatprep.subr.bf16.mxu0 0
  %5479 = vmatpush1.bf16.xpose.msra.mxu0 0
  %5480 = vmatprep.subr.bf16.mxu0 0
  %5481 = vmatpush1.bf16.xpose.msra.mxu0 0
  %5482 = vmatprep.subr.bf16.mxu0 0
  %5483 = vmatpush1.bf16.xpose.msra.mxu0 0
  %5484 = vmatprep.subr.bf16.mxu0 0
  %5485 = vmatpush1.bf16.xpose.msra.mxu0 0
  %5486 = vmatprep.subr.bf16.mxu0 0
  %5487 = vmatpush1.bf16.xpose.msra.mxu0 0
  %5488 = vmatprep.subr.bf16.mxu0 0
  %5489 = vmatpush1.bf16.xpose.msra.mxu0 0
  %5490 = vmatprep.mubr.bf16.mxu0 0
  %5491 = vmatmul.mubr.bf16.gmra.mrb[0].mxu0 %v5453
  %v5492 = vpop.f32.mrb[0].mxu0
  %v5493 = vadd.f32 0.0, %v5492
  %v5494 = vpop.f32.mrb[0].mxu0
  %v5495 = vpop.f32.mrb[0].mxu0
  %v5496 = vpop.f32.mrb[0].mxu0
  %5497 = vdwg.mxu0
  %v5498 = vmul.f32 %v5343, 0.35355338
  %v5499 = vmul.f32 %v5393, 0.35355338
  %v5500 = vmul.f32 %v5443, 0.35355338
  %v5501 = vmul.f32 %v5493, 0.35355338
  %v5502 = vsel %vm477, %v5498, -inf
  %5503 = vmax.xlane.f32.xlu0 %v5502
  %v5504 = vpop.xlane.xlu0 %5503
  %v5505 = vsel %vm477, %v5499, -inf
  %5506 = vmax.xlane.f32.xlu0 %v5505
  %v5507 = vpop.xlane.xlu0 %5506
  %v5508 = vsel %vm477, %v5500, -inf
  %5509 = vmax.xlane.f32.xlu0 %v5508
  %v5510 = vpop.xlane.xlu0 %5509
  %v5511 = vsel %vm477, %v5501, -inf
  %5512 = vmax.xlane.f32.xlu0 %v5511
  %v5513 = vpop.xlane.xlu0 %5512
  %v5514 = vsub.f32 %v5498, %v5504
  %v5515 = vsub.f32 %v5499, %v5507
  %v5516 = vsub.f32 %v5500, %v5510
  %v5517 = vsub.f32 %v5501, %v5513
  %v5518 = vmul.f32 %v5514, 1.442695
  %v5519 = vpow.pop %v5518
  %v5520 = vmul.f32 %v5515, 1.442695
  %v5521 = vpow.pop %v5520
  %v5522 = vmul.f32 %v5516, 1.442695
  %v5523 = vpow.pop %v5522
  %v5524 = vmul.f32 %v5517, 1.442695
  %v5525 = vpow.pop %v5524
  %v5526 = vsel %vm477, %v5519, 0.0
  %5527 = vadd.xlane.f32.xlu0 %v5526
  %v5528 = vpop.xlane.xlu0 %5527
  %v5529 = vsel %vm477, %v5521, 0.0
  %5530 = vadd.xlane.f32.xlu0 %v5529
  %v5531 = vpop.xlane.xlu0 %5530
  %v5532 = vsel %vm477, %v5523, 0.0
  %5533 = vadd.xlane.f32.xlu0 %v5532
  %v5534 = vpop.xlane.xlu0 %5533
  %v5535 = vsel %vm477, %v5525, 0.0
  %5536 = vadd.xlane.f32.xlu0 %v5535
  %v5537 = vpop.xlane.xlu0 %5536
  %v5538 = vrcp.pop %v5528
  %v5539 = vrcp.pop %v5531
  %v5540 = vrcp.pop %v5534
  %v5541 = vrcp.pop %v5537
  %v5542 = vmul.f32 %v5519, %v5538
  %v5543 = vmul.f32 %v5521, %v5539
  %v5544 = vmul.f32 %v5523, %v5540
  %v5545 = vmul.f32 %v5525, %v5541
  %v5546 = vpack.c.bf16 %v5542, %v5542
  %v5547 = vpack.c.bf16 %v5543, %v5543
  %v5548 = vpack.c.bf16 %v5544, %v5544
  %v5549 = vpack.c.bf16 %v5545, %v5545
  %5550 = vrot.lane.b32.xlu0 %v4854, 56
  %v5551 = vpop.permute.xlu0 %5550
  %v5553 = vsel %vm477, %v5546, 0
  %v5556 = vsel %vm728, %v5551, 0
  %5558 = vmatprep.subr.bf16.mxu0 0
  %5559 = vmatpush1.bf16.msra.mxu0 %v5556
  %5560 = vmatprep.subr.bf16.mxu0 0
  %5561 = vmatpush1.bf16.msra.mxu0 0
  %5562 = vmatprep.subr.bf16.mxu0 0
  %5563 = vmatpush1.bf16.msra.mxu0 0
  %5564 = vmatprep.subr.bf16.mxu0 0
  %5565 = vmatpush1.bf16.msra.mxu0 0
  %5566 = vmatprep.subr.bf16.mxu0 0
  %5567 = vmatpush1.bf16.msra.mxu0 0
  %5568 = vmatprep.subr.bf16.mxu0 0
  %5569 = vmatpush1.bf16.msra.mxu0 0
  %5570 = vmatprep.subr.bf16.mxu0 0
  %5571 = vmatpush1.bf16.msra.mxu0 0
  %5572 = vmatprep.subr.bf16.mxu0 0
  %5573 = vmatpush1.bf16.msra.mxu0 0
  %5574 = vmatprep.subr.bf16.mxu0 0
  %5575 = vmatpush1.bf16.msra.mxu0 0
  %5576 = vmatprep.subr.bf16.mxu0 0
  %5577 = vmatpush1.bf16.msra.mxu0 0
  %5578 = vmatprep.subr.bf16.mxu0 0
  %5579 = vmatpush1.bf16.msra.mxu0 0
  %5580 = vmatprep.subr.bf16.mxu0 0
  %5581 = vmatpush1.bf16.msra.mxu0 0
  %5582 = vmatprep.subr.bf16.mxu0 0
  %5583 = vmatpush1.bf16.msra.mxu0 0
  %5584 = vmatprep.subr.bf16.mxu0 0
  %5585 = vmatpush1.bf16.msra.mxu0 0
  %5586 = vmatprep.subr.bf16.mxu0 0
  %5587 = vmatpush1.bf16.msra.mxu0 0
  %5588 = vmatprep.subr.bf16.mxu0 0
  %5589 = vmatpush1.bf16.msra.mxu0 0
  %5590 = vmatprep.mubr.bf16.mxu0 0
  %5591 = vmatmul.mubr.bf16.gmra.mrb[0].mxu0 %v5553
  %v5592 = vpop.f32.mrb[0].mxu0
  %v5593 = vadd.f32 0.0, %v5592
  %v5594 = vpop.f32.mrb[0].mxu0
  %v5595 = vpop.f32.mrb[0].mxu0
  %v5596 = vpop.f32.mrb[0].mxu0
  %5597 = vdwg.mxu0
  %5598 = vrot.lane.b32.xlu0 %v4855, 56
  %v5599 = vpop.permute.xlu0 %5598
  %v5601 = vsel %vm477, %v5547, 0
  %v5604 = vsel %vm728, %v5599, 0
  %5606 = vmatprep.subr.bf16.mxu0 0
  %5607 = vmatpush1.bf16.msra.mxu0 %v5604
  %5608 = vmatprep.subr.bf16.mxu0 0
  %5609 = vmatpush1.bf16.msra.mxu0 0
  %5610 = vmatprep.subr.bf16.mxu0 0
  %5611 = vmatpush1.bf16.msra.mxu0 0
  %5612 = vmatprep.subr.bf16.mxu0 0
  %5613 = vmatpush1.bf16.msra.mxu0 0
  %5614 = vmatprep.subr.bf16.mxu0 0
  %5615 = vmatpush1.bf16.msra.mxu0 0
  %5616 = vmatprep.subr.bf16.mxu0 0
  %5617 = vmatpush1.bf16.msra.mxu0 0
  %5618 = vmatprep.subr.bf16.mxu0 0
  %5619 = vmatpush1.bf16.msra.mxu0 0
  %5620 = vmatprep.subr.bf16.mxu0 0
  %5621 = vmatpush1.bf16.msra.mxu0 0
  %5622 = vmatprep.subr.bf16.mxu0 0
  %5623 = vmatpush1.bf16.msra.mxu0 0
  %5624 = vmatprep.subr.bf16.mxu0 0
  %5625 = vmatpush1.bf16.msra.mxu0 0
  %5626 = vmatprep.subr.bf16.mxu0 0
  %5627 = vmatpush1.bf16.msra.mxu0 0
  %5628 = vmatprep.subr.bf16.mxu0 0
  %5629 = vmatpush1.bf16.msra.mxu0 0
  %5630 = vmatprep.subr.bf16.mxu0 0
  %5631 = vmatpush1.bf16.msra.mxu0 0
  %5632 = vmatprep.subr.bf16.mxu0 0
  %5633 = vmatpush1.bf16.msra.mxu0 0
  %5634 = vmatprep.subr.bf16.mxu0 0
  %5635 = vmatpush1.bf16.msra.mxu0 0
  %5636 = vmatprep.subr.bf16.mxu0 0
  %5637 = vmatpush1.bf16.msra.mxu0 0
  %5638 = vmatprep.mubr.bf16.mxu0 0
  %5639 = vmatmul.mubr.bf16.gmra.mrb[0].mxu0 %v5601
  %v5640 = vpop.f32.mrb[0].mxu0
  %v5641 = vadd.f32 0.0, %v5640
  %v5642 = vpop.f32.mrb[0].mxu0
  %v5643 = vpop.f32.mrb[0].mxu0
  %v5644 = vpop.f32.mrb[0].mxu0
  %5645 = vdwg.mxu0
  %5646 = vrot.lane.b32.xlu0 %v4856, 56
  %v5647 = vpop.permute.xlu0 %5646
  %v5649 = vsel %vm477, %v5548, 0
  %v5652 = vsel %vm728, %v5647, 0
  %5654 = vmatprep.subr.bf16.mxu0 0
  %5655 = vmatpush1.bf16.msra.mxu0 %v5652
  %5656 = vmatprep.subr.bf16.mxu0 0
  %5657 = vmatpush1.bf16.msra.mxu0 0
  %5658 = vmatprep.subr.bf16.mxu0 0
  %5659 = vmatpush1.bf16.msra.mxu0 0
  %5660 = vmatprep.subr.bf16.mxu0 0
  %5661 = vmatpush1.bf16.msra.mxu0 0
  %5662 = vmatprep.subr.bf16.mxu0 0
  %5663 = vmatpush1.bf16.msra.mxu0 0
  %5664 = vmatprep.subr.bf16.mxu0 0
  %5665 = vmatpush1.bf16.msra.mxu0 0
  %5666 = vmatprep.subr.bf16.mxu0 0
  %5667 = vmatpush1.bf16.msra.mxu0 0
  %5668 = vmatprep.subr.bf16.mxu0 0
  %5669 = vmatpush1.bf16.msra.mxu0 0
  %5670 = vmatprep.subr.bf16.mxu0 0
  %5671 = vmatpush1.bf16.msra.mxu0 0
  %5672 = vmatprep.subr.bf16.mxu0 0
  %5673 = vmatpush1.bf16.msra.mxu0 0
  %5674 = vmatprep.subr.bf16.mxu0 0
  %5675 = vmatpush1.bf16.msra.mxu0 0
  %5676 = vmatprep.subr.bf16.mxu0 0
  %5677 = vmatpush1.bf16.msra.mxu0 0
  %5678 = vmatprep.subr.bf16.mxu0 0
  %5679 = vmatpush1.bf16.msra.mxu0 0
  %5680 = vmatprep.subr.bf16.mxu0 0
  %5681 = vmatpush1.bf16.msra.mxu0 0
  %5682 = vmatprep.subr.bf16.mxu0 0
  %5683 = vmatpush1.bf16.msra.mxu0 0
  %5684 = vmatprep.subr.bf16.mxu0 0
  %5685 = vmatpush1.bf16.msra.mxu0 0
  %5686 = vmatprep.mubr.bf16.mxu0 0
  %5687 = vmatmul.mubr.bf16.gmra.mrb[0].mxu0 %v5649
  %v5688 = vpop.f32.mrb[0].mxu0
  %v5689 = vadd.f32 0.0, %v5688
  %v5690 = vpop.f32.mrb[0].mxu0
  %v5691 = vpop.f32.mrb[0].mxu0
  %v5692 = vpop.f32.mrb[0].mxu0
  %5693 = vdwg.mxu0
  %5694 = vrot.lane.b32.xlu0 %v4857, 56
  %v5695 = vpop.permute.xlu0 %5694
  %v5697 = vsel %vm477, %v5549, 0
  %v5700 = vsel %vm728, %v5695, 0
  %5702 = vmatprep.subr.bf16.mxu0 0
  %5703 = vmatpush1.bf16.msra.mxu0 %v5700
  %5704 = vmatprep.subr.bf16.mxu0 0
  %5705 = vmatpush1.bf16.msra.mxu0 0
  %5706 = vmatprep.subr.bf16.mxu0 0
  %5707 = vmatpush1.bf16.msra.mxu0 0
  %5708 = vmatprep.subr.bf16.mxu0 0
  %5709 = vmatpush1.bf16.msra.mxu0 0
  %5710 = vmatprep.subr.bf16.mxu0 0
  %5711 = vmatpush1.bf16.msra.mxu0 0
  %5712 = vmatprep.subr.bf16.mxu0 0
  %5713 = vmatpush1.bf16.msra.mxu0 0
  %5714 = vmatprep.subr.bf16.mxu0 0
  %5715 = vmatpush1.bf16.msra.mxu0 0
  %5716 = vmatprep.subr.bf16.mxu0 0
  %5717 = vmatpush1.bf16.msra.mxu0 0
  %5718 = vmatprep.subr.bf16.mxu0 0
  %5719 = vmatpush1.bf16.msra.mxu0 0
  %5720 = vmatprep.subr.bf16.mxu0 0
  %5721 = vmatpush1.bf16.msra.mxu0 0
  %5722 = vmatprep.subr.bf16.mxu0 0
  %5723 = vmatpush1.bf16.msra.mxu0 0
  %5724 = vmatprep.subr.bf16.mxu0 0
  %5725 = vmatpush1.bf16.msra.mxu0 0
  %5726 = vmatprep.subr.bf16.mxu0 0
  %5727 = vmatpush1.bf16.msra.mxu0 0
  %5728 = vmatprep.subr.bf16.mxu0 0
  %5729 = vmatpush1.bf16.msra.mxu0 0
  %5730 = vmatprep.subr.bf16.mxu0 0
  %5731 = vmatpush1.bf16.msra.mxu0 0
  %5732 = vmatprep.subr.bf16.mxu0 0
  %5733 = vmatpush1.bf16.msra.mxu0 0
  %5734 = vmatprep.mubr.bf16.mxu0 0
  %5735 = vmatmul.mubr.bf16.gmra.mrb[0].mxu0 %v5697
  %v5736 = vpop.f32.mrb[0].mxu0
  %v5737 = vadd.f32 0.0, %v5736
  %v5738 = vpop.f32.mrb[0].mxu0
  %v5739 = vpop.f32.mrb[0].mxu0
  %v5740 = vpop.f32.mrb[0].mxu0
  %5741 = vdwg.mxu0
  %5742 = vrot.lane.b32.xlu0 %v4854, 112
  %v5743 = vpop.permute.xlu0 %5742
  %5744 = vrot.lane.b32.xlu0 %v4854, 80
  %v5745 = vpop.permute.xlu0 %5744
  %v5747 = vsel %vm477, %v5743, 0
  %v5750 = vsel %vm477, %v5745, 0
  %5752 = vmatprep.subr.bf16.mxu0 0
  %5753 = vmatpush1.bf16.xpose.msra.mxu0 %v5750
  %5754 = vmatprep.subr.bf16.mxu0 0
  %5755 = vmatpush1.bf16.xpose.msra.mxu0 0
  %5756 = vmatprep.subr.bf16.mxu0 0
  %5757 = vmatpush1.bf16.xpose.msra.mxu0 0
  %5758 = vmatprep.subr.bf16.mxu0 0
  %5759 = vmatpush1.bf16.xpose.msra.mxu0 0
  %5760 = vmatprep.subr.bf16.mxu0 0
  %5761 = vmatpush1.bf16.xpose.msra.mxu0 0
  %5762 = vmatprep.subr.bf16.mxu0 0
  %5763 = vmatpush1.bf16.xpose.msra.mxu0 0
  %5764 = vmatprep.subr.bf16.mxu0 0
  %5765 = vmatpush1.bf16.xpose.msra.mxu0 0
  %5766 = vmatprep.subr.bf16.mxu0 0
  %5767 = vmatpush1.bf16.xpose.msra.mxu0 0
  %5768 = vmatprep.subr.bf16.mxu0 0
  %5769 = vmatpush1.bf16.xpose.msra.mxu0 0
  %5770 = vmatprep.subr.bf16.mxu0 0
  %5771 = vmatpush1.bf16.xpose.msra.mxu0 0
  %5772 = vmatprep.subr.bf16.mxu0 0
  %5773 = vmatpush1.bf16.xpose.msra.mxu0 0
  %5774 = vmatprep.subr.bf16.mxu0 0
  %5775 = vmatpush1.bf16.xpose.msra.mxu0 0
  %5776 = vmatprep.subr.bf16.mxu0 0
  %5777 = vmatpush1.bf16.xpose.msra.mxu0 0
  %5778 = vmatprep.subr.bf16.mxu0 0
  %5779 = vmatpush1.bf16.xpose.msra.mxu0 0
  %5780 = vmatprep.subr.bf16.mxu0 0
  %5781 = vmatpush1.bf16.xpose.msra.mxu0 0
  %5782 = vmatprep.subr.bf16.mxu0 0
  %5783 = vmatpush1.bf16.xpose.msra.mxu0 0
  %5784 = vmatprep.mubr.bf16.mxu0 0
  %5785 = vmatmul.mubr.bf16.gmra.mrb[0].mxu0 %v5747
  %v5786 = vpop.f32.mrb[0].mxu0
  %v5787 = vadd.f32 0.0, %v5786
  %v5788 = vpop.f32.mrb[0].mxu0
  %v5789 = vpop.f32.mrb[0].mxu0
  %v5790 = vpop.f32.mrb[0].mxu0
  %5791 = vdwg.mxu0
  %5792 = vrot.lane.b32.xlu0 %v4855, 112
  %v5793 = vpop.permute.xlu0 %5792
  %5794 = vrot.lane.b32.xlu0 %v4855, 80
  %v5795 = vpop.permute.xlu0 %5794
  %v5797 = vsel %vm477, %v5793, 0
  %v5800 = vsel %vm477, %v5795, 0
  %5802 = vmatprep.subr.bf16.mxu0 0
  %5803 = vmatpush1.bf16.xpose.msra.mxu0 %v5800
  %5804 = vmatprep.subr.bf16.mxu0 0
  %5805 = vmatpush1.bf16.xpose.msra.mxu0 0
  %5806 = vmatprep.subr.bf16.mxu0 0
  %5807 = vmatpush1.bf16.xpose.msra.mxu0 0
  %5808 = vmatprep.subr.bf16.mxu0 0
  %5809 = vmatpush1.bf16.xpose.msra.mxu0 0
  %5810 = vmatprep.subr.bf16.mxu0 0
  %5811 = vmatpush1.bf16.xpose.msra.mxu0 0
  %5812 = vmatprep.subr.bf16.mxu0 0
  %5813 = vmatpush1.bf16.xpose.msra.mxu0 0
  %5814 = vmatprep.subr.bf16.mxu0 0
  %5815 = vmatpush1.bf16.xpose.msra.mxu0 0
  %5816 = vmatprep.subr.bf16.mxu0 0
  %5817 = vmatpush1.bf16.xpose.msra.mxu0 0
  %5818 = vmatprep.subr.bf16.mxu0 0
  %5819 = vmatpush1.bf16.xpose.msra.mxu0 0
  %5820 = vmatprep.subr.bf16.mxu0 0
  %5821 = vmatpush1.bf16.xpose.msra.mxu0 0
  %5822 = vmatprep.subr.bf16.mxu0 0
  %5823 = vmatpush1.bf16.xpose.msra.mxu0 0
  %5824 = vmatprep.subr.bf16.mxu0 0
  %5825 = vmatpush1.bf16.xpose.msra.mxu0 0
  %5826 = vmatprep.subr.bf16.mxu0 0
  %5827 = vmatpush1.bf16.xpose.msra.mxu0 0
  %5828 = vmatprep.subr.bf16.mxu0 0
  %5829 = vmatpush1.bf16.xpose.msra.mxu0 0
  %5830 = vmatprep.subr.bf16.mxu0 0
  %5831 = vmatpush1.bf16.xpose.msra.mxu0 0
  %5832 = vmatprep.subr.bf16.mxu0 0
  %5833 = vmatpush1.bf16.xpose.msra.mxu0 0
  %5834 = vmatprep.mubr.bf16.mxu0 0
  %5835 = vmatmul.mubr.bf16.gmra.mrb[0].mxu0 %v5797
  %v5836 = vpop.f32.mrb[0].mxu0
  %v5837 = vadd.f32 0.0, %v5836
  %v5838 = vpop.f32.mrb[0].mxu0
  %v5839 = vpop.f32.mrb[0].mxu0
  %v5840 = vpop.f32.mrb[0].mxu0
  %5841 = vdwg.mxu0
  %5842 = vrot.lane.b32.xlu0 %v4856, 112
  %v5843 = vpop.permute.xlu0 %5842
  %5844 = vrot.lane.b32.xlu0 %v4856, 80
  %v5845 = vpop.permute.xlu0 %5844
  %v5847 = vsel %vm477, %v5843, 0
  %v5850 = vsel %vm477, %v5845, 0
  %5852 = vmatprep.subr.bf16.mxu0 0
  %5853 = vmatpush1.bf16.xpose.msra.mxu0 %v5850
  %5854 = vmatprep.subr.bf16.mxu0 0
  %5855 = vmatpush1.bf16.xpose.msra.mxu0 0
  %5856 = vmatprep.subr.bf16.mxu0 0
  %5857 = vmatpush1.bf16.xpose.msra.mxu0 0
  %5858 = vmatprep.subr.bf16.mxu0 0
  %5859 = vmatpush1.bf16.xpose.msra.mxu0 0
  %5860 = vmatprep.subr.bf16.mxu0 0
  %5861 = vmatpush1.bf16.xpose.msra.mxu0 0
  %5862 = vmatprep.subr.bf16.mxu0 0
  %5863 = vmatpush1.bf16.xpose.msra.mxu0 0
  %5864 = vmatprep.subr.bf16.mxu0 0
  %5865 = vmatpush1.bf16.xpose.msra.mxu0 0
  %5866 = vmatprep.subr.bf16.mxu0 0
  %5867 = vmatpush1.bf16.xpose.msra.mxu0 0
  %5868 = vmatprep.subr.bf16.mxu0 0
  %5869 = vmatpush1.bf16.xpose.msra.mxu0 0
  %5870 = vmatprep.subr.bf16.mxu0 0
  %5871 = vmatpush1.bf16.xpose.msra.mxu0 0
  %5872 = vmatprep.subr.bf16.mxu0 0
  %5873 = vmatpush1.bf16.xpose.msra.mxu0 0
  %5874 = vmatprep.subr.bf16.mxu0 0
  %5875 = vmatpush1.bf16.xpose.msra.mxu0 0
  %5876 = vmatprep.subr.bf16.mxu0 0
  %5877 = vmatpush1.bf16.xpose.msra.mxu0 0
  %5878 = vmatprep.subr.bf16.mxu0 0
  %5879 = vmatpush1.bf16.xpose.msra.mxu0 0
  %5880 = vmatprep.subr.bf16.mxu0 0
  %5881 = vmatpush1.bf16.xpose.msra.mxu0 0
  %5882 = vmatprep.subr.bf16.mxu0 0
  %5883 = vmatpush1.bf16.xpose.msra.mxu0 0
  %5884 = vmatprep.mubr.bf16.mxu0 0
  %5885 = vmatmul.mubr.bf16.gmra.mrb[0].mxu0 %v5847
  %v5886 = vpop.f32.mrb[0].mxu0
  %v5887 = vadd.f32 0.0, %v5886
  %v5888 = vpop.f32.mrb[0].mxu0
  %v5889 = vpop.f32.mrb[0].mxu0
  %v5890 = vpop.f32.mrb[0].mxu0
  %5891 = vdwg.mxu0
  %5892 = vrot.lane.b32.xlu0 %v4857, 112
  %v5893 = vpop.permute.xlu0 %5892
  %5894 = vrot.lane.b32.xlu0 %v4857, 80
  %v5895 = vpop.permute.xlu0 %5894
  %v5897 = vsel %vm477, %v5893, 0
  %v5900 = vsel %vm477, %v5895, 0
  %5902 = vmatprep.subr.bf16.mxu0 0
  %5903 = vmatpush1.bf16.xpose.msra.mxu0 %v5900
  %5904 = vmatprep.subr.bf16.mxu0 0
  %5905 = vmatpush1.bf16.xpose.msra.mxu0 0
  %5906 = vmatprep.subr.bf16.mxu0 0
  %5907 = vmatpush1.bf16.xpose.msra.mxu0 0
  %5908 = vmatprep.subr.bf16.mxu0 0
  %5909 = vmatpush1.bf16.xpose.msra.mxu0 0
  %5910 = vmatprep.subr.bf16.mxu0 0
  %5911 = vmatpush1.bf16.xpose.msra.mxu0 0
  %5912 = vmatprep.subr.bf16.mxu0 0
  %5913 = vmatpush1.bf16.xpose.msra.mxu0 0
  %5914 = vmatprep.subr.bf16.mxu0 0
  %5915 = vmatpush1.bf16.xpose.msra.mxu0 0
  %5916 = vmatprep.subr.bf16.mxu0 0
  %5917 = vmatpush1.bf16.xpose.msra.mxu0 0
  %5918 = vmatprep.subr.bf16.mxu0 0
  %5919 = vmatpush1.bf16.xpose.msra.mxu0 0
  %5920 = vmatprep.subr.bf16.mxu0 0
  %5921 = vmatpush1.bf16.xpose.msra.mxu0 0
  %5922 = vmatprep.subr.bf16.mxu0 0
  %5923 = vmatpush1.bf16.xpose.msra.mxu0 0
  %5924 = vmatprep.subr.bf16.mxu0 0
  %5925 = vmatpush1.bf16.xpose.msra.mxu0 0
  %5926 = vmatprep.subr.bf16.mxu0 0
  %5927 = vmatpush1.bf16.xpose.msra.mxu0 0
  %5928 = vmatprep.subr.bf16.mxu0 0
  %5929 = vmatpush1.bf16.xpose.msra.mxu0 0
  %5930 = vmatprep.subr.bf16.mxu0 0
  %5931 = vmatpush1.bf16.xpose.msra.mxu0 0
  %5932 = vmatprep.subr.bf16.mxu0 0
  %5933 = vmatpush1.bf16.xpose.msra.mxu0 0
  %5934 = vmatprep.mubr.bf16.mxu0 0
  %5935 = vmatmul.mubr.bf16.gmra.mrb[0].mxu0 %v5897
  %v5936 = vpop.f32.mrb[0].mxu0
  %v5937 = vadd.f32 0.0, %v5936
  %v5938 = vpop.f32.mrb[0].mxu0
  %v5939 = vpop.f32.mrb[0].mxu0
  %v5940 = vpop.f32.mrb[0].mxu0
  %5941 = vdwg.mxu0
  %v5942 = vmul.f32 %v5787, 0.35355338
  %v5943 = vmul.f32 %v5837, 0.35355338
  %v5944 = vmul.f32 %v5887, 0.35355338
  %v5945 = vmul.f32 %v5937, 0.35355338
  %v5946 = vsel %vm477, %v5942, -inf
  %5947 = vmax.xlane.f32.xlu0 %v5946
  %v5948 = vpop.xlane.xlu0 %5947
  %v5949 = vsel %vm477, %v5943, -inf
  %5950 = vmax.xlane.f32.xlu0 %v5949
  %v5951 = vpop.xlane.xlu0 %5950
  %v5952 = vsel %vm477, %v5944, -inf
  %5953 = vmax.xlane.f32.xlu0 %v5952
  %v5954 = vpop.xlane.xlu0 %5953
  %v5955 = vsel %vm477, %v5945, -inf
  %5956 = vmax.xlane.f32.xlu0 %v5955
  %v5957 = vpop.xlane.xlu0 %5956
  %v5958 = vsub.f32 %v5942, %v5948
  %v5959 = vsub.f32 %v5943, %v5951
  %v5960 = vsub.f32 %v5944, %v5954
  %v5961 = vsub.f32 %v5945, %v5957
  %v5962 = vmul.f32 %v5958, 1.442695
  %v5963 = vpow.pop %v5962
  %v5964 = vmul.f32 %v5959, 1.442695
  %v5965 = vpow.pop %v5964
  %v5966 = vmul.f32 %v5960, 1.442695
  %v5967 = vpow.pop %v5966
  %v5968 = vmul.f32 %v5961, 1.442695
  %v5969 = vpow.pop %v5968
  %v5970 = vsel %vm477, %v5963, 0.0
  %5971 = vadd.xlane.f32.xlu0 %v5970
  %v5972 = vpop.xlane.xlu0 %5971
  %v5973 = vsel %vm477, %v5965, 0.0
  %5974 = vadd.xlane.f32.xlu0 %v5973
  %v5975 = vpop.xlane.xlu0 %5974
  %v5976 = vsel %vm477, %v5967, 0.0
  %5977 = vadd.xlane.f32.xlu0 %v5976
  %v5978 = vpop.xlane.xlu0 %5977
  %v5979 = vsel %vm477, %v5969, 0.0
  %5980 = vadd.xlane.f32.xlu0 %v5979
  %v5981 = vpop.xlane.xlu0 %5980
  %v5982 = vrcp.pop %v5972
  %v5983 = vrcp.pop %v5975
  %v5984 = vrcp.pop %v5978
  %v5985 = vrcp.pop %v5981
  %v5986 = vmul.f32 %v5963, %v5982
  %v5987 = vmul.f32 %v5965, %v5983
  %v5988 = vmul.f32 %v5967, %v5984
  %v5989 = vmul.f32 %v5969, %v5985
  %v5990 = vpack.c.bf16 %v5986, %v5986
  %v5991 = vpack.c.bf16 %v5987, %v5987
  %v5992 = vpack.c.bf16 %v5988, %v5988
  %v5993 = vpack.c.bf16 %v5989, %v5989
  %5994 = vrot.lane.b32.xlu0 %v4854, 48
  %v5995 = vpop.permute.xlu0 %5994
  %v5997 = vsel %vm477, %v5990, 0
  %v6000 = vsel %vm728, %v5995, 0
  %6002 = vmatprep.subr.bf16.mxu0 0
  %6003 = vmatpush1.bf16.msra.mxu0 %v6000
  %6004 = vmatprep.subr.bf16.mxu0 0
  %6005 = vmatpush1.bf16.msra.mxu0 0
  %6006 = vmatprep.subr.bf16.mxu0 0
  %6007 = vmatpush1.bf16.msra.mxu0 0
  %6008 = vmatprep.subr.bf16.mxu0 0
  %6009 = vmatpush1.bf16.msra.mxu0 0
  %6010 = vmatprep.subr.bf16.mxu0 0
  %6011 = vmatpush1.bf16.msra.mxu0 0
  %6012 = vmatprep.subr.bf16.mxu0 0
  %6013 = vmatpush1.bf16.msra.mxu0 0
  %6014 = vmatprep.subr.bf16.mxu0 0
  %6015 = vmatpush1.bf16.msra.mxu0 0
  %6016 = vmatprep.subr.bf16.mxu0 0
  %6017 = vmatpush1.bf16.msra.mxu0 0
  %6018 = vmatprep.subr.bf16.mxu0 0
  %6019 = vmatpush1.bf16.msra.mxu0 0
  %6020 = vmatprep.subr.bf16.mxu0 0
  %6021 = vmatpush1.bf16.msra.mxu0 0
  %6022 = vmatprep.subr.bf16.mxu0 0
  %6023 = vmatpush1.bf16.msra.mxu0 0
  %6024 = vmatprep.subr.bf16.mxu0 0
  %6025 = vmatpush1.bf16.msra.mxu0 0
  %6026 = vmatprep.subr.bf16.mxu0 0
  %6027 = vmatpush1.bf16.msra.mxu0 0
  %6028 = vmatprep.subr.bf16.mxu0 0
  %6029 = vmatpush1.bf16.msra.mxu0 0
  %6030 = vmatprep.subr.bf16.mxu0 0
  %6031 = vmatpush1.bf16.msra.mxu0 0
  %6032 = vmatprep.subr.bf16.mxu0 0
  %6033 = vmatpush1.bf16.msra.mxu0 0
  %6034 = vmatprep.mubr.bf16.mxu0 0
  %6035 = vmatmul.mubr.bf16.gmra.mrb[0].mxu0 %v5997
  %v6036 = vpop.f32.mrb[0].mxu0
  %v6037 = vadd.f32 0.0, %v6036
  %v6038 = vpop.f32.mrb[0].mxu0
  %v6039 = vpop.f32.mrb[0].mxu0
  %v6040 = vpop.f32.mrb[0].mxu0
  %6041 = vdwg.mxu0
  %6042 = vrot.lane.b32.xlu0 %v4855, 48
  %v6043 = vpop.permute.xlu0 %6042
  %v6045 = vsel %vm477, %v5991, 0
  %v6048 = vsel %vm728, %v6043, 0
  %6050 = vmatprep.subr.bf16.mxu0 0
  %6051 = vmatpush1.bf16.msra.mxu0 %v6048
  %6052 = vmatprep.subr.bf16.mxu0 0
  %6053 = vmatpush1.bf16.msra.mxu0 0
  %6054 = vmatprep.subr.bf16.mxu0 0
  %6055 = vmatpush1.bf16.msra.mxu0 0
  %6056 = vmatprep.subr.bf16.mxu0 0
  %6057 = vmatpush1.bf16.msra.mxu0 0
  %6058 = vmatprep.subr.bf16.mxu0 0
  %6059 = vmatpush1.bf16.msra.mxu0 0
  %6060 = vmatprep.subr.bf16.mxu0 0
  %6061 = vmatpush1.bf16.msra.mxu0 0
  %6062 = vmatprep.subr.bf16.mxu0 0
  %6063 = vmatpush1.bf16.msra.mxu0 0
  %6064 = vmatprep.subr.bf16.mxu0 0
  %6065 = vmatpush1.bf16.msra.mxu0 0
  %6066 = vmatprep.subr.bf16.mxu0 0
  %6067 = vmatpush1.bf16.msra.mxu0 0
  %6068 = vmatprep.subr.bf16.mxu0 0
  %6069 = vmatpush1.bf16.msra.mxu0 0
  %6070 = vmatprep.subr.bf16.mxu0 0
  %6071 = vmatpush1.bf16.msra.mxu0 0
  %6072 = vmatprep.subr.bf16.mxu0 0
  %6073 = vmatpush1.bf16.msra.mxu0 0
  %6074 = vmatprep.subr.bf16.mxu0 0
  %6075 = vmatpush1.bf16.msra.mxu0 0
  %6076 = vmatprep.subr.bf16.mxu0 0
  %6077 = vmatpush1.bf16.msra.mxu0 0
  %6078 = vmatprep.subr.bf16.mxu0 0
  %6079 = vmatpush1.bf16.msra.mxu0 0
  %6080 = vmatprep.subr.bf16.mxu0 0
  %6081 = vmatpush1.bf16.msra.mxu0 0
  %6082 = vmatprep.mubr.bf16.mxu0 0
  %6083 = vmatmul.mubr.bf16.gmra.mrb[0].mxu0 %v6045
  %v6084 = vpop.f32.mrb[0].mxu0
  %v6085 = vadd.f32 0.0, %v6084
  %v6086 = vpop.f32.mrb[0].mxu0
  %v6087 = vpop.f32.mrb[0].mxu0
  %v6088 = vpop.f32.mrb[0].mxu0
  %6089 = vdwg.mxu0
  %6090 = vrot.lane.b32.xlu0 %v4856, 48
  %v6091 = vpop.permute.xlu0 %6090
  %v6093 = vsel %vm477, %v5992, 0
  %v6096 = vsel %vm728, %v6091, 0
  %6098 = vmatprep.subr.bf16.mxu0 0
  %6099 = vmatpush1.bf16.msra.mxu0 %v6096
  %6100 = vmatprep.subr.bf16.mxu0 0
  %6101 = vmatpush1.bf16.msra.mxu0 0
  %6102 = vmatprep.subr.bf16.mxu0 0
  %6103 = vmatpush1.bf16.msra.mxu0 0
  %6104 = vmatprep.subr.bf16.mxu0 0
  %6105 = vmatpush1.bf16.msra.mxu0 0
  %6106 = vmatprep.subr.bf16.mxu0 0
  %6107 = vmatpush1.bf16.msra.mxu0 0
  %6108 = vmatprep.subr.bf16.mxu0 0
  %6109 = vmatpush1.bf16.msra.mxu0 0
  %6110 = vmatprep.subr.bf16.mxu0 0
  %6111 = vmatpush1.bf16.msra.mxu0 0
  %6112 = vmatprep.subr.bf16.mxu0 0
  %6113 = vmatpush1.bf16.msra.mxu0 0
  %6114 = vmatprep.subr.bf16.mxu0 0
  %6115 = vmatpush1.bf16.msra.mxu0 0
  %6116 = vmatprep.subr.bf16.mxu0 0
  %6117 = vmatpush1.bf16.msra.mxu0 0
  %6118 = vmatprep.subr.bf16.mxu0 0
  %6119 = vmatpush1.bf16.msra.mxu0 0
  %6120 = vmatprep.subr.bf16.mxu0 0
  %6121 = vmatpush1.bf16.msra.mxu0 0
  %6122 = vmatprep.subr.bf16.mxu0 0
  %6123 = vmatpush1.bf16.msra.mxu0 0
  %6124 = vmatprep.subr.bf16.mxu0 0
  %6125 = vmatpush1.bf16.msra.mxu0 0
  %6126 = vmatprep.subr.bf16.mxu0 0
  %6127 = vmatpush1.bf16.msra.mxu0 0
  %6128 = vmatprep.subr.bf16.mxu0 0
  %6129 = vmatpush1.bf16.msra.mxu0 0
  %6130 = vmatprep.mubr.bf16.mxu0 0
  %6131 = vmatmul.mubr.bf16.gmra.mrb[0].mxu0 %v6093
  %v6132 = vpop.f32.mrb[0].mxu0
  %v6133 = vadd.f32 0.0, %v6132
  %v6134 = vpop.f32.mrb[0].mxu0
  %v6135 = vpop.f32.mrb[0].mxu0
  %v6136 = vpop.f32.mrb[0].mxu0
  %6137 = vdwg.mxu0
  %6138 = vrot.lane.b32.xlu0 %v4857, 48
  %v6139 = vpop.permute.xlu0 %6138
  %v6141 = vsel %vm477, %v5993, 0
  %v6144 = vsel %vm728, %v6139, 0
  %6146 = vmatprep.subr.bf16.mxu0 0
  %6147 = vmatpush1.bf16.msra.mxu0 %v6144
  %6148 = vmatprep.subr.bf16.mxu0 0
  %6149 = vmatpush1.bf16.msra.mxu0 0
  %6150 = vmatprep.subr.bf16.mxu0 0
  %6151 = vmatpush1.bf16.msra.mxu0 0
  %6152 = vmatprep.subr.bf16.mxu0 0
  %6153 = vmatpush1.bf16.msra.mxu0 0
  %6154 = vmatprep.subr.bf16.mxu0 0
  %6155 = vmatpush1.bf16.msra.mxu0 0
  %6156 = vmatprep.subr.bf16.mxu0 0
  %6157 = vmatpush1.bf16.msra.mxu0 0
  %6158 = vmatprep.subr.bf16.mxu0 0
  %6159 = vmatpush1.bf16.msra.mxu0 0
  %6160 = vmatprep.subr.bf16.mxu0 0
  %6161 = vmatpush1.bf16.msra.mxu0 0
  %6162 = vmatprep.subr.bf16.mxu0 0
  %6163 = vmatpush1.bf16.msra.mxu0 0
  %6164 = vmatprep.subr.bf16.mxu0 0
  %6165 = vmatpush1.bf16.msra.mxu0 0
  %6166 = vmatprep.subr.bf16.mxu0 0
  %6167 = vmatpush1.bf16.msra.mxu0 0
  %6168 = vmatprep.subr.bf16.mxu0 0
  %6169 = vmatpush1.bf16.msra.mxu0 0
  %6170 = vmatprep.subr.bf16.mxu0 0
  %6171 = vmatpush1.bf16.msra.mxu0 0
  %6172 = vmatprep.subr.bf16.mxu0 0
  %6173 = vmatpush1.bf16.msra.mxu0 0
  %6174 = vmatprep.subr.bf16.mxu0 0
  %6175 = vmatpush1.bf16.msra.mxu0 0
  %6176 = vmatprep.subr.bf16.mxu0 0
  %6177 = vmatpush1.bf16.msra.mxu0 0
  %6178 = vmatprep.mubr.bf16.mxu0 0
  %6179 = vmatmul.mubr.bf16.gmra.mrb[0].mxu0 %v6141
  %v6180 = vpop.f32.mrb[0].mxu0
  %v6181 = vadd.f32 0.0, %v6180
  %v6182 = vpop.f32.mrb[0].mxu0
  %v6183 = vpop.f32.mrb[0].mxu0
  %v6184 = vpop.f32.mrb[0].mxu0
  %6185 = vdwg.mxu0
  %6186 = vrot.lane.b32.xlu0 %v4854, 104
  %v6187 = vpop.permute.xlu0 %6186
  %6188 = vrot.lane.b32.xlu0 %v4854, 72
  %v6189 = vpop.permute.xlu0 %6188
  %v6191 = vsel %vm477, %v6187, 0
  %v6194 = vsel %vm477, %v6189, 0
  %6196 = vmatprep.subr.bf16.mxu0 0
  %6197 = vmatpush1.bf16.xpose.msra.mxu0 %v6194
  %6198 = vmatprep.subr.bf16.mxu0 0
  %6199 = vmatpush1.bf16.xpose.msra.mxu0 0
  %6200 = vmatprep.subr.bf16.mxu0 0
  %6201 = vmatpush1.bf16.xpose.msra.mxu0 0
  %6202 = vmatprep.subr.bf16.mxu0 0
  %6203 = vmatpush1.bf16.xpose.msra.mxu0 0
  %6204 = vmatprep.subr.bf16.mxu0 0
  %6205 = vmatpush1.bf16.xpose.msra.mxu0 0
  %6206 = vmatprep.subr.bf16.mxu0 0
  %6207 = vmatpush1.bf16.xpose.msra.mxu0 0
  %6208 = vmatprep.subr.bf16.mxu0 0
  %6209 = vmatpush1.bf16.xpose.msra.mxu0 0
  %6210 = vmatprep.subr.bf16.mxu0 0
  %6211 = vmatpush1.bf16.xpose.msra.mxu0 0
  %6212 = vmatprep.subr.bf16.mxu0 0
  %6213 = vmatpush1.bf16.xpose.msra.mxu0 0
  %6214 = vmatprep.subr.bf16.mxu0 0
  %6215 = vmatpush1.bf16.xpose.msra.mxu0 0
  %6216 = vmatprep.subr.bf16.mxu0 0
  %6217 = vmatpush1.bf16.xpose.msra.mxu0 0
  %6218 = vmatprep.subr.bf16.mxu0 0
  %6219 = vmatpush1.bf16.xpose.msra.mxu0 0
  %6220 = vmatprep.subr.bf16.mxu0 0
  %6221 = vmatpush1.bf16.xpose.msra.mxu0 0
  %6222 = vmatprep.subr.bf16.mxu0 0
  %6223 = vmatpush1.bf16.xpose.msra.mxu0 0
  %6224 = vmatprep.subr.bf16.mxu0 0
  %6225 = vmatpush1.bf16.xpose.msra.mxu0 0
  %6226 = vmatprep.subr.bf16.mxu0 0
  %6227 = vmatpush1.bf16.xpose.msra.mxu0 0
  %6228 = vmatprep.mubr.bf16.mxu0 0
  %6229 = vmatmul.mubr.bf16.gmra.mrb[0].mxu0 %v6191
  %v6230 = vpop.f32.mrb[0].mxu0
  %v6231 = vadd.f32 0.0, %v6230
  %v6232 = vpop.f32.mrb[0].mxu0
  %v6233 = vpop.f32.mrb[0].mxu0
  %v6234 = vpop.f32.mrb[0].mxu0
  %6235 = vdwg.mxu0
  %6236 = vrot.lane.b32.xlu0 %v4855, 104
  %v6237 = vpop.permute.xlu0 %6236
  %6238 = vrot.lane.b32.xlu0 %v4855, 72
  %v6239 = vpop.permute.xlu0 %6238
  %v6241 = vsel %vm477, %v6237, 0
  %v6244 = vsel %vm477, %v6239, 0
  %6246 = vmatprep.subr.bf16.mxu0 0
  %6247 = vmatpush1.bf16.xpose.msra.mxu0 %v6244
  %6248 = vmatprep.subr.bf16.mxu0 0
  %6249 = vmatpush1.bf16.xpose.msra.mxu0 0
  %6250 = vmatprep.subr.bf16.mxu0 0
  %6251 = vmatpush1.bf16.xpose.msra.mxu0 0
  %6252 = vmatprep.subr.bf16.mxu0 0
  %6253 = vmatpush1.bf16.xpose.msra.mxu0 0
  %6254 = vmatprep.subr.bf16.mxu0 0
  %6255 = vmatpush1.bf16.xpose.msra.mxu0 0
  %6256 = vmatprep.subr.bf16.mxu0 0
  %6257 = vmatpush1.bf16.xpose.msra.mxu0 0
  %6258 = vmatprep.subr.bf16.mxu0 0
  %6259 = vmatpush1.bf16.xpose.msra.mxu0 0
  %6260 = vmatprep.subr.bf16.mxu0 0
  %6261 = vmatpush1.bf16.xpose.msra.mxu0 0
  %6262 = vmatprep.subr.bf16.mxu0 0
  %6263 = vmatpush1.bf16.xpose.msra.mxu0 0
  %6264 = vmatprep.subr.bf16.mxu0 0
  %6265 = vmatpush1.bf16.xpose.msra.mxu0 0
  %6266 = vmatprep.subr.bf16.mxu0 0
  %6267 = vmatpush1.bf16.xpose.msra.mxu0 0
  %6268 = vmatprep.subr.bf16.mxu0 0
  %6269 = vmatpush1.bf16.xpose.msra.mxu0 0
  %6270 = vmatprep.subr.bf16.mxu0 0
  %6271 = vmatpush1.bf16.xpose.msra.mxu0 0
  %6272 = vmatprep.subr.bf16.mxu0 0
  %6273 = vmatpush1.bf16.xpose.msra.mxu0 0
  %6274 = vmatprep.subr.bf16.mxu0 0
  %6275 = vmatpush1.bf16.xpose.msra.mxu0 0
  %6276 = vmatprep.subr.bf16.mxu0 0
  %6277 = vmatpush1.bf16.xpose.msra.mxu0 0
  %6278 = vmatprep.mubr.bf16.mxu0 0
  %6279 = vmatmul.mubr.bf16.gmra.mrb[0].mxu0 %v6241
  %v6280 = vpop.f32.mrb[0].mxu0
  %v6281 = vadd.f32 0.0, %v6280
  %v6282 = vpop.f32.mrb[0].mxu0
  %v6283 = vpop.f32.mrb[0].mxu0
  %v6284 = vpop.f32.mrb[0].mxu0
  %6285 = vdwg.mxu0
  %6286 = vrot.lane.b32.xlu0 %v4856, 104
  %v6287 = vpop.permute.xlu0 %6286
  %6288 = vrot.lane.b32.xlu0 %v4856, 72
  %v6289 = vpop.permute.xlu0 %6288
  %v6291 = vsel %vm477, %v6287, 0
  %v6294 = vsel %vm477, %v6289, 0
  %6296 = vmatprep.subr.bf16.mxu0 0
  %6297 = vmatpush1.bf16.xpose.msra.mxu0 %v6294
  %6298 = vmatprep.subr.bf16.mxu0 0
  %6299 = vmatpush1.bf16.xpose.msra.mxu0 0
  %6300 = vmatprep.subr.bf16.mxu0 0
  %6301 = vmatpush1.bf16.xpose.msra.mxu0 0
  %6302 = vmatprep.subr.bf16.mxu0 0
  %6303 = vmatpush1.bf16.xpose.msra.mxu0 0
  %6304 = vmatprep.subr.bf16.mxu0 0
  %6305 = vmatpush1.bf16.xpose.msra.mxu0 0
  %6306 = vmatprep.subr.bf16.mxu0 0
  %6307 = vmatpush1.bf16.xpose.msra.mxu0 0
  %6308 = vmatprep.subr.bf16.mxu0 0
  %6309 = vmatpush1.bf16.xpose.msra.mxu0 0
  %6310 = vmatprep.subr.bf16.mxu0 0
  %6311 = vmatpush1.bf16.xpose.msra.mxu0 0
  %6312 = vmatprep.subr.bf16.mxu0 0
  %6313 = vmatpush1.bf16.xpose.msra.mxu0 0
  %6314 = vmatprep.subr.bf16.mxu0 0
  %6315 = vmatpush1.bf16.xpose.msra.mxu0 0
  %6316 = vmatprep.subr.bf16.mxu0 0
  %6317 = vmatpush1.bf16.xpose.msra.mxu0 0
  %6318 = vmatprep.subr.bf16.mxu0 0
  %6319 = vmatpush1.bf16.xpose.msra.mxu0 0
  %6320 = vmatprep.subr.bf16.mxu0 0
  %6321 = vmatpush1.bf16.xpose.msra.mxu0 0
  %6322 = vmatprep.subr.bf16.mxu0 0
  %6323 = vmatpush1.bf16.xpose.msra.mxu0 0
  %6324 = vmatprep.subr.bf16.mxu0 0
  %6325 = vmatpush1.bf16.xpose.msra.mxu0 0
  %6326 = vmatprep.subr.bf16.mxu0 0
  %6327 = vmatpush1.bf16.xpose.msra.mxu0 0
  %6328 = vmatprep.mubr.bf16.mxu0 0
  %6329 = vmatmul.mubr.bf16.gmra.mrb[0].mxu0 %v6291
  %v6330 = vpop.f32.mrb[0].mxu0
  %v6331 = vadd.f32 0.0, %v6330
  %v6332 = vpop.f32.mrb[0].mxu0
  %v6333 = vpop.f32.mrb[0].mxu0
  %v6334 = vpop.f32.mrb[0].mxu0
  %6335 = vdwg.mxu0
  %6336 = vrot.lane.b32.xlu0 %v4857, 104
  %v6337 = vpop.permute.xlu0 %6336
  %6338 = vrot.lane.b32.xlu0 %v4857, 72
  %v6339 = vpop.permute.xlu0 %6338
  %v6341 = vsel %vm477, %v6337, 0
  %v6344 = vsel %vm477, %v6339, 0
  %6346 = vmatprep.subr.bf16.mxu0 0
  %6347 = vmatpush1.bf16.xpose.msra.mxu0 %v6344
  %6348 = vmatprep.subr.bf16.mxu0 0
  %6349 = vmatpush1.bf16.xpose.msra.mxu0 0
  %6350 = vmatprep.subr.bf16.mxu0 0
  %6351 = vmatpush1.bf16.xpose.msra.mxu0 0
  %6352 = vmatprep.subr.bf16.mxu0 0
  %6353 = vmatpush1.bf16.xpose.msra.mxu0 0
  %6354 = vmatprep.subr.bf16.mxu0 0
  %6355 = vmatpush1.bf16.xpose.msra.mxu0 0
  %6356 = vmatprep.subr.bf16.mxu0 0
  %6357 = vmatpush1.bf16.xpose.msra.mxu0 0
  %6358 = vmatprep.subr.bf16.mxu0 0
  %6359 = vmatpush1.bf16.xpose.msra.mxu0 0
  %6360 = vmatprep.subr.bf16.mxu0 0
  %6361 = vmatpush1.bf16.xpose.msra.mxu0 0
  %6362 = vmatprep.subr.bf16.mxu0 0
  %6363 = vmatpush1.bf16.xpose.msra.mxu0 0
  %6364 = vmatprep.subr.bf16.mxu0 0
  %6365 = vmatpush1.bf16.xpose.msra.mxu0 0
  %6366 = vmatprep.subr.bf16.mxu0 0
  %6367 = vmatpush1.bf16.xpose.msra.mxu0 0
  %6368 = vmatprep.subr.bf16.mxu0 0
  %6369 = vmatpush1.bf16.xpose.msra.mxu0 0
  %6370 = vmatprep.subr.bf16.mxu0 0
  %6371 = vmatpush1.bf16.xpose.msra.mxu0 0
  %6372 = vmatprep.subr.bf16.mxu0 0
  %6373 = vmatpush1.bf16.xpose.msra.mxu0 0
  %6374 = vmatprep.subr.bf16.mxu0 0
  %6375 = vmatpush1.bf16.xpose.msra.mxu0 0
  %6376 = vmatprep.subr.bf16.mxu0 0
  %6377 = vmatpush1.bf16.xpose.msra.mxu0 0
  %6378 = vmatprep.mubr.bf16.mxu0 0
  %6379 = vmatmul.mubr.bf16.gmra.mrb[0].mxu0 %v6341
  %v6380 = vpop.f32.mrb[0].mxu0
  %v6381 = vadd.f32 0.0, %v6380
  %v6382 = vpop.f32.mrb[0].mxu0
  %v6383 = vpop.f32.mrb[0].mxu0
  %v6384 = vpop.f32.mrb[0].mxu0
  %6385 = vdwg.mxu0
  %v6386 = vmul.f32 %v6231, 0.35355338
  %v6387 = vmul.f32 %v6281, 0.35355338
  %v6388 = vmul.f32 %v6331, 0.35355338
  %v6389 = vmul.f32 %v6381, 0.35355338
  %v6390 = vsel %vm477, %v6386, -inf
  %6391 = vmax.xlane.f32.xlu0 %v6390
  %v6392 = vpop.xlane.xlu0 %6391
  %v6393 = vsel %vm477, %v6387, -inf
  %6394 = vmax.xlane.f32.xlu0 %v6393
  %v6395 = vpop.xlane.xlu0 %6394
  %v6396 = vsel %vm477, %v6388, -inf
  %6397 = vmax.xlane.f32.xlu0 %v6396
  %v6398 = vpop.xlane.xlu0 %6397
  %v6399 = vsel %vm477, %v6389, -inf
  %6400 = vmax.xlane.f32.xlu0 %v6399
  %v6401 = vpop.xlane.xlu0 %6400
  %v6402 = vsub.f32 %v6386, %v6392
  %v6403 = vsub.f32 %v6387, %v6395
  %v6404 = vsub.f32 %v6388, %v6398
  %v6405 = vsub.f32 %v6389, %v6401
  %v6406 = vmul.f32 %v6402, 1.442695
  %v6407 = vpow.pop %v6406
  %v6408 = vmul.f32 %v6403, 1.442695
  %v6409 = vpow.pop %v6408
  %v6410 = vmul.f32 %v6404, 1.442695
  %v6411 = vpow.pop %v6410
  %v6412 = vmul.f32 %v6405, 1.442695
  %v6413 = vpow.pop %v6412
  %v6414 = vsel %vm477, %v6407, 0.0
  %6415 = vadd.xlane.f32.xlu0 %v6414
  %v6416 = vpop.xlane.xlu0 %6415
  %v6417 = vsel %vm477, %v6409, 0.0
  %6418 = vadd.xlane.f32.xlu0 %v6417
  %v6419 = vpop.xlane.xlu0 %6418
  %v6420 = vsel %vm477, %v6411, 0.0
  %6421 = vadd.xlane.f32.xlu0 %v6420
  %v6422 = vpop.xlane.xlu0 %6421
  %v6423 = vsel %vm477, %v6413, 0.0
  %6424 = vadd.xlane.f32.xlu0 %v6423
  %v6425 = vpop.xlane.xlu0 %6424
  %v6426 = vrcp.pop %v6416
  %v6427 = vrcp.pop %v6419
  %v6428 = vrcp.pop %v6422
  %v6429 = vrcp.pop %v6425
  %v6430 = vmul.f32 %v6407, %v6426
  %v6431 = vmul.f32 %v6409, %v6427
  %v6432 = vmul.f32 %v6411, %v6428
  %v6433 = vmul.f32 %v6413, %v6429
  %v6434 = vpack.c.bf16 %v6430, %v6430
  %v6435 = vpack.c.bf16 %v6431, %v6431
  %v6436 = vpack.c.bf16 %v6432, %v6432
  %v6437 = vpack.c.bf16 %v6433, %v6433
  %6438 = vrot.lane.b32.xlu0 %v4854, 40
  %v6439 = vpop.permute.xlu0 %6438
  %v6441 = vsel %vm477, %v6434, 0
  %v6444 = vsel %vm728, %v6439, 0
  %6446 = vmatprep.subr.bf16.mxu0 0
  %6447 = vmatpush1.bf16.msra.mxu0 %v6444
  %6448 = vmatprep.subr.bf16.mxu0 0
  %6449 = vmatpush1.bf16.msra.mxu0 0
  %6450 = vmatprep.subr.bf16.mxu0 0
  %6451 = vmatpush1.bf16.msra.mxu0 0
  %6452 = vmatprep.subr.bf16.mxu0 0
  %6453 = vmatpush1.bf16.msra.mxu0 0
  %6454 = vmatprep.subr.bf16.mxu0 0
  %6455 = vmatpush1.bf16.msra.mxu0 0
  %6456 = vmatprep.subr.bf16.mxu0 0
  %6457 = vmatpush1.bf16.msra.mxu0 0
  %6458 = vmatprep.subr.bf16.mxu0 0
  %6459 = vmatpush1.bf16.msra.mxu0 0
  %6460 = vmatprep.subr.bf16.mxu0 0
  %6461 = vmatpush1.bf16.msra.mxu0 0
  %6462 = vmatprep.subr.bf16.mxu0 0
  %6463 = vmatpush1.bf16.msra.mxu0 0
  %6464 = vmatprep.subr.bf16.mxu0 0
  %6465 = vmatpush1.bf16.msra.mxu0 0
  %6466 = vmatprep.subr.bf16.mxu0 0
  %6467 = vmatpush1.bf16.msra.mxu0 0
  %6468 = vmatprep.subr.bf16.mxu0 0
  %6469 = vmatpush1.bf16.msra.mxu0 0
  %6470 = vmatprep.subr.bf16.mxu0 0
  %6471 = vmatpush1.bf16.msra.mxu0 0
  %6472 = vmatprep.subr.bf16.mxu0 0
  %6473 = vmatpush1.bf16.msra.mxu0 0
  %6474 = vmatprep.subr.bf16.mxu0 0
  %6475 = vmatpush1.bf16.msra.mxu0 0
  %6476 = vmatprep.subr.bf16.mxu0 0
  %6477 = vmatpush1.bf16.msra.mxu0 0
  %6478 = vmatprep.mubr.bf16.mxu0 0
  %6479 = vmatmul.mubr.bf16.gmra.mrb[0].mxu0 %v6441
  %v6480 = vpop.f32.mrb[0].mxu0
  %v6481 = vadd.f32 0.0, %v6480
  %v6482 = vpop.f32.mrb[0].mxu0
  %v6483 = vpop.f32.mrb[0].mxu0
  %v6484 = vpop.f32.mrb[0].mxu0
  %6485 = vdwg.mxu0
  %6486 = vrot.lane.b32.xlu0 %v4855, 40
  %v6487 = vpop.permute.xlu0 %6486
  %v6489 = vsel %vm477, %v6435, 0
  %v6492 = vsel %vm728, %v6487, 0
  %6494 = vmatprep.subr.bf16.mxu0 0
  %6495 = vmatpush1.bf16.msra.mxu0 %v6492
  %6496 = vmatprep.subr.bf16.mxu0 0
  %6497 = vmatpush1.bf16.msra.mxu0 0
  %6498 = vmatprep.subr.bf16.mxu0 0
  %6499 = vmatpush1.bf16.msra.mxu0 0
  %6500 = vmatprep.subr.bf16.mxu0 0
  %6501 = vmatpush1.bf16.msra.mxu0 0
  %6502 = vmatprep.subr.bf16.mxu0 0
  %6503 = vmatpush1.bf16.msra.mxu0 0
  %6504 = vmatprep.subr.bf16.mxu0 0
  %6505 = vmatpush1.bf16.msra.mxu0 0
  %6506 = vmatprep.subr.bf16.mxu0 0
  %6507 = vmatpush1.bf16.msra.mxu0 0
  %6508 = vmatprep.subr.bf16.mxu0 0
  %6509 = vmatpush1.bf16.msra.mxu0 0
  %6510 = vmatprep.subr.bf16.mxu0 0
  %6511 = vmatpush1.bf16.msra.mxu0 0
  %6512 = vmatprep.subr.bf16.mxu0 0
  %6513 = vmatpush1.bf16.msra.mxu0 0
  %6514 = vmatprep.subr.bf16.mxu0 0
  %6515 = vmatpush1.bf16.msra.mxu0 0
  %6516 = vmatprep.subr.bf16.mxu0 0
  %6517 = vmatpush1.bf16.msra.mxu0 0
  %6518 = vmatprep.subr.bf16.mxu0 0
  %6519 = vmatpush1.bf16.msra.mxu0 0
  %6520 = vmatprep.subr.bf16.mxu0 0
  %6521 = vmatpush1.bf16.msra.mxu0 0
  %6522 = vmatprep.subr.bf16.mxu0 0
  %6523 = vmatpush1.bf16.msra.mxu0 0
  %6524 = vmatprep.subr.bf16.mxu0 0
  %6525 = vmatpush1.bf16.msra.mxu0 0
  %6526 = vmatprep.mubr.bf16.mxu0 0
  %6527 = vmatmul.mubr.bf16.gmra.mrb[0].mxu0 %v6489
  %v6528 = vpop.f32.mrb[0].mxu0
  %v6529 = vadd.f32 0.0, %v6528
  %v6530 = vpop.f32.mrb[0].mxu0
  %v6531 = vpop.f32.mrb[0].mxu0
  %v6532 = vpop.f32.mrb[0].mxu0
  %6533 = vdwg.mxu0
  %6534 = vrot.lane.b32.xlu0 %v4856, 40
  %v6535 = vpop.permute.xlu0 %6534
  %v6537 = vsel %vm477, %v6436, 0
  %v6540 = vsel %vm728, %v6535, 0
  %6542 = vmatprep.subr.bf16.mxu0 0
  %6543 = vmatpush1.bf16.msra.mxu0 %v6540
  %6544 = vmatprep.subr.bf16.mxu0 0
  %6545 = vmatpush1.bf16.msra.mxu0 0
  %6546 = vmatprep.subr.bf16.mxu0 0
  %6547 = vmatpush1.bf16.msra.mxu0 0
  %6548 = vmatprep.subr.bf16.mxu0 0
  %6549 = vmatpush1.bf16.msra.mxu0 0
  %6550 = vmatprep.subr.bf16.mxu0 0
  %6551 = vmatpush1.bf16.msra.mxu0 0
  %6552 = vmatprep.subr.bf16.mxu0 0
  %6553 = vmatpush1.bf16.msra.mxu0 0
  %6554 = vmatprep.subr.bf16.mxu0 0
  %6555 = vmatpush1.bf16.msra.mxu0 0
  %6556 = vmatprep.subr.bf16.mxu0 0
  %6557 = vmatpush1.bf16.msra.mxu0 0
  %6558 = vmatprep.subr.bf16.mxu0 0
  %6559 = vmatpush1.bf16.msra.mxu0 0
  %6560 = vmatprep.subr.bf16.mxu0 0
  %6561 = vmatpush1.bf16.msra.mxu0 0
  %6562 = vmatprep.subr.bf16.mxu0 0
  %6563 = vmatpush1.bf16.msra.mxu0 0
  %6564 = vmatprep.subr.bf16.mxu0 0
  %6565 = vmatpush1.bf16.msra.mxu0 0
  %6566 = vmatprep.subr.bf16.mxu0 0
  %6567 = vmatpush1.bf16.msra.mxu0 0
  %6568 = vmatprep.subr.bf16.mxu0 0
  %6569 = vmatpush1.bf16.msra.mxu0 0
  %6570 = vmatprep.subr.bf16.mxu0 0
  %6571 = vmatpush1.bf16.msra.mxu0 0
  %6572 = vmatprep.subr.bf16.mxu0 0
  %6573 = vmatpush1.bf16.msra.mxu0 0
  %6574 = vmatprep.mubr.bf16.mxu0 0
  %6575 = vmatmul.mubr.bf16.gmra.mrb[0].mxu0 %v6537
  %v6576 = vpop.f32.mrb[0].mxu0
  %v6577 = vadd.f32 0.0, %v6576
  %v6578 = vpop.f32.mrb[0].mxu0
  %v6579 = vpop.f32.mrb[0].mxu0
  %v6580 = vpop.f32.mrb[0].mxu0
  %6581 = vdwg.mxu0
  %6582 = vrot.lane.b32.xlu0 %v4857, 40
  %v6583 = vpop.permute.xlu0 %6582
  %v6585 = vsel %vm477, %v6437, 0
  %v6588 = vsel %vm728, %v6583, 0
  %6590 = vmatprep.subr.bf16.mxu0 0
  %6591 = vmatpush1.bf16.msra.mxu0 %v6588
  %6592 = vmatprep.subr.bf16.mxu0 0
  %6593 = vmatpush1.bf16.msra.mxu0 0
  %6594 = vmatprep.subr.bf16.mxu0 0
  %6595 = vmatpush1.bf16.msra.mxu0 0
  %6596 = vmatprep.subr.bf16.mxu0 0
  %6597 = vmatpush1.bf16.msra.mxu0 0
  %6598 = vmatprep.subr.bf16.mxu0 0
  %6599 = vmatpush1.bf16.msra.mxu0 0
  %6600 = vmatprep.subr.bf16.mxu0 0
  %6601 = vmatpush1.bf16.msra.mxu0 0
  %6602 = vmatprep.subr.bf16.mxu0 0
  %6603 = vmatpush1.bf16.msra.mxu0 0
  %6604 = vmatprep.subr.bf16.mxu0 0
  %6605 = vmatpush1.bf16.msra.mxu0 0
  %6606 = vmatprep.subr.bf16.mxu0 0
  %6607 = vmatpush1.bf16.msra.mxu0 0
  %6608 = vmatprep.subr.bf16.mxu0 0
  %6609 = vmatpush1.bf16.msra.mxu0 0
  %6610 = vmatprep.subr.bf16.mxu0 0
  %6611 = vmatpush1.bf16.msra.mxu0 0
  %6612 = vmatprep.subr.bf16.mxu0 0
  %6613 = vmatpush1.bf16.msra.mxu0 0
  %6614 = vmatprep.subr.bf16.mxu0 0
  %6615 = vmatpush1.bf16.msra.mxu0 0
  %6616 = vmatprep.subr.bf16.mxu0 0
  %6617 = vmatpush1.bf16.msra.mxu0 0
  %6618 = vmatprep.subr.bf16.mxu0 0
  %6619 = vmatpush1.bf16.msra.mxu0 0
  %6620 = vmatprep.subr.bf16.mxu0 0
  %6621 = vmatpush1.bf16.msra.mxu0 0
  %6622 = vmatprep.mubr.bf16.mxu0 0
  %6623 = vmatmul.mubr.bf16.gmra.mrb[0].mxu0 %v6585
  %v6624 = vpop.f32.mrb[0].mxu0
  %v6625 = vadd.f32 0.0, %v6624
  %v6626 = vpop.f32.mrb[0].mxu0
  %v6627 = vpop.f32.mrb[0].mxu0
  %v6628 = vpop.f32.mrb[0].mxu0
  %6629 = vdwg.mxu0
  %6634 = vrot.lane.b32.xlu0 %v5593, 8
  %v6635 = vpop.permute.xlu0 %6634
  %6636 = vrot.lane.b32.xlu0 %v5641, 8
  %v6637 = vpop.permute.xlu0 %6636
  %6638 = vrot.lane.b32.xlu0 %v5689, 8
  %v6639 = vpop.permute.xlu0 %6638
  %6640 = vrot.lane.b32.xlu0 %v5737, 8
  %v6641 = vpop.permute.xlu0 %6640
  %6650 = vrot.lane.b32.xlu0 %v6037, 16
  %v6651 = vpop.permute.xlu0 %6650
  %6652 = vrot.lane.b32.xlu0 %v6085, 16
  %v6653 = vpop.permute.xlu0 %6652
  %6654 = vrot.lane.b32.xlu0 %v6133, 16
  %v6655 = vpop.permute.xlu0 %6654
  %6656 = vrot.lane.b32.xlu0 %v6181, 16
  %v6657 = vpop.permute.xlu0 %6656
  %6666 = vrot.lane.b32.xlu0 %v6481, 24
  %v6667 = vpop.permute.xlu0 %6666
  %6668 = vrot.lane.b32.xlu0 %v6529, 24
  %v6669 = vpop.permute.xlu0 %6668
  %6670 = vrot.lane.b32.xlu0 %v6577, 24
  %v6671 = vpop.permute.xlu0 %6670
  %6672 = vrot.lane.b32.xlu0 %v6625, 24
  %v6673 = vpop.permute.xlu0 %6672
  %v6678 = vsel %vm477, %v5149, %v6635
  %v6679 = vsel %vm477, %v5197, %v6637
  %v6680 = vsel %vm477, %v5245, %v6639
  %v6681 = vsel %vm477, %v5293, %v6641
  %v6682 = vsel %vm2300, %v6678, %v6651
  %v6683 = vsel %vm2300, %v6679, %v6653
  %v6684 = vsel %vm2300, %v6680, %v6655
  %v6685 = vsel %vm2300, %v6681, %v6657
  %v6686 = vsel %vm2305, %v6682, %v6667
  %v6687 = vsel %vm2305, %v6683, %v6669
  %v6688 = vsel %vm2305, %v6684, %v6671
  %v6689 = vsel %vm2305, %v6685, %v6673
  %v6690 = vpack.c.bf16 %v6687, %v6686
  %v6691 = vpack.c.bf16 %v6689, %v6688
  %v6692 = vld [vmem:[%s17] sm:$0x1]
  %v6694 = vlaneseq
  %v6695 = vshrl.u32 %v6694, 7
  %v6696 = vsub.s32 0, %v6695
  %v6697 = vrot.slane %v6692, %v6696
  %v6703 = vunpack.c.l.b16 %v4486
  %v6704 = vunpack.c.l.b16 %v4487
  %v6705 = vunpack.c.l.b16 %v4488
  %v6706 = vunpack.c.l.b16 %v4489
  %v6707 = vpack.c.b16 %v6704, %v6703
  %v6708 = vpack.c.b16 %v6706, %v6705
  %v6712 = vsel %vm414, %v6690, 0
  %v6715 = vsel %vm414, %v6691, 0
  %6717 = vmatprep.subr.bf16.mxu0 0
  %6718 = vmatpush1.bf16.msra.mxu0 %v6707
  %6719 = vmatprep.subr.bf16.mxu0 0
  %6720 = vmatpush1.bf16.msra.mxu0 %v6708
  %6721 = vmatprep.subr.bf16.mxu0 0
  %6722 = vmatpush1.bf16.msra.mxu0 0
  %6723 = vmatprep.subr.bf16.mxu0 0
  %6724 = vmatpush1.bf16.msra.mxu0 0
  %6725 = vmatprep.subr.bf16.mxu0 0
  %6726 = vmatpush1.bf16.msra.mxu0 0
  %6727 = vmatprep.subr.bf16.mxu0 0
  %6728 = vmatpush1.bf16.msra.mxu0 0
  %6729 = vmatprep.subr.bf16.mxu0 0
  %6730 = vmatpush1.bf16.msra.mxu0 0
  %6731 = vmatprep.subr.bf16.mxu0 0
  %6732 = vmatpush1.bf16.msra.mxu0 0
  %6733 = vmatprep.subr.bf16.mxu0 0
  %6734 = vmatpush1.bf16.msra.mxu0 0
  %6735 = vmatprep.subr.bf16.mxu0 0
  %6736 = vmatpush1.bf16.msra.mxu0 0
  %6737 = vmatprep.subr.bf16.mxu0 0
  %6738 = vmatpush1.bf16.msra.mxu0 0
  %6739 = vmatprep.subr.bf16.mxu0 0
  %6740 = vmatpush1.bf16.msra.mxu0 0
  %6741 = vmatprep.subr.bf16.mxu0 0
  %6742 = vmatpush1.bf16.msra.mxu0 0
  %6743 = vmatprep.subr.bf16.mxu0 0
  %6744 = vmatpush1.bf16.msra.mxu0 0
  %6745 = vmatprep.subr.bf16.mxu0 0
  %6746 = vmatpush1.bf16.msra.mxu0 0
  %6747 = vmatprep.subr.bf16.mxu0 0
  %6748 = vmatpush1.bf16.msra.mxu0 0
  %6749 = vmatprep.mubr.bf16.mxu0 0
  %6750 = vmatmul.mubr.bf16.gmra.mrb[0].mxu0 %v6712
  %v6751 = vpop.f32.mrb[0].mxu0
  %v6752 = vadd.f32 %v6697, %v6751
  %v6753 = vpop.f32.mrb[0].mxu0
  %v6754 = vpop.f32.mrb[0].mxu0
  %v6755 = vadd.f32 %v6697, %v6754
  %v6756 = vpop.f32.mrb[0].mxu0
  %6757 = vmatprep.mubr.bf16.mxu0 0
  %6758 = vmatmul.mubr.bf16.gmra.mrb[0].mxu0 %v6715
  %v6759 = vpop.f32.mrb[0].mxu0
  %v6760 = vadd.f32 %v6697, %v6759
  %v6761 = vpop.f32.mrb[0].mxu0
  %v6762 = vpop.f32.mrb[0].mxu0
  %v6763 = vadd.f32 %v6697, %v6762
  %v6764 = vpop.f32.mrb[0].mxu0
  %6765 = vdwg.mxu0
  %v6766 = vadd.f32 %v4478, %v6752
  %v6767 = vadd.f32 %v4479, %v6755
  %v6768 = vadd.f32 %v4480, %v6760
  %v6769 = vadd.f32 %v4481, %v6763
  %v6770 = vsel %vm414, %v6766, 0.0
  %6771 = vadd.xlane.f32.xlu0 %v6770
  %v6772 = vpop.xlane.xlu0 %6771
  %v6773 = vsel %vm414, %v6767, 0.0
  %6774 = vadd.xlane.f32.xlu0 %v6773
  %v6775 = vpop.xlane.xlu0 %6774
  %v6776 = vsel %vm414, %v6768, 0.0
  %6777 = vadd.xlane.f32.xlu0 %v6776
  %v6778 = vpop.xlane.xlu0 %6777
  %v6779 = vsel %vm414, %v6769, 0.0
  %6780 = vadd.xlane.f32.xlu0 %v6779
  %v6781 = vpop.xlane.xlu0 %6780
  %v6782 = vmul.f32 %v6772, %v2402
  %v6783 = vmul.f32 %v6775, %v2402
  %v6784 = vmul.f32 %v6778, %v2402
  %v6785 = vmul.f32 %v6781, %v2402
  %v6786 = vsub.f32 %v6766, %v6782
  %v6787 = vsub.f32 %v6767, %v6783
  %v6788 = vsub.f32 %v6768, %v6784
  %v6789 = vsub.f32 %v6769, %v6785
  %v6790 = vmul.f32 %v6786, %v6786
  %v6791 = vmul.f32 %v6787, %v6787
  %v6792 = vmul.f32 %v6788, %v6788
  %v6793 = vmul.f32 %v6789, %v6789
  %v6794 = vsel %vm414, %v6790, 0.0
  %6795 = vadd.xlane.f32.xlu0 %v6794
  %v6796 = vpop.xlane.xlu0 %6795
  %v6797 = vsel %vm414, %v6791, 0.0
  %6798 = vadd.xlane.f32.xlu0 %v6797
  %v6799 = vpop.xlane.xlu0 %6798
  %v6800 = vsel %vm414, %v6792, 0.0
  %6801 = vadd.xlane.f32.xlu0 %v6800
  %v6802 = vpop.xlane.xlu0 %6801
  %v6803 = vsel %vm414, %v6793, 0.0
  %6804 = vadd.xlane.f32.xlu0 %v6803
  %v6805 = vpop.xlane.xlu0 %6804
  %v6806 = vmul.f32 %v6796, %v2402
  %v6807 = vmul.f32 %v6799, %v2402
  %v6808 = vmul.f32 %v6802, %v2402
  %v6809 = vmul.f32 %v6805, %v2402
  %v6810 = vadd.f32 %v6806, 1e-05
  %v6811 = vadd.f32 %v6807, 1e-05
  %v6812 = vadd.f32 %v6808, 1e-05
  %v6813 = vadd.f32 %v6809, 1e-05
  %v6814 = vrsqrt.pop %v6810
  %v6815 = vrsqrt.pop %v6811
  %v6816 = vrsqrt.pop %v6812
  %v6817 = vrsqrt.pop %v6813
  %v6818 = vmul.f32 %v6786, %v6814
  %v6819 = vmul.f32 %v6787, %v6815
  %v6820 = vmul.f32 %v6788, %v6816
  %v6821 = vmul.f32 %v6789, %v6817
  %v6822 = vld [vmem:[%s22] sm:$0x1]
  %v6824 = vlaneseq
  %v6825 = vshrl.u32 %v6824, 7
  %v6826 = vsub.s32 0, %v6825
  %v6827 = vrot.slane %v6822, %v6826
  %v6829 = vmul.f32 %v6818, %v6827
  %v6830 = vmul.f32 %v6819, %v6827
  %v6831 = vmul.f32 %v6820, %v6827
  %v6832 = vmul.f32 %v6821, %v6827
  %v6833 = vld [vmem:[%s23] sm:$0x1]
  %v6835 = vlaneseq
  %v6836 = vshrl.u32 %v6835, 7
  %v6837 = vsub.s32 0, %v6836
  %v6838 = vrot.slane %v6833, %v6837
  %v6840 = vadd.f32 %v6829, %v6838
  %v6841 = vadd.f32 %v6830, %v6838
  %v6842 = vadd.f32 %v6831, %v6838
  %v6843 = vadd.f32 %v6832, %v6838
  %v6844 = vpack.c.bf16 %v6841, %v6840
  %v6845 = vpack.c.bf16 %v6843, %v6842
  %v6846 = vld [vmem:[%s19] sm:$0xff]
  %v6847 = vld [vmem:[%s19 + $0x8] sm:$0xff]
  %v6850 = vlaneseq
  %v6851 = vshrl.u32 %v6850, 7
  %v6852 = vsub.s32 0, %v6851
  %v6853 = vrot.slane %v6846, %v6852
  %v6854 = vlaneseq
  %v6855 = vshrl.u32 %v6854, 7
  %v6856 = vsub.s32 1, %v6855
  %v6857 = vrot.slane %v6846, %v6856
  %v6858 = vlaneseq
  %v6859 = vshrl.u32 %v6858, 7
  %v6860 = vsub.s32 2, %v6859
  %v6861 = vrot.slane %v6846, %v6860
  %v6862 = vlaneseq
  %v6863 = vshrl.u32 %v6862, 7
  %v6864 = vsub.s32 3, %v6863
  %v6865 = vrot.slane %v6846, %v6864
  %v6866 = vlaneseq
  %v6867 = vshrl.u32 %v6866, 7
  %v6868 = vsub.s32 4, %v6867
  %v6869 = vrot.slane %v6846, %v6868
  %v6870 = vlaneseq
  %v6871 = vshrl.u32 %v6870, 7
  %v6872 = vsub.s32 5, %v6871
  %v6873 = vrot.slane %v6846, %v6872
  %v6874 = vlaneseq
  %v6875 = vshrl.u32 %v6874, 7
  %v6876 = vsub.s32 6, %v6875
  %v6877 = vrot.slane %v6846, %v6876
  %v6878 = vlaneseq
  %v6879 = vshrl.u32 %v6878, 7
  %v6880 = vsub.s32 7, %v6879
  %v6881 = vrot.slane %v6846, %v6880
  %v6882 = vlaneseq
  %v6883 = vshrl.u32 %v6882, 7
  %v6884 = vsub.s32 0, %v6883
  %v6885 = vrot.slane %v6847, %v6884
  %v6886 = vlaneseq
  %v6887 = vshrl.u32 %v6886, 7
  %v6888 = vsub.s32 1, %v6887
  %v6889 = vrot.slane %v6847, %v6888
  %v6890 = vlaneseq
  %v6891 = vshrl.u32 %v6890, 7
  %v6892 = vsub.s32 2, %v6891
  %v6893 = vrot.slane %v6847, %v6892
  %v6894 = vlaneseq
  %v6895 = vshrl.u32 %v6894, 7
  %v6896 = vsub.s32 3, %v6895
  %v6897 = vrot.slane %v6847, %v6896
  %v6898 = vlaneseq
  %v6899 = vshrl.u32 %v6898, 7
  %v6900 = vsub.s32 4, %v6899
  %v6901 = vrot.slane %v6847, %v6900
  %v6902 = vlaneseq
  %v6903 = vshrl.u32 %v6902, 7
  %v6904 = vsub.s32 5, %v6903
  %v6905 = vrot.slane %v6847, %v6904
  %v6906 = vlaneseq
  %v6907 = vshrl.u32 %v6906, 7
  %v6908 = vsub.s32 6, %v6907
  %v6909 = vrot.slane %v6847, %v6908
  %v6910 = vlaneseq
  %v6911 = vshrl.u32 %v6910, 7
  %v6912 = vsub.s32 7, %v6911
  %v6913 = vrot.slane %v6847, %v6912
  %v6962 = vunpack.c.l.b16 %v4490
  %v6963 = vunpack.c.h.b16 %v4490
  %v6964 = vunpack.c.l.b16 %v4491
  %v6965 = vunpack.c.h.b16 %v4491
  %v6966 = vunpack.c.l.b16 %v4492
  %v6967 = vunpack.c.h.b16 %v4492
  %v6968 = vunpack.c.l.b16 %v4493
  %v6969 = vunpack.c.h.b16 %v4493
  %v6970 = vunpack.c.l.b16 %v4494
  %v6971 = vunpack.c.h.b16 %v4494
  %v6972 = vunpack.c.l.b16 %v4495
  %v6973 = vunpack.c.h.b16 %v4495
  %v6974 = vunpack.c.l.b16 %v4496
  %v6975 = vunpack.c.h.b16 %v4496
  %v6976 = vunpack.c.l.b16 %v4497
  %v6977 = vunpack.c.h.b16 %v4497
  %v6978 = vunpack.c.l.b16 %v4498
  %v6979 = vunpack.c.h.b16 %v4498
  %v6980 = vunpack.c.l.b16 %v4499
  %v6981 = vunpack.c.h.b16 %v4499
  %v6982 = vunpack.c.l.b16 %v4500
  %v6983 = vunpack.c.h.b16 %v4500
  %v6984 = vunpack.c.l.b16 %v4501
  %v6985 = vunpack.c.h.b16 %v4501
  %v6986 = vunpack.c.l.b16 %v4502
  %v6987 = vunpack.c.h.b16 %v4502
  %v6988 = vunpack.c.l.b16 %v4503
  %v6989 = vunpack.c.h.b16 %v4503
  %v6990 = vunpack.c.l.b16 %v4504
  %v6991 = vunpack.c.h.b16 %v4504
  %v6992 = vunpack.c.l.b16 %v4505
  %v6993 = vunpack.c.h.b16 %v4505
  %v6994 = vunpack.c.l.b16 %v4506
  %v6995 = vunpack.c.h.b16 %v4506
  %v6996 = vunpack.c.l.b16 %v4507
  %v6997 = vunpack.c.h.b16 %v4507
  %v6998 = vunpack.c.l.b16 %v4508
  %v6999 = vunpack.c.h.b16 %v4508
  %v7000 = vunpack.c.l.b16 %v4509
  %v7001 = vunpack.c.h.b16 %v4509
  %v7002 = vunpack.c.l.b16 %v4510
  %v7003 = vunpack.c.h.b16 %v4510
  %v7004 = vunpack.c.l.b16 %v4511
  %v7005 = vunpack.c.h.b16 %v4511
  %v7006 = vunpack.c.l.b16 %v4512
  %v7007 = vunpack.c.h.b16 %v4512
  %v7008 = vunpack.c.l.b16 %v4513
  %v7009 = vunpack.c.h.b16 %v4513
  %v7010 = vunpack.c.l.b16 %v4514
  %v7011 = vunpack.c.h.b16 %v4514
  %v7012 = vunpack.c.l.b16 %v4515
  %v7013 = vunpack.c.h.b16 %v4515
  %v7014 = vunpack.c.l.b16 %v4516
  %v7015 = vunpack.c.h.b16 %v4516
  %v7016 = vunpack.c.l.b16 %v4517
  %v7017 = vunpack.c.h.b16 %v4517
  %v7018 = vunpack.c.l.b16 %v4518
  %v7019 = vunpack.c.h.b16 %v4518
  %v7020 = vunpack.c.l.b16 %v4519
  %v7021 = vunpack.c.h.b16 %v4519
  %v7022 = vunpack.c.l.b16 %v4520
  %v7023 = vunpack.c.h.b16 %v4520
  %v7024 = vunpack.c.l.b16 %v4521
  %v7025 = vunpack.c.h.b16 %v4521
  %v7026 = vpack.c.b16 %v6978, %v6962
  %v7027 = vpack.c.b16 %v6979, %v6963
  %v7028 = vpack.c.b16 %v6980, %v6964
  %v7029 = vpack.c.b16 %v6981, %v6965
  %v7030 = vpack.c.b16 %v6982, %v6966
  %v7031 = vpack.c.b16 %v6983, %v6967
  %v7032 = vpack.c.b16 %v6984, %v6968
  %v7033 = vpack.c.b16 %v6985, %v6969
  %v7034 = vpack.c.b16 %v6986, %v6970
  %v7035 = vpack.c.b16 %v6987, %v6971
  %v7036 = vpack.c.b16 %v6988, %v6972
  %v7037 = vpack.c.b16 %v6989, %v6973
  %v7038 = vpack.c.b16 %v6990, %v6974
  %v7039 = vpack.c.b16 %v6991, %v6975
  %v7040 = vpack.c.b16 %v6992, %v6976
  %v7041 = vpack.c.b16 %v6993, %v6977
  %v7042 = vpack.c.b16 %v7010, %v6994
  %v7043 = vpack.c.b16 %v7011, %v6995
  %v7044 = vpack.c.b16 %v7012, %v6996
  %v7045 = vpack.c.b16 %v7013, %v6997
  %v7046 = vpack.c.b16 %v7014, %v6998
  %v7047 = vpack.c.b16 %v7015, %v6999
  %v7048 = vpack.c.b16 %v7016, %v7000
  %v7049 = vpack.c.b16 %v7017, %v7001
  %v7050 = vpack.c.b16 %v7018, %v7002
  %v7051 = vpack.c.b16 %v7019, %v7003
  %v7052 = vpack.c.b16 %v7020, %v7004
  %v7053 = vpack.c.b16 %v7021, %v7005
  %v7054 = vpack.c.b16 %v7022, %v7006
  %v7055 = vpack.c.b16 %v7023, %v7007
  %v7056 = vpack.c.b16 %v7024, %v7008
  %v7057 = vpack.c.b16 %v7025, %v7009
  %v7091 = vsel %vm414, %v6844, 0
  %v7094 = vsel %vm414, %v6845, 0
  %7096 = vmatprep.subr.bf16.mxu0 %v7027
  %7097 = vmatpush1.bf16.msra.mxu0 %v7026
  %7098 = vmatprep.subr.bf16.mxu0 %v7043
  %7099 = vmatpush1.bf16.msra.mxu0 %v7042
  %7100 = vmatprep.subr.bf16.mxu0 0
  %7101 = vmatpush1.bf16.msra.mxu0 0
  %7102 = vmatprep.subr.bf16.mxu0 0
  %7103 = vmatpush1.bf16.msra.mxu0 0
  %7104 = vmatprep.subr.bf16.mxu0 0
  %7105 = vmatpush1.bf16.msra.mxu0 0
  %7106 = vmatprep.subr.bf16.mxu0 0
  %7107 = vmatpush1.bf16.msra.mxu0 0
  %7108 = vmatprep.subr.bf16.mxu0 0
  %7109 = vmatpush1.bf16.msra.mxu0 0
  %7110 = vmatprep.subr.bf16.mxu0 0
  %7111 = vmatpush1.bf16.msra.mxu0 0
  %7112 = vmatprep.subr.bf16.mxu0 0
  %7113 = vmatpush1.bf16.msra.mxu0 0
  %7114 = vmatprep.subr.bf16.mxu0 0
  %7115 = vmatpush1.bf16.msra.mxu0 0
  %7116 = vmatprep.subr.bf16.mxu0 0
  %7117 = vmatpush1.bf16.msra.mxu0 0
  %7118 = vmatprep.subr.bf16.mxu0 0
  %7119 = vmatpush1.bf16.msra.mxu0 0
  %7120 = vmatprep.subr.bf16.mxu0 0
  %7121 = vmatpush1.bf16.msra.mxu0 0
  %7122 = vmatprep.subr.bf16.mxu0 0
  %7123 = vmatpush1.bf16.msra.mxu0 0
  %7124 = vmatprep.subr.bf16.mxu0 0
  %7125 = vmatpush1.bf16.msra.mxu0 0
  %7126 = vmatprep.subr.bf16.mxu0 0
  %7127 = vmatpush1.bf16.msra.mxu0 0
  %7128 = vmatprep.mubr.bf16.mxu0 0
  %7129 = vmatmul.mubr.bf16.gmra.mrb[0].mxu0 %v7091
  %v7130 = vpop.f32.mrb[0].mxu0
  %v7131 = vadd.f32 %v6853, %v7130
  %v7132 = vpop.f32.mrb[0].mxu0
  %v7133 = vadd.f32 %v6857, %v7132
  %v7134 = vpop.f32.mrb[0].mxu0
  %v7135 = vadd.f32 %v6853, %v7134
  %v7136 = vpop.f32.mrb[0].mxu0
  %v7137 = vadd.f32 %v6857, %v7136
  %7138 = vmatprep.mubr.bf16.mxu0 0
  %7139 = vmatmul.mubr.bf16.gmra.mrb[0].mxu0 %v7094
  %v7140 = vpop.f32.mrb[0].mxu0
  %v7141 = vadd.f32 %v6853, %v7140
  %v7142 = vpop.f32.mrb[0].mxu0
  %v7143 = vadd.f32 %v6857, %v7142
  %v7144 = vpop.f32.mrb[0].mxu0
  %v7145 = vadd.f32 %v6853, %v7144
  %v7146 = vpop.f32.mrb[0].mxu0
  %v7147 = vadd.f32 %v6857, %v7146
  %7148 = vdwg.mxu0
  %7149 = vmatprep.subr.bf16.mxu0 %v7029
  %7150 = vmatpush1.bf16.msra.mxu0 %v7028
  %7151 = vmatprep.subr.bf16.mxu0 %v7045
  %7152 = vmatpush1.bf16.msra.mxu0 %v7044
  %7153 = vmatprep.subr.bf16.mxu0 0
  %7154 = vmatpush1.bf16.msra.mxu0 0
  %7155 = vmatprep.subr.bf16.mxu0 0
  %7156 = vmatpush1.bf16.msra.mxu0 0
  %7157 = vmatprep.subr.bf16.mxu0 0
  %7158 = vmatpush1.bf16.msra.mxu0 0
  %7159 = vmatprep.subr.bf16.mxu0 0
  %7160 = vmatpush1.bf16.msra.mxu0 0
  %7161 = vmatprep.subr.bf16.mxu0 0
  %7162 = vmatpush1.bf16.msra.mxu0 0
  %7163 = vmatprep.subr.bf16.mxu0 0
  %7164 = vmatpush1.bf16.msra.mxu0 0
  %7165 = vmatprep.subr.bf16.mxu0 0
  %7166 = vmatpush1.bf16.msra.mxu0 0
  %7167 = vmatprep.subr.bf16.mxu0 0
  %7168 = vmatpush1.bf16.msra.mxu0 0
  %7169 = vmatprep.subr.bf16.mxu0 0
  %7170 = vmatpush1.bf16.msra.mxu0 0
  %7171 = vmatprep.subr.bf16.mxu0 0
  %7172 = vmatpush1.bf16.msra.mxu0 0
  %7173 = vmatprep.subr.bf16.mxu0 0
  %7174 = vmatpush1.bf16.msra.mxu0 0
  %7175 = vmatprep.subr.bf16.mxu0 0
  %7176 = vmatpush1.bf16.msra.mxu0 0
  %7177 = vmatprep.subr.bf16.mxu0 0
  %7178 = vmatpush1.bf16.msra.mxu0 0
  %7179 = vmatprep.subr.bf16.mxu0 0
  %7180 = vmatpush1.bf16.msra.mxu0 0
  %7181 = vmatprep.mubr.bf16.mxu0 0
  %7182 = vmatmul.mubr.bf16.gmra.mrb[0].mxu0 %v7091
  %v7183 = vpop.f32.mrb[0].mxu0
  %v7184 = vadd.f32 %v6861, %v7183
  %v7185 = vpop.f32.mrb[0].mxu0
  %v7186 = vadd.f32 %v6865, %v7185
  %v7187 = vpop.f32.mrb[0].mxu0
  %v7188 = vadd.f32 %v6861, %v7187
  %v7189 = vpop.f32.mrb[0].mxu0
  %v7190 = vadd.f32 %v6865, %v7189
  %7191 = vmatprep.mubr.bf16.mxu0 0
  %7192 = vmatmul.mubr.bf16.gmra.mrb[0].mxu0 %v7094
  %v7193 = vpop.f32.mrb[0].mxu0
  %v7194 = vadd.f32 %v6861, %v7193
  %v7195 = vpop.f32.mrb[0].mxu0
  %v7196 = vadd.f32 %v6865, %v7195
  %v7197 = vpop.f32.mrb[0].mxu0
  %v7198 = vadd.f32 %v6861, %v7197
  %v7199 = vpop.f32.mrb[0].mxu0
  %v7200 = vadd.f32 %v6865, %v7199
  %7201 = vdwg.mxu0
  %7202 = vmatprep.subr.bf16.mxu0 %v7031
  %7203 = vmatpush1.bf16.msra.mxu0 %v7030
  %7204 = vmatprep.subr.bf16.mxu0 %v7047
  %7205 = vmatpush1.bf16.msra.mxu0 %v7046
  %7206 = vmatprep.subr.bf16.mxu0 0
  %7207 = vmatpush1.bf16.msra.mxu0 0
  %7208 = vmatprep.subr.bf16.mxu0 0
  %7209 = vmatpush1.bf16.msra.mxu0 0
  %7210 = vmatprep.subr.bf16.mxu0 0
  %7211 = vmatpush1.bf16.msra.mxu0 0
  %7212 = vmatprep.subr.bf16.mxu0 0
  %7213 = vmatpush1.bf16.msra.mxu0 0
  %7214 = vmatprep.subr.bf16.mxu0 0
  %7215 = vmatpush1.bf16.msra.mxu0 0
  %7216 = vmatprep.subr.bf16.mxu0 0
  %7217 = vmatpush1.bf16.msra.mxu0 0
  %7218 = vmatprep.subr.bf16.mxu0 0
  %7219 = vmatpush1.bf16.msra.mxu0 0
  %7220 = vmatprep.subr.bf16.mxu0 0
  %7221 = vmatpush1.bf16.msra.mxu0 0
  %7222 = vmatprep.subr.bf16.mxu0 0
  %7223 = vmatpush1.bf16.msra.mxu0 0
  %7224 = vmatprep.subr.bf16.mxu0 0
  %7225 = vmatpush1.bf16.msra.mxu0 0
  %7226 = vmatprep.subr.bf16.mxu0 0
  %7227 = vmatpush1.bf16.msra.mxu0 0
  %7228 = vmatprep.subr.bf16.mxu0 0
  %7229 = vmatpush1.bf16.msra.mxu0 0
  %7230 = vmatprep.subr.bf16.mxu0 0
  %7231 = vmatpush1.bf16.msra.mxu0 0
  %7232 = vmatprep.subr.bf16.mxu0 0
  %7233 = vmatpush1.bf16.msra.mxu0 0
  %7234 = vmatprep.mubr.bf16.mxu0 0
  %7235 = vmatmul.mubr.bf16.gmra.mrb[0].mxu0 %v7091
  %v7236 = vpop.f32.mrb[0].mxu0
  %v7237 = vadd.f32 %v6869, %v7236
  %v7238 = vpop.f32.mrb[0].mxu0
  %v7239 = vadd.f32 %v6873, %v7238
  %v7240 = vpop.f32.mrb[0].mxu0
  %v7241 = vadd.f32 %v6869, %v7240
  %v7242 = vpop.f32.mrb[0].mxu0
  %v7243 = vadd.f32 %v6873, %v7242
  %7244 = vmatprep.mubr.bf16.mxu0 0
  %7245 = vmatmul.mubr.bf16.gmra.mrb[0].mxu0 %v7094
  %v7246 = vpop.f32.mrb[0].mxu0
  %v7247 = vadd.f32 %v6869, %v7246
  %v7248 = vpop.f32.mrb[0].mxu0
  %v7249 = vadd.f32 %v6873, %v7248
  %v7250 = vpop.f32.mrb[0].mxu0
  %v7251 = vadd.f32 %v6869, %v7250
  %v7252 = vpop.f32.mrb[0].mxu0
  %v7253 = vadd.f32 %v6873, %v7252
  %7254 = vdwg.mxu0
  %7255 = vmatprep.subr.bf16.mxu0 %v7033
  %7256 = vmatpush1.bf16.msra.mxu0 %v7032
  %7257 = vmatprep.subr.bf16.mxu0 %v7049
  %7258 = vmatpush1.bf16.msra.mxu0 %v7048
  %7259 = vmatprep.subr.bf16.mxu0 0
  %7260 = vmatpush1.bf16.msra.mxu0 0
  %7261 = vmatprep.subr.bf16.mxu0 0
  %7262 = vmatpush1.bf16.msra.mxu0 0
  %7263 = vmatprep.subr.bf16.mxu0 0
  %7264 = vmatpush1.bf16.msra.mxu0 0
  %7265 = vmatprep.subr.bf16.mxu0 0
  %7266 = vmatpush1.bf16.msra.mxu0 0
  %7267 = vmatprep.subr.bf16.mxu0 0
  %7268 = vmatpush1.bf16.msra.mxu0 0
  %7269 = vmatprep.subr.bf16.mxu0 0
  %7270 = vmatpush1.bf16.msra.mxu0 0
  %7271 = vmatprep.subr.bf16.mxu0 0
  %7272 = vmatpush1.bf16.msra.mxu0 0
  %7273 = vmatprep.subr.bf16.mxu0 0
  %7274 = vmatpush1.bf16.msra.mxu0 0
  %7275 = vmatprep.subr.bf16.mxu0 0
  %7276 = vmatpush1.bf16.msra.mxu0 0
  %7277 = vmatprep.subr.bf16.mxu0 0
  %7278 = vmatpush1.bf16.msra.mxu0 0
  %7279 = vmatprep.subr.bf16.mxu0 0
  %7280 = vmatpush1.bf16.msra.mxu0 0
  %7281 = vmatprep.subr.bf16.mxu0 0
  %7282 = vmatpush1.bf16.msra.mxu0 0
  %7283 = vmatprep.subr.bf16.mxu0 0
  %7284 = vmatpush1.bf16.msra.mxu0 0
  %7285 = vmatprep.subr.bf16.mxu0 0
  %7286 = vmatpush1.bf16.msra.mxu0 0
  %7287 = vmatprep.mubr.bf16.mxu0 0
  %7288 = vmatmul.mubr.bf16.gmra.mrb[0].mxu0 %v7091
  %v7289 = vpop.f32.mrb[0].mxu0
  %v7290 = vadd.f32 %v6877, %v7289
  %v7291 = vpop.f32.mrb[0].mxu0
  %v7292 = vadd.f32 %v6881, %v7291
  %v7293 = vpop.f32.mrb[0].mxu0
  %v7294 = vadd.f32 %v6877, %v7293
  %v7295 = vpop.f32.mrb[0].mxu0
  %v7296 = vadd.f32 %v6881, %v7295
  %7297 = vmatprep.mubr.bf16.mxu0 0
  %7298 = vmatmul.mubr.bf16.gmra.mrb[0].mxu0 %v7094
  %v7299 = vpop.f32.mrb[0].mxu0
  %v7300 = vadd.f32 %v6877, %v7299
  %v7301 = vpop.f32.mrb[0].mxu0
  %v7302 = vadd.f32 %v6881, %v7301
  %v7303 = vpop.f32.mrb[0].mxu0
  %v7304 = vadd.f32 %v6877, %v7303
  %v7305 = vpop.f32.mrb[0].mxu0
  %v7306 = vadd.f32 %v6881, %v7305
  %7307 = vdwg.mxu0
  %7308 = vmatprep.subr.bf16.mxu0 %v7035
  %7309 = vmatpush1.bf16.msra.mxu0 %v7034
  %7310 = vmatprep.subr.bf16.mxu0 %v7051
  %7311 = vmatpush1.bf16.msra.mxu0 %v7050
  %7312 = vmatprep.subr.bf16.mxu0 0
  %7313 = vmatpush1.bf16.msra.mxu0 0
  %7314 = vmatprep.subr.bf16.mxu0 0
  %7315 = vmatpush1.bf16.msra.mxu0 0
  %7316 = vmatprep.subr.bf16.mxu0 0
  %7317 = vmatpush1.bf16.msra.mxu0 0
  %7318 = vmatprep.subr.bf16.mxu0 0
  %7319 = vmatpush1.bf16.msra.mxu0 0
  %7320 = vmatprep.subr.bf16.mxu0 0
  %7321 = vmatpush1.bf16.msra.mxu0 0
  %7322 = vmatprep.subr.bf16.mxu0 0
  %7323 = vmatpush1.bf16.msra.mxu0 0
  %7324 = vmatprep.subr.bf16.mxu0 0
  %7325 = vmatpush1.bf16.msra.mxu0 0
  %7326 = vmatprep.subr.bf16.mxu0 0
  %7327 = vmatpush1.bf16.msra.mxu0 0
  %7328 = vmatprep.subr.bf16.mxu0 0
  %7329 = vmatpush1.bf16.msra.mxu0 0
  %7330 = vmatprep.subr.bf16.mxu0 0
  %7331 = vmatpush1.bf16.msra.mxu0 0
  %7332 = vmatprep.subr.bf16.mxu0 0
  %7333 = vmatpush1.bf16.msra.mxu0 0
  %7334 = vmatprep.subr.bf16.mxu0 0
  %7335 = vmatpush1.bf16.msra.mxu0 0
  %7336 = vmatprep.subr.bf16.mxu0 0
  %7337 = vmatpush1.bf16.msra.mxu0 0
  %7338 = vmatprep.subr.bf16.mxu0 0
  %7339 = vmatpush1.bf16.msra.mxu0 0
  %7340 = vmatprep.mubr.bf16.mxu0 0
  %7341 = vmatmul.mubr.bf16.gmra.mrb[0].mxu0 %v7091
  %v7342 = vpop.f32.mrb[0].mxu0
  %v7343 = vadd.f32 %v6885, %v7342
  %v7344 = vpop.f32.mrb[0].mxu0
  %v7345 = vadd.f32 %v6889, %v7344
  %v7346 = vpop.f32.mrb[0].mxu0
  %v7347 = vadd.f32 %v6885, %v7346
  %v7348 = vpop.f32.mrb[0].mxu0
  %v7349 = vadd.f32 %v6889, %v7348
  %7350 = vmatprep.mubr.bf16.mxu0 0
  %7351 = vmatmul.mubr.bf16.gmra.mrb[0].mxu0 %v7094
  %v7352 = vpop.f32.mrb[0].mxu0
  %v7353 = vadd.f32 %v6885, %v7352
  %v7354 = vpop.f32.mrb[0].mxu0
  %v7355 = vadd.f32 %v6889, %v7354
  %v7356 = vpop.f32.mrb[0].mxu0
  %v7357 = vadd.f32 %v6885, %v7356
  %v7358 = vpop.f32.mrb[0].mxu0
  %v7359 = vadd.f32 %v6889, %v7358
  %7360 = vdwg.mxu0
  %7361 = vmatprep.subr.bf16.mxu0 %v7037
  %7362 = vmatpush1.bf16.msra.mxu0 %v7036
  %7363 = vmatprep.subr.bf16.mxu0 %v7053
  %7364 = vmatpush1.bf16.msra.mxu0 %v7052
  %7365 = vmatprep.subr.bf16.mxu0 0
  %7366 = vmatpush1.bf16.msra.mxu0 0
  %7367 = vmatprep.subr.bf16.mxu0 0
  %7368 = vmatpush1.bf16.msra.mxu0 0
  %7369 = vmatprep.subr.bf16.mxu0 0
  %7370 = vmatpush1.bf16.msra.mxu0 0
  %7371 = vmatprep.subr.bf16.mxu0 0
  %7372 = vmatpush1.bf16.msra.mxu0 0
  %7373 = vmatprep.subr.bf16.mxu0 0
  %7374 = vmatpush1.bf16.msra.mxu0 0
  %7375 = vmatprep.subr.bf16.mxu0 0
  %7376 = vmatpush1.bf16.msra.mxu0 0
  %7377 = vmatprep.subr.bf16.mxu0 0
  %7378 = vmatpush1.bf16.msra.mxu0 0
  %7379 = vmatprep.subr.bf16.mxu0 0
  %7380 = vmatpush1.bf16.msra.mxu0 0
  %7381 = vmatprep.subr.bf16.mxu0 0
  %7382 = vmatpush1.bf16.msra.mxu0 0
  %7383 = vmatprep.subr.bf16.mxu0 0
  %7384 = vmatpush1.bf16.msra.mxu0 0
  %7385 = vmatprep.subr.bf16.mxu0 0
  %7386 = vmatpush1.bf16.msra.mxu0 0
  %7387 = vmatprep.subr.bf16.mxu0 0
  %7388 = vmatpush1.bf16.msra.mxu0 0
  %7389 = vmatprep.subr.bf16.mxu0 0
  %7390 = vmatpush1.bf16.msra.mxu0 0
  %7391 = vmatprep.subr.bf16.mxu0 0
  %7392 = vmatpush1.bf16.msra.mxu0 0
  %7393 = vmatprep.mubr.bf16.mxu0 0
  %7394 = vmatmul.mubr.bf16.gmra.mrb[0].mxu0 %v7091
  %v7395 = vpop.f32.mrb[0].mxu0
  %v7396 = vadd.f32 %v6893, %v7395
  %v7397 = vpop.f32.mrb[0].mxu0
  %v7398 = vadd.f32 %v6897, %v7397
  %v7399 = vpop.f32.mrb[0].mxu0
  %v7400 = vadd.f32 %v6893, %v7399
  %v7401 = vpop.f32.mrb[0].mxu0
  %v7402 = vadd.f32 %v6897, %v7401
  %7403 = vmatprep.mubr.bf16.mxu0 0
  %7404 = vmatmul.mubr.bf16.gmra.mrb[0].mxu0 %v7094
  %v7405 = vpop.f32.mrb[0].mxu0
  %v7406 = vadd.f32 %v6893, %v7405
  %v7407 = vpop.f32.mrb[0].mxu0
  %v7408 = vadd.f32 %v6897, %v7407
  %v7409 = vpop.f32.mrb[0].mxu0
  %v7410 = vadd.f32 %v6893, %v7409
  %v7411 = vpop.f32.mrb[0].mxu0
  %v7412 = vadd.f32 %v6897, %v7411
  %7413 = vdwg.mxu0
  %7414 = vmatprep.subr.bf16.mxu0 %v7039
  %7415 = vmatpush1.bf16.msra.mxu0 %v7038
  %7416 = vmatprep.subr.bf16.mxu0 %v7055
  %7417 = vmatpush1.bf16.msra.mxu0 %v7054
  %7418 = vmatprep.subr.bf16.mxu0 0
  %7419 = vmatpush1.bf16.msra.mxu0 0
  %7420 = vmatprep.subr.bf16.mxu0 0
  %7421 = vmatpush1.bf16.msra.mxu0 0
  %7422 = vmatprep.subr.bf16.mxu0 0
  %7423 = vmatpush1.bf16.msra.mxu0 0
  %7424 = vmatprep.subr.bf16.mxu0 0
  %7425 = vmatpush1.bf16.msra.mxu0 0
  %7426 = vmatprep.subr.bf16.mxu0 0
  %7427 = vmatpush1.bf16.msra.mxu0 0
  %7428 = vmatprep.subr.bf16.mxu0 0
  %7429 = vmatpush1.bf16.msra.mxu0 0
  %7430 = vmatprep.subr.bf16.mxu0 0
  %7431 = vmatpush1.bf16.msra.mxu0 0
  %7432 = vmatprep.subr.bf16.mxu0 0
  %7433 = vmatpush1.bf16.msra.mxu0 0
  %7434 = vmatprep.subr.bf16.mxu0 0
  %7435 = vmatpush1.bf16.msra.mxu0 0
  %7436 = vmatprep.subr.bf16.mxu0 0
  %7437 = vmatpush1.bf16.msra.mxu0 0
  %7438 = vmatprep.subr.bf16.mxu0 0
  %7439 = vmatpush1.bf16.msra.mxu0 0
  %7440 = vmatprep.subr.bf16.mxu0 0
  %7441 = vmatpush1.bf16.msra.mxu0 0
  %7442 = vmatprep.subr.bf16.mxu0 0
  %7443 = vmatpush1.bf16.msra.mxu0 0
  %7444 = vmatprep.subr.bf16.mxu0 0
  %7445 = vmatpush1.bf16.msra.mxu0 0
  %7446 = vmatprep.mubr.bf16.mxu0 0
  %7447 = vmatmul.mubr.bf16.gmra.mrb[0].mxu0 %v7091
  %v7448 = vpop.f32.mrb[0].mxu0
  %v7449 = vadd.f32 %v6901, %v7448
  %v7450 = vpop.f32.mrb[0].mxu0
  %v7451 = vadd.f32 %v6905, %v7450
  %v7452 = vpop.f32.mrb[0].mxu0
  %v7453 = vadd.f32 %v6901, %v7452
  %v7454 = vpop.f32.mrb[0].mxu0
  %v7455 = vadd.f32 %v6905, %v7454
  %7456 = vmatprep.mubr.bf16.mxu0 0
  %7457 = vmatmul.mubr.bf16.gmra.mrb[0].mxu0 %v7094
  %v7458 = vpop.f32.mrb[0].mxu0
  %v7459 = vadd.f32 %v6901, %v7458
  %v7460 = vpop.f32.mrb[0].mxu0
  %v7461 = vadd.f32 %v6905, %v7460
  %v7462 = vpop.f32.mrb[0].mxu0
  %v7463 = vadd.f32 %v6901, %v7462
  %v7464 = vpop.f32.mrb[0].mxu0
  %v7465 = vadd.f32 %v6905, %v7464
  %7466 = vdwg.mxu0
  %7467 = vmatprep.subr.bf16.mxu0 %v7041
  %7468 = vmatpush1.bf16.msra.mxu0 %v7040
  %7469 = vmatprep.subr.bf16.mxu0 %v7057
  %7470 = vmatpush1.bf16.msra.mxu0 %v7056
  %7471 = vmatprep.subr.bf16.mxu0 0
  %7472 = vmatpush1.bf16.msra.mxu0 0
  %7473 = vmatprep.subr.bf16.mxu0 0
  %7474 = vmatpush1.bf16.msra.mxu0 0
  %7475 = vmatprep.subr.bf16.mxu0 0
  %7476 = vmatpush1.bf16.msra.mxu0 0
  %7477 = vmatprep.subr.bf16.mxu0 0
  %7478 = vmatpush1.bf16.msra.mxu0 0
  %7479 = vmatprep.subr.bf16.mxu0 0
  %7480 = vmatpush1.bf16.msra.mxu0 0
  %7481 = vmatprep.subr.bf16.mxu0 0
  %7482 = vmatpush1.bf16.msra.mxu0 0
  %7483 = vmatprep.subr.bf16.mxu0 0
  %7484 = vmatpush1.bf16.msra.mxu0 0
  %7485 = vmatprep.subr.bf16.mxu0 0
  %7486 = vmatpush1.bf16.msra.mxu0 0
  %7487 = vmatprep.subr.bf16.mxu0 0
  %7488 = vmatpush1.bf16.msra.mxu0 0
  %7489 = vmatprep.subr.bf16.mxu0 0
  %7490 = vmatpush1.bf16.msra.mxu0 0
  %7491 = vmatprep.subr.bf16.mxu0 0
  %7492 = vmatpush1.bf16.msra.mxu0 0
  %7493 = vmatprep.subr.bf16.mxu0 0
  %7494 = vmatpush1.bf16.msra.mxu0 0
  %7495 = vmatprep.subr.bf16.mxu0 0
  %7496 = vmatpush1.bf16.msra.mxu0 0
  %7497 = vmatprep.subr.bf16.mxu0 0
  %7498 = vmatpush1.bf16.msra.mxu0 0
  %7499 = vmatprep.mubr.bf16.mxu0 0
  %7500 = vmatmul.mubr.bf16.gmra.mrb[0].mxu0 %v7091
  %v7501 = vpop.f32.mrb[0].mxu0
  %v7502 = vadd.f32 %v6909, %v7501
  %v7503 = vpop.f32.mrb[0].mxu0
  %v7504 = vadd.f32 %v6913, %v7503
  %v7505 = vpop.f32.mrb[0].mxu0
  %v7506 = vadd.f32 %v6909, %v7505
  %v7507 = vpop.f32.mrb[0].mxu0
  %v7508 = vadd.f32 %v6913, %v7507
  %7509 = vmatprep.mubr.bf16.mxu0 0
  %7510 = vmatmul.mubr.bf16.gmra.mrb[0].mxu0 %v7094
  %v7511 = vpop.f32.mrb[0].mxu0
  %v7512 = vadd.f32 %v6909, %v7511
  %v7513 = vpop.f32.mrb[0].mxu0
  %v7514 = vadd.f32 %v6913, %v7513
  %v7515 = vpop.f32.mrb[0].mxu0
  %v7516 = vadd.f32 %v6909, %v7515
  %v7517 = vpop.f32.mrb[0].mxu0
  %v7518 = vadd.f32 %v6913, %v7517
  %7519 = vdwg.mxu0
  %v7520 = vmax.f32 %v7131, 0.0
  %v7521 = vmax.f32 %v7133, 0.0
  %v7522 = vmax.f32 %v7184, 0.0
  %v7523 = vmax.f32 %v7186, 0.0
  %v7524 = vmax.f32 %v7237, 0.0
  %v7525 = vmax.f32 %v7239, 0.0
  %v7526 = vmax.f32 %v7290, 0.0
  %v7527 = vmax.f32 %v7292, 0.0
  %v7528 = vmax.f32 %v7343, 0.0
  %v7529 = vmax.f32 %v7345, 0.0
  %v7530 = vmax.f32 %v7396, 0.0
  %v7531 = vmax.f32 %v7398, 0.0
  %v7532 = vmax.f32 %v7449, 0.0
  %v7533 = vmax.f32 %v7451, 0.0
  %v7534 = vmax.f32 %v7502, 0.0
  %v7535 = vmax.f32 %v7504, 0.0
  %v7536 = vmax.f32 %v7135, 0.0
  %v7537 = vmax.f32 %v7137, 0.0
  %v7538 = vmax.f32 %v7188, 0.0
  %v7539 = vmax.f32 %v7190, 0.0
  %v7540 = vmax.f32 %v7241, 0.0
  %v7541 = vmax.f32 %v7243, 0.0
  %v7542 = vmax.f32 %v7294, 0.0
  %v7543 = vmax.f32 %v7296, 0.0
  %v7544 = vmax.f32 %v7347, 0.0
  %v7545 = vmax.f32 %v7349, 0.0
  %v7546 = vmax.f32 %v7400, 0.0
  %v7547 = vmax.f32 %v7402, 0.0
  %v7548 = vmax.f32 %v7453, 0.0
  %v7549 = vmax.f32 %v7455, 0.0
  %v7550 = vmax.f32 %v7506, 0.0
  %v7551 = vmax.f32 %v7508, 0.0
  %v7552 = vmax.f32 %v7141, 0.0
  %v7553 = vmax.f32 %v7143, 0.0
  %v7554 = vmax.f32 %v7194, 0.0
  %v7555 = vmax.f32 %v7196, 0.0
  %v7556 = vmax.f32 %v7247, 0.0
  %v7557 = vmax.f32 %v7249, 0.0
  %v7558 = vmax.f32 %v7300, 0.0
  %v7559 = vmax.f32 %v7302, 0.0
  %v7560 = vmax.f32 %v7353, 0.0
  %v7561 = vmax.f32 %v7355, 0.0
  %v7562 = vmax.f32 %v7406, 0.0
  %v7563 = vmax.f32 %v7408, 0.0
  %v7564 = vmax.f32 %v7459, 0.0
  %v7565 = vmax.f32 %v7461, 0.0
  %v7566 = vmax.f32 %v7512, 0.0
  %v7567 = vmax.f32 %v7514, 0.0
  %v7568 = vmax.f32 %v7145, 0.0
  %v7569 = vmax.f32 %v7147, 0.0
  %v7570 = vmax.f32 %v7198, 0.0
  %v7571 = vmax.f32 %v7200, 0.0
  %v7572 = vmax.f32 %v7251, 0.0
  %v7573 = vmax.f32 %v7253, 0.0
  %v7574 = vmax.f32 %v7304, 0.0
  %v7575 = vmax.f32 %v7306, 0.0
  %v7576 = vmax.f32 %v7357, 0.0
  %v7577 = vmax.f32 %v7359, 0.0
  %v7578 = vmax.f32 %v7410, 0.0
  %v7579 = vmax.f32 %v7412, 0.0
  %v7580 = vmax.f32 %v7463, 0.0
  %v7581 = vmax.f32 %v7465, 0.0
  %v7582 = vmax.f32 %v7516, 0.0
  %v7583 = vmax.f32 %v7518, 0.0
  %v7584 = vpack.c.bf16 %v7536, %v7520
  %v7585 = vpack.c.bf16 %v7537, %v7521
  %v7586 = vpack.c.bf16 %v7538, %v7522
  %v7587 = vpack.c.bf16 %v7539, %v7523
  %v7588 = vpack.c.bf16 %v7540, %v7524
  %v7589 = vpack.c.bf16 %v7541, %v7525
  %v7590 = vpack.c.bf16 %v7542, %v7526
  %v7591 = vpack.c.bf16 %v7543, %v7527
  %v7592 = vpack.c.bf16 %v7544, %v7528
  %v7593 = vpack.c.bf16 %v7545, %v7529
  %v7594 = vpack.c.bf16 %v7546, %v7530
  %v7595 = vpack.c.bf16 %v7547, %v7531
  %v7596 = vpack.c.bf16 %v7548, %v7532
  %v7597 = vpack.c.bf16 %v7549, %v7533
  %v7598 = vpack.c.bf16 %v7550, %v7534
  %v7599 = vpack.c.bf16 %v7551, %v7535
  %v7600 = vpack.c.bf16 %v7568, %v7552
  %v7601 = vpack.c.bf16 %v7569, %v7553
  %v7602 = vpack.c.bf16 %v7570, %v7554
  %v7603 = vpack.c.bf16 %v7571, %v7555
  %v7604 = vpack.c.bf16 %v7572, %v7556
  %v7605 = vpack.c.bf16 %v7573, %v7557
  %v7606 = vpack.c.bf16 %v7574, %v7558
  %v7607 = vpack.c.bf16 %v7575, %v7559
  %v7608 = vpack.c.bf16 %v7576, %v7560
  %v7609 = vpack.c.bf16 %v7577, %v7561
  %v7610 = vpack.c.bf16 %v7578, %v7562
  %v7611 = vpack.c.bf16 %v7579, %v7563
  %v7612 = vpack.c.bf16 %v7580, %v7564
  %v7613 = vpack.c.bf16 %v7581, %v7565
  %v7614 = vpack.c.bf16 %v7582, %v7566
  %v7615 = vpack.c.bf16 %v7583, %v7567
  %v7616 = vld [vmem:[%s21] sm:$0x1]
  %v7618 = vlaneseq
  %v7619 = vshrl.u32 %v7618, 7
  %v7620 = vsub.s32 0, %v7619
  %v7621 = vrot.slane %v7616, %v7620
  %v7879 = vunpack.c.l.b16 %v4522
  %v7880 = vunpack.c.l.b16 %v4523
  %v7881 = vunpack.c.l.b16 %v4524
  %v7882 = vunpack.c.l.b16 %v4525
  %v7883 = vunpack.c.l.b16 %v4526
  %v7884 = vunpack.c.l.b16 %v4527
  %v7885 = vunpack.c.l.b16 %v4528
  %v7886 = vunpack.c.l.b16 %v4529
  %v7887 = vunpack.c.l.b16 %v4530
  %v7888 = vunpack.c.l.b16 %v4531
  %v7889 = vunpack.c.l.b16 %v4532
  %v7890 = vunpack.c.l.b16 %v4533
  %v7891 = vunpack.c.l.b16 %v4534
  %v7892 = vunpack.c.l.b16 %v4535
  %v7893 = vunpack.c.l.b16 %v4536
  %v7894 = vunpack.c.l.b16 %v4537
  %v7895 = vunpack.c.l.b16 %v4538
  %v7896 = vunpack.c.l.b16 %v4539
  %v7897 = vunpack.c.l.b16 %v4540
  %v7898 = vunpack.c.l.b16 %v4541
  %v7899 = vunpack.c.l.b16 %v4542
  %v7900 = vunpack.c.l.b16 %v4543
  %v7901 = vunpack.c.l.b16 %v4544
  %v7902 = vunpack.c.l.b16 %v4545
  %v7903 = vunpack.c.l.b16 %v4546
  %v7904 = vunpack.c.l.b16 %v4547
  %v7905 = vunpack.c.l.b16 %v4548
  %v7906 = vunpack.c.l.b16 %v4549
  %v7907 = vunpack.c.l.b16 %v4550
  %v7908 = vunpack.c.l.b16 %v4551
  %v7909 = vunpack.c.l.b16 %v4552
  %v7910 = vunpack.c.l.b16 %v4553
  %v7911 = vunpack.c.l.b16 %v4554
  %v7912 = vunpack.c.l.b16 %v4555
  %v7913 = vunpack.c.l.b16 %v4556
  %v7914 = vunpack.c.l.b16 %v4557
  %v7915 = vunpack.c.l.b16 %v4558
  %v7916 = vunpack.c.l.b16 %v4559
  %v7917 = vunpack.c.l.b16 %v4560
  %v7918 = vunpack.c.l.b16 %v4561
  %v7919 = vunpack.c.l.b16 %v4562
  %v7920 = vunpack.c.l.b16 %v4563
  %v7921 = vunpack.c.l.b16 %v4564
  %v7922 = vunpack.c.l.b16 %v4565
  %v7923 = vunpack.c.l.b16 %v4566
  %v7924 = vunpack.c.l.b16 %v4567
  %v7925 = vunpack.c.l.b16 %v4568
  %v7926 = vunpack.c.l.b16 %v4569
  %v7927 = vunpack.c.l.b16 %v4570
  %v7928 = vunpack.c.l.b16 %v4571
  %v7929 = vunpack.c.l.b16 %v4572
  %v7930 = vunpack.c.l.b16 %v4573
  %v7931 = vunpack.c.l.b16 %v4574
  %v7932 = vunpack.c.l.b16 %v4575
  %v7933 = vunpack.c.l.b16 %v4576
  %v7934 = vunpack.c.l.b16 %v4577
  %v7935 = vunpack.c.l.b16 %v4578
  %v7936 = vunpack.c.l.b16 %v4579
  %v7937 = vunpack.c.l.b16 %v4580
  %v7938 = vunpack.c.l.b16 %v4581
  %v7939 = vunpack.c.l.b16 %v4582
  %v7940 = vunpack.c.l.b16 %v4583
  %v7941 = vunpack.c.l.b16 %v4584
  %v7942 = vunpack.c.l.b16 %v4585
  %v7943 = vunpack.c.l.b16 %v4586
  %v7944 = vunpack.c.l.b16 %v4587
  %v7945 = vunpack.c.l.b16 %v4588
  %v7946 = vunpack.c.l.b16 %v4589
  %v7947 = vunpack.c.l.b16 %v4590
  %v7948 = vunpack.c.l.b16 %v4591
  %v7949 = vunpack.c.l.b16 %v4592
  %v7950 = vunpack.c.l.b16 %v4593
  %v7951 = vunpack.c.l.b16 %v4594
  %v7952 = vunpack.c.l.b16 %v4595
  %v7953 = vunpack.c.l.b16 %v4596
  %v7954 = vunpack.c.l.b16 %v4597
  %v7955 = vunpack.c.l.b16 %v4598
  %v7956 = vunpack.c.l.b16 %v4599
  %v7957 = vunpack.c.l.b16 %v4600
  %v7958 = vunpack.c.l.b16 %v4601
  %v7959 = vunpack.c.l.b16 %v4602
  %v7960 = vunpack.c.l.b16 %v4603
  %v7961 = vunpack.c.l.b16 %v4604
  %v7962 = vunpack.c.l.b16 %v4605
  %v7963 = vunpack.c.l.b16 %v4606
  %v7964 = vunpack.c.l.b16 %v4607
  %v7965 = vunpack.c.l.b16 %v4608
  %v7966 = vunpack.c.l.b16 %v4609
  %v7967 = vunpack.c.l.b16 %v4610
  %v7968 = vunpack.c.l.b16 %v4611
  %v7969 = vunpack.c.l.b16 %v4612
  %v7970 = vunpack.c.l.b16 %v4613
  %v7971 = vunpack.c.l.b16 %v4614
  %v7972 = vunpack.c.l.b16 %v4615
  %v7973 = vunpack.c.l.b16 %v4616
  %v7974 = vunpack.c.l.b16 %v4617
  %v7975 = vunpack.c.l.b16 %v4618
  %v7976 = vunpack.c.l.b16 %v4619
  %v7977 = vunpack.c.l.b16 %v4620
  %v7978 = vunpack.c.l.b16 %v4621
  %v7979 = vunpack.c.l.b16 %v4622
  %v7980 = vunpack.c.l.b16 %v4623
  %v7981 = vunpack.c.l.b16 %v4624
  %v7982 = vunpack.c.l.b16 %v4625
  %v7983 = vunpack.c.l.b16 %v4626
  %v7984 = vunpack.c.l.b16 %v4627
  %v7985 = vunpack.c.l.b16 %v4628
  %v7986 = vunpack.c.l.b16 %v4629
  %v7987 = vunpack.c.l.b16 %v4630
  %v7988 = vunpack.c.l.b16 %v4631
  %v7989 = vunpack.c.l.b16 %v4632
  %v7990 = vunpack.c.l.b16 %v4633
  %v7991 = vunpack.c.l.b16 %v4634
  %v7992 = vunpack.c.l.b16 %v4635
  %v7993 = vunpack.c.l.b16 %v4636
  %v7994 = vunpack.c.l.b16 %v4637
  %v7995 = vunpack.c.l.b16 %v4638
  %v7996 = vunpack.c.l.b16 %v4639
  %v7997 = vunpack.c.l.b16 %v4640
  %v7998 = vunpack.c.l.b16 %v4641
  %v7999 = vunpack.c.l.b16 %v4642
  %v8000 = vunpack.c.l.b16 %v4643
  %v8001 = vunpack.c.l.b16 %v4644
  %v8002 = vunpack.c.l.b16 %v4645
  %v8003 = vunpack.c.l.b16 %v4646
  %v8004 = vunpack.c.l.b16 %v4647
  %v8005 = vunpack.c.l.b16 %v4648
  %v8006 = vunpack.c.l.b16 %v4649
  %v8007 = vunpack.c.l.b16 %v4650
  %v8008 = vunpack.c.l.b16 %v4651
  %v8009 = vunpack.c.l.b16 %v4652
  %v8010 = vunpack.c.l.b16 %v4653
  %v8011 = vunpack.c.l.b16 %v4654
  %v8012 = vunpack.c.l.b16 %v4655
  %v8013 = vunpack.c.l.b16 %v4656
  %v8014 = vunpack.c.l.b16 %v4657
  %v8015 = vunpack.c.l.b16 %v4658
  %v8016 = vunpack.c.l.b16 %v4659
  %v8017 = vunpack.c.l.b16 %v4660
  %v8018 = vunpack.c.l.b16 %v4661
  %v8019 = vunpack.c.l.b16 %v4662
  %v8020 = vunpack.c.l.b16 %v4663
  %v8021 = vunpack.c.l.b16 %v4664
  %v8022 = vunpack.c.l.b16 %v4665
  %v8023 = vunpack.c.l.b16 %v4666
  %v8024 = vunpack.c.l.b16 %v4667
  %v8025 = vunpack.c.l.b16 %v4668
  %v8026 = vunpack.c.l.b16 %v4669
  %v8027 = vunpack.c.l.b16 %v4670
  %v8028 = vunpack.c.l.b16 %v4671
  %v8029 = vunpack.c.l.b16 %v4672
  %v8030 = vunpack.c.l.b16 %v4673
  %v8031 = vunpack.c.l.b16 %v4674
  %v8032 = vunpack.c.l.b16 %v4675
  %v8033 = vunpack.c.l.b16 %v4676
  %v8034 = vunpack.c.l.b16 %v4677
  %v8035 = vunpack.c.l.b16 %v4678
  %v8036 = vunpack.c.l.b16 %v4679
  %v8037 = vunpack.c.l.b16 %v4680
  %v8038 = vunpack.c.l.b16 %v4681
  %v8039 = vunpack.c.l.b16 %v4682
  %v8040 = vunpack.c.l.b16 %v4683
  %v8041 = vunpack.c.l.b16 %v4684
  %v8042 = vunpack.c.l.b16 %v4685
  %v8043 = vunpack.c.l.b16 %v4686
  %v8044 = vunpack.c.l.b16 %v4687
  %v8045 = vunpack.c.l.b16 %v4688
  %v8046 = vunpack.c.l.b16 %v4689
  %v8047 = vunpack.c.l.b16 %v4690
  %v8048 = vunpack.c.l.b16 %v4691
  %v8049 = vunpack.c.l.b16 %v4692
  %v8050 = vunpack.c.l.b16 %v4693
  %v8051 = vunpack.c.l.b16 %v4694
  %v8052 = vunpack.c.l.b16 %v4695
  %v8053 = vunpack.c.l.b16 %v4696
  %v8054 = vunpack.c.l.b16 %v4697
  %v8055 = vunpack.c.l.b16 %v4698
  %v8056 = vunpack.c.l.b16 %v4699
  %v8057 = vunpack.c.l.b16 %v4700
  %v8058 = vunpack.c.l.b16 %v4701
  %v8059 = vunpack.c.l.b16 %v4702
  %v8060 = vunpack.c.l.b16 %v4703
  %v8061 = vunpack.c.l.b16 %v4704
  %v8062 = vunpack.c.l.b16 %v4705
  %v8063 = vunpack.c.l.b16 %v4706
  %v8064 = vunpack.c.l.b16 %v4707
  %v8065 = vunpack.c.l.b16 %v4708
  %v8066 = vunpack.c.l.b16 %v4709
  %v8067 = vunpack.c.l.b16 %v4710
  %v8068 = vunpack.c.l.b16 %v4711
  %v8069 = vunpack.c.l.b16 %v4712
  %v8070 = vunpack.c.l.b16 %v4713
  %v8071 = vunpack.c.l.b16 %v4714
  %v8072 = vunpack.c.l.b16 %v4715
  %v8073 = vunpack.c.l.b16 %v4716
  %v8074 = vunpack.c.l.b16 %v4717
  %v8075 = vunpack.c.l.b16 %v4718
  %v8076 = vunpack.c.l.b16 %v4719
  %v8077 = vunpack.c.l.b16 %v4720
  %v8078 = vunpack.c.l.b16 %v4721
  %v8079 = vunpack.c.l.b16 %v4722
  %v8080 = vunpack.c.l.b16 %v4723
  %v8081 = vunpack.c.l.b16 %v4724
  %v8082 = vunpack.c.l.b16 %v4725
  %v8083 = vunpack.c.l.b16 %v4726
  %v8084 = vunpack.c.l.b16 %v4727
  %v8085 = vunpack.c.l.b16 %v4728
  %v8086 = vunpack.c.l.b16 %v4729
  %v8087 = vunpack.c.l.b16 %v4730
  %v8088 = vunpack.c.l.b16 %v4731
  %v8089 = vunpack.c.l.b16 %v4732
  %v8090 = vunpack.c.l.b16 %v4733
  %v8091 = vunpack.c.l.b16 %v4734
  %v8092 = vunpack.c.l.b16 %v4735
  %v8093 = vunpack.c.l.b16 %v4736
  %v8094 = vunpack.c.l.b16 %v4737
  %v8095 = vunpack.c.l.b16 %v4738
  %v8096 = vunpack.c.l.b16 %v4739
  %v8097 = vunpack.c.l.b16 %v4740
  %v8098 = vunpack.c.l.b16 %v4741
  %v8099 = vunpack.c.l.b16 %v4742
  %v8100 = vunpack.c.l.b16 %v4743
  %v8101 = vunpack.c.l.b16 %v4744
  %v8102 = vunpack.c.l.b16 %v4745
  %v8103 = vunpack.c.l.b16 %v4746
  %v8104 = vunpack.c.l.b16 %v4747
  %v8105 = vunpack.c.l.b16 %v4748
  %v8106 = vunpack.c.l.b16 %v4749
  %v8107 = vunpack.c.l.b16 %v4750
  %v8108 = vunpack.c.l.b16 %v4751
  %v8109 = vunpack.c.l.b16 %v4752
  %v8110 = vunpack.c.l.b16 %v4753
  %v8111 = vunpack.c.l.b16 %v4754
  %v8112 = vunpack.c.l.b16 %v4755
  %v8113 = vunpack.c.l.b16 %v4756
  %v8114 = vunpack.c.l.b16 %v4757
  %v8115 = vunpack.c.l.b16 %v4758
  %v8116 = vunpack.c.l.b16 %v4759
  %v8117 = vunpack.c.l.b16 %v4760
  %v8118 = vunpack.c.l.b16 %v4761
  %v8119 = vunpack.c.l.b16 %v4762
  %v8120 = vunpack.c.l.b16 %v4763
  %v8121 = vunpack.c.l.b16 %v4764
  %v8122 = vunpack.c.l.b16 %v4765
  %v8123 = vunpack.c.l.b16 %v4766
  %v8124 = vunpack.c.l.b16 %v4767
  %v8125 = vunpack.c.l.b16 %v4768
  %v8126 = vunpack.c.l.b16 %v4769
  %v8127 = vunpack.c.l.b16 %v4770
  %v8128 = vunpack.c.l.b16 %v4771
  %v8129 = vunpack.c.l.b16 %v4772
  %v8130 = vunpack.c.l.b16 %v4773
  %v8131 = vunpack.c.l.b16 %v4774
  %v8132 = vunpack.c.l.b16 %v4775
  %v8133 = vunpack.c.l.b16 %v4776
  %v8134 = vunpack.c.l.b16 %v4777
  %v8135 = vpack.c.b16 %v7880, %v7879
  %v8136 = vpack.c.b16 %v7882, %v7881
  %v8137 = vpack.c.b16 %v7884, %v7883
  %v8138 = vpack.c.b16 %v7886, %v7885
  %v8139 = vpack.c.b16 %v7888, %v7887
  %v8140 = vpack.c.b16 %v7890, %v7889
  %v8141 = vpack.c.b16 %v7892, %v7891
  %v8142 = vpack.c.b16 %v7894, %v7893
  %v8143 = vpack.c.b16 %v7896, %v7895
  %v8144 = vpack.c.b16 %v7898, %v7897
  %v8145 = vpack.c.b16 %v7900, %v7899
  %v8146 = vpack.c.b16 %v7902, %v7901
  %v8147 = vpack.c.b16 %v7904, %v7903
  %v8148 = vpack.c.b16 %v7906, %v7905
  %v8149 = vpack.c.b16 %v7908, %v7907
  %v8150 = vpack.c.b16 %v7910, %v7909
  %v8151 = vpack.c.b16 %v7912, %v7911
  %v8152 = vpack.c.b16 %v7914, %v7913
  %v8153 = vpack.c.b16 %v7916, %v7915
  %v8154 = vpack.c.b16 %v7918, %v7917
  %v8155 = vpack.c.b16 %v7920, %v7919
  %v8156 = vpack.c.b16 %v7922, %v7921
  %v8157 = vpack.c.b16 %v7924, %v7923
  %v8158 = vpack.c.b16 %v7926, %v7925
  %v8159 = vpack.c.b16 %v7928, %v7927
  %v8160 = vpack.c.b16 %v7930, %v7929
  %v8161 = vpack.c.b16 %v7932, %v7931
  %v8162 = vpack.c.b16 %v7934, %v7933
  %v8163 = vpack.c.b16 %v7936, %v7935
  %v8164 = vpack.c.b16 %v7938, %v7937
  %v8165 = vpack.c.b16 %v7940, %v7939
  %v8166 = vpack.c.b16 %v7942, %v7941
  %v8167 = vpack.c.b16 %v7944, %v7943
  %v8168 = vpack.c.b16 %v7946, %v7945
  %v8169 = vpack.c.b16 %v7948, %v7947
  %v8170 = vpack.c.b16 %v7950, %v7949
  %v8171 = vpack.c.b16 %v7952, %v7951
  %v8172 = vpack.c.b16 %v7954, %v7953
  %v8173 = vpack.c.b16 %v7956, %v7955
  %v8174 = vpack.c.b16 %v7958, %v7957
  %v8175 = vpack.c.b16 %v7960, %v7959
  %v8176 = vpack.c.b16 %v7962, %v7961
  %v8177 = vpack.c.b16 %v7964, %v7963
  %v8178 = vpack.c.b16 %v7966, %v7965
  %v8179 = vpack.c.b16 %v7968, %v7967
  %v8180 = vpack.c.b16 %v7970, %v7969
  %v8181 = vpack.c.b16 %v7972, %v7971
  %v8182 = vpack.c.b16 %v7974, %v7973
  %v8183 = vpack.c.b16 %v7976, %v7975
  %v8184 = vpack.c.b16 %v7978, %v7977
  %v8185 = vpack.c.b16 %v7980, %v7979
  %v8186 = vpack.c.b16 %v7982, %v7981
  %v8187 = vpack.c.b16 %v7984, %v7983
  %v8188 = vpack.c.b16 %v7986, %v7985
  %v8189 = vpack.c.b16 %v7988, %v7987
  %v8190 = vpack.c.b16 %v7990, %v7989
  %v8191 = vpack.c.b16 %v7992, %v7991
  %v8192 = vpack.c.b16 %v7994, %v7993
  %v8193 = vpack.c.b16 %v7996, %v7995
  %v8194 = vpack.c.b16 %v7998, %v7997
  %v8195 = vpack.c.b16 %v8000, %v7999
  %v8196 = vpack.c.b16 %v8002, %v8001
  %v8197 = vpack.c.b16 %v8004, %v8003
  %v8198 = vpack.c.b16 %v8006, %v8005
  %v8199 = vpack.c.b16 %v8008, %v8007
  %v8200 = vpack.c.b16 %v8010, %v8009
  %v8201 = vpack.c.b16 %v8012, %v8011
  %v8202 = vpack.c.b16 %v8014, %v8013
  %v8203 = vpack.c.b16 %v8016, %v8015
  %v8204 = vpack.c.b16 %v8018, %v8017
  %v8205 = vpack.c.b16 %v8020, %v8019
  %v8206 = vpack.c.b16 %v8022, %v8021
  %v8207 = vpack.c.b16 %v8024, %v8023
  %v8208 = vpack.c.b16 %v8026, %v8025
  %v8209 = vpack.c.b16 %v8028, %v8027
  %v8210 = vpack.c.b16 %v8030, %v8029
  %v8211 = vpack.c.b16 %v8032, %v8031
  %v8212 = vpack.c.b16 %v8034, %v8033
  %v8213 = vpack.c.b16 %v8036, %v8035
  %v8214 = vpack.c.b16 %v8038, %v8037
  %v8215 = vpack.c.b16 %v8040, %v8039
  %v8216 = vpack.c.b16 %v8042, %v8041
  %v8217 = vpack.c.b16 %v8044, %v8043
  %v8218 = vpack.c.b16 %v8046, %v8045
  %v8219 = vpack.c.b16 %v8048, %v8047
  %v8220 = vpack.c.b16 %v8050, %v8049
  %v8221 = vpack.c.b16 %v8052, %v8051
  %v8222 = vpack.c.b16 %v8054, %v8053
  %v8223 = vpack.c.b16 %v8056, %v8055
  %v8224 = vpack.c.b16 %v8058, %v8057
  %v8225 = vpack.c.b16 %v8060, %v8059
  %v8226 = vpack.c.b16 %v8062, %v8061
  %v8227 = vpack.c.b16 %v8064, %v8063
  %v8228 = vpack.c.b16 %v8066, %v8065
  %v8229 = vpack.c.b16 %v8068, %v8067
  %v8230 = vpack.c.b16 %v8070, %v8069
  %v8231 = vpack.c.b16 %v8072, %v8071
  %v8232 = vpack.c.b16 %v8074, %v8073
  %v8233 = vpack.c.b16 %v8076, %v8075
  %v8234 = vpack.c.b16 %v8078, %v8077
  %v8235 = vpack.c.b16 %v8080, %v8079
  %v8236 = vpack.c.b16 %v8082, %v8081
  %v8237 = vpack.c.b16 %v8084, %v8083
  %v8238 = vpack.c.b16 %v8086, %v8085
  %v8239 = vpack.c.b16 %v8088, %v8087
  %v8240 = vpack.c.b16 %v8090, %v8089
  %v8241 = vpack.c.b16 %v8092, %v8091
  %v8242 = vpack.c.b16 %v8094, %v8093
  %v8243 = vpack.c.b16 %v8096, %v8095
  %v8244 = vpack.c.b16 %v8098, %v8097
  %v8245 = vpack.c.b16 %v8100, %v8099
  %v8246 = vpack.c.b16 %v8102, %v8101
  %v8247 = vpack.c.b16 %v8104, %v8103
  %v8248 = vpack.c.b16 %v8106, %v8105
  %v8249 = vpack.c.b16 %v8108, %v8107
  %v8250 = vpack.c.b16 %v8110, %v8109
  %v8251 = vpack.c.b16 %v8112, %v8111
  %v8252 = vpack.c.b16 %v8114, %v8113
  %v8253 = vpack.c.b16 %v8116, %v8115
  %v8254 = vpack.c.b16 %v8118, %v8117
  %v8255 = vpack.c.b16 %v8120, %v8119
  %v8256 = vpack.c.b16 %v8122, %v8121
  %v8257 = vpack.c.b16 %v8124, %v8123
  %v8258 = vpack.c.b16 %v8126, %v8125
  %v8259 = vpack.c.b16 %v8128, %v8127
  %v8260 = vpack.c.b16 %v8130, %v8129
  %v8261 = vpack.c.b16 %v8132, %v8131
  %v8262 = vpack.c.b16 %v8134, %v8133
  %8391 = vmatprep.subr.bf16.mxu0 0
  %8392 = vmatpush1.bf16.msra.mxu0 %v8135
  %8393 = vmatprep.subr.bf16.mxu0 0
  %8394 = vmatpush1.bf16.msra.mxu0 %v8136
  %8395 = vmatprep.subr.bf16.mxu0 0
  %8396 = vmatpush1.bf16.msra.mxu0 %v8137
  %8397 = vmatprep.subr.bf16.mxu0 0
  %8398 = vmatpush1.bf16.msra.mxu0 %v8138
  %8399 = vmatprep.subr.bf16.mxu0 0
  %8400 = vmatpush1.bf16.msra.mxu0 %v8139
  %8401 = vmatprep.subr.bf16.mxu0 0
  %8402 = vmatpush1.bf16.msra.mxu0 %v8140
  %8403 = vmatprep.subr.bf16.mxu0 0
  %8404 = vmatpush1.bf16.msra.mxu0 %v8141
  %8405 = vmatprep.subr.bf16.mxu0 0
  %8406 = vmatpush1.bf16.msra.mxu0 %v8142
  %8407 = vmatprep.subr.bf16.mxu0 0
  %8408 = vmatpush1.bf16.msra.mxu0 %v8143
  %8409 = vmatprep.subr.bf16.mxu0 0
  %8410 = vmatpush1.bf16.msra.mxu0 %v8144
  %8411 = vmatprep.subr.bf16.mxu0 0
  %8412 = vmatpush1.bf16.msra.mxu0 %v8145
  %8413 = vmatprep.subr.bf16.mxu0 0
  %8414 = vmatpush1.bf16.msra.mxu0 %v8146
  %8415 = vmatprep.subr.bf16.mxu0 0
  %8416 = vmatpush1.bf16.msra.mxu0 %v8147
  %8417 = vmatprep.subr.bf16.mxu0 0
  %8418 = vmatpush1.bf16.msra.mxu0 %v8148
  %8419 = vmatprep.subr.bf16.mxu0 0
  %8420 = vmatpush1.bf16.msra.mxu0 %v8149
  %8421 = vmatprep.subr.bf16.mxu0 0
  %8422 = vmatpush1.bf16.msra.mxu0 %v8150
  %8423 = vmatprep.mubr.bf16.mxu0 %v7585
  %8424 = vmatmul.mubr.bf16.gmra.mrb[0].mxu0 %v7584
  %v8425 = vpop.f32.mrb[0].mxu0
  %v8426 = vadd.f32 %v7621, %v8425
  %v8427 = vpop.f32.mrb[0].mxu0
  %v8428 = vpop.f32.mrb[0].mxu0
  %v8429 = vadd.f32 %v7621, %v8428
  %v8430 = vpop.f32.mrb[0].mxu0
  %8431 = vmatprep.mubr.bf16.mxu0 %v7601
  %8432 = vmatmul.mubr.bf16.gmra.mrb[0].mxu0 %v7600
  %v8433 = vpop.f32.mrb[0].mxu0
  %v8434 = vadd.f32 %v7621, %v8433
  %v8435 = vpop.f32.mrb[0].mxu0
  %v8436 = vpop.f32.mrb[0].mxu0
  %v8437 = vadd.f32 %v7621, %v8436
  %v8438 = vpop.f32.mrb[0].mxu0
  %8439 = vdwg.mxu0
  %8440 = vmatprep.subr.bf16.mxu0 0
  %8441 = vmatpush1.bf16.msra.mxu0 %v8151
  %8442 = vmatprep.subr.bf16.mxu0 0
  %8443 = vmatpush1.bf16.msra.mxu0 %v8152
  %8444 = vmatprep.subr.bf16.mxu0 0
  %8445 = vmatpush1.bf16.msra.mxu0 %v8153
  %8446 = vmatprep.subr.bf16.mxu0 0
  %8447 = vmatpush1.bf16.msra.mxu0 %v8154
  %8448 = vmatprep.subr.bf16.mxu0 0
  %8449 = vmatpush1.bf16.msra.mxu0 %v8155
  %8450 = vmatprep.subr.bf16.mxu0 0
  %8451 = vmatpush1.bf16.msra.mxu0 %v8156
  %8452 = vmatprep.subr.bf16.mxu0 0
  %8453 = vmatpush1.bf16.msra.mxu0 %v8157
  %8454 = vmatprep.subr.bf16.mxu0 0
  %8455 = vmatpush1.bf16.msra.mxu0 %v8158
  %8456 = vmatprep.subr.bf16.mxu0 0
  %8457 = vmatpush1.bf16.msra.mxu0 %v8159
  %8458 = vmatprep.subr.bf16.mxu0 0
  %8459 = vmatpush1.bf16.msra.mxu0 %v8160
  %8460 = vmatprep.subr.bf16.mxu0 0
  %8461 = vmatpush1.bf16.msra.mxu0 %v8161
  %8462 = vmatprep.subr.bf16.mxu0 0
  %8463 = vmatpush1.bf16.msra.mxu0 %v8162
  %8464 = vmatprep.subr.bf16.mxu0 0
  %8465 = vmatpush1.bf16.msra.mxu0 %v8163
  %8466 = vmatprep.subr.bf16.mxu0 0
  %8467 = vmatpush1.bf16.msra.mxu0 %v8164
  %8468 = vmatprep.subr.bf16.mxu0 0
  %8469 = vmatpush1.bf16.msra.mxu0 %v8165
  %8470 = vmatprep.subr.bf16.mxu0 0
  %8471 = vmatpush1.bf16.msra.mxu0 %v8166
  %8472 = vmatprep.mubr.bf16.mxu0 %v7587
  %8473 = vmatmul.mubr.bf16.gmra.mrb[0].mxu0 %v7586
  %v8474 = vpop.f32.mrb[0].mxu0
  %v8475 = vadd.f32 %v8426, %v8474
  %v8476 = vpop.f32.mrb[0].mxu0
  %v8477 = vpop.f32.mrb[0].mxu0
  %v8478 = vadd.f32 %v8429, %v8477
  %v8479 = vpop.f32.mrb[0].mxu0
  %8480 = vmatprep.mubr.bf16.mxu0 %v7603
  %8481 = vmatmul.mubr.bf16.gmra.mrb[0].mxu0 %v7602
  %v8482 = vpop.f32.mrb[0].mxu0
  %v8483 = vadd.f32 %v8434, %v8482
  %v8484 = vpop.f32.mrb[0].mxu0
  %v8485 = vpop.f32.mrb[0].mxu0
  %v8486 = vadd.f32 %v8437, %v8485
  %v8487 = vpop.f32.mrb[0].mxu0
  %8488 = vdwg.mxu0
  %8489 = vmatprep.subr.bf16.mxu0 0
  %8490 = vmatpush1.bf16.msra.mxu0 %v8167
  %8491 = vmatprep.subr.bf16.mxu0 0
  %8492 = vmatpush1.bf16.msra.mxu0 %v8168
  %8493 = vmatprep.subr.bf16.mxu0 0
  %8494 = vmatpush1.bf16.msra.mxu0 %v8169
  %8495 = vmatprep.subr.bf16.mxu0 0
  %8496 = vmatpush1.bf16.msra.mxu0 %v8170
  %8497 = vmatprep.subr.bf16.mxu0 0
  %8498 = vmatpush1.bf16.msra.mxu0 %v8171
  %8499 = vmatprep.subr.bf16.mxu0 0
  %8500 = vmatpush1.bf16.msra.mxu0 %v8172
  %8501 = vmatprep.subr.bf16.mxu0 0
  %8502 = vmatpush1.bf16.msra.mxu0 %v8173
  %8503 = vmatprep.subr.bf16.mxu0 0
  %8504 = vmatpush1.bf16.msra.mxu0 %v8174
  %8505 = vmatprep.subr.bf16.mxu0 0
  %8506 = vmatpush1.bf16.msra.mxu0 %v8175
  %8507 = vmatprep.subr.bf16.mxu0 0
  %8508 = vmatpush1.bf16.msra.mxu0 %v8176
  %8509 = vmatprep.subr.bf16.mxu0 0
  %8510 = vmatpush1.bf16.msra.mxu0 %v8177
  %8511 = vmatprep.subr.bf16.mxu0 0
  %8512 = vmatpush1.bf16.msra.mxu0 %v8178
  %8513 = vmatprep.subr.bf16.mxu0 0
  %8514 = vmatpush1.bf16.msra.mxu0 %v8179
  %8515 = vmatprep.subr.bf16.mxu0 0
  %8516 = vmatpush1.bf16.msra.mxu0 %v8180
  %8517 = vmatprep.subr.bf16.mxu0 0
  %8518 = vmatpush1.bf16.msra.mxu0 %v8181
  %8519 = vmatprep.subr.bf16.mxu0 0
  %8520 = vmatpush1.bf16.msra.mxu0 %v8182
  %8521 = vmatprep.mubr.bf16.mxu0 %v7589
  %8522 = vmatmul.mubr.bf16.gmra.mrb[0].mxu0 %v7588
  %v8523 = vpop.f32.mrb[0].mxu0
  %v8524 = vadd.f32 %v8475, %v8523
  %v8525 = vpop.f32.mrb[0].mxu0
  %v8526 = vpop.f32.mrb[0].mxu0
  %v8527 = vadd.f32 %v8478, %v8526
  %v8528 = vpop.f32.mrb[0].mxu0
  %8529 = vmatprep.mubr.bf16.mxu0 %v7605
  %8530 = vmatmul.mubr.bf16.gmra.mrb[0].mxu0 %v7604
  %v8531 = vpop.f32.mrb[0].mxu0
  %v8532 = vadd.f32 %v8483, %v8531
  %v8533 = vpop.f32.mrb[0].mxu0
  %v8534 = vpop.f32.mrb[0].mxu0
  %v8535 = vadd.f32 %v8486, %v8534
  %v8536 = vpop.f32.mrb[0].mxu0
  %8537 = vdwg.mxu0
  %8538 = vmatprep.subr.bf16.mxu0 0
  %8539 = vmatpush1.bf16.msra.mxu0 %v8183
  %8540 = vmatprep.subr.bf16.mxu0 0
  %8541 = vmatpush1.bf16.msra.mxu0 %v8184
  %8542 = vmatprep.subr.bf16.mxu0 0
  %8543 = vmatpush1.bf16.msra.mxu0 %v8185
  %8544 = vmatprep.subr.bf16.mxu0 0
  %8545 = vmatpush1.bf16.msra.mxu0 %v8186
  %8546 = vmatprep.subr.bf16.mxu0 0
  %8547 = vmatpush1.bf16.msra.mxu0 %v8187
  %8548 = vmatprep.subr.bf16.mxu0 0
  %8549 = vmatpush1.bf16.msra.mxu0 %v8188
  %8550 = vmatprep.subr.bf16.mxu0 0
  %8551 = vmatpush1.bf16.msra.mxu0 %v8189
  %8552 = vmatprep.subr.bf16.mxu0 0
  %8553 = vmatpush1.bf16.msra.mxu0 %v8190
  %8554 = vmatprep.subr.bf16.mxu0 0
  %8555 = vmatpush1.bf16.msra.mxu0 %v8191
  %8556 = vmatprep.subr.bf16.mxu0 0
  %8557 = vmatpush1.bf16.msra.mxu0 %v8192
  %8558 = vmatprep.subr.bf16.mxu0 0
  %8559 = vmatpush1.bf16.msra.mxu0 %v8193
  %8560 = vmatprep.subr.bf16.mxu0 0
  %8561 = vmatpush1.bf16.msra.mxu0 %v8194
  %8562 = vmatprep.subr.bf16.mxu0 0
  %8563 = vmatpush1.bf16.msra.mxu0 %v8195
  %8564 = vmatprep.subr.bf16.mxu0 0
  %8565 = vmatpush1.bf16.msra.mxu0 %v8196
  %8566 = vmatprep.subr.bf16.mxu0 0
  %8567 = vmatpush1.bf16.msra.mxu0 %v8197
  %8568 = vmatprep.subr.bf16.mxu0 0
  %8569 = vmatpush1.bf16.msra.mxu0 %v8198
  %8570 = vmatprep.mubr.bf16.mxu0 %v7591
  %8571 = vmatmul.mubr.bf16.gmra.mrb[0].mxu0 %v7590
  %v8572 = vpop.f32.mrb[0].mxu0
  %v8573 = vadd.f32 %v8524, %v8572
  %v8574 = vpop.f32.mrb[0].mxu0
  %v8575 = vpop.f32.mrb[0].mxu0
  %v8576 = vadd.f32 %v8527, %v8575
  %v8577 = vpop.f32.mrb[0].mxu0
  %8578 = vmatprep.mubr.bf16.mxu0 %v7607
  %8579 = vmatmul.mubr.bf16.gmra.mrb[0].mxu0 %v7606
  %v8580 = vpop.f32.mrb[0].mxu0
  %v8581 = vadd.f32 %v8532, %v8580
  %v8582 = vpop.f32.mrb[0].mxu0
  %v8583 = vpop.f32.mrb[0].mxu0
  %v8584 = vadd.f32 %v8535, %v8583
  %v8585 = vpop.f32.mrb[0].mxu0
  %8586 = vdwg.mxu0
  %8587 = vmatprep.subr.bf16.mxu0 0
  %8588 = vmatpush1.bf16.msra.mxu0 %v8199
  %8589 = vmatprep.subr.bf16.mxu0 0
  %8590 = vmatpush1.bf16.msra.mxu0 %v8200
  %8591 = vmatprep.subr.bf16.mxu0 0
  %8592 = vmatpush1.bf16.msra.mxu0 %v8201
  %8593 = vmatprep.subr.bf16.mxu0 0
  %8594 = vmatpush1.bf16.msra.mxu0 %v8202
  %8595 = vmatprep.subr.bf16.mxu0 0
  %8596 = vmatpush1.bf16.msra.mxu0 %v8203
  %8597 = vmatprep.subr.bf16.mxu0 0
  %8598 = vmatpush1.bf16.msra.mxu0 %v8204
  %8599 = vmatprep.subr.bf16.mxu0 0
  %8600 = vmatpush1.bf16.msra.mxu0 %v8205
  %8601 = vmatprep.subr.bf16.mxu0 0
  %8602 = vmatpush1.bf16.msra.mxu0 %v8206
  %8603 = vmatprep.subr.bf16.mxu0 0
  %8604 = vmatpush1.bf16.msra.mxu0 %v8207
  %8605 = vmatprep.subr.bf16.mxu0 0
  %8606 = vmatpush1.bf16.msra.mxu0 %v8208
  %8607 = vmatprep.subr.bf16.mxu0 0
  %8608 = vmatpush1.bf16.msra.mxu0 %v8209
  %8609 = vmatprep.subr.bf16.mxu0 0
  %8610 = vmatpush1.bf16.msra.mxu0 %v8210
  %8611 = vmatprep.subr.bf16.mxu0 0
  %8612 = vmatpush1.bf16.msra.mxu0 %v8211
  %8613 = vmatprep.subr.bf16.mxu0 0
  %8614 = vmatpush1.bf16.msra.mxu0 %v8212
  %8615 = vmatprep.subr.bf16.mxu0 0
  %8616 = vmatpush1.bf16.msra.mxu0 %v8213
  %8617 = vmatprep.subr.bf16.mxu0 0
  %8618 = vmatpush1.bf16.msra.mxu0 %v8214
  %8619 = vmatprep.mubr.bf16.mxu0 %v7593
  %8620 = vmatmul.mubr.bf16.gmra.mrb[0].mxu0 %v7592
  %v8621 = vpop.f32.mrb[0].mxu0
  %v8622 = vadd.f32 %v8573, %v8621
  %v8623 = vpop.f32.mrb[0].mxu0
  %v8624 = vpop.f32.mrb[0].mxu0
  %v8625 = vadd.f32 %v8576, %v8624
  %v8626 = vpop.f32.mrb[0].mxu0
  %8627 = vmatprep.mubr.bf16.mxu0 %v7609
  %8628 = vmatmul.mubr.bf16.gmra.mrb[0].mxu0 %v7608
  %v8629 = vpop.f32.mrb[0].mxu0
  %v8630 = vadd.f32 %v8581, %v8629
  %v8631 = vpop.f32.mrb[0].mxu0
  %v8632 = vpop.f32.mrb[0].mxu0
  %v8633 = vadd.f32 %v8584, %v8632
  %v8634 = vpop.f32.mrb[0].mxu0
  %8635 = vdwg.mxu0
  %8636 = vmatprep.subr.bf16.mxu0 0
  %8637 = vmatpush1.bf16.msra.mxu0 %v8215
  %8638 = vmatprep.subr.bf16.mxu0 0
  %8639 = vmatpush1.bf16.msra.mxu0 %v8216
  %8640 = vmatprep.subr.bf16.mxu0 0
  %8641 = vmatpush1.bf16.msra.mxu0 %v8217
  %8642 = vmatprep.subr.bf16.mxu0 0
  %8643 = vmatpush1.bf16.msra.mxu0 %v8218
  %8644 = vmatprep.subr.bf16.mxu0 0
  %8645 = vmatpush1.bf16.msra.mxu0 %v8219
  %8646 = vmatprep.subr.bf16.mxu0 0
  %8647 = vmatpush1.bf16.msra.mxu0 %v8220
  %8648 = vmatprep.subr.bf16.mxu0 0
  %8649 = vmatpush1.bf16.msra.mxu0 %v8221
  %8650 = vmatprep.subr.bf16.mxu0 0
  %8651 = vmatpush1.bf16.msra.mxu0 %v8222
  %8652 = vmatprep.subr.bf16.mxu0 0
  %8653 = vmatpush1.bf16.msra.mxu0 %v8223
  %8654 = vmatprep.subr.bf16.mxu0 0
  %8655 = vmatpush1.bf16.msra.mxu0 %v8224
  %8656 = vmatprep.subr.bf16.mxu0 0
  %8657 = vmatpush1.bf16.msra.mxu0 %v8225
  %8658 = vmatprep.subr.bf16.mxu0 0
  %8659 = vmatpush1.bf16.msra.mxu0 %v8226
  %8660 = vmatprep.subr.bf16.mxu0 0
  %8661 = vmatpush1.bf16.msra.mxu0 %v8227
  %8662 = vmatprep.subr.bf16.mxu0 0
  %8663 = vmatpush1.bf16.msra.mxu0 %v8228
  %8664 = vmatprep.subr.bf16.mxu0 0
  %8665 = vmatpush1.bf16.msra.mxu0 %v8229
  %8666 = vmatprep.subr.bf16.mxu0 0
  %8667 = vmatpush1.bf16.msra.mxu0 %v8230
  %8668 = vmatprep.mubr.bf16.mxu0 %v7595
  %8669 = vmatmul.mubr.bf16.gmra.mrb[0].mxu0 %v7594
  %v8670 = vpop.f32.mrb[0].mxu0
  %v8671 = vadd.f32 %v8622, %v8670
  %v8672 = vpop.f32.mrb[0].mxu0
  %v8673 = vpop.f32.mrb[0].mxu0
  %v8674 = vadd.f32 %v8625, %v8673
  %v8675 = vpop.f32.mrb[0].mxu0
  %8676 = vmatprep.mubr.bf16.mxu0 %v7611
  %8677 = vmatmul.mubr.bf16.gmra.mrb[0].mxu0 %v7610
  %v8678 = vpop.f32.mrb[0].mxu0
  %v8679 = vadd.f32 %v8630, %v8678
  %v8680 = vpop.f32.mrb[0].mxu0
  %v8681 = vpop.f32.mrb[0].mxu0
  %v8682 = vadd.f32 %v8633, %v8681
  %v8683 = vpop.f32.mrb[0].mxu0
  %8684 = vdwg.mxu0
  %8685 = vmatprep.subr.bf16.mxu0 0
  %8686 = vmatpush1.bf16.msra.mxu0 %v8231
  %8687 = vmatprep.subr.bf16.mxu0 0
  %8688 = vmatpush1.bf16.msra.mxu0 %v8232
  %8689 = vmatprep.subr.bf16.mxu0 0
  %8690 = vmatpush1.bf16.msra.mxu0 %v8233
  %8691 = vmatprep.subr.bf16.mxu0 0
  %8692 = vmatpush1.bf16.msra.mxu0 %v8234
  %8693 = vmatprep.subr.bf16.mxu0 0
  %8694 = vmatpush1.bf16.msra.mxu0 %v8235
  %8695 = vmatprep.subr.bf16.mxu0 0
  %8696 = vmatpush1.bf16.msra.mxu0 %v8236
  %8697 = vmatprep.subr.bf16.mxu0 0
  %8698 = vmatpush1.bf16.msra.mxu0 %v8237
  %8699 = vmatprep.subr.bf16.mxu0 0
  %8700 = vmatpush1.bf16.msra.mxu0 %v8238
  %8701 = vmatprep.subr.bf16.mxu0 0
  %8702 = vmatpush1.bf16.msra.mxu0 %v8239
  %8703 = vmatprep.subr.bf16.mxu0 0
  %8704 = vmatpush1.bf16.msra.mxu0 %v8240
  %8705 = vmatprep.subr.bf16.mxu0 0
  %8706 = vmatpush1.bf16.msra.mxu0 %v8241
  %8707 = vmatprep.subr.bf16.mxu0 0
  %8708 = vmatpush1.bf16.msra.mxu0 %v8242
  %8709 = vmatprep.subr.bf16.mxu0 0
  %8710 = vmatpush1.bf16.msra.mxu0 %v8243
  %8711 = vmatprep.subr.bf16.mxu0 0
  %8712 = vmatpush1.bf16.msra.mxu0 %v8244
  %8713 = vmatprep.subr.bf16.mxu0 0
  %8714 = vmatpush1.bf16.msra.mxu0 %v8245
  %8715 = vmatprep.subr.bf16.mxu0 0
  %8716 = vmatpush1.bf16.msra.mxu0 %v8246
  %8717 = vmatprep.mubr.bf16.mxu0 %v7597
  %8718 = vmatmul.mubr.bf16.gmra.mrb[0].mxu0 %v7596
  %v8719 = vpop.f32.mrb[0].mxu0
  %v8720 = vadd.f32 %v8671, %v8719
  %v8721 = vpop.f32.mrb[0].mxu0
  %v8722 = vpop.f32.mrb[0].mxu0
  %v8723 = vadd.f32 %v8674, %v8722
  %v8724 = vpop.f32.mrb[0].mxu0
  %8725 = vmatprep.mubr.bf16.mxu0 %v7613
  %8726 = vmatmul.mubr.bf16.gmra.mrb[0].mxu0 %v7612
  %v8727 = vpop.f32.mrb[0].mxu0
  %v8728 = vadd.f32 %v8679, %v8727
  %v8729 = vpop.f32.mrb[0].mxu0
  %v8730 = vpop.f32.mrb[0].mxu0
  %v8731 = vadd.f32 %v8682, %v8730
  %v8732 = vpop.f32.mrb[0].mxu0
  %8733 = vdwg.mxu0
  %8734 = vmatprep.subr.bf16.mxu0 0
  %8735 = vmatpush1.bf16.msra.mxu0 %v8247
  %8736 = vmatprep.subr.bf16.mxu0 0
  %8737 = vmatpush1.bf16.msra.mxu0 %v8248
  %8738 = vmatprep.subr.bf16.mxu0 0
  %8739 = vmatpush1.bf16.msra.mxu0 %v8249
  %8740 = vmatprep.subr.bf16.mxu0 0
  %8741 = vmatpush1.bf16.msra.mxu0 %v8250
  %8742 = vmatprep.subr.bf16.mxu0 0
  %8743 = vmatpush1.bf16.msra.mxu0 %v8251
  %8744 = vmatprep.subr.bf16.mxu0 0
  %8745 = vmatpush1.bf16.msra.mxu0 %v8252
  %8746 = vmatprep.subr.bf16.mxu0 0
  %8747 = vmatpush1.bf16.msra.mxu0 %v8253
  %8748 = vmatprep.subr.bf16.mxu0 0
  %8749 = vmatpush1.bf16.msra.mxu0 %v8254
  %8750 = vmatprep.subr.bf16.mxu0 0
  %8751 = vmatpush1.bf16.msra.mxu0 %v8255
  %8752 = vmatprep.subr.bf16.mxu0 0
  %8753 = vmatpush1.bf16.msra.mxu0 %v8256
  %8754 = vmatprep.subr.bf16.mxu0 0
  %8755 = vmatpush1.bf16.msra.mxu0 %v8257
  %8756 = vmatprep.subr.bf16.mxu0 0
  %8757 = vmatpush1.bf16.msra.mxu0 %v8258
  %8758 = vmatprep.subr.bf16.mxu0 0
  %8759 = vmatpush1.bf16.msra.mxu0 %v8259
  %8760 = vmatprep.subr.bf16.mxu0 0
  %8761 = vmatpush1.bf16.msra.mxu0 %v8260
  %8762 = vmatprep.subr.bf16.mxu0 0
  %8763 = vmatpush1.bf16.msra.mxu0 %v8261
  %8764 = vmatprep.subr.bf16.mxu0 0
  %8765 = vmatpush1.bf16.msra.mxu0 %v8262
  %8766 = vmatprep.mubr.bf16.mxu0 %v7599
  %8767 = vmatmul.mubr.bf16.gmra.mrb[0].mxu0 %v7598
  %v8768 = vpop.f32.mrb[0].mxu0
  %v8769 = vadd.f32 %v8720, %v8768
  %v8770 = vpop.f32.mrb[0].mxu0
  %v8771 = vpop.f32.mrb[0].mxu0
  %v8772 = vadd.f32 %v8723, %v8771
  %v8773 = vpop.f32.mrb[0].mxu0
  %8774 = vmatprep.mubr.bf16.mxu0 %v7615
  %8775 = vmatmul.mubr.bf16.gmra.mrb[0].mxu0 %v7614
  %v8776 = vpop.f32.mrb[0].mxu0
  %v8777 = vadd.f32 %v8728, %v8776
  %v8778 = vpop.f32.mrb[0].mxu0
  %v8779 = vpop.f32.mrb[0].mxu0
  %v8780 = vadd.f32 %v8731, %v8779
  %v8781 = vpop.f32.mrb[0].mxu0
  %8782 = vdwg.mxu0
  %v8783 = vadd.f32 %v6840, %v8769
  %v8784 = vadd.f32 %v6841, %v8772
  %v8785 = vadd.f32 %v6842, %v8777
  %v8786 = vadd.f32 %v6843, %v8780
  %v8787 = vsel %vm414, %v8783, 0.0
  %8788 = vadd.xlane.f32.xlu0 %v8787
  %v8789 = vpop.xlane.xlu0 %8788
  %v8790 = vsel %vm414, %v8784, 0.0
  %8791 = vadd.xlane.f32.xlu0 %v8790
  %v8792 = vpop.xlane.xlu0 %8791
  %v8793 = vsel %vm414, %v8785, 0.0
  %8794 = vadd.xlane.f32.xlu0 %v8793
  %v8795 = vpop.xlane.xlu0 %8794
  %v8796 = vsel %vm414, %v8786, 0.0
  %8797 = vadd.xlane.f32.xlu0 %v8796
  %v8798 = vpop.xlane.xlu0 %8797
  %v8799 = vmul.f32 %v8789, %v2402
  %v8800 = vmul.f32 %v8792, %v2402
  %v8801 = vmul.f32 %v8795, %v2402
  %v8802 = vmul.f32 %v8798, %v2402
  %v8803 = vsub.f32 %v8783, %v8799
  %v8804 = vsub.f32 %v8784, %v8800
  %v8805 = vsub.f32 %v8785, %v8801
  %v8806 = vsub.f32 %v8786, %v8802
  %v8807 = vmul.f32 %v8803, %v8803
  %v8808 = vmul.f32 %v8804, %v8804
  %v8809 = vmul.f32 %v8805, %v8805
  %v8810 = vmul.f32 %v8806, %v8806
  %v8811 = vsel %vm414, %v8807, 0.0
  %8812 = vadd.xlane.f32.xlu0 %v8811
  %v8813 = vpop.xlane.xlu0 %8812
  %v8814 = vsel %vm414, %v8808, 0.0
  %8815 = vadd.xlane.f32.xlu0 %v8814
  %v8816 = vpop.xlane.xlu0 %8815
  %v8817 = vsel %vm414, %v8809, 0.0
  %8818 = vadd.xlane.f32.xlu0 %v8817
  %v8819 = vpop.xlane.xlu0 %8818
  %v8820 = vsel %vm414, %v8810, 0.0
  %8821 = vadd.xlane.f32.xlu0 %v8820
  %v8822 = vpop.xlane.xlu0 %8821
  %v8823 = vmul.f32 %v8813, %v2402
  %v8824 = vmul.f32 %v8816, %v2402
  %v8825 = vmul.f32 %v8819, %v2402
  %v8826 = vmul.f32 %v8822, %v2402
  %v8827 = vadd.f32 %v8823, 1e-05
  %v8828 = vadd.f32 %v8824, 1e-05
  %v8829 = vadd.f32 %v8825, 1e-05
  %v8830 = vadd.f32 %v8826, 1e-05
  %v8831 = vrsqrt.pop %v8827
  %v8832 = vrsqrt.pop %v8828
  %v8833 = vrsqrt.pop %v8829
  %v8834 = vrsqrt.pop %v8830
  %v8835 = vmul.f32 %v8803, %v8831
  %v8836 = vmul.f32 %v8804, %v8832
  %v8837 = vmul.f32 %v8805, %v8833
  %v8838 = vmul.f32 %v8806, %v8834
  %v8839 = vld [vmem:[%s24] sm:$0x1]
  %v8841 = vlaneseq
  %v8842 = vshrl.u32 %v8841, 7
  %v8843 = vsub.s32 0, %v8842
  %v8844 = vrot.slane %v8839, %v8843
  %v8846 = vmul.f32 %v8835, %v8844
  %v8847 = vmul.f32 %v8836, %v8844
  %v8848 = vmul.f32 %v8837, %v8844
  %v8849 = vmul.f32 %v8838, %v8844
  %v8850 = vld [vmem:[%s25] sm:$0x1]
  %v8852 = vlaneseq
  %v8853 = vshrl.u32 %v8852, 7
  %v8854 = vsub.s32 0, %v8853
  %v8855 = vrot.slane %v8850, %v8854
  %v8857 = vadd.f32 %v8846, %v8855
  %v8858 = vadd.f32 %v8847, %v8855
  %v8859 = vadd.f32 %v8848, %v8855
  %v8860 = vadd.f32 %v8849, %v8855
  %v8861 = vsel %vm414, %v8857, 0.0
  %v8862 = vrot.slane %v8861, 4
  %v8863 = vadd.f32 %v8861, %v8862
  %v8864 = vrot.slane %v8863, 2
  %v8865 = vadd.f32 %v8863, %v8864
  %v8866 = vrot.slane %v8865, 1
  %v8867 = vadd.f32 %v8865, %v8866
  %v8868 = vsel %vm414, %v8858, 0.0
  %v8869 = vrot.slane %v8868, 4
  %v8870 = vadd.f32 %v8868, %v8869
  %v8871 = vrot.slane %v8870, 2
  %v8872 = vadd.f32 %v8870, %v8871
  %v8873 = vrot.slane %v8872, 1
  %v8874 = vadd.f32 %v8872, %v8873
  %v8875 = vsel %vm414, %v8859, 0.0
  %v8876 = vrot.slane %v8875, 4
  %v8877 = vadd.f32 %v8875, %v8876
  %v8878 = vrot.slane %v8877, 2
  %v8879 = vadd.f32 %v8877, %v8878
  %v8880 = vrot.slane %v8879, 1
  %v8881 = vadd.f32 %v8879, %v8880
  %v8882 = vsel %vm414, %v8860, 0.0
  %v8883 = vrot.slane %v8882, 4
  %v8884 = vadd.f32 %v8882, %v8883
  %v8885 = vrot.slane %v8884, 2
  %v8886 = vadd.f32 %v8884, %v8885
  %v8887 = vrot.slane %v8886, 1
  %v8888 = vadd.f32 %v8886, %v8887
  %v8889 = vrcp.pop 8.0
  %v8890 = vmul.f32 %v8867, %v8889
  %v8891 = vmul.f32 %v8874, %v8889
  %v8892 = vmul.f32 %v8881, %v8889
  %v8893 = vmul.f32 %v8888, %v8889
  %vm8898 = vcmask 1041409
  %v8899 = vsel %vm8898, %v8891, %v8890
  %vm8900 = vcmask 1042434
  %v8901 = vsel %vm8900, %v8892, %v8899
  %vm8902 = vcmask 1043459
  %v8903 = vsel %vm8902, %v8893, %v8901
  %vm8905 = vcmask 257024
  %8906 = vst.msk [vmem:[%s26] sm:$0xf] %vm8905, %v8903
  // Predicated region
  $region106: #{transformer_recommender.1} parent=0 // pred_check
    _
  $region107: #{transformer_recommender.1} parent=0 // pred_check_branch
    %8908 = sbr.rel (0) target = $region109
  $region108: #{transformer_recommender.1} parent=0 // pred_region
    _
  $region109: #{transformer_recommender.1} parent=0 // pred_fallthru
    _
  // Predicated region
  $region110: #{transformer_recommender.1} parent=0 // pred_check
    _
  $region111: #{transformer_recommender.1} parent=0 // pred_check_branch
    %8910 = sbr.rel (0) target = $region113
  $region112: #{transformer_recommender.1} parent=0 // pred_region
    _
  $region113: #{transformer_recommender.1} parent=0 // pred_fallthru
    _

</llo_original>
